<compile_context>
chip_gen: v6e
topology: v6e:2x2x1
jax: 0.10.0
libtpu: 0.0.40
codegen_flags: <defaults>
</compile_context>

<pallas_src>
import functools

import jax
import jax.numpy as jnp
from jax.experimental import pallas as pl
from jax.experimental.pallas import tpu as pltpu

EPS = 1e-5                      # nn.BatchNorm2d default
LANE = 128                      # TPU lane width
VMEM_LIMIT = 32 * 1024 * 1024   # scoped VMEM budget (re-derive for bigger tiles / v7x 64 MiB)


def _round_up(x, m):
    return (x + m - 1) // m * m


def _compiler_params():
    return pltpu.CompilerParams(
        dimension_semantics=("parallel",),   # batch grid axis -> both TCs on v7x
        vmem_limit_bytes=VMEM_LIMIT)


# ----------------------------------------------------------------------------
# Pallas kernels
# ----------------------------------------------------------------------------
def _conv1_shortcut_kernel(x_ref, w1_ref, b1_ref, ws_ref, bs_ref,
                           h1_ref, s_ref, st_ref, xpad_ref, *, H, W, Cin, Cp):
    """relu(conv1) + fused shortcut 1x1 conv + single-pass BN partial stats."""
    HW = H * W
    # Build the zero-padded ("same") input tile in VMEM -- no HBM im2col.
    xpad_ref[...] = jnp.zeros_like(xpad_ref)
    xpad_ref[1:H + 1, 1:W + 1, :] = x_ref[...]

    # conv1 = 9 accumulated MXU matmuls over shifted windows of the halo'd tile.
    acc = jnp.zeros((HW, Cp), jnp.float32)
    for kh in range(3):
        for kw in range(3):
            win = xpad_ref[kh:kh + H, kw:kw + W, :].reshape(HW, Cin)
            acc += jnp.dot(win, w1_ref[kh * 3 + kw],
                           preferred_element_type=jnp.float32)
    h = jnp.maximum(acc + b1_ref[...], 0.0)                       # bias + ReLU (f32)

    # shortcut 1x1 conv reuses the centre tap of the same tile (no extra x read).
    xc = xpad_ref[1:H + 1, 1:W + 1, :].reshape(HW, Cin)
    s = jnp.dot(xc, ws_ref[...], preferred_element_type=jnp.float32) + bs_ref[...]

    h1_ref[...] = h.astype(h1_ref.dtype)
    s_ref[...] = s.astype(s_ref.dtype)

    # Single-pass per-block BN partials (sum, sum of squares) for bn1 and bn_s.
    st_ref[0:1, :] = jnp.sum(h, axis=0, keepdims=True)
    st_ref[1:2, :] = jnp.sum(h * h, axis=0, keepdims=True)
    st_ref[2:3, :] = jnp.sum(s, axis=0, keepdims=True)
    st_ref[3:4, :] = jnp.sum(s * s, axis=0, keepdims=True)


def _bn_conv2_kernel(h1_ref, w2_ref, b2_ref, sc1_ref, of1_ref,
                     h2_ref, st_ref, hpad_ref, *, H, W, Cp):
    """apply folded bn1 -> relu(conv2) + single-pass BN partial stats."""
    HW = H * W
    # Folded bn1 affine (identity when BN=False), applied in f32 before padding
    # so the spatial halo stays exactly zero (matches 'same' padding of bn1(x)).
    h1n = h1_ref[...].astype(jnp.float32) * sc1_ref[...] + of1_ref[...]
    hpad_ref[...] = jnp.zeros_like(hpad_ref)
    hpad_ref[1:H + 1, 1:W + 1, :] = h1n.reshape(H, W, Cp).astype(hpad_ref.dtype)

    acc = jnp.zeros((HW, Cp), jnp.float32)
    for kh in range(3):
        for kw in range(3):
            win = hpad_ref[kh:kh + H, kw:kw + W, :].reshape(HW, Cp)
            acc += jnp.dot(win, w2_ref[kh * 3 + kw],
                           preferred_element_type=jnp.float32)
    h = jnp.maximum(acc + b2_ref[...], 0.0)

    h2_ref[...] = h.astype(h2_ref.dtype)
    st_ref[0:1, :] = jnp.sum(h, axis=0, keepdims=True)
    st_ref[1:2, :] = jnp.sum(h * h, axis=0, keepdims=True)


def _bn_add_kernel(h2_ref, s_ref, sc2_ref, of2_ref, scs_ref, ofs_ref, o_ref):
    """out = bn2(h2) + bn_s(s), elementwise; h2 buffer is aliased to out."""
    h2 = h2_ref[...].astype(jnp.float32) * sc2_ref[...] + of2_ref[...]
    s = s_ref[...].astype(jnp.float32) * scs_ref[...] + ofs_ref[...]
    o_ref[...] = (h2 + s).astype(o_ref.dtype)


# ----------------------------------------------------------------------------
# pallas_call wrappers
# ----------------------------------------------------------------------------
def conv1_shortcut(x_nhwc, w1, b1, ws, bs, *, Cp, mm_dtype):
    N, H, W, Cin = x_nhwc.shape
    HW = H * W
    kernel = functools.partial(_conv1_shortcut_kernel, H=H, W=W, Cin=Cin, Cp=Cp)
    out_shape = (
        jax.ShapeDtypeStruct((N, HW, Cp), mm_dtype),      # pre-BN relu(conv1)
        jax.ShapeDtypeStruct((N, HW, Cp), mm_dtype),      # pre-BN shortcut
        jax.ShapeDtypeStruct((N, 4, Cp), jnp.float32),    # per-block BN partials
    )
    return pl.pallas_call(
        kernel,
        out_shape=out_shape,
        grid=(N,),
        in_specs=[
            pl.BlockSpec((None, H, W, Cin), lambda n: (n, 0, 0, 0)),
            pl.BlockSpec((9, Cin, Cp), lambda n: (0, 0, 0)),
            pl.BlockSpec((1, Cp), lambda n: (0, 0)),
            pl.BlockSpec((Cin, Cp), lambda n: (0, 0)),
            pl.BlockSpec((1, Cp), lambda n: (0, 0)),
        ],
        out_specs=(
            pl.BlockSpec((None, HW, Cp), lambda n: (n, 0, 0)),
            pl.BlockSpec((None, HW, Cp), lambda n: (n, 0, 0)),
            pl.BlockSpec((None, 4, Cp), lambda n: (n, 0, 0)),
        ),
        scratch_shapes=[pltpu.VMEM((H + 2, W + 2, Cin), mm_dtype)],
        compiler_params=_compiler_params(),
    )(x_nhwc, w1, b1, ws, bs)


def bn_conv2(h1, w2, b2, sc1, of1, *, H, W, Cp, mm_dtype):
    N = h1.shape[0]
    HW = H * W
    kernel = functools.partial(_bn_conv2_kernel, H=H, W=W, Cp=Cp)
    out_shape = (
        jax.ShapeDtypeStruct((N, HW, Cp), mm_dtype),      # pre-BN relu(conv2)
        jax.ShapeDtypeStruct((N, 2, Cp), jnp.float32),    # per-block BN partials
    )
    return pl.pallas_call(
        kernel,
        out_shape=out_shape,
        grid=(N,),
        in_specs=[
            pl.BlockSpec((None, HW, Cp), lambda n: (n, 0, 0)),
            pl.BlockSpec((9, Cp, Cp), lambda n: (0, 0, 0)),
            pl.BlockSpec((1, Cp), lambda n: (0, 0)),
            pl.BlockSpec((1, Cp), lambda n: (0, 0)),
            pl.BlockSpec((1, Cp), lambda n: (0, 0)),
        ],
        out_specs=(
            pl.BlockSpec((None, HW, Cp), lambda n: (n, 0, 0)),
            pl.BlockSpec((None, 2, Cp), lambda n: (n, 0, 0)),
        ),
        scratch_shapes=[pltpu.VMEM((H + 2, W + 2, Cp), mm_dtype)],
        compiler_params=_compiler_params(),
    )(h1, w2, b2, sc1, of1)


def bn_add(h2, s, sc2, of2, scs, ofs):
    N, HW, Cp = h2.shape
    return pl.pallas_call(
        _bn_add_kernel,
        out_shape=jax.ShapeDtypeStruct((N, HW, Cp), h2.dtype),
        grid=(N,),
        in_specs=[
            pl.BlockSpec((None, HW, Cp), lambda n: (n, 0, 0)),
            pl.BlockSpec((None, HW, Cp), lambda n: (n, 0, 0)),
            pl.BlockSpec((1, Cp), lambda n: (0, 0)),
            pl.BlockSpec((1, Cp), lambda n: (0, 0)),
            pl.BlockSpec((1, Cp), lambda n: (0, 0)),
            pl.BlockSpec((1, Cp), lambda n: (0, 0)),
        ],
        out_specs=pl.BlockSpec((None, HW, Cp), lambda n: (n, 0, 0)),
        input_output_aliases={0: 0},            # update h2's buffer in place
        compiler_params=_compiler_params(),
    )(h2, s, sc2, of2, scs, ofs)


# ----------------------------------------------------------------------------
# Glue: weight prep, BN stat folding, full forward
# ----------------------------------------------------------------------------
def _prep_conv_w(w_oihw, cin_pad, cout_pad, dtype):
    """(Cout, Cin, KH, KW) -> (KH*KW, cin_pad, cout_pad), zero-padded, tap-major."""
    cout, cin, kh, kw = w_oihw.shape
    w = jnp.transpose(w_oihw, (2, 3, 1, 0)).reshape(kh * kw, cin, cout)
    w = jnp.pad(w, ((0, 0), (0, cin_pad - cin), (0, cout_pad - cout)))
    return w.astype(dtype)


def _pad_c(v, cp, fill=0.0):
    v = v.astype(jnp.float32)
    return jnp.pad(v, (0, cp - v.shape[0]), constant_values=fill)


def _fold_bn(sum_, sumsq, count, gamma, beta):
    """Fold batch-stat BN into a per-channel (scale, offset), single-pass stats."""
    mean = sum_ / count
    var = jnp.maximum(sumsq / count - mean * mean, 0.0)   # biased var, E[x^2]-E[x]^2
    scale = gamma * jax.lax.rsqrt(var + EPS)
    offset = beta - mean * scale
    return (scale.reshape(1, -1).astype(jnp.float32),
            offset.reshape(1, -1).astype(jnp.float32))


def conv_res_forward(x_nchw, params, BN, mm_dtype=jnp.bfloat16):
    N, Cin, H, W = x_nchw.shape
    Cout = params["w1"].shape[0]
    Cp = _round_up(Cout, LANE)      # lane-dense channel padding (no-op when Cout%128==0)
    M = N * H * W

    x_nhwc = jnp.transpose(x_nchw, (0, 2, 3, 1)).astype(mm_dtype)

    w1 = _prep_conv_w(params["w1"], Cin, Cp, mm_dtype)                 # (9, Cin, Cp)
    w2 = _prep_conv_w(params["w2"], Cp, Cp, mm_dtype)                  # (9, Cp,  Cp)
    ws = _prep_conv_w(params["ws"], Cin, Cp, mm_dtype).reshape(Cin, Cp)
    b1 = _pad_c(params["b1"], Cp).reshape(1, Cp)
    b2 = _pad_c(params["b2"], Cp).reshape(1, Cp)
    bs = _pad_c(params["bs"], Cp).reshape(1, Cp)

    # ---- kernel 1: relu(conv1) + fused shortcut + partial BN stats -------------
    h1, s, st1 = conv1_shortcut(x_nhwc, w1, b1, ws, bs, Cp=Cp, mm_dtype=mm_dtype)
    st1 = jnp.sum(st1, axis=0)                       # (4, Cp) cross-block totals (tiny)

    if BN:
        sc1, of1 = _fold_bn(st1[0], st1[1], M, _pad_c(params["g1"], Cp, 1.0),
                            _pad_c(params["be1"], Cp))
    else:
        sc1 = jnp.ones((1, Cp), jnp.float32)
        of1 = jnp.zeros((1, Cp), jnp.float32)
    scs, ofs = _fold_bn(st1[2], st1[3], M, _pad_c(params["gs"], Cp, 1.0),
                        _pad_c(params["bes"], Cp))   # shortcut BN is always applied

    # ---- kernel 2: apply folded bn1 -> relu(conv2) + partial BN stats ----------
    h2, st2 = bn_conv2(h1, w2, b2, sc1, of1, H=H, W=W, Cp=Cp, mm_dtype=mm_dtype)
    st2 = jnp.sum(st2, axis=0)

    if BN:
        sc2, of2 = _fold_bn(st2[0], st2[1], M, _pad_c(params["g2"], Cp, 1.0),
                            _pad_c(params["be2"], Cp))
    else:
        sc2 = jnp.ones((1, Cp), jnp.float32)
        of2 = jnp.zeros((1, Cp), jnp.float32)

    # ---- kernel 3: out = bn2(h2) + bn_s(s), in place over h2's buffer ----------
    # TODO(synk): with BN=False this epilogue could be fused into kernel 2; with
    # BN=True the bn2 batch stats are only final after the full grid, so it stays.
    out = bn_add(h2, s, sc2, of2, scs, ofs)          # (N, H*W, Cp) mm_dtype

    out = out.reshape(N, H, W, Cp)[..., :Cout].astype(jnp.float32)
    return jnp.transpose(out, (0, 3, 1, 2))          # back to NCHW


# ----------------------------------------------------------------------------
# Pure-JAX reference (verification only)
# ----------------------------------------------------------------------------
def conv_res_reference(x_nchw, params, BN):
    def conv(x, w, b):
        y = jax.lax.conv_general_dilated(
            x, w, (1, 1), "SAME", dimension_numbers=("NCHW", "OIHW", "NCHW"))
        return y + b[None, :, None, None]

    def bn(x, g, be):
        mean = x.mean(axis=(0, 2, 3), keepdims=True)
        var = ((x - mean) ** 2).mean(axis=(0, 2, 3), keepdims=True)
        xn = (x - mean) * jax.lax.rsqrt(var + EPS)
        return xn * g[None, :, None, None] + be[None, :, None, None]

    h = jax.nn.relu(conv(x_nchw, params["w1"], params["b1"]))
    if BN:
        h = bn(h, params["g1"], params["be1"])
    h = jax.nn.relu(conv(h, params["w2"], params["b2"]))
    if BN:
        h = bn(h, params["g2"], params["be2"])
    s = bn(conv(x_nchw, params["ws"], params["bs"]), params["gs"], params["bes"])
    return h + s


# ----------------------------------------------------------------------------
# Deterministic parameter init (shapes per ConvRes.__init__)
# ----------------------------------------------------------------------------
def init_params(key, in_channels, out_channels, k=3):
    ks = jax.random.split(key, 6)

    def xavier_normal(kk, shape):
        fan_in = shape[1] * shape[2] * shape[3]
        fan_out = shape[0] * shape[2] * shape[3]
        std = (2.0 / (fan_in + fan_out)) ** 0.5
        return std * jax.random.normal(kk, shape, jnp.float32)

    def bias(kk, n, fan_in):
        bound = 1.0 / (fan_in ** 0.5)
        return jax.random.uniform(kk, (n,), jnp.float32, -bound, bound)

    return dict(
        w1=xavier_normal(ks[0], (out_channels, in_channels, k, k)),
        b1=bias(ks[1], out_channels, in_channels * k * k),
        w2=xavier_normal(ks[2], (out_channels, out_channels, k, k)),
        b2=bias(ks[3], out_channels, out_channels * k * k),
        ws=xavier_normal(ks[4], (out_channels, in_channels, 1, 1)),
        bs=bias(ks[5], out_channels, in_channels),
        g1=jnp.ones(out_channels), be1=jnp.zeros(out_channels),
        g2=jnp.ones(out_channels), be2=jnp.zeros(out_channels),
        gs=jnp.ones(out_channels), bes=jnp.zeros(out_channels),
    )


if __name__ == "__main__":
    N, Cin, Cout, H, W = 2, 4, 8, 16, 16
    BN = True

    key = jax.random.PRNGKey(0)
    kx, kp = jax.random.split(key)
    x = jax.random.normal(kx, (N, Cin, H, W), jnp.float32)
    params = init_params(kp, Cin, Cout)

    fwd = jax.jit(conv_res_forward, static_argnums=(2, 3))

    # Primary (performance) config: bf16 MXU operands, f32 accumulation / BN math.
    out_bf16 = jax.block_until_ready(fwd(x, params, BN, jnp.bfloat16))
    # f32 operand path, kept for tight numerical verification.
    out_f32 = jax.block_until_ready(fwd(x, params, BN, jnp.float32))

    ref = jax.block_until_ready(conv_res_reference(x, params, BN))

    assert out_bf16.shape == (N, Cout, H, W)
    assert out_f32.shape == (N, Cout, H, W)
    assert jnp.allclose(out_f32, ref, rtol=2e-3, atol=2e-3), \
        f"f32 path max abs err {jnp.max(jnp.abs(out_f32 - ref))}"
    assert jnp.allclose(out_bf16, ref, rtol=5e-2, atol=3e-1), \
        f"bf16 path max abs err {jnp.max(jnp.abs(out_bf16 - ref))}"

    print("KERNEL_OK")
</pallas_src>

<mosaic_0001>
module attributes {stable_mosaic.version = 11 : i64} {
  func.func @_conv1_shortcut_kernel(%arg0: i32, %arg1: memref<1x16x16x4xbf16, #tpu.memory_space<vmem>>, %arg2: memref<9x4x128xbf16, #tpu.memory_space<vmem>>, %arg3: memref<1x128xf32, #tpu.memory_space<vmem>>, %arg4: memref<4x128xbf16, #tpu.memory_space<vmem>>, %arg5: memref<1x128xf32, #tpu.memory_space<vmem>>, %arg6: memref<1x256x128xbf16, #tpu.memory_space<vmem>>, %arg7: memref<1x256x128xbf16, #tpu.memory_space<vmem>>, %arg8: memref<1x4x128xf32, #tpu.memory_space<vmem>>, %arg9: memref<18x18x4xbf16, #tpu.memory_space<vmem>>) attributes {dimension_semantics = [#tpu.dimension_semantics<parallel>], iteration_bounds = array<i64: 2>, scalar_prefetch = 0 : i64, scratch_operands = 1 : i64, tpu.core_type = #tpu.core_type<tc>, window_params = [{transform_indices = @transform_0, window_bounds = array<i64: 1, 16, 16, 4>}, {pipeline_mode = #tpu.pipeline_mode<synchronous>, transform_indices = @transform_1, window_bounds = array<i64: 9, 4, 128>}, {pipeline_mode = #tpu.pipeline_mode<synchronous>, transform_indices = @transform_2, window_bounds = array<i64: 1, 128>}, {pipeline_mode = #tpu.pipeline_mode<synchronous>, transform_indices = @transform_3, window_bounds = array<i64: 4, 128>}, {pipeline_mode = #tpu.pipeline_mode<synchronous>, transform_indices = @transform_4, window_bounds = array<i64: 1, 128>}, {transform_indices = @transform_5, window_bounds = array<i64: 1, 256, 128>}, {transform_indices = @transform_6, window_bounds = array<i64: 1, 256, 128>}, {transform_indices = @transform_7, window_bounds = array<i64: 1, 4, 128>}]} {
    %cst = arith.constant 0.000000e+00 : bf16
    %0 = vector.broadcast %cst : bf16 to vector<18x18x4xbf16>
    %c0 = arith.constant 0 : index
    %c0_0 = arith.constant 0 : index
    %c0_1 = arith.constant 0 : index
    %1 = vector.load %arg9[%c0, %c0_0, %c0_1] : memref<18x18x4xbf16, #tpu.memory_space<vmem>>, vector<18x18x4xbf16>
    tpu.vector_store %arg9[%c0, %c0_0, %c0_1], %0 {strides = array<i32>} : memref<18x18x4xbf16, #tpu.memory_space<vmem>>, vector<18x18x4xbf16>,
    %c0_2 = arith.constant 0 : index
    %c0_3 = arith.constant 0 : index
    %c0_4 = arith.constant 0 : index
    %c0_5 = arith.constant 0 : index
    %2 = vector.load %arg1[%c0_2, %c0_3, %c0_4, %c0_5] : memref<1x16x16x4xbf16, #tpu.memory_space<vmem>>, vector<1x16x16x4xbf16>
    %3 = vector.shape_cast %2 : vector<1x16x16x4xbf16> to vector<16x16x4xbf16>
    %c1 = arith.constant 1 : index
    %c1_6 = arith.constant 1 : index
    %c0_7 = arith.constant 0 : index
    %4 = vector.load %arg9[%c1, %c1_6, %c0_7] : memref<18x18x4xbf16, #tpu.memory_space<vmem>>, vector<16x16x4xbf16>
    tpu.vector_store %arg9[%c1, %c1_6, %c0_7], %3 {strides = array<i32>} : memref<18x18x4xbf16, #tpu.memory_space<vmem>>, vector<16x16x4xbf16>,
    %cst_8 = arith.constant 0.000000e+00 : f32
    %5 = vector.broadcast %cst_8 : f32 to vector<256x128xf32>
    %c0_9 = arith.constant 0 : index
    %c0_10 = arith.constant 0 : index
    %c0_11 = arith.constant 0 : index
    %6 = vector.load %arg9[%c0_9, %c0_10, %c0_11] : memref<18x18x4xbf16, #tpu.memory_space<vmem>>, vector<16x16x4xbf16>
    %7 = vector.shape_cast %6 : vector<16x16x4xbf16> to vector<256x4xbf16>
    %c0_12 = arith.constant 0 : index
    %c0_13 = arith.constant 0 : index
    %c0_14 = arith.constant 0 : index
    %8 = vector.load %arg2[%c0_12, %c0_13, %c0_14] : memref<9x4x128xbf16, #tpu.memory_space<vmem>>, vector<1x4x128xbf16>
    %9 = vector.shape_cast %8 : vector<1x4x128xbf16> to vector<4x128xbf16>
    %cst_15 = arith.constant dense<0.000000e+00> : vector<256x128xf32>
    %10 = tpu.matmul %7, %9, %cst_15 {dimension_numbers = #tpu.dot_dimension_numbers<[1], [0], [0], [1], [0, 0, 1, 1], [], []>} : vector<256x4xbf16>, vector<4x128xbf16>, vector<256x128xf32> -> vector<256x128xf32>
    %11 = arith.addf %5, %10 : vector<256x128xf32>
    %c0_16 = arith.constant 0 : index
    %c1_17 = arith.constant 1 : index
    %c0_18 = arith.constant 0 : index
    %12 = vector.load %arg9[%c0_16, %c1_17, %c0_18] : memref<18x18x4xbf16, #tpu.memory_space<vmem>>, vector<16x16x4xbf16>
    %13 = vector.shape_cast %12 : vector<16x16x4xbf16> to vector<256x4xbf16>
    %c1_19 = arith.constant 1 : index
    %c0_20 = arith.constant 0 : index
    %c0_21 = arith.constant 0 : index
    %14 = vector.load %arg2[%c1_19, %c0_20, %c0_21] : memref<9x4x128xbf16, #tpu.memory_space<vmem>>, vector<1x4x128xbf16>
    %15 = vector.shape_cast %14 : vector<1x4x128xbf16> to vector<4x128xbf16>
    %cst_22 = arith.constant dense<0.000000e+00> : vector<256x128xf32>
    %16 = tpu.matmul %13, %15, %cst_22 {dimension_numbers = #tpu.dot_dimension_numbers<[1], [0], [0], [1], [0, 0, 1, 1], [], []>} : vector<256x4xbf16>, vector<4x128xbf16>, vector<256x128xf32> -> vector<256x128xf32>
    %17 = arith.addf %11, %16 : vector<256x128xf32>
    %c0_23 = arith.constant 0 : index
    %c2 = arith.constant 2 : index
    %c0_24 = arith.constant 0 : index
    %18 = vector.load %arg9[%c0_23, %c2, %c0_24] : memref<18x18x4xbf16, #tpu.memory_space<vmem>>, vector<16x16x4xbf16>
    %19 = vector.shape_cast %18 : vector<16x16x4xbf16> to vector<256x4xbf16>
    %c2_25 = arith.constant 2 : index
    %c0_26 = arith.constant 0 : index
    %c0_27 = arith.constant 0 : index
    %20 = vector.load %arg2[%c2_25, %c0_26, %c0_27] : memref<9x4x128xbf16, #tpu.memory_space<vmem>>, vector<1x4x128xbf16>
    %21 = vector.shape_cast %20 : vector<1x4x128xbf16> to vector<4x128xbf16>
    %cst_28 = arith.constant dense<0.000000e+00> : vector<256x128xf32>
    %22 = tpu.matmul %19, %21, %cst_28 {dimension_numbers = #tpu.dot_dimension_numbers<[1], [0], [0], [1], [0, 0, 1, 1], [], []>} : vector<256x4xbf16>, vector<4x128xbf16>, vector<256x128xf32> -> vector<256x128xf32>
    %23 = arith.addf %17, %22 : vector<256x128xf32>
    %c1_29 = arith.constant 1 : index
    %c0_30 = arith.constant 0 : index
    %c0_31 = arith.constant 0 : index
    %24 = vector.load %arg9[%c1_29, %c0_30, %c0_31] : memref<18x18x4xbf16, #tpu.memory_space<vmem>>, vector<16x16x4xbf16>
    %25 = vector.shape_cast %24 : vector<16x16x4xbf16> to vector<256x4xbf16>
    %c3 = arith.constant 3 : index
    %c0_32 = arith.constant 0 : index
    %c0_33 = arith.constant 0 : index
    %26 = vector.load %arg2[%c3, %c0_32, %c0_33] : memref<9x4x128xbf16, #tpu.memory_space<vmem>>, vector<1x4x128xbf16>
    %27 = vector.shape_cast %26 : vector<1x4x128xbf16> to vector<4x128xbf16>
    %cst_34 = arith.constant dense<0.000000e+00> : vector<256x128xf32>
    %28 = tpu.matmul %25, %27, %cst_34 {dimension_numbers = #tpu.dot_dimension_numbers<[1], [0], [0], [1], [0, 0, 1, 1], [], []>} : vector<256x4xbf16>, vector<4x128xbf16>, vector<256x128xf32> -> vector<256x128xf32>
    %29 = arith.addf %23, %28 : vector<256x128xf32>
    %c1_35 = arith.constant 1 : index
    %c1_36 = arith.constant 1 : index
    %c0_37 = arith.constant 0 : index
    %30 = vector.load %arg9[%c1_35, %c1_36, %c0_37] : memref<18x18x4xbf16, #tpu.memory_space<vmem>>, vector<16x16x4xbf16>
    %31 = vector.shape_cast %30 : vector<16x16x4xbf16> to vector<256x4xbf16>
    %c4 = arith.constant 4 : index
    %c0_38 = arith.constant 0 : index
    %c0_39 = arith.constant 0 : index
    %32 = vector.load %arg2[%c4, %c0_38, %c0_39] : memref<9x4x128xbf16, #tpu.memory_space<vmem>>, vector<1x4x128xbf16>
    %33 = vector.shape_cast %32 : vector<1x4x128xbf16> to vector<4x128xbf16>
    %cst_40 = arith.constant dense<0.000000e+00> : vector<256x128xf32>
    %34 = tpu.matmul %31, %33, %cst_40 {dimension_numbers = #tpu.dot_dimension_numbers<[1], [0], [0], [1], [0, 0, 1, 1], [], []>} : vector<256x4xbf16>, vector<4x128xbf16>, vector<256x128xf32> -> vector<256x128xf32>
    %35 = arith.addf %29, %34 : vector<256x128xf32>
    %c1_41 = arith.constant 1 : index
    %c2_42 = arith.constant 2 : index
    %c0_43 = arith.constant 0 : index
    %36 = vector.load %arg9[%c1_41, %c2_42, %c0_43] : memref<18x18x4xbf16, #tpu.memory_space<vmem>>, vector<16x16x4xbf16>
    %37 = vector.shape_cast %36 : vector<16x16x4xbf16> to vector<256x4xbf16>
    %c5 = arith.constant 5 : index
    %c0_44 = arith.constant 0 : index
    %c0_45 = arith.constant 0 : index
    %38 = vector.load %arg2[%c5, %c0_44, %c0_45] : memref<9x4x128xbf16, #tpu.memory_space<vmem>>, vector<1x4x128xbf16>
    %39 = vector.shape_cast %38 : vector<1x4x128xbf16> to vector<4x128xbf16>
    %cst_46 = arith.constant dense<0.000000e+00> : vector<256x128xf32>
    %40 = tpu.matmul %37, %39, %cst_46 {dimension_numbers = #tpu.dot_dimension_numbers<[1], [0], [0], [1], [0, 0, 1, 1], [], []>} : vector<256x4xbf16>, vector<4x128xbf16>, vector<256x128xf32> -> vector<256x128xf32>
    %41 = arith.addf %35, %40 : vector<256x128xf32>
    %c2_47 = arith.constant 2 : index
    %c0_48 = arith.constant 0 : index
    %c0_49 = arith.constant 0 : index
    %42 = vector.load %arg9[%c2_47, %c0_48, %c0_49] : memref<18x18x4xbf16, #tpu.memory_space<vmem>>, vector<16x16x4xbf16>
    %43 = vector.shape_cast %42 : vector<16x16x4xbf16> to vector<256x4xbf16>
    %c6 = arith.constant 6 : index
    %c0_50 = arith.constant 0 : index
    %c0_51 = arith.constant 0 : index
    %44 = vector.load %arg2[%c6, %c0_50, %c0_51] : memref<9x4x128xbf16, #tpu.memory_space<vmem>>, vector<1x4x128xbf16>
    %45 = vector.shape_cast %44 : vector<1x4x128xbf16> to vector<4x128xbf16>
    %cst_52 = arith.constant dense<0.000000e+00> : vector<256x128xf32>
    %46 = tpu.matmul %43, %45, %cst_52 {dimension_numbers = #tpu.dot_dimension_numbers<[1], [0], [0], [1], [0, 0, 1, 1], [], []>} : vector<256x4xbf16>, vector<4x128xbf16>, vector<256x128xf32> -> vector<256x128xf32>
    %47 = arith.addf %41, %46 : vector<256x128xf32>
    %c2_53 = arith.constant 2 : index
    %c1_54 = arith.constant 1 : index
    %c0_55 = arith.constant 0 : index
    %48 = vector.load %arg9[%c2_53, %c1_54, %c0_55] : memref<18x18x4xbf16, #tpu.memory_space<vmem>>, vector<16x16x4xbf16>
    %49 = vector.shape_cast %48 : vector<16x16x4xbf16> to vector<256x4xbf16>
    %c7 = arith.constant 7 : index
    %c0_56 = arith.constant 0 : index
    %c0_57 = arith.constant 0 : index
    %50 = vector.load %arg2[%c7, %c0_56, %c0_57] : memref<9x4x128xbf16, #tpu.memory_space<vmem>>, vector<1x4x128xbf16>
    %51 = vector.shape_cast %50 : vector<1x4x128xbf16> to vector<4x128xbf16>
    %cst_58 = arith.constant dense<0.000000e+00> : vector<256x128xf32>
    %52 = tpu.matmul %49, %51, %cst_58 {dimension_numbers = #tpu.dot_dimension_numbers<[1], [0], [0], [1], [0, 0, 1, 1], [], []>} : vector<256x4xbf16>, vector<4x128xbf16>, vector<256x128xf32> -> vector<256x128xf32>
    %53 = arith.addf %47, %52 : vector<256x128xf32>
    %c2_59 = arith.constant 2 : index
    %c2_60 = arith.constant 2 : index
    %c0_61 = arith.constant 0 : index
    %54 = vector.load %arg9[%c2_59, %c2_60, %c0_61] : memref<18x18x4xbf16, #tpu.memory_space<vmem>>, vector<16x16x4xbf16>
    %55 = vector.shape_cast %54 : vector<16x16x4xbf16> to vector<256x4xbf16>
    %c8 = arith.constant 8 : index
    %c0_62 = arith.constant 0 : index
    %c0_63 = arith.constant 0 : index
    %56 = vector.load %arg2[%c8, %c0_62, %c0_63] : memref<9x4x128xbf16, #tpu.memory_space<vmem>>, vector<1x4x128xbf16>
    %57 = vector.shape_cast %56 : vector<1x4x128xbf16> to vector<4x128xbf16>
    %cst_64 = arith.constant dense<0.000000e+00> : vector<256x128xf32>
    %58 = tpu.matmul %55, %57, %cst_64 {dimension_numbers = #tpu.dot_dimension_numbers<[1], [0], [0], [1], [0, 0, 1, 1], [], []>} : vector<256x4xbf16>, vector<4x128xbf16>, vector<256x128xf32> -> vector<256x128xf32>
    %59 = arith.addf %53, %58 : vector<256x128xf32>
    %c0_65 = arith.constant 0 : index
    %c0_66 = arith.constant 0 : index
    %60 = vector.load %arg3[%c0_65, %c0_66] : memref<1x128xf32, #tpu.memory_space<vmem>>, vector<1x128xf32>
    %61 = vector.broadcast %60 : vector<1x128xf32> to vector<256x128xf32>
    %62 = arith.addf %59, %61 : vector<256x128xf32>
    %cst_67 = arith.constant 0.000000e+00 : f32
    %63 = vector.broadcast %cst_67 : f32 to vector<256x128xf32>
    %64 = arith.maximumf %62, %63 : vector<256x128xf32>
    %c1_68 = arith.constant 1 : index
    %c1_69 = arith.constant 1 : index
    %c0_70 = arith.constant 0 : index
    %65 = vector.load %arg9[%c1_68, %c1_69, %c0_70] : memref<18x18x4xbf16, #tpu.memory_space<vmem>>, vector<16x16x4xbf16>
    %66 = vector.shape_cast %65 : vector<16x16x4xbf16> to vector<256x4xbf16>
    %c0_71 = arith.constant 0 : index
    %c0_72 = arith.constant 0 : index
    %67 = vector.load %arg4[%c0_71, %c0_72] : memref<4x128xbf16, #tpu.memory_space<vmem>>, vector<4x128xbf16>
    %cst_73 = arith.constant dense<0.000000e+00> : vector<256x128xf32>
    %68 = tpu.matmul %66, %67, %cst_73 {dimension_numbers = #tpu.dot_dimension_numbers<[1], [0], [0], [1], [0, 0, 1, 1], [], []>} : vector<256x4xbf16>, vector<4x128xbf16>, vector<256x128xf32> -> vector<256x128xf32>
    %c0_74 = arith.constant 0 : index
    %c0_75 = arith.constant 0 : index
    %69 = vector.load %arg5[%c0_74, %c0_75] : memref<1x128xf32, #tpu.memory_space<vmem>>, vector<1x128xf32>
    %70 = vector.broadcast %69 : vector<1x128xf32> to vector<256x128xf32>
    %71 = arith.addf %68, %70 : vector<256x128xf32>
    %72 = arith.truncf %64 : vector<256x128xf32> to vector<256x128xbf16>
    %c0_76 = arith.constant 0 : index
    %c0_77 = arith.constant 0 : index
    %c0_78 = arith.constant 0 : index
    %73 = vector.load %arg6[%c0_76, %c0_77, %c0_78] : memref<1x256x128xbf16, #tpu.memory_space<vmem>>, vector<1x256x128xbf16>
    %74 = vector.shape_cast %73 : vector<1x256x128xbf16> to vector<256x128xbf16>
    %75 = vector.shape_cast %72 : vector<256x128xbf16> to vector<1x256x128xbf16>
    tpu.vector_store %arg6[%c0_76, %c0_77, %c0_78], %75 {strides = array<i32>} : memref<1x256x128xbf16, #tpu.memory_space<vmem>>, vector<1x256x128xbf16>,
    %76 = arith.truncf %71 : vector<256x128xf32> to vector<256x128xbf16>
    %c0_79 = arith.constant 0 : index
    %c0_80 = arith.constant 0 : index
    %c0_81 = arith.constant 0 : index
    %77 = vector.load %arg7[%c0_79, %c0_80, %c0_81] : memref<1x256x128xbf16, #tpu.memory_space<vmem>>, vector<1x256x128xbf16>
    %78 = vector.shape_cast %77 : vector<1x256x128xbf16> to vector<256x128xbf16>
    %79 = vector.shape_cast %76 : vector<256x128xbf16> to vector<1x256x128xbf16>
    tpu.vector_store %arg7[%c0_79, %c0_80, %c0_81], %79 {strides = array<i32>} : memref<1x256x128xbf16, #tpu.memory_space<vmem>>, vector<1x256x128xbf16>,
    %cst_82 = arith.constant dense<0.000000e+00> : vector<128xf32>
    %80 = vector.multi_reduction <add>, %64, %cst_82 [0] : vector<256x128xf32> to vector<128xf32>
    %81 = vector.shape_cast %80 : vector<128xf32> to vector<1x128xf32>
    %c0_83 = arith.constant 0 : index
    %c0_84 = arith.constant 0 : index
    %c0_85 = arith.constant 0 : index
    %82 = vector.load %arg8[%c0_83, %c0_84, %c0_85] : memref<1x4x128xf32, #tpu.memory_space<vmem>>, vector<1x1x128xf32>
    %83 = vector.shape_cast %82 : vector<1x1x128xf32> to vector<1x128xf32>
    %84 = vector.shape_cast %81 : vector<1x128xf32> to vector<1x1x128xf32>
    tpu.vector_store %arg8[%c0_83, %c0_84, %c0_85], %84 {strides = array<i32>} : memref<1x4x128xf32, #tpu.memory_space<vmem>>, vector<1x1x128xf32>,
    %85 = arith.mulf %64, %64 : vector<256x128xf32>
    %cst_86 = arith.constant dense<0.000000e+00> : vector<128xf32>
    %86 = vector.multi_reduction <add>, %85, %cst_86 [0] : vector<256x128xf32> to vector<128xf32>
    %87 = vector.shape_cast %86 : vector<128xf32> to vector<1x128xf32>
    %c0_87 = arith.constant 0 : index
    %c1_88 = arith.constant 1 : index
    %c0_89 = arith.constant 0 : index
    %88 = vector.load %arg8[%c0_87, %c1_88, %c0_89] : memref<1x4x128xf32, #tpu.memory_space<vmem>>, vector<1x1x128xf32>
    %89 = vector.shape_cast %88 : vector<1x1x128xf32> to vector<1x128xf32>
    %90 = vector.shape_cast %87 : vector<1x128xf32> to vector<1x1x128xf32>
    tpu.vector_store %arg8[%c0_87, %c1_88, %c0_89], %90 {strides = array<i32>} : memref<1x4x128xf32, #tpu.memory_space<vmem>>, vector<1x1x128xf32>,
    %cst_90 = arith.constant dense<0.000000e+00> : vector<128xf32>
    %91 = vector.multi_reduction <add>, %71, %cst_90 [0] : vector<256x128xf32> to vector<128xf32>
    %92 = vector.shape_cast %91 : vector<128xf32> to vector<1x128xf32>
    %c0_91 = arith.constant 0 : index
    %c2_92 = arith.constant 2 : index
    %c0_93 = arith.constant 0 : index
    %93 = vector.load %arg8[%c0_91, %c2_92, %c0_93] : memref<1x4x128xf32, #tpu.memory_space<vmem>>, vector<1x1x128xf32>
    %94 = vector.shape_cast %93 : vector<1x1x128xf32> to vector<1x128xf32>
    %95 = vector.shape_cast %92 : vector<1x128xf32> to vector<1x1x128xf32>
    tpu.vector_store %arg8[%c0_91, %c2_92, %c0_93], %95 {strides = array<i32>} : memref<1x4x128xf32, #tpu.memory_space<vmem>>, vector<1x1x128xf32>,
    %96 = arith.mulf %71, %71 : vector<256x128xf32>
    %cst_94 = arith.constant dense<0.000000e+00> : vector<128xf32>
    %97 = vector.multi_reduction <add>, %96, %cst_94 [0] : vector<256x128xf32> to vector<128xf32>
    %98 = vector.shape_cast %97 : vector<128xf32> to vector<1x128xf32>
    %c0_95 = arith.constant 0 : index
    %c3_96 = arith.constant 3 : index
    %c0_97 = arith.constant 0 : index
    %99 = vector.load %arg8[%c0_95, %c3_96, %c0_97] : memref<1x4x128xf32, #tpu.memory_space<vmem>>, vector<1x1x128xf32>
    %100 = vector.shape_cast %99 : vector<1x1x128xf32> to vector<1x128xf32>
    %101 = vector.shape_cast %98 : vector<1x128xf32> to vector<1x1x128xf32>
    tpu.vector_store %arg8[%c0_95, %c3_96, %c0_97], %101 {strides = array<i32>} : memref<1x4x128xf32, #tpu.memory_space<vmem>>, vector<1x1x128xf32>,
    return
  }
  func.func @transform_0(%arg0: i32) -> (i32, i32, i32, i32) {
    %c0_i32 = arith.constant 0 : i32
    %c0_i32_0 = arith.constant 0 : i32
    %c0_i32_1 = arith.constant 0 : i32
    %c0_i32_2 = arith.constant 0 : i32
    return %arg0, %c0_i32, %c0_i32_0, %c0_i32_1 : i32, i32, i32, i32
  }
  func.func @transform_1(%arg0: i32) -> (i32, i32, i32) {
    %c0_i32 = arith.constant 0 : i32
    %c0_i32_0 = arith.constant 0 : i32
    %c0_i32_1 = arith.constant 0 : i32
    %c0_i32_2 = arith.constant 0 : i32
    return %c0_i32, %c0_i32_0, %c0_i32_1 : i32, i32, i32
  }
  func.func @transform_2(%arg0: i32) -> (i32, i32) {
    %c0_i32 = arith.constant 0 : i32
    %c0_i32_0 = arith.constant 0 : i32
    %c0_i32_1 = arith.constant 0 : i32
    return %c0_i32, %c0_i32_0 : i32, i32
  }
  func.func @transform_3(%arg0: i32) -> (i32, i32) {
    %c0_i32 = arith.constant 0 : i32
    %c0_i32_0 = arith.constant 0 : i32
    %c0_i32_1 = arith.constant 0 : i32
    return %c0_i32, %c0_i32_0 : i32, i32
  }
  func.func @transform_4(%arg0: i32) -> (i32, i32) {
    %c0_i32 = arith.constant 0 : i32
    %c0_i32_0 = arith.constant 0 : i32
    %c0_i32_1 = arith.constant 0 : i32
    return %c0_i32, %c0_i32_0 : i32, i32
  }
  func.func @transform_5(%arg0: i32) -> (i32, i32, i32) {
    %c0_i32 = arith.constant 0 : i32
    %c0_i32_0 = arith.constant 0 : i32
    %c0_i32_1 = arith.constant 0 : i32
    return %arg0, %c0_i32, %c0_i32_0 : i32, i32, i32
  }
  func.func @transform_6(%arg0: i32) -> (i32, i32, i32) {
    %c0_i32 = arith.constant 0 : i32
    %c0_i32_0 = arith.constant 0 : i32
    %c0_i32_1 = arith.constant 0 : i32
    return %arg0, %c0_i32, %c0_i32_0 : i32, i32, i32
  }
  func.func @transform_7(%arg0: i32) -> (i32, i32, i32) {
    %c0_i32 = arith.constant 0 : i32
    %c0_i32_0 = arith.constant 0 : i32
    %c0_i32_1 = arith.constant 0 : i32
    return %arg0, %c0_i32, %c0_i32_0 : i32, i32, i32
  }
}

module attributes {stable_mosaic.version = 11 : i64} {
  func.func @_bn_conv2_kernel(%arg0: i32, %arg1: memref<1x256x128xbf16, #tpu.memory_space<vmem>>, %arg2: memref<9x128x128xbf16, #tpu.memory_space<vmem>>, %arg3: memref<1x128xf32, #tpu.memory_space<vmem>>, %arg4: memref<1x128xf32, #tpu.memory_space<vmem>>, %arg5: memref<1x128xf32, #tpu.memory_space<vmem>>, %arg6: memref<1x256x128xbf16, #tpu.memory_space<vmem>>, %arg7: memref<1x2x128xf32, #tpu.memory_space<vmem>>, %arg8: memref<18x18x128xbf16, #tpu.memory_space<vmem>>) attributes {dimension_semantics = [#tpu.dimension_semantics<parallel>], iteration_bounds = array<i64: 2>, scalar_prefetch = 0 : i64, scratch_operands = 1 : i64, tpu.core_type = #tpu.core_type<tc>, window_params = [{transform_indices = @transform_0, window_bounds = array<i64: 1, 256, 128>}, {pipeline_mode = #tpu.pipeline_mode<synchronous>, transform_indices = @transform_1, window_bounds = array<i64: 9, 128, 128>}, {pipeline_mode = #tpu.pipeline_mode<synchronous>, transform_indices = @transform_2, window_bounds = array<i64: 1, 128>}, {pipeline_mode = #tpu.pipeline_mode<synchronous>, transform_indices = @transform_3, window_bounds = array<i64: 1, 128>}, {pipeline_mode = #tpu.pipeline_mode<synchronous>, transform_indices = @transform_4, window_bounds = array<i64: 1, 128>}, {transform_indices = @transform_5, window_bounds = array<i64: 1, 256, 128>}, {transform_indices = @transform_6, window_bounds = array<i64: 1, 2, 128>}]} {
    %c0 = arith.constant 0 : index
    %c0_0 = arith.constant 0 : index
    %c0_1 = arith.constant 0 : index
    %0 = vector.load %arg1[%c0, %c0_0, %c0_1] : memref<1x256x128xbf16, #tpu.memory_space<vmem>>, vector<1x256x128xbf16>
    %1 = vector.shape_cast %0 : vector<1x256x128xbf16> to vector<256x128xbf16>
    %2 = arith.extf %1 : vector<256x128xbf16> to vector<256x128xf32>
    %c0_2 = arith.constant 0 : index
    %c0_3 = arith.constant 0 : index
    %3 = vector.load %arg4[%c0_2, %c0_3] : memref<1x128xf32, #tpu.memory_space<vmem>>, vector<1x128xf32>
    %4 = vector.broadcast %3 : vector<1x128xf32> to vector<256x128xf32>
    %5 = arith.mulf %2, %4 : vector<256x128xf32>
    %c0_4 = arith.constant 0 : index
    %c0_5 = arith.constant 0 : index
    %6 = vector.load %arg5[%c0_4, %c0_5] : memref<1x128xf32, #tpu.memory_space<vmem>>, vector<1x128xf32>
    %7 = vector.broadcast %6 : vector<1x128xf32> to vector<256x128xf32>
    %8 = arith.addf %5, %7 : vector<256x128xf32>
    %cst = arith.constant 0.000000e+00 : bf16
    %9 = vector.broadcast %cst : bf16 to vector<18x18x128xbf16>
    %c0_6 = arith.constant 0 : index
    %c0_7 = arith.constant 0 : index
    %c0_8 = arith.constant 0 : index
    %10 = vector.load %arg8[%c0_6, %c0_7, %c0_8] : memref<18x18x128xbf16, #tpu.memory_space<vmem>>, vector<18x18x128xbf16>
    tpu.vector_store %arg8[%c0_6, %c0_7, %c0_8], %9 {strides = array<i32>} : memref<18x18x128xbf16, #tpu.memory_space<vmem>>, vector<18x18x128xbf16>,
    %11 = vector.shape_cast %8 : vector<256x128xf32> to vector<16x16x128xf32>
    %12 = arith.truncf %11 : vector<16x16x128xf32> to vector<16x16x128xbf16>
    %c1 = arith.constant 1 : index
    %c1_9 = arith.constant 1 : index
    %c0_10 = arith.constant 0 : index
    %13 = vector.load %arg8[%c1, %c1_9, %c0_10] : memref<18x18x128xbf16, #tpu.memory_space<vmem>>, vector<16x16x128xbf16>
    tpu.vector_store %arg8[%c1, %c1_9, %c0_10], %12 {strides = array<i32>} : memref<18x18x128xbf16, #tpu.memory_space<vmem>>, vector<16x16x128xbf16>,
    %cst_11 = arith.constant 0.000000e+00 : f32
    %14 = vector.broadcast %cst_11 : f32 to vector<256x128xf32>
    %c0_12 = arith.constant 0 : index
    %c0_13 = arith.constant 0 : index
    %c0_14 = arith.constant 0 : index
    %15 = vector.load %arg8[%c0_12, %c0_13, %c0_14] : memref<18x18x128xbf16, #tpu.memory_space<vmem>>, vector<16x16x128xbf16>
    %16 = vector.shape_cast %15 : vector<16x16x128xbf16> to vector<256x128xbf16>
    %c0_15 = arith.constant 0 : index
    %c0_16 = arith.constant 0 : index
    %c0_17 = arith.constant 0 : index
    %17 = vector.load %arg2[%c0_15, %c0_16, %c0_17] : memref<9x128x128xbf16, #tpu.memory_space<vmem>>, vector<1x128x128xbf16>
    %18 = vector.shape_cast %17 : vector<1x128x128xbf16> to vector<128x128xbf16>
    %cst_18 = arith.constant dense<0.000000e+00> : vector<256x128xf32>
    %19 = tpu.matmul %16, %18, %cst_18 {dimension_numbers = #tpu.dot_dimension_numbers<[1], [0], [0], [1], [0, 0, 1, 1], [], []>} : vector<256x128xbf16>, vector<128x128xbf16>, vector<256x128xf32> -> vector<256x128xf32>
    %20 = arith.addf %14, %19 : vector<256x128xf32>
    %c0_19 = arith.constant 0 : index
    %c1_20 = arith.constant 1 : index
    %c0_21 = arith.constant 0 : index
    %21 = vector.load %arg8[%c0_19, %c1_20, %c0_21] : memref<18x18x128xbf16, #tpu.memory_space<vmem>>, vector<16x16x128xbf16>
    %22 = vector.shape_cast %21 : vector<16x16x128xbf16> to vector<256x128xbf16>
    %c1_22 = arith.constant 1 : index
    %c0_23 = arith.constant 0 : index
    %c0_24 = arith.constant 0 : index
    %23 = vector.load %arg2[%c1_22, %c0_23, %c0_24] : memref<9x128x128xbf16, #tpu.memory_space<vmem>>, vector<1x128x128xbf16>
    %24 = vector.shape_cast %23 : vector<1x128x128xbf16> to vector<128x128xbf16>
    %cst_25 = arith.constant dense<0.000000e+00> : vector<256x128xf32>
    %25 = tpu.matmul %22, %24, %cst_25 {dimension_numbers = #tpu.dot_dimension_numbers<[1], [0], [0], [1], [0, 0, 1, 1], [], []>} : vector<256x128xbf16>, vector<128x128xbf16>, vector<256x128xf32> -> vector<256x128xf32>
    %26 = arith.addf %20, %25 : vector<256x128xf32>
    %c0_26 = arith.constant 0 : index
    %c2 = arith.constant 2 : index
    %c0_27 = arith.constant 0 : index
    %27 = vector.load %arg8[%c0_26, %c2, %c0_27] : memref<18x18x128xbf16, #tpu.memory_space<vmem>>, vector<16x16x128xbf16>
    %28 = vector.shape_cast %27 : vector<16x16x128xbf16> to vector<256x128xbf16>
    %c2_28 = arith.constant 2 : index
    %c0_29 = arith.constant 0 : index
    %c0_30 = arith.constant 0 : index
    %29 = vector.load %arg2[%c2_28, %c0_29, %c0_30] : memref<9x128x128xbf16, #tpu.memory_space<vmem>>, vector<1x128x128xbf16>
    %30 = vector.shape_cast %29 : vector<1x128x128xbf16> to vector<128x128xbf16>
    %cst_31 = arith.constant dense<0.000000e+00> : vector<256x128xf32>
    %31 = tpu.matmul %28, %30, %cst_31 {dimension_numbers = #tpu.dot_dimension_numbers<[1], [0], [0], [1], [0, 0, 1, 1], [], []>} : vector<256x128xbf16>, vector<128x128xbf16>, vector<256x128xf32> -> vector<256x128xf32>
    %32 = arith.addf %26, %31 : vector<256x128xf32>
    %c1_32 = arith.constant 1 : index
    %c0_33 = arith.constant 0 : index
    %c0_34 = arith.constant 0 : index
    %33 = vector.load %arg8[%c1_32, %c0_33, %c0_34] : memref<18x18x128xbf16, #tpu.memory_space<vmem>>, vector<16x16x128xbf16>
    %34 = vector.shape_cast %33 : vector<16x16x128xbf16> to vector<256x128xbf16>
    %c3 = arith.constant 3 : index
    %c0_35 = arith.constant 0 : index
    %c0_36 = arith.constant 0 : index
    %35 = vector.load %arg2[%c3, %c0_35, %c0_36] : memref<9x128x128xbf16, #tpu.memory_space<vmem>>, vector<1x128x128xbf16>
    %36 = vector.shape_cast %35 : vector<1x128x128xbf16> to vector<128x128xbf16>
    %cst_37 = arith.constant dense<0.000000e+00> : vector<256x128xf32>
    %37 = tpu.matmul %34, %36, %cst_37 {dimension_numbers = #tpu.dot_dimension_numbers<[1], [0], [0], [1], [0, 0, 1, 1], [], []>} : vector<256x128xbf16>, vector<128x128xbf16>, vector<256x128xf32> -> vector<256x128xf32>
    %38 = arith.addf %32, %37 : vector<256x128xf32>
    %c1_38 = arith.constant 1 : index
    %c1_39 = arith.constant 1 : index
    %c0_40 = arith.constant 0 : index
    %39 = vector.load %arg8[%c1_38, %c1_39, %c0_40] : memref<18x18x128xbf16, #tpu.memory_space<vmem>>, vector<16x16x128xbf16>
    %40 = vector.shape_cast %39 : vector<16x16x128xbf16> to vector<256x128xbf16>
    %c4 = arith.constant 4 : index
    %c0_41 = arith.constant 0 : index
    %c0_42 = arith.constant 0 : index
    %41 = vector.load %arg2[%c4, %c0_41, %c0_42] : memref<9x128x128xbf16, #tpu.memory_space<vmem>>, vector<1x128x128xbf16>
    %42 = vector.shape_cast %41 : vector<1x128x128xbf16> to vector<128x128xbf16>
    %cst_43 = arith.constant dense<0.000000e+00> : vector<256x128xf32>
    %43 = tpu.matmul %40, %42, %cst_43 {dimension_numbers = #tpu.dot_dimension_numbers<[1], [0], [0], [1], [0, 0, 1, 1], [], []>} : vector<256x128xbf16>, vector<128x128xbf16>, vector<256x128xf32> -> vector<256x128xf32>
    %44 = arith.addf %38, %43 : vector<256x128xf32>
    %c1_44 = arith.constant 1 : index
    %c2_45 = arith.constant 2 : index
    %c0_46 = arith.constant 0 : index
    %45 = vector.load %arg8[%c1_44, %c2_45, %c0_46] : memref<18x18x128xbf16, #tpu.memory_space<vmem>>, vector<16x16x128xbf16>
    %46 = vector.shape_cast %45 : vector<16x16x128xbf16> to vector<256x128xbf16>
    %c5 = arith.constant 5 : index
    %c0_47 = arith.constant 0 : index
    %c0_48 = arith.constant 0 : index
    %47 = vector.load %arg2[%c5, %c0_47, %c0_48] : memref<9x128x128xbf16, #tpu.memory_space<vmem>>, vector<1x128x128xbf16>
    %48 = vector.shape_cast %47 : vector<1x128x128xbf16> to vector<128x128xbf16>
    %cst_49 = arith.constant dense<0.000000e+00> : vector<256x128xf32>
    %49 = tpu.matmul %46, %48, %cst_49 {dimension_numbers = #tpu.dot_dimension_numbers<[1], [0], [0], [1], [0, 0, 1, 1], [], []>} : vector<256x128xbf16>, vector<128x128xbf16>, vector<256x128xf32> -> vector<256x128xf32>
    %50 = arith.addf %44, %49 : vector<256x128xf32>
    %c2_50 = arith.constant 2 : index
    %c0_51 = arith.constant 0 : index
    %c0_52 = arith.constant 0 : index
    %51 = vector.load %arg8[%c2_50, %c0_51, %c0_52] : memref<18x18x128xbf16, #tpu.memory_space<vmem>>, vector<16x16x128xbf16>
    %52 = vector.shape_cast %51 : vector<16x16x128xbf16> to vector<256x128xbf16>
    %c6 = arith.constant 6 : index
    %c0_53 = arith.constant 0 : index
    %c0_54 = arith.constant 0 : index
    %53 = vector.load %arg2[%c6, %c0_53, %c0_54] : memref<9x128x128xbf16, #tpu.memory_space<vmem>>, vector<1x128x128xbf16>
    %54 = vector.shape_cast %53 : vector<1x128x128xbf16> to vector<128x128xbf16>
    %cst_55 = arith.constant dense<0.000000e+00> : vector<256x128xf32>
    %55 = tpu.matmul %52, %54, %cst_55 {dimension_numbers = #tpu.dot_dimension_numbers<[1], [0], [0], [1], [0, 0, 1, 1], [], []>} : vector<256x128xbf16>, vector<128x128xbf16>, vector<256x128xf32> -> vector<256x128xf32>
    %56 = arith.addf %50, %55 : vector<256x128xf32>
    %c2_56 = arith.constant 2 : index
    %c1_57 = arith.constant 1 : index
    %c0_58 = arith.constant 0 : index
    %57 = vector.load %arg8[%c2_56, %c1_57, %c0_58] : memref<18x18x128xbf16, #tpu.memory_space<vmem>>, vector<16x16x128xbf16>
    %58 = vector.shape_cast %57 : vector<16x16x128xbf16> to vector<256x128xbf16>
    %c7 = arith.constant 7 : index
    %c0_59 = arith.constant 0 : index
    %c0_60 = arith.constant 0 : index
    %59 = vector.load %arg2[%c7, %c0_59, %c0_60] : memref<9x128x128xbf16, #tpu.memory_space<vmem>>, vector<1x128x128xbf16>
    %60 = vector.shape_cast %59 : vector<1x128x128xbf16> to vector<128x128xbf16>
    %cst_61 = arith.constant dense<0.000000e+00> : vector<256x128xf32>
    %61 = tpu.matmul %58, %60, %cst_61 {dimension_numbers = #tpu.dot_dimension_numbers<[1], [0], [0], [1], [0, 0, 1, 1], [], []>} : vector<256x128xbf16>, vector<128x128xbf16>, vector<256x128xf32> -> vector<256x128xf32>
    %62 = arith.addf %56, %61 : vector<256x128xf32>
    %c2_62 = arith.constant 2 : index
    %c2_63 = arith.constant 2 : index
    %c0_64 = arith.constant 0 : index
    %63 = vector.load %arg8[%c2_62, %c2_63, %c0_64] : memref<18x18x128xbf16, #tpu.memory_space<vmem>>, vector<16x16x128xbf16>
    %64 = vector.shape_cast %63 : vector<16x16x128xbf16> to vector<256x128xbf16>
    %c8 = arith.constant 8 : index
    %c0_65 = arith.constant 0 : index
    %c0_66 = arith.constant 0 : index
    %65 = vector.load %arg2[%c8, %c0_65, %c0_66] : memref<9x128x128xbf16, #tpu.memory_space<vmem>>, vector<1x128x128xbf16>
    %66 = vector.shape_cast %65 : vector<1x128x128xbf16> to vector<128x128xbf16>
    %cst_67 = arith.constant dense<0.000000e+00> : vector<256x128xf32>
    %67 = tpu.matmul %64, %66, %cst_67 {dimension_numbers = #tpu.dot_dimension_numbers<[1], [0], [0], [1], [0, 0, 1, 1], [], []>} : vector<256x128xbf16>, vector<128x128xbf16>, vector<256x128xf32> -> vector<256x128xf32>
    %68 = arith.addf %62, %67 : vector<256x128xf32>
    %c0_68 = arith.constant 0 : index
    %c0_69 = arith.constant 0 : index
    %69 = vector.load %arg3[%c0_68, %c0_69] : memref<1x128xf32, #tpu.memory_space<vmem>>, vector<1x128xf32>
    %70 = vector.broadcast %69 : vector<1x128xf32> to vector<256x128xf32>
    %71 = arith.addf %68, %70 : vector<256x128xf32>
    %cst_70 = arith.constant 0.000000e+00 : f32
    %72 = vector.broadcast %cst_70 : f32 to vector<256x128xf32>
    %73 = arith.maximumf %71, %72 : vector<256x128xf32>
    %74 = arith.truncf %73 : vector<256x128xf32> to vector<256x128xbf16>
    %c0_71 = arith.constant 0 : index
    %c0_72 = arith.constant 0 : index
    %c0_73 = arith.constant 0 : index
    %75 = vector.load %arg6[%c0_71, %c0_72, %c0_73] : memref<1x256x128xbf16, #tpu.memory_space<vmem>>, vector<1x256x128xbf16>
    %76 = vector.shape_cast %75 : vector<1x256x128xbf16> to vector<256x128xbf16>
    %77 = vector.shape_cast %74 : vector<256x128xbf16> to vector<1x256x128xbf16>
    tpu.vector_store %arg6[%c0_71, %c0_72, %c0_73], %77 {strides = array<i32>} : memref<1x256x128xbf16, #tpu.memory_space<vmem>>, vector<1x256x128xbf16>,
    %cst_74 = arith.constant dense<0.000000e+00> : vector<128xf32>
    %78 = vector.multi_reduction <add>, %73, %cst_74 [0] : vector<256x128xf32> to vector<128xf32>
    %79 = vector.shape_cast %78 : vector<128xf32> to vector<1x128xf32>
    %c0_75 = arith.constant 0 : index
    %c0_76 = arith.constant 0 : index
    %c0_77 = arith.constant 0 : index
    %80 = vector.load %arg7[%c0_75, %c0_76, %c0_77] : memref<1x2x128xf32, #tpu.memory_space<vmem>>, vector<1x1x128xf32>
    %81 = vector.shape_cast %80 : vector<1x1x128xf32> to vector<1x128xf32>
    %82 = vector.shape_cast %79 : vector<1x128xf32> to vector<1x1x128xf32>
    tpu.vector_store %arg7[%c0_75, %c0_76, %c0_77], %82 {strides = array<i32>} : memref<1x2x128xf32, #tpu.memory_space<vmem>>, vector<1x1x128xf32>,
    %83 = arith.mulf %73, %73 : vector<256x128xf32>
    %cst_78 = arith.constant dense<0.000000e+00> : vector<128xf32>
    %84 = vector.multi_reduction <add>, %83, %cst_78 [0] : vector<256x128xf32> to vector<128xf32>
    %85 = vector.shape_cast %84 : vector<128xf32> to vector<1x128xf32>
    %c0_79 = arith.constant 0 : index
    %c1_80 = arith.constant 1 : index
    %c0_81 = arith.constant 0 : index
    %86 = vector.load %arg7[%c0_79, %c1_80, %c0_81] : memref<1x2x128xf32, #tpu.memory_space<vmem>>, vector<1x1x128xf32>
    %87 = vector.shape_cast %86 : vector<1x1x128xf32> to vector<1x128xf32>
    %88 = vector.shape_cast %85 : vector<1x128xf32> to vector<1x1x128xf32>
    tpu.vector_store %arg7[%c0_79, %c1_80, %c0_81], %88 {strides = array<i32>} : memref<1x2x128xf32, #tpu.memory_space<vmem>>, vector<1x1x128xf32>,
    return
  }
  func.func @transform_0(%arg0: i32) -> (i32, i32, i32) {
    %c0_i32 = arith.constant 0 : i32
    %c0_i32_0 = arith.constant 0 : i32
    %c0_i32_1 = arith.constant 0 : i32
    return %arg0, %c0_i32, %c0_i32_0 : i32, i32, i32
  }
  func.func @transform_1(%arg0: i32) -> (i32, i32, i32) {
    %c0_i32 = arith.constant 0 : i32
    %c0_i32_0 = arith.constant 0 : i32
    %c0_i32_1 = arith.constant 0 : i32
    %c0_i32_2 = arith.constant 0 : i32
    return %c0_i32, %c0_i32_0, %c0_i32_1 : i32, i32, i32
  }
  func.func @transform_2(%arg0: i32) -> (i32, i32) {
    %c0_i32 = arith.constant 0 : i32
    %c0_i32_0 = arith.constant 0 : i32
    %c0_i32_1 = arith.constant 0 : i32
    return %c0_i32, %c0_i32_0 : i32, i32
  }
  func.func @transform_3(%arg0: i32) -> (i32, i32) {
    %c0_i32 = arith.constant 0 : i32
    %c0_i32_0 = arith.constant 0 : i32
    %c0_i32_1 = arith.constant 0 : i32
    return %c0_i32, %c0_i32_0 : i32, i32
  }
  func.func @transform_4(%arg0: i32) -> (i32, i32) {
    %c0_i32 = arith.constant 0 : i32
    %c0_i32_0 = arith.constant 0 : i32
    %c0_i32_1 = arith.constant 0 : i32
    return %c0_i32, %c0_i32_0 : i32, i32
  }
  func.func @transform_5(%arg0: i32) -> (i32, i32, i32) {
    %c0_i32 = arith.constant 0 : i32
    %c0_i32_0 = arith.constant 0 : i32
    %c0_i32_1 = arith.constant 0 : i32
    return %arg0, %c0_i32, %c0_i32_0 : i32, i32, i32
  }
  func.func @transform_6(%arg0: i32) -> (i32, i32, i32) {
    %c0_i32 = arith.constant 0 : i32
    %c0_i32_0 = arith.constant 0 : i32
    %c0_i32_1 = arith.constant 0 : i32
    return %arg0, %c0_i32, %c0_i32_0 : i32, i32, i32
  }
}

module attributes {stable_mosaic.version = 11 : i64} {
  func.func @_bn_add_kernel(%arg0: i32, %arg1: memref<1x256x128xbf16, #tpu.memory_space<vmem>>, %arg2: memref<1x256x128xbf16, #tpu.memory_space<vmem>>, %arg3: memref<1x128xf32, #tpu.memory_space<vmem>>, %arg4: memref<1x128xf32, #tpu.memory_space<vmem>>, %arg5: memref<1x128xf32, #tpu.memory_space<vmem>>, %arg6: memref<1x128xf32, #tpu.memory_space<vmem>>, %arg7: memref<1x256x128xbf16, #tpu.memory_space<vmem>>) attributes {dimension_semantics = [#tpu.dimension_semantics<parallel>], iteration_bounds = array<i64: 2>, scalar_prefetch = 0 : i64, scratch_operands = 0 : i64, tpu.core_type = #tpu.core_type<tc>, window_params = [{transform_indices = @transform_0, window_bounds = array<i64: 1, 256, 128>}, {transform_indices = @transform_1, window_bounds = array<i64: 1, 256, 128>}, {pipeline_mode = #tpu.pipeline_mode<synchronous>, transform_indices = @transform_2, window_bounds = array<i64: 1, 128>}, {pipeline_mode = #tpu.pipeline_mode<synchronous>, transform_indices = @transform_3, window_bounds = array<i64: 1, 128>}, {pipeline_mode = #tpu.pipeline_mode<synchronous>, transform_indices = @transform_4, window_bounds = array<i64: 1, 128>}, {pipeline_mode = #tpu.pipeline_mode<synchronous>, transform_indices = @transform_5, window_bounds = array<i64: 1, 128>}, {transform_indices = @transform_6, window_bounds = array<i64: 1, 256, 128>}]} {
    %c0 = arith.constant 0 : index
    %c0_0 = arith.constant 0 : index
    %c0_1 = arith.constant 0 : index
    %0 = vector.load %arg1[%c0, %c0_0, %c0_1] : memref<1x256x128xbf16, #tpu.memory_space<vmem>>, vector<1x256x128xbf16>
    %1 = vector.shape_cast %0 : vector<1x256x128xbf16> to vector<256x128xbf16>
    %2 = arith.extf %1 : vector<256x128xbf16> to vector<256x128xf32>
    %c0_2 = arith.constant 0 : index
    %c0_3 = arith.constant 0 : index
    %3 = vector.load %arg3[%c0_2, %c0_3] : memref<1x128xf32, #tpu.memory_space<vmem>>, vector<1x128xf32>
    %4 = vector.broadcast %3 : vector<1x128xf32> to vector<256x128xf32>
    %5 = arith.mulf %2, %4 : vector<256x128xf32>
    %c0_4 = arith.constant 0 : index
    %c0_5 = arith.constant 0 : index
    %6 = vector.load %arg4[%c0_4, %c0_5] : memref<1x128xf32, #tpu.memory_space<vmem>>, vector<1x128xf32>
    %7 = vector.broadcast %6 : vector<1x128xf32> to vector<256x128xf32>
    %8 = arith.addf %5, %7 : vector<256x128xf32>
    %c0_6 = arith.constant 0 : index
    %c0_7 = arith.constant 0 : index
    %c0_8 = arith.constant 0 : index
    %9 = vector.load %arg2[%c0_6, %c0_7, %c0_8] : memref<1x256x128xbf16, #tpu.memory_space<vmem>>, vector<1x256x128xbf16>
    %10 = vector.shape_cast %9 : vector<1x256x128xbf16> to vector<256x128xbf16>
    %11 = arith.extf %10 : vector<256x128xbf16> to vector<256x128xf32>
    %c0_9 = arith.constant 0 : index
    %c0_10 = arith.constant 0 : index
    %12 = vector.load %arg5[%c0_9, %c0_10] : memref<1x128xf32, #tpu.memory_space<vmem>>, vector<1x128xf32>
    %13 = vector.broadcast %12 : vector<1x128xf32> to vector<256x128xf32>
    %14 = arith.mulf %11, %13 : vector<256x128xf32>
    %c0_11 = arith.constant 0 : index
    %c0_12 = arith.constant 0 : index
    %15 = vector.load %arg6[%c0_11, %c0_12] : memref<1x128xf32, #tpu.memory_space<vmem>>, vector<1x128xf32>
    %16 = vector.broadcast %15 : vector<1x128xf32> to vector<256x128xf32>
    %17 = arith.addf %14, %16 : vector<256x128xf32>
    %18 = arith.addf %8, %17 : vector<256x128xf32>
    %19 = arith.truncf %18 : vector<256x128xf32> to vector<256x128xbf16>
    %c0_13 = arith.constant 0 : index
    %c0_14 = arith.constant 0 : index
    %c0_15 = arith.constant 0 : index
    %20 = vector.load %arg7[%c0_13, %c0_14, %c0_15] : memref<1x256x128xbf16, #tpu.memory_space<vmem>>, vector<1x256x128xbf16>
    %21 = vector.shape_cast %20 : vector<1x256x128xbf16> to vector<256x128xbf16>
    %22 = vector.shape_cast %19 : vector<256x128xbf16> to vector<1x256x128xbf16>
    tpu.vector_store %arg7[%c0_13, %c0_14, %c0_15], %22 {strides = array<i32>} : memref<1x256x128xbf16, #tpu.memory_space<vmem>>, vector<1x256x128xbf16>,
    return
  }
  func.func @transform_0(%arg0: i32) -> (i32, i32, i32) {
    %c0_i32 = arith.constant 0 : i32
    %c0_i32_0 = arith.constant 0 : i32
    %c0_i32_1 = arith.constant 0 : i32
    return %arg0, %c0_i32, %c0_i32_0 : i32, i32, i32
  }
  func.func @transform_1(%arg0: i32) -> (i32, i32, i32) {
    %c0_i32 = arith.constant 0 : i32
    %c0_i32_0 = arith.constant 0 : i32
    %c0_i32_1 = arith.constant 0 : i32
    return %arg0, %c0_i32, %c0_i32_0 : i32, i32, i32
  }
  func.func @transform_2(%arg0: i32) -> (i32, i32) {
    %c0_i32 = arith.constant 0 : i32
    %c0_i32_0 = arith.constant 0 : i32
    %c0_i32_1 = arith.constant 0 : i32
    return %c0_i32, %c0_i32_0 : i32, i32
  }
  func.func @transform_3(%arg0: i32) -> (i32, i32) {
    %c0_i32 = arith.constant 0 : i32
    %c0_i32_0 = arith.constant 0 : i32
    %c0_i32_1 = arith.constant 0 : i32
    return %c0_i32, %c0_i32_0 : i32, i32
  }
  func.func @transform_4(%arg0: i32) -> (i32, i32) {
    %c0_i32 = arith.constant 0 : i32
    %c0_i32_0 = arith.constant 0 : i32
    %c0_i32_1 = arith.constant 0 : i32
    return %c0_i32, %c0_i32_0 : i32, i32
  }
  func.func @transform_5(%arg0: i32) -> (i32, i32) {
    %c0_i32 = arith.constant 0 : i32
    %c0_i32_0 = arith.constant 0 : i32
    %c0_i32_1 = arith.constant 0 : i32
    return %c0_i32, %c0_i32_0 : i32, i32
  }
  func.func @transform_6(%arg0: i32) -> (i32, i32, i32) {
    %c0_i32 = arith.constant 0 : i32
    %c0_i32_0 = arith.constant 0 : i32
    %c0_i32_1 = arith.constant 0 : i32
    return %arg0, %c0_i32, %c0_i32_0 : i32, i32, i32
  }
}

</mosaic_0001>

<llo_original>
// kernel: conv_res_forward.5
$region0: #{conv_res_forward.5}
  #allocation0 [shape = 'u32[]', space=smem, size = 0x4, offset = 0x4, fixed_abs, tag = 'smem constant byte address 0x4 - core index']
  #allocation1 [shape = 'u32[144,128]{1,0:T(1,128)}', space=vmem, size = 0x12000, scoped, tag = 'internal scratch']
  %s0 = inlined_call_operand.vmem [shape: bf16[2,256,128], index: 0, kind: input, shape index: {}, may-alias: {0,6}]
  %s1 = inlined_call_operand.vmem [shape: bf16[2,256,128], index: 1, kind: input, shape index: {}]
  %s2 = inlined_call_operand.vmem [shape: f32[1,128], index: 2, kind: input, shape index: {}]
  %s3 = inlined_call_operand.vmem [shape: f32[1,128], index: 3, kind: input, shape index: {}]
  %s4 = inlined_call_operand.vmem [shape: f32[1,128], index: 4, kind: input, shape index: {}]
  %s5 = inlined_call_operand.vmem [shape: f32[1,128], index: 5, kind: input, shape index: {}]
  %s6 = inlined_call_operand.vmem [shape: bf16[2,256,128], index: 6, kind: output, shape index: {}, may-alias: {0,6}]
  %s7 = sld [smem:[#allocation0]]
  $region57: #{conv_res_forward.5} parent=0
    _
  %s9 = ssub.s32 1, %s7
  %s10 = scalar_select 0, %s9, %s7
  loop: start=0, step=1, limit=4
  $region2: #{conv_res_forward.5} parent=0 // loop_pre_header
    _
  $region3: #{conv_res_forward.5} parent=0 // loop_header
    %s12 = sphi 0, %s16
    %p13 = scmp.ge.s32.totalorder %s12, 4
    %s22 = sphi 0, %s24
    %s25 = sphi 0, %s22
    %s26 = sphi 0, %s25
    %s42 = sphi 0, %s26
    %s48 = sphi 0, %s50
    %s51 = sphi 0, %s48
    %s52 = sphi 0, %s51
    %s68 = sphi 0, %s52
    %s72 = sphi 0, %s72
    %s74 = sphi 0, %s72
    %s75 = sphi 0, %s74
    %s89 = sphi 0, %s75
    %s93 = sphi 0, %s93
    %s95 = sphi 0, %s93
    %s96 = sphi 0, %s95
    %s110 = sphi 0, %s96
    %s114 = sphi 0, %s114
    %s116 = sphi 0, %s114
    %s117 = sphi 0, %s116
    %s131 = sphi 0, %s117
    %s135 = sphi 0, %s135
    %s137 = sphi 0, %s135
    %s138 = sphi 0, %s137
    %s152 = sphi 0, %s138
    %s158 = sphi 0, %s160
    %s161 = sphi 0, %s158
    %s162 = sphi 0, %s161
    %s178 = sphi 0, %s162
  $region4: #{conv_res_forward.5} parent=0 // loop_header_branch
    %15 = sbr.rel (%p13) target = $region8
  $region5: #{conv_res_forward.5} parent=0 // loop_body
    %s17 = ssub.s32 %s12, 1
    %s18 = ssub.s32 %s12, 2
    %s19 = sadd.s32 %s12, 1
    %s20 = ssub.s32 %s12, %s19
    %p21 = scmp.eq.s32.totalorder %s20, 0
    %s23 = sadd.s32 %s22, 1
    %s24 = scalar_select %p21, %s22, %s23
    %p27 = pneg %p21
    %p28 = scmp.eq.s32.totalorder %s12, 1
    %p29 = por %p27, %p28
    %p30 = scmp.ne.s32.totalorder %s22, %s25
    %p31 = scmp.eq.s32.totalorder %s12, 0
    %p32 = por %p30, %p31
    %p33 = scmp.ne.s32.totalorder %s22, %s25
    %p34 = scmp.eq.s32.totalorder %s17, 1
    %p35 = por %p33, %p34
    %p36 = scmp.ne.s32.totalorder %s25, %s26
    %p37 = scmp.eq.s32.totalorder %s17, 0
    %p38 = por %p36, %p37
    %p39 = scmp.ne.s32.totalorder %s25, %s26
    %p40 = scmp.eq.s32.totalorder %s18, 1
    %p41 = por %p39, %p40
    %p43 = scmp.ne.s32.totalorder %s26, %s42
    %p44 = scmp.eq.s32.totalorder %s18, 0
    %p45 = por %p43, %p44
    %s46 = ssub.s32 %s12, %s19
    %p47 = scmp.eq.s32.totalorder %s46, 0
    %s49 = sadd.s32 %s48, 1
    %s50 = scalar_select %p47, %s48, %s49
    %p53 = pneg %p47
    %p54 = scmp.eq.s32.totalorder %s12, 1
    %p55 = por %p53, %p54
    %p56 = scmp.ne.s32.totalorder %s48, %s51
    %p57 = scmp.eq.s32.totalorder %s12, 0
    %p58 = por %p56, %p57
    %p59 = scmp.ne.s32.totalorder %s48, %s51
    %p60 = scmp.eq.s32.totalorder %s17, 1
    %p61 = por %p59, %p60
    %p62 = scmp.ne.s32.totalorder %s51, %s52
    %p63 = scmp.eq.s32.totalorder %s17, 0
    %p64 = por %p62, %p63
    %p65 = scmp.ne.s32.totalorder %s51, %s52
    %p66 = scmp.eq.s32.totalorder %s18, 1
    %p67 = por %p65, %p66
    %p69 = scmp.ne.s32.totalorder %s52, %s68
    %p70 = scmp.eq.s32.totalorder %s18, 0
    %p71 = por %p69, %p70
    %s73 = sadd.s32 %s72, 1
    %p76 = scmp.eq.s32.totalorder %s12, 1
    %p77 = scmp.ne.s32.totalorder %s72, %s74
    %p78 = scmp.eq.s32.totalorder %s12, 0
    %p79 = por %p77, %p78
    %p80 = scmp.ne.s32.totalorder %s72, %s74
    %p81 = scmp.eq.s32.totalorder %s17, 1
    %p82 = por %p80, %p81
    %p83 = scmp.ne.s32.totalorder %s74, %s75
    %p84 = scmp.eq.s32.totalorder %s17, 0
    %p85 = por %p83, %p84
    %p86 = scmp.ne.s32.totalorder %s74, %s75
    %p87 = scmp.eq.s32.totalorder %s18, 1
    %p88 = por %p86, %p87
    %p90 = scmp.ne.s32.totalorder %s75, %s89
    %p91 = scmp.eq.s32.totalorder %s18, 0
    %p92 = por %p90, %p91
    %s94 = sadd.s32 %s93, 1
    %p97 = scmp.eq.s32.totalorder %s12, 1
    %p98 = scmp.ne.s32.totalorder %s93, %s95
    %p99 = scmp.eq.s32.totalorder %s12, 0
    %p100 = por %p98, %p99
    %p101 = scmp.ne.s32.totalorder %s93, %s95
    %p102 = scmp.eq.s32.totalorder %s17, 1
    %p103 = por %p101, %p102
    %p104 = scmp.ne.s32.totalorder %s95, %s96
    %p105 = scmp.eq.s32.totalorder %s17, 0
    %p106 = por %p104, %p105
    %p107 = scmp.ne.s32.totalorder %s95, %s96
    %p108 = scmp.eq.s32.totalorder %s18, 1
    %p109 = por %p107, %p108
    %p111 = scmp.ne.s32.totalorder %s96, %s110
    %p112 = scmp.eq.s32.totalorder %s18, 0
    %p113 = por %p111, %p112
    %s115 = sadd.s32 %s114, 1
    %p118 = scmp.eq.s32.totalorder %s12, 1
    %p119 = scmp.ne.s32.totalorder %s114, %s116
    %p120 = scmp.eq.s32.totalorder %s12, 0
    %p121 = por %p119, %p120
    %p122 = scmp.ne.s32.totalorder %s114, %s116
    %p123 = scmp.eq.s32.totalorder %s17, 1
    %p124 = por %p122, %p123
    %p125 = scmp.ne.s32.totalorder %s116, %s117
    %p126 = scmp.eq.s32.totalorder %s17, 0
    %p127 = por %p125, %p126
    %p128 = scmp.ne.s32.totalorder %s116, %s117
    %p129 = scmp.eq.s32.totalorder %s18, 1
    %p130 = por %p128, %p129
    %p132 = scmp.ne.s32.totalorder %s117, %s131
    %p133 = scmp.eq.s32.totalorder %s18, 0
    %p134 = por %p132, %p133
    %s136 = sadd.s32 %s135, 1
    %p139 = scmp.eq.s32.totalorder %s12, 1
    %p140 = scmp.ne.s32.totalorder %s135, %s137
    %p141 = scmp.eq.s32.totalorder %s12, 0
    %p142 = por %p140, %p141
    %p143 = scmp.ne.s32.totalorder %s135, %s137
    %p144 = scmp.eq.s32.totalorder %s17, 1
    %p145 = por %p143, %p144
    %p146 = scmp.ne.s32.totalorder %s137, %s138
    %p147 = scmp.eq.s32.totalorder %s17, 0
    %p148 = por %p146, %p147
    %p149 = scmp.ne.s32.totalorder %s137, %s138
    %p150 = scmp.eq.s32.totalorder %s18, 1
    %p151 = por %p149, %p150
    %p153 = scmp.ne.s32.totalorder %s138, %s152
    %p154 = scmp.eq.s32.totalorder %s18, 0
    %p155 = por %p153, %p154
    %s156 = ssub.s32 %s12, %s19
    %p157 = scmp.eq.s32.totalorder %s156, 0
    %s159 = sadd.s32 %s158, 1
    %s160 = scalar_select %p157, %s158, %s159
    %p163 = pneg %p157
    %p164 = scmp.eq.s32.totalorder %s12, 1
    %p165 = por %p163, %p164
    %p166 = scmp.ne.s32.totalorder %s158, %s161
    %p167 = scmp.eq.s32.totalorder %s12, 0
    %p168 = por %p166, %p167
    %p169 = scmp.ne.s32.totalorder %s158, %s161
    %p170 = scmp.eq.s32.totalorder %s17, 1
    %p171 = por %p169, %p170
    %p172 = scmp.ne.s32.totalorder %s161, %s162
    %p173 = scmp.eq.s32.totalorder %s17, 0
    %p174 = por %p172, %p173
    %p175 = scmp.ne.s32.totalorder %s161, %s162
    %p176 = scmp.eq.s32.totalorder %s18, 1
    %p177 = por %p175, %p176
    %p179 = scmp.ne.s32.totalorder %s162, %s178
    %p180 = scmp.eq.s32.totalorder %s18, 0
    %p181 = por %p179, %p180
    %p182 = scmp.le.s32.totalorder 1, %s12
    %p183 = scmp.lt.s32.totalorder %s12, 3
    %p184 = pnand %p182, %p183
    %p185 = pneg %p184
    // Predicated region
    $region9: #{conv_res_forward.5} parent=5 // pred_check
      _
    $region10: #{conv_res_forward.5} parent=5 // pred_check_branch
      %187 = sbr.rel (%p184) target = $region12
    $region11: #{conv_res_forward.5} parent=5 // pred_region
      %s188 = ssub.s32 %s12, 1
      // Predicated region
      $region13: #{conv_res_forward.5} parent=11 // pred_check
        %p189 = pneg %p85
      $region14: #{conv_res_forward.5} parent=11 // pred_check_branch
        %191 = sbr.rel (%p189) target = $region16
      $region15: #{conv_res_forward.5} parent=11 // pred_region
        _
      $region16: #{conv_res_forward.5} parent=11 // pred_fallthru
        _
      // Predicated region
      $region17: #{conv_res_forward.5} parent=11 // pred_check
        %p192 = pneg %p106
      $region18: #{conv_res_forward.5} parent=11 // pred_check_branch
        %194 = sbr.rel (%p192) target = $region20
      $region19: #{conv_res_forward.5} parent=11 // pred_region
        _
      $region20: #{conv_res_forward.5} parent=11 // pred_fallthru
        _
      // Predicated region
      $region21: #{conv_res_forward.5} parent=11 // pred_check
        %p195 = pneg %p127
      $region22: #{conv_res_forward.5} parent=11 // pred_check_branch
        %197 = sbr.rel (%p195) target = $region24
      $region23: #{conv_res_forward.5} parent=11 // pred_region
        _
      $region24: #{conv_res_forward.5} parent=11 // pred_fallthru
        _
      // Predicated region
      $region25: #{conv_res_forward.5} parent=11 // pred_check
        %p198 = pneg %p148
      $region26: #{conv_res_forward.5} parent=11 // pred_check_branch
        %200 = sbr.rel (%p198) target = $region28
      $region27: #{conv_res_forward.5} parent=11 // pred_region
        _
      $region28: #{conv_res_forward.5} parent=11 // pred_fallthru
        _
    $region12: #{conv_res_forward.5} parent=5 // pred_fallthru
      _
    %p201 = scmp.lt.s32.totalorder %s12, 2
    // Predicated region
    $region29: #{conv_res_forward.5} parent=5 // pred_check
      %p202 = pneg %p201
    $region30: #{conv_res_forward.5} parent=5 // pred_check_branch
      %204 = sbr.rel (%p202) target = $region32
    $region31: #{conv_res_forward.5} parent=5 // pred_region
      // Predicated region
      $region33: #{conv_res_forward.5} parent=31 // pred_check
        %p205 = pneg %p32
      $region34: #{conv_res_forward.5} parent=31 // pred_check_branch
        %207 = sbr.rel (%p205) target = $region36
      $region35: #{conv_res_forward.5} parent=31 // pred_region
        %p208 = scmp.lt.s32.totalorder %s12, 1
        %s209 = scalar_select %p208, %s12, 1
        %s210 = smul.addr %s209, 32
        %s211 = smul.addr %s210, 4
        %s212 = scalar_lea.vmem %s0, %s211
      $region36: #{conv_res_forward.5} parent=31 // pred_fallthru
        _
      // Predicated region
      $region37: #{conv_res_forward.5} parent=31 // pred_check
        %p213 = pneg %p58
      $region38: #{conv_res_forward.5} parent=31 // pred_check_branch
        %215 = sbr.rel (%p213) target = $region40
      $region39: #{conv_res_forward.5} parent=31 // pred_region
        %p216 = scmp.lt.s32.totalorder %s12, 1
        %s217 = scalar_select %p216, %s12, 1
        %s218 = smul.addr %s217, 32
        %s219 = smul.addr %s218, 4
        %s220 = scalar_lea.vmem %s1, %s219
      $region40: #{conv_res_forward.5} parent=31 // pred_fallthru
        _
    $region32: #{conv_res_forward.5} parent=5 // pred_fallthru
      _
    %p221 = scmp.le.s32.totalorder 1, %s12
    %p222 = scmp.lt.s32.totalorder %s12, 3
    %p223 = pnand %p221, %p222
    %p224 = pneg %p223
    // Predicated region
    $region41: #{conv_res_forward.5} parent=5 // pred_check
      _
    $region42: #{conv_res_forward.5} parent=5 // pred_check_branch
      %226 = sbr.rel (%p223) target = $region44
    $region43: #{conv_res_forward.5} parent=5 // pred_region
      %s227 = ssub.s32 %s12, 1
      %p228 = scmp.lt.s32.totalorder %s17, 1
      %s229 = scalar_select %p228, %s17, 1
      %s230 = smul.addr %s229, 32
      %s231 = smul.addr %s230, 4
      %s232 = scalar_lea.vmem %s0, %s231
      %p233 = pneg %p38
      %p234 = pneg %p35
      %p235 = scmp.lt.s32.totalorder %s17, 1
      %s236 = scalar_select %p235, %s17, 1
      %s237 = smul.addr %s236, 32
      %s238 = smul.addr %s237, 4
      %s239 = scalar_lea.vmem %s1, %s238
      %p240 = pneg %p64
      %p241 = pneg %p61
      %p242 = pneg %p85
      %p243 = pneg %p82
      %p244 = pneg %p106
      %p245 = pneg %p103
      %p246 = pneg %p127
      %p247 = pneg %p124
      %p248 = pneg %p148
      %p249 = pneg %p145
      %p250 = pneg %p174
      %p251 = pneg %p171
      %p252 = scmp.lt.s32.totalorder %s17, 1
      %s253 = scalar_select %p252, %s17, 1
      %s254 = smul.addr %s253, 32
      %s255 = smul.addr %s254, 4
      %s256 = scalar_lea.vmem %s6, %s255
      %p257 = scmp.lt.s32.totalorder %s17, 1
      %s258 = scalar_select %p257, %s17, 1
      %s259 = smul.addr %s258, 32
      %s260 = smul.addr %s259, 4
      %s261 = scalar_lea.vmem %s0, %s260
      %p262 = scmp.lt.s32.totalorder %s17, 1
      %s263 = scalar_select %p262, %s17, 1
      %s264 = smul.addr %s263, 32
      %s265 = smul.addr %s264, 4
      %s266 = scalar_lea.vmem %s1, %s265
      %p267 = scmp.lt.s32.totalorder %s17, 1
      %s268 = scalar_select %p267, %s17, 1
      %s269 = smul.addr %s268, 32
      %s270 = smul.addr %s269, 4
      %s271 = scalar_lea.vmem %s6, %s270
      %v272 = vld [vmem:[%s261] sm:$0xf]
      %v273 = vld [vmem:[%s261 + $0x4] sm:$0xf]
      %v274 = vld [vmem:[%s261 + $0x8] sm:$0xf]
      %v275 = vld [vmem:[%s261 + $0xc] sm:$0xf]
      %v276 = vld [vmem:[%s261 + $0x10] sm:$0xf]
      %v277 = vld [vmem:[%s261 + $0x14] sm:$0xf]
      %v278 = vld [vmem:[%s261 + $0x18] sm:$0xf]
      %v279 = vld [vmem:[%s261 + $0x1c] sm:$0xf]
      %v280 = vld [vmem:[%s261 + $0x20] sm:$0xf]
      %v281 = vld [vmem:[%s261 + $0x24] sm:$0xf]
      %v282 = vld [vmem:[%s261 + $0x28] sm:$0xf]
      %v283 = vld [vmem:[%s261 + $0x2c] sm:$0xf]
      %v284 = vld [vmem:[%s261 + $0x30] sm:$0xf]
      %v285 = vld [vmem:[%s261 + $0x34] sm:$0xf]
      %v286 = vld [vmem:[%s261 + $0x38] sm:$0xf]
      %v287 = vld [vmem:[%s261 + $0x3c] sm:$0xf]
      %v288 = vld [vmem:[%s261 + $0x40] sm:$0xf]
      %v289 = vld [vmem:[%s261 + $0x44] sm:$0xf]
      %v290 = vld [vmem:[%s261 + $0x48] sm:$0xf]
      %v291 = vld [vmem:[%s261 + $0x4c] sm:$0xf]
      %v292 = vld [vmem:[%s261 + $0x50] sm:$0xf]
      %v293 = vld [vmem:[%s261 + $0x54] sm:$0xf]
      %v294 = vld [vmem:[%s261 + $0x58] sm:$0xf]
      %v295 = vld [vmem:[%s261 + $0x5c] sm:$0xf]
      %v296 = vld [vmem:[%s261 + $0x60] sm:$0xf]
      %v297 = vld [vmem:[%s261 + $0x64] sm:$0xf]
      %v298 = vld [vmem:[%s261 + $0x68] sm:$0xf]
      %v299 = vld [vmem:[%s261 + $0x6c] sm:$0xf]
      %v300 = vld [vmem:[%s261 + $0x70] sm:$0xf]
      %v301 = vld [vmem:[%s261 + $0x74] sm:$0xf]
      %v302 = vld [vmem:[%s261 + $0x78] sm:$0xf]
      %v303 = vld [vmem:[%s261 + $0x7c] sm:$0xf]
      %v304 = vunpack.c.l.bf16 %v272
      %v305 = vunpack.c.l.bf16 %v273
      %v306 = vunpack.c.l.bf16 %v274
      %v307 = vunpack.c.l.bf16 %v275
      %v308 = vunpack.c.l.bf16 %v276
      %v309 = vunpack.c.l.bf16 %v277
      %v310 = vunpack.c.l.bf16 %v278
      %v311 = vunpack.c.l.bf16 %v279
      %v312 = vunpack.c.l.bf16 %v280
      %v313 = vunpack.c.l.bf16 %v281
      %v314 = vunpack.c.l.bf16 %v282
      %v315 = vunpack.c.l.bf16 %v283
      %v316 = vunpack.c.l.bf16 %v284
      %v317 = vunpack.c.l.bf16 %v285
      %v318 = vunpack.c.l.bf16 %v286
      %v319 = vunpack.c.l.bf16 %v287
      %v320 = vunpack.c.l.bf16 %v288
      %v321 = vunpack.c.l.bf16 %v289
      %v322 = vunpack.c.l.bf16 %v290
      %v323 = vunpack.c.l.bf16 %v291
      %v324 = vunpack.c.l.bf16 %v292
      %v325 = vunpack.c.l.bf16 %v293
      %v326 = vunpack.c.l.bf16 %v294
      %v327 = vunpack.c.l.bf16 %v295
      %v328 = vunpack.c.l.bf16 %v296
      %v329 = vunpack.c.l.bf16 %v297
      %v330 = vunpack.c.l.bf16 %v298
      %v331 = vunpack.c.l.bf16 %v299
      %v332 = vunpack.c.l.bf16 %v300
      %v333 = vunpack.c.l.bf16 %v301
      %v334 = vunpack.c.l.bf16 %v302
      %v335 = vunpack.c.l.bf16 %v303
      %v336 = vld [vmem:[%s2] sm:$0x1]
      %v338 = vlaneseq
      %v339 = vshrl.u32 %v338, 7
      %v340 = vsub.s32 0, %v339
      %v341 = vrot.slane %v336, %v340
      %v343 = vmul.f32 %v304, %v341
      %v344 = vmul.f32 %v305, %v341
      %v345 = vmul.f32 %v306, %v341
      %v346 = vmul.f32 %v307, %v341
      %v347 = vmul.f32 %v308, %v341
      %v348 = vmul.f32 %v309, %v341
      %v349 = vmul.f32 %v310, %v341
      %v350 = vmul.f32 %v311, %v341
      %v351 = vmul.f32 %v312, %v341
      %v352 = vmul.f32 %v313, %v341
      %v353 = vmul.f32 %v314, %v341
      %v354 = vmul.f32 %v315, %v341
      %v355 = vmul.f32 %v316, %v341
      %v356 = vmul.f32 %v317, %v341
      %v357 = vmul.f32 %v318, %v341
      %v358 = vmul.f32 %v319, %v341
      %v359 = vmul.f32 %v320, %v341
      %v360 = vmul.f32 %v321, %v341
      %v361 = vmul.f32 %v322, %v341
      %v362 = vmul.f32 %v323, %v341
      %v363 = vmul.f32 %v324, %v341
      %v364 = vmul.f32 %v325, %v341
      %v365 = vmul.f32 %v326, %v341
      %v366 = vmul.f32 %v327, %v341
      %v367 = vmul.f32 %v328, %v341
      %v368 = vmul.f32 %v329, %v341
      %v369 = vmul.f32 %v330, %v341
      %v370 = vmul.f32 %v331, %v341
      %v371 = vmul.f32 %v332, %v341
      %v372 = vmul.f32 %v333, %v341
      %v373 = vmul.f32 %v334, %v341
      %v374 = vmul.f32 %v335, %v341
      %v375 = vld [vmem:[%s3] sm:$0x1]
      %v377 = vlaneseq
      %v378 = vshrl.u32 %v377, 7
      %v379 = vsub.s32 0, %v378
      %v380 = vrot.slane %v375, %v379
      %v382 = vadd.f32 %v343, %v380
      %v383 = vadd.f32 %v344, %v380
      %v384 = vadd.f32 %v345, %v380
      %v385 = vadd.f32 %v346, %v380
      %v386 = vadd.f32 %v347, %v380
      %v387 = vadd.f32 %v348, %v380
      %v388 = vadd.f32 %v349, %v380
      %v389 = vadd.f32 %v350, %v380
      %v390 = vadd.f32 %v351, %v380
      %v391 = vadd.f32 %v352, %v380
      %v392 = vadd.f32 %v353, %v380
      %v393 = vadd.f32 %v354, %v380
      %v394 = vadd.f32 %v355, %v380
      %v395 = vadd.f32 %v356, %v380
      %v396 = vadd.f32 %v357, %v380
      %v397 = vadd.f32 %v358, %v380
      %v398 = vadd.f32 %v359, %v380
      %v399 = vadd.f32 %v360, %v380
      %v400 = vadd.f32 %v361, %v380
      %v401 = vadd.f32 %v362, %v380
      %v402 = vadd.f32 %v363, %v380
      %v403 = vadd.f32 %v364, %v380
      %v404 = vadd.f32 %v365, %v380
      %v405 = vadd.f32 %v366, %v380
      %v406 = vadd.f32 %v367, %v380
      %v407 = vadd.f32 %v368, %v380
      %v408 = vadd.f32 %v369, %v380
      %v409 = vadd.f32 %v370, %v380
      %v410 = vadd.f32 %v371, %v380
      %v411 = vadd.f32 %v372, %v380
      %v412 = vadd.f32 %v373, %v380
      %v413 = vadd.f32 %v374, %v380
      %v414 = vld [vmem:[%s266] sm:$0xf]
      %v415 = vld [vmem:[%s266 + $0x4] sm:$0xf]
      %v416 = vld [vmem:[%s266 + $0x8] sm:$0xf]
      %v417 = vld [vmem:[%s266 + $0xc] sm:$0xf]
      %v418 = vld [vmem:[%s266 + $0x10] sm:$0xf]
      %v419 = vld [vmem:[%s266 + $0x14] sm:$0xf]
      %v420 = vld [vmem:[%s266 + $0x18] sm:$0xf]
      %v421 = vld [vmem:[%s266 + $0x1c] sm:$0xf]
      %v422 = vld [vmem:[%s266 + $0x20] sm:$0xf]
      %v423 = vld [vmem:[%s266 + $0x24] sm:$0xf]
      %v424 = vld [vmem:[%s266 + $0x28] sm:$0xf]
      %v425 = vld [vmem:[%s266 + $0x2c] sm:$0xf]
      %v426 = vld [vmem:[%s266 + $0x30] sm:$0xf]
      %v427 = vld [vmem:[%s266 + $0x34] sm:$0xf]
      %v428 = vld [vmem:[%s266 + $0x38] sm:$0xf]
      %v429 = vld [vmem:[%s266 + $0x3c] sm:$0xf]
      %v430 = vld [vmem:[%s266 + $0x40] sm:$0xf]
      %v431 = vld [vmem:[%s266 + $0x44] sm:$0xf]
      %v432 = vld [vmem:[%s266 + $0x48] sm:$0xf]
      %v433 = vld [vmem:[%s266 + $0x4c] sm:$0xf]
      %v434 = vld [vmem:[%s266 + $0x50] sm:$0xf]
      %v435 = vld [vmem:[%s266 + $0x54] sm:$0xf]
      %v436 = vld [vmem:[%s266 + $0x58] sm:$0xf]
      %v437 = vld [vmem:[%s266 + $0x5c] sm:$0xf]
      %v438 = vld [vmem:[%s266 + $0x60] sm:$0xf]
      %v439 = vld [vmem:[%s266 + $0x64] sm:$0xf]
      %v440 = vld [vmem:[%s266 + $0x68] sm:$0xf]
      %v441 = vld [vmem:[%s266 + $0x6c] sm:$0xf]
      %v442 = vld [vmem:[%s266 + $0x70] sm:$0xf]
      %v443 = vld [vmem:[%s266 + $0x74] sm:$0xf]
      %v444 = vld [vmem:[%s266 + $0x78] sm:$0xf]
      %v445 = vld [vmem:[%s266 + $0x7c] sm:$0xf]
      %v446 = vunpack.c.l.bf16 %v414
      %v447 = vunpack.c.l.bf16 %v415
      %v448 = vunpack.c.l.bf16 %v416
      %v449 = vunpack.c.l.bf16 %v417
      %v450 = vunpack.c.l.bf16 %v418
      %v451 = vunpack.c.l.bf16 %v419
      %v452 = vunpack.c.l.bf16 %v420
      %v453 = vunpack.c.l.bf16 %v421
      %v454 = vunpack.c.l.bf16 %v422
      %v455 = vunpack.c.l.bf16 %v423
      %v456 = vunpack.c.l.bf16 %v424
      %v457 = vunpack.c.l.bf16 %v425
      %v458 = vunpack.c.l.bf16 %v426
      %v459 = vunpack.c.l.bf16 %v427
      %v460 = vunpack.c.l.bf16 %v428
      %v461 = vunpack.c.l.bf16 %v429
      %v462 = vunpack.c.l.bf16 %v430
      %v463 = vunpack.c.l.bf16 %v431
      %v464 = vunpack.c.l.bf16 %v432
      %v465 = vunpack.c.l.bf16 %v433
      %v466 = vunpack.c.l.bf16 %v434
      %v467 = vunpack.c.l.bf16 %v435
      %v468 = vunpack.c.l.bf16 %v436
      %v469 = vunpack.c.l.bf16 %v437
      %v470 = vunpack.c.l.bf16 %v438
      %v471 = vunpack.c.l.bf16 %v439
      %v472 = vunpack.c.l.bf16 %v440
      %v473 = vunpack.c.l.bf16 %v441
      %v474 = vunpack.c.l.bf16 %v442
      %v475 = vunpack.c.l.bf16 %v443
      %v476 = vunpack.c.l.bf16 %v444
      %v477 = vunpack.c.l.bf16 %v445
      %v478 = vld [vmem:[%s4] sm:$0x1]
      %v480 = vlaneseq
      %v481 = vshrl.u32 %v480, 7
      %v482 = vsub.s32 0, %v481
      %v483 = vrot.slane %v478, %v482
      %v485 = vmul.f32 %v446, %v483
      %v486 = vmul.f32 %v447, %v483
      %v487 = vmul.f32 %v448, %v483
      %v488 = vmul.f32 %v449, %v483
      %v489 = vmul.f32 %v450, %v483
      %v490 = vmul.f32 %v451, %v483
      %v491 = vmul.f32 %v452, %v483
      %v492 = vmul.f32 %v453, %v483
      %v493 = vmul.f32 %v454, %v483
      %v494 = vmul.f32 %v455, %v483
      %v495 = vmul.f32 %v456, %v483
      %v496 = vmul.f32 %v457, %v483
      %v497 = vmul.f32 %v458, %v483
      %v498 = vmul.f32 %v459, %v483
      %v499 = vmul.f32 %v460, %v483
      %v500 = vmul.f32 %v461, %v483
      %v501 = vmul.f32 %v462, %v483
      %v502 = vmul.f32 %v463, %v483
      %v503 = vmul.f32 %v464, %v483
      %v504 = vmul.f32 %v465, %v483
      %v505 = vmul.f32 %v466, %v483
      %v506 = vmul.f32 %v467, %v483
      %v507 = vmul.f32 %v468, %v483
      %v508 = vmul.f32 %v469, %v483
      %v509 = vmul.f32 %v470, %v483
      %v510 = vmul.f32 %v471, %v483
      %v511 = vmul.f32 %v472, %v483
      %v512 = vmul.f32 %v473, %v483
      %v513 = vmul.f32 %v474, %v483
      %v514 = vmul.f32 %v475, %v483
      %v515 = vmul.f32 %v476, %v483
      %v516 = vmul.f32 %v477, %v483
      %v517 = vld [vmem:[%s5] sm:$0x1]
      %v519 = vlaneseq
      %v520 = vshrl.u32 %v519, 7
      %v521 = vsub.s32 0, %v520
      %v522 = vrot.slane %v517, %v521
      %v524 = vadd.f32 %v485, %v522
      %v525 = vadd.f32 %v486, %v522
      %v526 = vadd.f32 %v487, %v522
      %v527 = vadd.f32 %v488, %v522
      %v528 = vadd.f32 %v489, %v522
      %v529 = vadd.f32 %v490, %v522
      %v530 = vadd.f32 %v491, %v522
      %v531 = vadd.f32 %v492, %v522
      %v532 = vadd.f32 %v493, %v522
      %v533 = vadd.f32 %v494, %v522
      %v534 = vadd.f32 %v495, %v522
      %v535 = vadd.f32 %v496, %v522
      %v536 = vadd.f32 %v497, %v522
      %v537 = vadd.f32 %v498, %v522
      %v538 = vadd.f32 %v499, %v522
      %v539 = vadd.f32 %v500, %v522
      %v540 = vadd.f32 %v501, %v522
      %v541 = vadd.f32 %v502, %v522
      %v542 = vadd.f32 %v503, %v522
      %v543 = vadd.f32 %v504, %v522
      %v544 = vadd.f32 %v505, %v522
      %v545 = vadd.f32 %v506, %v522
      %v546 = vadd.f32 %v507, %v522
      %v547 = vadd.f32 %v508, %v522
      %v548 = vadd.f32 %v509, %v522
      %v549 = vadd.f32 %v510, %v522
      %v550 = vadd.f32 %v511, %v522
      %v551 = vadd.f32 %v512, %v522
      %v552 = vadd.f32 %v513, %v522
      %v553 = vadd.f32 %v514, %v522
      %v554 = vadd.f32 %v515, %v522
      %v555 = vadd.f32 %v516, %v522
      %v556 = vadd.f32 %v382, %v524
      %v557 = vadd.f32 %v383, %v525
      %v558 = vadd.f32 %v384, %v526
      %v559 = vadd.f32 %v385, %v527
      %v560 = vadd.f32 %v386, %v528
      %v561 = vadd.f32 %v387, %v529
      %v562 = vadd.f32 %v388, %v530
      %v563 = vadd.f32 %v389, %v531
      %v564 = vadd.f32 %v390, %v532
      %v565 = vadd.f32 %v391, %v533
      %v566 = vadd.f32 %v392, %v534
      %v567 = vadd.f32 %v393, %v535
      %v568 = vadd.f32 %v394, %v536
      %v569 = vadd.f32 %v395, %v537
      %v570 = vadd.f32 %v396, %v538
      %v571 = vadd.f32 %v397, %v539
      %v572 = vadd.f32 %v398, %v540
      %v573 = vadd.f32 %v399, %v541
      %v574 = vadd.f32 %v400, %v542
      %v575 = vadd.f32 %v401, %v543
      %v576 = vadd.f32 %v402, %v544
      %v577 = vadd.f32 %v403, %v545
      %v578 = vadd.f32 %v404, %v546
      %v579 = vadd.f32 %v405, %v547
      %v580 = vadd.f32 %v406, %v548
      %v581 = vadd.f32 %v407, %v549
      %v582 = vadd.f32 %v408, %v550
      %v583 = vadd.f32 %v409, %v551
      %v584 = vadd.f32 %v410, %v552
      %v585 = vadd.f32 %v411, %v553
      %v586 = vadd.f32 %v412, %v554
      %v587 = vadd.f32 %v413, %v555
      %v588 = vpack.c.bf16 %v557, %v556
      %v589 = vpack.c.bf16 %v559, %v558
      %v590 = vpack.c.bf16 %v561, %v560
      %v591 = vpack.c.bf16 %v563, %v562
      %v592 = vpack.c.bf16 %v565, %v564
      %v593 = vpack.c.bf16 %v567, %v566
      %v594 = vpack.c.bf16 %v569, %v568
      %v595 = vpack.c.bf16 %v571, %v570
      %v596 = vpack.c.bf16 %v573, %v572
      %v597 = vpack.c.bf16 %v575, %v574
      %v598 = vpack.c.bf16 %v577, %v576
      %v599 = vpack.c.bf16 %v579, %v578
      %v600 = vpack.c.bf16 %v581, %v580
      %v601 = vpack.c.bf16 %v583, %v582
      %v602 = vpack.c.bf16 %v585, %v584
      %v603 = vpack.c.bf16 %v587, %v586
      %v620 = vunpack.c.l.b16 %v588
      %v621 = vunpack.c.h.b16 %v588
      %v622 = vunpack.c.l.b16 %v589
      %v623 = vunpack.c.h.b16 %v589
      %v624 = vunpack.c.l.b16 %v590
      %v625 = vunpack.c.h.b16 %v590
      %v626 = vunpack.c.l.b16 %v591
      %v627 = vunpack.c.h.b16 %v591
      %v628 = vunpack.c.l.b16 %v592
      %v629 = vunpack.c.h.b16 %v592
      %v630 = vunpack.c.l.b16 %v593
      %v631 = vunpack.c.h.b16 %v593
      %v632 = vunpack.c.l.b16 %v594
      %v633 = vunpack.c.h.b16 %v594
      %v634 = vunpack.c.l.b16 %v595
      %v635 = vunpack.c.h.b16 %v595
      %v636 = vunpack.c.l.b16 %v596
      %v637 = vunpack.c.h.b16 %v596
      %v638 = vunpack.c.l.b16 %v597
      %v639 = vunpack.c.h.b16 %v597
      %v640 = vunpack.c.l.b16 %v598
      %v641 = vunpack.c.h.b16 %v598
      %v642 = vunpack.c.l.b16 %v599
      %v643 = vunpack.c.h.b16 %v599
      %v644 = vunpack.c.l.b16 %v600
      %v645 = vunpack.c.h.b16 %v600
      %v646 = vunpack.c.l.b16 %v601
      %v647 = vunpack.c.h.b16 %v601
      %v648 = vunpack.c.l.b16 %v602
      %v649 = vunpack.c.h.b16 %v602
      %v650 = vunpack.c.l.b16 %v603
      %v651 = vunpack.c.h.b16 %v603
      %v652 = vpack.c.b16 %v620, %v620
      %v653 = vpack.c.b16 %v621, %v621
      %v654 = vpack.c.b16 %v622, %v622
      %v655 = vpack.c.b16 %v623, %v623
      %v656 = vpack.c.b16 %v624, %v624
      %v657 = vpack.c.b16 %v625, %v625
      %v658 = vpack.c.b16 %v626, %v626
      %v659 = vpack.c.b16 %v627, %v627
      %v660 = vpack.c.b16 %v628, %v628
      %v661 = vpack.c.b16 %v629, %v629
      %v662 = vpack.c.b16 %v630, %v630
      %v663 = vpack.c.b16 %v631, %v631
      %v664 = vpack.c.b16 %v632, %v632
      %v665 = vpack.c.b16 %v633, %v633
      %v666 = vpack.c.b16 %v634, %v634
      %v667 = vpack.c.b16 %v635, %v635
      %v668 = vpack.c.b16 %v636, %v636
      %v669 = vpack.c.b16 %v637, %v637
      %v670 = vpack.c.b16 %v638, %v638
      %v671 = vpack.c.b16 %v639, %v639
      %v672 = vpack.c.b16 %v640, %v640
      %v673 = vpack.c.b16 %v641, %v641
      %v674 = vpack.c.b16 %v642, %v642
      %v675 = vpack.c.b16 %v643, %v643
      %v676 = vpack.c.b16 %v644, %v644
      %v677 = vpack.c.b16 %v645, %v645
      %v678 = vpack.c.b16 %v646, %v646
      %v679 = vpack.c.b16 %v647, %v647
      %v680 = vpack.c.b16 %v648, %v648
      %v681 = vpack.c.b16 %v649, %v649
      %v682 = vpack.c.b16 %v650, %v650
      %v683 = vpack.c.b16 %v651, %v651
      %716 = vst [vmem:[%s271] sm:$0xf] %v652
      %717 = vst [vmem:[%s271 + $0x4] sm:$0xf] %v653
      %718 = vst [vmem:[%s271 + $0x8] sm:$0xf] %v654
      %719 = vst [vmem:[%s271 + $0xc] sm:$0xf] %v655
      %720 = vst [vmem:[%s271 + $0x10] sm:$0xf] %v656
      %721 = vst [vmem:[%s271 + $0x14] sm:$0xf] %v657
      %722 = vst [vmem:[%s271 + $0x18] sm:$0xf] %v658
      %723 = vst [vmem:[%s271 + $0x1c] sm:$0xf] %v659
      %724 = vst [vmem:[%s271 + $0x20] sm:$0xf] %v660
      %725 = vst [vmem:[%s271 + $0x24] sm:$0xf] %v661
      %726 = vst [vmem:[%s271 + $0x28] sm:$0xf] %v662
      %727 = vst [vmem:[%s271 + $0x2c] sm:$0xf] %v663
      %728 = vst [vmem:[%s271 + $0x30] sm:$0xf] %v664
      %729 = vst [vmem:[%s271 + $0x34] sm:$0xf] %v665
      %730 = vst [vmem:[%s271 + $0x38] sm:$0xf] %v666
      %731 = vst [vmem:[%s271 + $0x3c] sm:$0xf] %v667
      %732 = vst [vmem:[%s271 + $0x40] sm:$0xf] %v668
      %733 = vst [vmem:[%s271 + $0x44] sm:$0xf] %v669
      %734 = vst [vmem:[%s271 + $0x48] sm:$0xf] %v670
      %735 = vst [vmem:[%s271 + $0x4c] sm:$0xf] %v671
      %736 = vst [vmem:[%s271 + $0x50] sm:$0xf] %v672
      %737 = vst [vmem:[%s271 + $0x54] sm:$0xf] %v673
      %738 = vst [vmem:[%s271 + $0x58] sm:$0xf] %v674
      %739 = vst [vmem:[%s271 + $0x5c] sm:$0xf] %v675
      %740 = vst [vmem:[%s271 + $0x60] sm:$0xf] %v676
      %741 = vst [vmem:[%s271 + $0x64] sm:$0xf] %v677
      %742 = vst [vmem:[%s271 + $0x68] sm:$0xf] %v678
      %743 = vst [vmem:[%s271 + $0x6c] sm:$0xf] %v679
      %744 = vst [vmem:[%s271 + $0x70] sm:$0xf] %v680
      %745 = vst [vmem:[%s271 + $0x74] sm:$0xf] %v681
      %746 = vst [vmem:[%s271 + $0x78] sm:$0xf] %v682
      %747 = vst [vmem:[%s271 + $0x7c] sm:$0xf] %v683
      %p748 = scmp.lt.s32.totalorder %s17, 1
      %s749 = scalar_select %p748, %s17, 1
      %s750 = smul.addr %s749, 32
      %s751 = smul.addr %s750, 4
      %s752 = scalar_lea.vmem %s6, %s751
      // Predicated region
      $region45: #{conv_res_forward.5} parent=43 // pred_check
        %p753 = pneg %p171
      $region46: #{conv_res_forward.5} parent=43 // pred_check_branch
        %755 = sbr.rel (%p753) target = $region48
      $region47: #{conv_res_forward.5} parent=43 // pred_region
        _
      $region48: #{conv_res_forward.5} parent=43 // pred_fallthru
        _
    $region44: #{conv_res_forward.5} parent=5 // pred_fallthru
      _
    %p756 = scmp.le.s32.totalorder 2, %s12
    // Predicated region
    $region49: #{conv_res_forward.5} parent=5 // pred_check
      %p757 = pneg %p756
    $region50: #{conv_res_forward.5} parent=5 // pred_check_branch
      %759 = sbr.rel (%p757) target = $region52
    $region51: #{conv_res_forward.5} parent=5 // pred_region
      %s760 = ssub.s32 %s12, 2
      // Predicated region
      $region53: #{conv_res_forward.5} parent=51 // pred_check
        %p761 = pneg %p177
      $region54: #{conv_res_forward.5} parent=51 // pred_check_branch
        %763 = sbr.rel (%p761) target = $region56
      $region55: #{conv_res_forward.5} parent=51 // pred_region
        %p764 = scmp.lt.s32.totalorder %s18, 1
        %s765 = scalar_select %p764, %s18, 1
        %s766 = smul.addr %s765, 32
        %s767 = smul.addr %s766, 4
        %s768 = scalar_lea.vmem %s6, %s767
      $region56: #{conv_res_forward.5} parent=51 // pred_fallthru
        _
    $region52: #{conv_res_forward.5} parent=5 // pred_fallthru
      _
  $region6: #{conv_res_forward.5} parent=0 // loop_footer
    %s16 = sadd.s32 1, %s12
  $region7: #{conv_res_forward.5} parent=0 // loop_footer_branch
    %11 = sbr.rel target = $region3
  $region8: #{conv_res_forward.5} parent=0 // loop_exit
    _

// kernel: conv_res_forward.3
$region0: #{conv_res_forward.3}
  #allocation0 [shape = 'u32[]', space=smem, size = 0x4, offset = 0x4, fixed_abs, tag = 'smem constant byte address 0x4 - core index']
  #allocation1 [shape = 'u32[144,128]{1,0:T(1,128)}', space=vmem, size = 0x12000, scoped, tag = 'internal scratch']
  #allocation2 [shape = 'bf16[18,18,4]{2,1,0:T(8,128)(2,1)}', space=vmem, size = 0x1b000, scoped, tag = 'scratch operand']
  %s0 = inlined_call_operand.vmem [shape: bf16[2,16,16,4], index: 0, kind: input, shape index: {}]
  %s1 = inlined_call_operand.vmem [shape: bf16[9,4,128], index: 1, kind: input, shape index: {}]
  %s2 = inlined_call_operand.vmem [shape: f32[1,128], index: 2, kind: input, shape index: {}]
  %s3 = inlined_call_operand.vmem [shape: bf16[4,128], index: 3, kind: input, shape index: {}]
  %s4 = inlined_call_operand.vmem [shape: f32[1,128], index: 4, kind: input, shape index: {}]
  %s5 = inlined_call_operand.vmem [shape: bf16[2,256,128], index: 5, kind: output, shape index: {0}]
  %s6 = inlined_call_operand.vmem [shape: bf16[2,256,128], index: 6, kind: output, shape index: {1}]
  %s7 = inlined_call_operand.vmem [shape: f32[2,4,128], index: 7, kind: output, shape index: {2}]
  %8 = xla_tuple %s5, %s6, %s7
  %s9 = sld [smem:[#allocation0]]
  $region69: #{conv_res_forward.3} parent=0
    _
  %s11 = ssub.s32 1, %s9
  %s12 = scalar_select 0, %s11, %s9
  loop: start=0, step=1, limit=4
  $region2: #{conv_res_forward.3} parent=0 // loop_pre_header
    _
  $region3: #{conv_res_forward.3} parent=0 // loop_header
    %s14 = sphi 0, %s18
    %p15 = scmp.ge.s32.totalorder %s14, 4
    %s24 = sphi 0, %s26
    %s27 = sphi 0, %s24
    %s28 = sphi 0, %s27
    %s44 = sphi 0, %s28
    %s48 = sphi 0, %s48
    %s50 = sphi 0, %s48
    %s51 = sphi 0, %s50
    %s65 = sphi 0, %s51
    %s69 = sphi 0, %s69
    %s71 = sphi 0, %s69
    %s72 = sphi 0, %s71
    %s86 = sphi 0, %s72
    %s90 = sphi 0, %s90
    %s92 = sphi 0, %s90
    %s93 = sphi 0, %s92
    %s107 = sphi 0, %s93
    %s111 = sphi 0, %s111
    %s113 = sphi 0, %s111
    %s114 = sphi 0, %s113
    %s128 = sphi 0, %s114
    %s134 = sphi 0, %s136
    %s137 = sphi 0, %s134
    %s138 = sphi 0, %s137
    %s154 = sphi 0, %s138
    %s160 = sphi 0, %s162
    %s163 = sphi 0, %s160
    %s164 = sphi 0, %s163
    %s180 = sphi 0, %s164
    %s186 = sphi 0, %s188
    %s189 = sphi 0, %s186
    %s190 = sphi 0, %s189
    %s206 = sphi 0, %s190
  $region4: #{conv_res_forward.3} parent=0 // loop_header_branch
    %17 = sbr.rel (%p15) target = $region8
  $region5: #{conv_res_forward.3} parent=0 // loop_body
    %s19 = ssub.s32 %s14, 1
    %s20 = ssub.s32 %s14, 2
    %s21 = sadd.s32 %s14, 1
    %s22 = ssub.s32 %s14, %s21
    %p23 = scmp.eq.s32.totalorder %s22, 0
    %s25 = sadd.s32 %s24, 1
    %s26 = scalar_select %p23, %s24, %s25
    %p29 = pneg %p23
    %p30 = scmp.eq.s32.totalorder %s14, 1
    %p31 = por %p29, %p30
    %p32 = scmp.ne.s32.totalorder %s24, %s27
    %p33 = scmp.eq.s32.totalorder %s14, 0
    %p34 = por %p32, %p33
    %p35 = scmp.ne.s32.totalorder %s24, %s27
    %p36 = scmp.eq.s32.totalorder %s19, 1
    %p37 = por %p35, %p36
    %p38 = scmp.ne.s32.totalorder %s27, %s28
    %p39 = scmp.eq.s32.totalorder %s19, 0
    %p40 = por %p38, %p39
    %p41 = scmp.ne.s32.totalorder %s27, %s28
    %p42 = scmp.eq.s32.totalorder %s20, 1
    %p43 = por %p41, %p42
    %p45 = scmp.ne.s32.totalorder %s28, %s44
    %p46 = scmp.eq.s32.totalorder %s20, 0
    %p47 = por %p45, %p46
    %s49 = sadd.s32 %s48, 1
    %p52 = scmp.eq.s32.totalorder %s14, 1
    %p53 = scmp.ne.s32.totalorder %s48, %s50
    %p54 = scmp.eq.s32.totalorder %s14, 0
    %p55 = por %p53, %p54
    %p56 = scmp.ne.s32.totalorder %s48, %s50
    %p57 = scmp.eq.s32.totalorder %s19, 1
    %p58 = por %p56, %p57
    %p59 = scmp.ne.s32.totalorder %s50, %s51
    %p60 = scmp.eq.s32.totalorder %s19, 0
    %p61 = por %p59, %p60
    %p62 = scmp.ne.s32.totalorder %s50, %s51
    %p63 = scmp.eq.s32.totalorder %s20, 1
    %p64 = por %p62, %p63
    %p66 = scmp.ne.s32.totalorder %s51, %s65
    %p67 = scmp.eq.s32.totalorder %s20, 0
    %p68 = por %p66, %p67
    %s70 = sadd.s32 %s69, 1
    %p73 = scmp.eq.s32.totalorder %s14, 1
    %p74 = scmp.ne.s32.totalorder %s69, %s71
    %p75 = scmp.eq.s32.totalorder %s14, 0
    %p76 = por %p74, %p75
    %p77 = scmp.ne.s32.totalorder %s69, %s71
    %p78 = scmp.eq.s32.totalorder %s19, 1
    %p79 = por %p77, %p78
    %p80 = scmp.ne.s32.totalorder %s71, %s72
    %p81 = scmp.eq.s32.totalorder %s19, 0
    %p82 = por %p80, %p81
    %p83 = scmp.ne.s32.totalorder %s71, %s72
    %p84 = scmp.eq.s32.totalorder %s20, 1
    %p85 = por %p83, %p84
    %p87 = scmp.ne.s32.totalorder %s72, %s86
    %p88 = scmp.eq.s32.totalorder %s20, 0
    %p89 = por %p87, %p88
    %s91 = sadd.s32 %s90, 1
    %p94 = scmp.eq.s32.totalorder %s14, 1
    %p95 = scmp.ne.s32.totalorder %s90, %s92
    %p96 = scmp.eq.s32.totalorder %s14, 0
    %p97 = por %p95, %p96
    %p98 = scmp.ne.s32.totalorder %s90, %s92
    %p99 = scmp.eq.s32.totalorder %s19, 1
    %p100 = por %p98, %p99
    %p101 = scmp.ne.s32.totalorder %s92, %s93
    %p102 = scmp.eq.s32.totalorder %s19, 0
    %p103 = por %p101, %p102
    %p104 = scmp.ne.s32.totalorder %s92, %s93
    %p105 = scmp.eq.s32.totalorder %s20, 1
    %p106 = por %p104, %p105
    %p108 = scmp.ne.s32.totalorder %s93, %s107
    %p109 = scmp.eq.s32.totalorder %s20, 0
    %p110 = por %p108, %p109
    %s112 = sadd.s32 %s111, 1
    %p115 = scmp.eq.s32.totalorder %s14, 1
    %p116 = scmp.ne.s32.totalorder %s111, %s113
    %p117 = scmp.eq.s32.totalorder %s14, 0
    %p118 = por %p116, %p117
    %p119 = scmp.ne.s32.totalorder %s111, %s113
    %p120 = scmp.eq.s32.totalorder %s19, 1
    %p121 = por %p119, %p120
    %p122 = scmp.ne.s32.totalorder %s113, %s114
    %p123 = scmp.eq.s32.totalorder %s19, 0
    %p124 = por %p122, %p123
    %p125 = scmp.ne.s32.totalorder %s113, %s114
    %p126 = scmp.eq.s32.totalorder %s20, 1
    %p127 = por %p125, %p126
    %p129 = scmp.ne.s32.totalorder %s114, %s128
    %p130 = scmp.eq.s32.totalorder %s20, 0
    %p131 = por %p129, %p130
    %s132 = ssub.s32 %s14, %s21
    %p133 = scmp.eq.s32.totalorder %s132, 0
    %s135 = sadd.s32 %s134, 1
    %s136 = scalar_select %p133, %s134, %s135
    %p139 = pneg %p133
    %p140 = scmp.eq.s32.totalorder %s14, 1
    %p141 = por %p139, %p140
    %p142 = scmp.ne.s32.totalorder %s134, %s137
    %p143 = scmp.eq.s32.totalorder %s14, 0
    %p144 = por %p142, %p143
    %p145 = scmp.ne.s32.totalorder %s134, %s137
    %p146 = scmp.eq.s32.totalorder %s19, 1
    %p147 = por %p145, %p146
    %p148 = scmp.ne.s32.totalorder %s137, %s138
    %p149 = scmp.eq.s32.totalorder %s19, 0
    %p150 = por %p148, %p149
    %p151 = scmp.ne.s32.totalorder %s137, %s138
    %p152 = scmp.eq.s32.totalorder %s20, 1
    %p153 = por %p151, %p152
    %p155 = scmp.ne.s32.totalorder %s138, %s154
    %p156 = scmp.eq.s32.totalorder %s20, 0
    %p157 = por %p155, %p156
    %s158 = ssub.s32 %s14, %s21
    %p159 = scmp.eq.s32.totalorder %s158, 0
    %s161 = sadd.s32 %s160, 1
    %s162 = scalar_select %p159, %s160, %s161
    %p165 = pneg %p159
    %p166 = scmp.eq.s32.totalorder %s14, 1
    %p167 = por %p165, %p166
    %p168 = scmp.ne.s32.totalorder %s160, %s163
    %p169 = scmp.eq.s32.totalorder %s14, 0
    %p170 = por %p168, %p169
    %p171 = scmp.ne.s32.totalorder %s160, %s163
    %p172 = scmp.eq.s32.totalorder %s19, 1
    %p173 = por %p171, %p172
    %p174 = scmp.ne.s32.totalorder %s163, %s164
    %p175 = scmp.eq.s32.totalorder %s19, 0
    %p176 = por %p174, %p175
    %p177 = scmp.ne.s32.totalorder %s163, %s164
    %p178 = scmp.eq.s32.totalorder %s20, 1
    %p179 = por %p177, %p178
    %p181 = scmp.ne.s32.totalorder %s164, %s180
    %p182 = scmp.eq.s32.totalorder %s20, 0
    %p183 = por %p181, %p182
    %s184 = ssub.s32 %s14, %s21
    %p185 = scmp.eq.s32.totalorder %s184, 0
    %s187 = sadd.s32 %s186, 1
    %s188 = scalar_select %p185, %s186, %s187
    %p191 = pneg %p185
    %p192 = scmp.eq.s32.totalorder %s14, 1
    %p193 = por %p191, %p192
    %p194 = scmp.ne.s32.totalorder %s186, %s189
    %p195 = scmp.eq.s32.totalorder %s14, 0
    %p196 = por %p194, %p195
    %p197 = scmp.ne.s32.totalorder %s186, %s189
    %p198 = scmp.eq.s32.totalorder %s19, 1
    %p199 = por %p197, %p198
    %p200 = scmp.ne.s32.totalorder %s189, %s190
    %p201 = scmp.eq.s32.totalorder %s19, 0
    %p202 = por %p200, %p201
    %p203 = scmp.ne.s32.totalorder %s189, %s190
    %p204 = scmp.eq.s32.totalorder %s20, 1
    %p205 = por %p203, %p204
    %p207 = scmp.ne.s32.totalorder %s190, %s206
    %p208 = scmp.eq.s32.totalorder %s20, 0
    %p209 = por %p207, %p208
    %p210 = scmp.le.s32.totalorder 1, %s14
    %p211 = scmp.lt.s32.totalorder %s14, 3
    %p212 = pnand %p210, %p211
    %p213 = pneg %p212
    // Predicated region
    $region9: #{conv_res_forward.3} parent=5 // pred_check
      _
    $region10: #{conv_res_forward.3} parent=5 // pred_check_branch
      %215 = sbr.rel (%p212) target = $region12
    $region11: #{conv_res_forward.3} parent=5 // pred_region
      %s216 = ssub.s32 %s14, 1
      // Predicated region
      $region13: #{conv_res_forward.3} parent=11 // pred_check
        %p217 = pneg %p61
      $region14: #{conv_res_forward.3} parent=11 // pred_check_branch
        %219 = sbr.rel (%p217) target = $region16
      $region15: #{conv_res_forward.3} parent=11 // pred_region
        _
      $region16: #{conv_res_forward.3} parent=11 // pred_fallthru
        _
      // Predicated region
      $region17: #{conv_res_forward.3} parent=11 // pred_check
        %p220 = pneg %p82
      $region18: #{conv_res_forward.3} parent=11 // pred_check_branch
        %222 = sbr.rel (%p220) target = $region20
      $region19: #{conv_res_forward.3} parent=11 // pred_region
        _
      $region20: #{conv_res_forward.3} parent=11 // pred_fallthru
        _
      // Predicated region
      $region21: #{conv_res_forward.3} parent=11 // pred_check
        %p223 = pneg %p103
      $region22: #{conv_res_forward.3} parent=11 // pred_check_branch
        %225 = sbr.rel (%p223) target = $region24
      $region23: #{conv_res_forward.3} parent=11 // pred_region
        _
      $region24: #{conv_res_forward.3} parent=11 // pred_fallthru
        _
      // Predicated region
      $region25: #{conv_res_forward.3} parent=11 // pred_check
        %p226 = pneg %p124
      $region26: #{conv_res_forward.3} parent=11 // pred_check_branch
        %228 = sbr.rel (%p226) target = $region28
      $region27: #{conv_res_forward.3} parent=11 // pred_region
        _
      $region28: #{conv_res_forward.3} parent=11 // pred_fallthru
        _
    $region12: #{conv_res_forward.3} parent=5 // pred_fallthru
      _
    %p229 = scmp.lt.s32.totalorder %s14, 2
    // Predicated region
    $region29: #{conv_res_forward.3} parent=5 // pred_check
      %p230 = pneg %p229
    $region30: #{conv_res_forward.3} parent=5 // pred_check_branch
      %232 = sbr.rel (%p230) target = $region32
    $region31: #{conv_res_forward.3} parent=5 // pred_region
      // Predicated region
      $region33: #{conv_res_forward.3} parent=31 // pred_check
        %p233 = pneg %p34
      $region34: #{conv_res_forward.3} parent=31 // pred_check_branch
        %235 = sbr.rel (%p233) target = $region36
      $region35: #{conv_res_forward.3} parent=31 // pred_region
        %p236 = scmp.lt.s32.totalorder %s14, 1
        %s237 = scalar_select %p236, %s14, 1
        %s238 = smul.addr %s237, 32
        %s239 = smul.addr %s238, 4
        %s240 = scalar_lea.vmem %s0, %s239
      $region36: #{conv_res_forward.3} parent=31 // pred_fallthru
        _
    $region32: #{conv_res_forward.3} parent=5 // pred_fallthru
      _
    %p241 = scmp.le.s32.totalorder 1, %s14
    %p242 = scmp.lt.s32.totalorder %s14, 3
    %p243 = pnand %p241, %p242
    %p244 = pneg %p243
    // Predicated region
    $region37: #{conv_res_forward.3} parent=5 // pred_check
      _
    $region38: #{conv_res_forward.3} parent=5 // pred_check_branch
      %246 = sbr.rel (%p243) target = $region40
    $region39: #{conv_res_forward.3} parent=5 // pred_region
      %s247 = ssub.s32 %s14, 1
      %p248 = scmp.lt.s32.totalorder %s19, 1
      %s249 = scalar_select %p248, %s19, 1
      %s250 = smul.addr %s249, 32
      %s251 = smul.addr %s250, 4
      %s252 = scalar_lea.vmem %s0, %s251
      %p253 = pneg %p40
      %p254 = pneg %p37
      %p255 = pneg %p61
      %p256 = pneg %p58
      %p257 = pneg %p82
      %p258 = pneg %p79
      %p259 = pneg %p103
      %p260 = pneg %p100
      %p261 = pneg %p124
      %p262 = pneg %p121
      %p263 = pneg %p150
      %p264 = pneg %p147
      %p265 = scmp.lt.s32.totalorder %s19, 1
      %s266 = scalar_select %p265, %s19, 1
      %s267 = smul.addr %s266, 32
      %s268 = smul.addr %s267, 4
      %s269 = scalar_lea.vmem %s5, %s268
      %p270 = pneg %p176
      %p271 = pneg %p173
      %p272 = scmp.lt.s32.totalorder %s19, 1
      %s273 = scalar_select %p272, %s19, 1
      %s274 = smul.addr %s273, 32
      %s275 = smul.addr %s274, 4
      %s276 = scalar_lea.vmem %s6, %s275
      %p277 = pneg %p202
      %p278 = pneg %p199
      %p279 = scmp.lt.s32.totalorder %s19, 1
      %s280 = scalar_select %p279, %s19, 1
      %s281 = smul.addr %s280, 4
      %s282 = scalar_lea.vmem %s7, %s281
      %p283 = scmp.lt.s32.totalorder %s19, 1
      %s284 = scalar_select %p283, %s19, 1
      %s285 = smul.addr %s284, 32
      %s286 = smul.addr %s285, 4
      %s287 = scalar_lea.vmem %s0, %s286
      %p288 = scmp.lt.s32.totalorder %s19, 1
      %s289 = scalar_select %p288, %s19, 1
      %s290 = smul.addr %s289, 32
      %s291 = smul.addr %s290, 4
      %s292 = scalar_lea.vmem %s5, %s291
      %p293 = scmp.lt.s32.totalorder %s19, 1
      %s294 = scalar_select %p293, %s19, 1
      %s295 = smul.addr %s294, 32
      %s296 = smul.addr %s295, 4
      %s297 = scalar_lea.vmem %s6, %s296
      %p298 = scmp.lt.s32.totalorder %s19, 1
      %s299 = scalar_select %p298, %s19, 1
      %s300 = smul.addr %s299, 4
      %s301 = scalar_lea.vmem %s7, %s300
      %vm303 = vcmask 27648
      %304 = vst.msk [vmem:[#allocation2] sm:$0xf] %vm303, 0
      %305 = vst.msk [vmem:[#allocation2 + $0x4] sm:$0xf] %vm303, 0
      %vm306 = vcmask 24576
      %307 = vst.msk [vmem:[#allocation2 + $0x8] sm:$0x1] %vm306, 0
      %308 = vst.msk [vmem:[#allocation2 + $0xc] sm:$0xf] %vm303, 0
      %309 = vst.msk [vmem:[#allocation2 + $0x10] sm:$0xf] %vm303, 0
      %310 = vst.msk [vmem:[#allocation2 + $0x14] sm:$0x1] %vm306, 0
      %311 = vst.msk [vmem:[#allocation2 + $0x18] sm:$0xf] %vm303, 0
      %312 = vst.msk [vmem:[#allocation2 + $0x1c] sm:$0xf] %vm303, 0
      %313 = vst.msk [vmem:[#allocation2 + $0x20] sm:$0x1] %vm306, 0
      %314 = vst.msk [vmem:[#allocation2 + $0x24] sm:$0xf] %vm303, 0
      %315 = vst.msk [vmem:[#allocation2 + $0x28] sm:$0xf] %vm303, 0
      %316 = vst.msk [vmem:[#allocation2 + $0x2c] sm:$0x1] %vm306, 0
      %317 = vst.msk [vmem:[#allocation2 + $0x30] sm:$0xf] %vm303, 0
      %318 = vst.msk [vmem:[#allocation2 + $0x34] sm:$0xf] %vm303, 0
      %319 = vst.msk [vmem:[#allocation2 + $0x38] sm:$0x1] %vm306, 0
      %320 = vst.msk [vmem:[#allocation2 + $0x3c] sm:$0xf] %vm303, 0
      %321 = vst.msk [vmem:[#allocation2 + $0x40] sm:$0xf] %vm303, 0
      %322 = vst.msk [vmem:[#allocation2 + $0x44] sm:$0x1] %vm306, 0
      %323 = vst.msk [vmem:[#allocation2 + $0x48] sm:$0xf] %vm303, 0
      %324 = vst.msk [vmem:[#allocation2 + $0x4c] sm:$0xf] %vm303, 0
      %325 = vst.msk [vmem:[#allocation2 + $0x50] sm:$0x1] %vm306, 0
      %326 = vst.msk [vmem:[#allocation2 + $0x54] sm:$0xf] %vm303, 0
      %327 = vst.msk [vmem:[#allocation2 + $0x58] sm:$0xf] %vm303, 0
      %328 = vst.msk [vmem:[#allocation2 + $0x5c] sm:$0x1] %vm306, 0
      %329 = vst.msk [vmem:[#allocation2 + $0x60] sm:$0xf] %vm303, 0
      %330 = vst.msk [vmem:[#allocation2 + $0x64] sm:$0xf] %vm303, 0
      %331 = vst.msk [vmem:[#allocation2 + $0x68] sm:$0x1] %vm306, 0
      %332 = vst.msk [vmem:[#allocation2 + $0x6c] sm:$0xf] %vm303, 0
      %333 = vst.msk [vmem:[#allocation2 + $0x70] sm:$0xf] %vm303, 0
      %334 = vst.msk [vmem:[#allocation2 + $0x74] sm:$0x1] %vm306, 0
      %335 = vst.msk [vmem:[#allocation2 + $0x78] sm:$0xf] %vm303, 0
      %336 = vst.msk [vmem:[#allocation2 + $0x7c] sm:$0xf] %vm303, 0
      %337 = vst.msk [vmem:[#allocation2 + $0x80] sm:$0x1] %vm306, 0
      %338 = vst.msk [vmem:[#allocation2 + $0x84] sm:$0xf] %vm303, 0
      %339 = vst.msk [vmem:[#allocation2 + $0x88] sm:$0xf] %vm303, 0
      %340 = vst.msk [vmem:[#allocation2 + $0x8c] sm:$0x1] %vm306, 0
      %341 = vst.msk [vmem:[#allocation2 + $0x90] sm:$0xf] %vm303, 0
      %342 = vst.msk [vmem:[#allocation2 + $0x94] sm:$0xf] %vm303, 0
      %343 = vst.msk [vmem:[#allocation2 + $0x98] sm:$0x1] %vm306, 0
      %344 = vst.msk [vmem:[#allocation2 + $0x9c] sm:$0xf] %vm303, 0
      %345 = vst.msk [vmem:[#allocation2 + $0xa0] sm:$0xf] %vm303, 0
      %346 = vst.msk [vmem:[#allocation2 + $0xa4] sm:$0x1] %vm306, 0
      %347 = vst.msk [vmem:[#allocation2 + $0xa8] sm:$0xf] %vm303, 0
      %348 = vst.msk [vmem:[#allocation2 + $0xac] sm:$0xf] %vm303, 0
      %349 = vst.msk [vmem:[#allocation2 + $0xb0] sm:$0x1] %vm306, 0
      %350 = vst.msk [vmem:[#allocation2 + $0xb4] sm:$0xf] %vm303, 0
      %351 = vst.msk [vmem:[#allocation2 + $0xb8] sm:$0xf] %vm303, 0
      %352 = vst.msk [vmem:[#allocation2 + $0xbc] sm:$0x1] %vm306, 0
      %353 = vst.msk [vmem:[#allocation2 + $0xc0] sm:$0xf] %vm303, 0
      %354 = vst.msk [vmem:[#allocation2 + $0xc4] sm:$0xf] %vm303, 0
      %355 = vst.msk [vmem:[#allocation2 + $0xc8] sm:$0x1] %vm306, 0
      %356 = vst.msk [vmem:[#allocation2 + $0xcc] sm:$0xf] %vm303, 0
      %357 = vst.msk [vmem:[#allocation2 + $0xd0] sm:$0xf] %vm303, 0
      %358 = vst.msk [vmem:[#allocation2 + $0xd4] sm:$0x1] %vm306, 0
      %v359 = vld [vmem:[%s287] sm:$0xf]
      %v360 = vld [vmem:[%s287 + $0x4] sm:$0xf]
      %v361 = vld [vmem:[%s287 + $0x8] sm:$0xf]
      %v362 = vld [vmem:[%s287 + $0xc] sm:$0xf]
      %v363 = vld [vmem:[%s287 + $0x10] sm:$0xf]
      %v364 = vld [vmem:[%s287 + $0x14] sm:$0xf]
      %v365 = vld [vmem:[%s287 + $0x18] sm:$0xf]
      %v366 = vld [vmem:[%s287 + $0x1c] sm:$0xf]
      %v367 = vld [vmem:[%s287 + $0x20] sm:$0xf]
      %v368 = vld [vmem:[%s287 + $0x24] sm:$0xf]
      %v369 = vld [vmem:[%s287 + $0x28] sm:$0xf]
      %v370 = vld [vmem:[%s287 + $0x2c] sm:$0xf]
      %v371 = vld [vmem:[%s287 + $0x30] sm:$0xf]
      %v372 = vld [vmem:[%s287 + $0x34] sm:$0xf]
      %v373 = vld [vmem:[%s287 + $0x38] sm:$0xf]
      %v374 = vld [vmem:[%s287 + $0x3c] sm:$0xf]
      %v375 = vld [vmem:[%s287 + $0x40] sm:$0xf]
      %v376 = vld [vmem:[%s287 + $0x44] sm:$0xf]
      %v377 = vld [vmem:[%s287 + $0x48] sm:$0xf]
      %v378 = vld [vmem:[%s287 + $0x4c] sm:$0xf]
      %v379 = vld [vmem:[%s287 + $0x50] sm:$0xf]
      %v380 = vld [vmem:[%s287 + $0x54] sm:$0xf]
      %v381 = vld [vmem:[%s287 + $0x58] sm:$0xf]
      %v382 = vld [vmem:[%s287 + $0x5c] sm:$0xf]
      %v383 = vld [vmem:[%s287 + $0x60] sm:$0xf]
      %v384 = vld [vmem:[%s287 + $0x64] sm:$0xf]
      %v385 = vld [vmem:[%s287 + $0x68] sm:$0xf]
      %v386 = vld [vmem:[%s287 + $0x6c] sm:$0xf]
      %v387 = vld [vmem:[%s287 + $0x70] sm:$0xf]
      %v388 = vld [vmem:[%s287 + $0x74] sm:$0xf]
      %v389 = vld [vmem:[%s287 + $0x78] sm:$0xf]
      %v390 = vld [vmem:[%s287 + $0x7c] sm:$0xf]
      %vm391 = vsmask.f32 256
      %vm392 = vsmask.f32 4368
      %vm393 = vmor %vm391, %vm392
      %v395 = vshrl.u32 %v359, 16
      %v397 = vrot.slane %v395, 7
      %v398 = vshll.u32 %v359, 16
      %v400 = vor.u32 %v397, %v398
      %v401 = vrot.slane %v397, 4
      %v403 = vshrl.u32 %v360, 16
      %v405 = vrot.slane %v403, 7
      %v406 = vshll.u32 %v360, 16
      %v408 = vor.u32 %v405, %v406
      %v409 = vsel %vm393, %v401, %v408
      %v410 = vrot.slane %v405, 4
      %v412 = vshrl.u32 %v361, 16
      %v414 = vrot.slane %v412, 7
      %v415 = vshll.u32 %v361, 16
      %v417 = vor.u32 %v414, %v415
      %v418 = vrot.slane %v414, 4
      %v420 = vshrl.u32 %v362, 16
      %v422 = vrot.slane %v420, 7
      %v423 = vshll.u32 %v362, 16
      %v425 = vor.u32 %v422, %v423
      %v426 = vsel %vm393, %v418, %v425
      %v427 = vrot.slane %v422, 4
      %v429 = vshrl.u32 %v363, 16
      %v431 = vrot.slane %v429, 7
      %v432 = vshll.u32 %v363, 16
      %v434 = vor.u32 %v431, %v432
      %v435 = vrot.slane %v431, 4
      %v437 = vshrl.u32 %v364, 16
      %v439 = vrot.slane %v437, 7
      %v440 = vshll.u32 %v364, 16
      %v442 = vor.u32 %v439, %v440
      %v443 = vsel %vm393, %v435, %v442
      %v444 = vrot.slane %v439, 4
      %v446 = vshrl.u32 %v365, 16
      %v448 = vrot.slane %v446, 7
      %v449 = vshll.u32 %v365, 16
      %v451 = vor.u32 %v448, %v449
      %v452 = vrot.slane %v448, 4
      %v454 = vshrl.u32 %v366, 16
      %v456 = vrot.slane %v454, 7
      %v457 = vshll.u32 %v366, 16
      %v459 = vor.u32 %v456, %v457
      %v460 = vsel %vm393, %v452, %v459
      %v461 = vrot.slane %v456, 4
      %v463 = vshrl.u32 %v367, 16
      %v465 = vrot.slane %v463, 7
      %v466 = vshll.u32 %v367, 16
      %v468 = vor.u32 %v465, %v466
      %v469 = vrot.slane %v465, 4
      %v471 = vshrl.u32 %v368, 16
      %v473 = vrot.slane %v471, 7
      %v474 = vshll.u32 %v368, 16
      %v476 = vor.u32 %v473, %v474
      %v477 = vsel %vm393, %v469, %v476
      %v478 = vrot.slane %v473, 4
      %v480 = vshrl.u32 %v369, 16
      %v482 = vrot.slane %v480, 7
      %v483 = vshll.u32 %v369, 16
      %v485 = vor.u32 %v482, %v483
      %v486 = vrot.slane %v482, 4
      %v488 = vshrl.u32 %v370, 16
      %v490 = vrot.slane %v488, 7
      %v491 = vshll.u32 %v370, 16
      %v493 = vor.u32 %v490, %v491
      %v494 = vsel %vm393, %v486, %v493
      %v495 = vrot.slane %v490, 4
      %v497 = vshrl.u32 %v371, 16
      %v499 = vrot.slane %v497, 7
      %v500 = vshll.u32 %v371, 16
      %v502 = vor.u32 %v499, %v500
      %v503 = vrot.slane %v499, 4
      %v505 = vshrl.u32 %v372, 16
      %v507 = vrot.slane %v505, 7
      %v508 = vshll.u32 %v372, 16
      %v510 = vor.u32 %v507, %v508
      %v511 = vsel %vm393, %v503, %v510
      %v512 = vrot.slane %v507, 4
      %v514 = vshrl.u32 %v373, 16
      %v516 = vrot.slane %v514, 7
      %v517 = vshll.u32 %v373, 16
      %v519 = vor.u32 %v516, %v517
      %v520 = vrot.slane %v516, 4
      %v522 = vshrl.u32 %v374, 16
      %v524 = vrot.slane %v522, 7
      %v525 = vshll.u32 %v374, 16
      %v527 = vor.u32 %v524, %v525
      %v528 = vsel %vm393, %v520, %v527
      %v529 = vrot.slane %v524, 4
      %v531 = vshrl.u32 %v375, 16
      %v533 = vrot.slane %v531, 7
      %v534 = vshll.u32 %v375, 16
      %v536 = vor.u32 %v533, %v534
      %v537 = vrot.slane %v533, 4
      %v539 = vshrl.u32 %v376, 16
      %v541 = vrot.slane %v539, 7
      %v542 = vshll.u32 %v376, 16
      %v544 = vor.u32 %v541, %v542
      %v545 = vsel %vm393, %v537, %v544
      %v546 = vrot.slane %v541, 4
      %v548 = vshrl.u32 %v377, 16
      %v550 = vrot.slane %v548, 7
      %v551 = vshll.u32 %v377, 16
      %v553 = vor.u32 %v550, %v551
      %v554 = vrot.slane %v550, 4
      %v556 = vshrl.u32 %v378, 16
      %v558 = vrot.slane %v556, 7
      %v559 = vshll.u32 %v378, 16
      %v561 = vor.u32 %v558, %v559
      %v562 = vsel %vm393, %v554, %v561
      %v563 = vrot.slane %v558, 4
      %v565 = vshrl.u32 %v379, 16
      %v567 = vrot.slane %v565, 7
      %v568 = vshll.u32 %v379, 16
      %v570 = vor.u32 %v567, %v568
      %v571 = vrot.slane %v567, 4
      %v573 = vshrl.u32 %v380, 16
      %v575 = vrot.slane %v573, 7
      %v576 = vshll.u32 %v380, 16
      %v578 = vor.u32 %v575, %v576
      %v579 = vsel %vm393, %v571, %v578
      %v580 = vrot.slane %v575, 4
      %v582 = vshrl.u32 %v381, 16
      %v584 = vrot.slane %v582, 7
      %v585 = vshll.u32 %v381, 16
      %v587 = vor.u32 %v584, %v585
      %v588 = vrot.slane %v584, 4
      %v590 = vshrl.u32 %v382, 16
      %v592 = vrot.slane %v590, 7
      %v593 = vshll.u32 %v382, 16
      %v595 = vor.u32 %v592, %v593
      %v596 = vsel %vm393, %v588, %v595
      %v597 = vrot.slane %v592, 4
      %v599 = vshrl.u32 %v383, 16
      %v601 = vrot.slane %v599, 7
      %v602 = vshll.u32 %v383, 16
      %v604 = vor.u32 %v601, %v602
      %v605 = vrot.slane %v601, 4
      %v607 = vshrl.u32 %v384, 16
      %v609 = vrot.slane %v607, 7
      %v610 = vshll.u32 %v384, 16
      %v612 = vor.u32 %v609, %v610
      %v613 = vsel %vm393, %v605, %v612
      %v614 = vrot.slane %v609, 4
      %v616 = vshrl.u32 %v385, 16
      %v618 = vrot.slane %v616, 7
      %v619 = vshll.u32 %v385, 16
      %v621 = vor.u32 %v618, %v619
      %v622 = vrot.slane %v618, 4
      %v624 = vshrl.u32 %v386, 16
      %v626 = vrot.slane %v624, 7
      %v627 = vshll.u32 %v386, 16
      %v629 = vor.u32 %v626, %v627
      %v630 = vsel %vm393, %v622, %v629
      %v631 = vrot.slane %v626, 4
      %v633 = vshrl.u32 %v387, 16
      %v635 = vrot.slane %v633, 7
      %v636 = vshll.u32 %v387, 16
      %v638 = vor.u32 %v635, %v636
      %v639 = vrot.slane %v635, 4
      %v641 = vshrl.u32 %v388, 16
      %v643 = vrot.slane %v641, 7
      %v644 = vshll.u32 %v388, 16
      %v646 = vor.u32 %v643, %v644
      %v647 = vsel %vm393, %v639, %v646
      %v648 = vrot.slane %v643, 4
      %v650 = vshrl.u32 %v389, 16
      %v652 = vrot.slane %v650, 7
      %v653 = vshll.u32 %v389, 16
      %v655 = vor.u32 %v652, %v653
      %v656 = vrot.slane %v652, 4
      %v658 = vshrl.u32 %v390, 16
      %v660 = vrot.slane %v658, 7
      %v661 = vshll.u32 %v390, 16
      %v663 = vor.u32 %v660, %v661
      %v664 = vsel %vm393, %v656, %v663
      %v665 = vrot.slane %v660, 4
      %s714 = scalar_lea.vmem [#allocation2], 12
      %vm715 = vcmask 27648
      %vm716 = vsmask.f32 7938
      %vm717 = vmand %vm715, %vm716
      %v718 = vld [vmem:[%s714] sm:$0xf]
      %v719 = vsel %vm717, %v400, %v718
      %720 = vst [vmem:[%s714] sm:$0xf] %v719
      %721 = vst.msk [vmem:[%s714 + $0x4] sm:$0xf] %vm303, %v409
      %vm722 = vcmask 24576
      %vm723 = vmand %vm722, %vm391
      %v724 = vld [vmem:[%s714 + $0x8] sm:$0x1]
      %v725 = vsel %vm723, %v410, %v724
      %726 = vst [vmem:[%s714 + $0x8] sm:$0x1] %v725
      %v727 = vld [vmem:[%s714 + $0xc] sm:$0xf]
      %v728 = vsel %vm717, %v417, %v727
      %729 = vst [vmem:[%s714 + $0xc] sm:$0xf] %v728
      %730 = vst.msk [vmem:[%s714 + $0x10] sm:$0xf] %vm303, %v426
      %v731 = vld [vmem:[%s714 + $0x14] sm:$0x1]
      %v732 = vsel %vm723, %v427, %v731
      %733 = vst [vmem:[%s714 + $0x14] sm:$0x1] %v732
      %v734 = vld [vmem:[%s714 + $0x18] sm:$0xf]
      %v735 = vsel %vm717, %v434, %v734
      %736 = vst [vmem:[%s714 + $0x18] sm:$0xf] %v735
      %737 = vst.msk [vmem:[%s714 + $0x1c] sm:$0xf] %vm303, %v443
      %v738 = vld [vmem:[%s714 + $0x20] sm:$0x1]
      %v739 = vsel %vm723, %v444, %v738
      %740 = vst [vmem:[%s714 + $0x20] sm:$0x1] %v739
      %v741 = vld [vmem:[%s714 + $0x24] sm:$0xf]
      %v742 = vsel %vm717, %v451, %v741
      %743 = vst [vmem:[%s714 + $0x24] sm:$0xf] %v742
      %744 = vst.msk [vmem:[%s714 + $0x28] sm:$0xf] %vm303, %v460
      %v745 = vld [vmem:[%s714 + $0x2c] sm:$0x1]
      %v746 = vsel %vm723, %v461, %v745
      %747 = vst [vmem:[%s714 + $0x2c] sm:$0x1] %v746
      %v748 = vld [vmem:[%s714 + $0x30] sm:$0xf]
      %v749 = vsel %vm717, %v468, %v748
      %750 = vst [vmem:[%s714 + $0x30] sm:$0xf] %v749
      %751 = vst.msk [vmem:[%s714 + $0x34] sm:$0xf] %vm303, %v477
      %v752 = vld [vmem:[%s714 + $0x38] sm:$0x1]
      %v753 = vsel %vm723, %v478, %v752
      %754 = vst [vmem:[%s714 + $0x38] sm:$0x1] %v753
      %v755 = vld [vmem:[%s714 + $0x3c] sm:$0xf]
      %v756 = vsel %vm717, %v485, %v755
      %757 = vst [vmem:[%s714 + $0x3c] sm:$0xf] %v756
      %758 = vst.msk [vmem:[%s714 + $0x40] sm:$0xf] %vm303, %v494
      %v759 = vld [vmem:[%s714 + $0x44] sm:$0x1]
      %v760 = vsel %vm723, %v495, %v759
      %761 = vst [vmem:[%s714 + $0x44] sm:$0x1] %v760
      %v762 = vld [vmem:[%s714 + $0x48] sm:$0xf]
      %v763 = vsel %vm717, %v502, %v762
      %764 = vst [vmem:[%s714 + $0x48] sm:$0xf] %v763
      %765 = vst.msk [vmem:[%s714 + $0x4c] sm:$0xf] %vm303, %v511
      %v766 = vld [vmem:[%s714 + $0x50] sm:$0x1]
      %v767 = vsel %vm723, %v512, %v766
      %768 = vst [vmem:[%s714 + $0x50] sm:$0x1] %v767
      %v769 = vld [vmem:[%s714 + $0x54] sm:$0xf]
      %v770 = vsel %vm717, %v519, %v769
      %771 = vst [vmem:[%s714 + $0x54] sm:$0xf] %v770
      %772 = vst.msk [vmem:[%s714 + $0x58] sm:$0xf] %vm303, %v528
      %v773 = vld [vmem:[%s714 + $0x5c] sm:$0x1]
      %v774 = vsel %vm723, %v529, %v773
      %775 = vst [vmem:[%s714 + $0x5c] sm:$0x1] %v774
      %v776 = vld [vmem:[%s714 + $0x60] sm:$0xf]
      %v777 = vsel %vm717, %v536, %v776
      %778 = vst [vmem:[%s714 + $0x60] sm:$0xf] %v777
      %779 = vst.msk [vmem:[%s714 + $0x64] sm:$0xf] %vm303, %v545
      %v780 = vld [vmem:[%s714 + $0x68] sm:$0x1]
      %v781 = vsel %vm723, %v546, %v780
      %782 = vst [vmem:[%s714 + $0x68] sm:$0x1] %v781
      %v783 = vld [vmem:[%s714 + $0x6c] sm:$0xf]
      %v784 = vsel %vm717, %v553, %v783
      %785 = vst [vmem:[%s714 + $0x6c] sm:$0xf] %v784
      %786 = vst.msk [vmem:[%s714 + $0x70] sm:$0xf] %vm303, %v562
      %v787 = vld [vmem:[%s714 + $0x74] sm:$0x1]
      %v788 = vsel %vm723, %v563, %v787
      %789 = vst [vmem:[%s714 + $0x74] sm:$0x1] %v788
      %v790 = vld [vmem:[%s714 + $0x78] sm:$0xf]
      %v791 = vsel %vm717, %v570, %v790
      %792 = vst [vmem:[%s714 + $0x78] sm:$0xf] %v791
      %793 = vst.msk [vmem:[%s714 + $0x7c] sm:$0xf] %vm303, %v579
      %v794 = vld [vmem:[%s714 + $0x80] sm:$0x1]
      %v795 = vsel %vm723, %v580, %v794
      %796 = vst [vmem:[%s714 + $0x80] sm:$0x1] %v795
      %v797 = vld [vmem:[%s714 + $0x84] sm:$0xf]
      %v798 = vsel %vm717, %v587, %v797
      %799 = vst [vmem:[%s714 + $0x84] sm:$0xf] %v798
      %800 = vst.msk [vmem:[%s714 + $0x88] sm:$0xf] %vm303, %v596
      %v801 = vld [vmem:[%s714 + $0x8c] sm:$0x1]
      %v802 = vsel %vm723, %v597, %v801
      %803 = vst [vmem:[%s714 + $0x8c] sm:$0x1] %v802
      %v804 = vld [vmem:[%s714 + $0x90] sm:$0xf]
      %v805 = vsel %vm717, %v604, %v804
      %806 = vst [vmem:[%s714 + $0x90] sm:$0xf] %v805
      %807 = vst.msk [vmem:[%s714 + $0x94] sm:$0xf] %vm303, %v613
      %v808 = vld [vmem:[%s714 + $0x98] sm:$0x1]
      %v809 = vsel %vm723, %v614, %v808
      %810 = vst [vmem:[%s714 + $0x98] sm:$0x1] %v809
      %v811 = vld [vmem:[%s714 + $0x9c] sm:$0xf]
      %v812 = vsel %vm717, %v621, %v811
      %813 = vst [vmem:[%s714 + $0x9c] sm:$0xf] %v812
      %814 = vst.msk [vmem:[%s714 + $0xa0] sm:$0xf] %vm303, %v630
      %v815 = vld [vmem:[%s714 + $0xa4] sm:$0x1]
      %v816 = vsel %vm723, %v631, %v815
      %817 = vst [vmem:[%s714 + $0xa4] sm:$0x1] %v816
      %v818 = vld [vmem:[%s714 + $0xa8] sm:$0xf]
      %v819 = vsel %vm717, %v638, %v818
      %820 = vst [vmem:[%s714 + $0xa8] sm:$0xf] %v819
      %821 = vst.msk [vmem:[%s714 + $0xac] sm:$0xf] %vm303, %v647
      %v822 = vld [vmem:[%s714 + $0xb0] sm:$0x1]
      %v823 = vsel %vm723, %v648, %v822
      %824 = vst [vmem:[%s714 + $0xb0] sm:$0x1] %v823
      %v825 = vld [vmem:[%s714 + $0xb4] sm:$0xf]
      %v826 = vsel %vm717, %v655, %v825
      %827 = vst [vmem:[%s714 + $0xb4] sm:$0xf] %v826
      %828 = vst.msk [vmem:[%s714 + $0xb8] sm:$0xf] %vm303, %v664
      %v829 = vld [vmem:[%s714 + $0xbc] sm:$0x1]
      %v830 = vsel %vm723, %v665, %v829
      %831 = vst [vmem:[%s714 + $0xbc] sm:$0x1] %v830
      %v832 = vld [vmem:[#allocation2] sm:$0xf]
      %v833 = vld [vmem:[#allocation2 + $0x4] sm:$0xf]
      %v834 = vld [vmem:[#allocation2 + $0xc] sm:$0xf]
      %v835 = vld [vmem:[#allocation2 + $0x10] sm:$0xf]
      %v836 = vld [vmem:[#allocation2 + $0x18] sm:$0xf]
      %v837 = vld [vmem:[#allocation2 + $0x1c] sm:$0xf]
      %v838 = vld [vmem:[#allocation2 + $0x24] sm:$0xf]
      %v839 = vld [vmem:[#allocation2 + $0x28] sm:$0xf]
      %v840 = vld [vmem:[#allocation2 + $0x30] sm:$0xf]
      %v841 = vld [vmem:[#allocation2 + $0x34] sm:$0xf]
      %v842 = vld [vmem:[#allocation2 + $0x3c] sm:$0xf]
      %v843 = vld [vmem:[#allocation2 + $0x40] sm:$0xf]
      %v844 = vld [vmem:[#allocation2 + $0x48] sm:$0xf]
      %v845 = vld [vmem:[#allocation2 + $0x4c] sm:$0xf]
      %v846 = vld [vmem:[#allocation2 + $0x54] sm:$0xf]
      %v847 = vld [vmem:[#allocation2 + $0x58] sm:$0xf]
      %v848 = vld [vmem:[#allocation2 + $0x60] sm:$0xf]
      %v849 = vld [vmem:[#allocation2 + $0x64] sm:$0xf]
      %v850 = vld [vmem:[#allocation2 + $0x6c] sm:$0xf]
      %v851 = vld [vmem:[#allocation2 + $0x70] sm:$0xf]
      %v852 = vld [vmem:[#allocation2 + $0x78] sm:$0xf]
      %v853 = vld [vmem:[#allocation2 + $0x7c] sm:$0xf]
      %v854 = vld [vmem:[#allocation2 + $0x84] sm:$0xf]
      %v855 = vld [vmem:[#allocation2 + $0x88] sm:$0xf]
      %v856 = vld [vmem:[#allocation2 + $0x90] sm:$0xf]
      %v857 = vld [vmem:[#allocation2 + $0x94] sm:$0xf]
      %v858 = vld [vmem:[#allocation2 + $0x9c] sm:$0xf]
      %v859 = vld [vmem:[#allocation2 + $0xa0] sm:$0xf]
      %v860 = vld [vmem:[#allocation2 + $0xa8] sm:$0xf]
      %v861 = vld [vmem:[#allocation2 + $0xac] sm:$0xf]
      %v862 = vld [vmem:[#allocation2 + $0xb4] sm:$0xf]
      %v863 = vld [vmem:[#allocation2 + $0xb8] sm:$0xf]
      %v864 = vld [vmem:[%s1] sm:$0x3]
      %v865 = vld [vmem:[#allocation2 + $0x8] sm:$0x1]
      %v866 = vld [vmem:[#allocation2 + $0x14] sm:$0x1]
      %v867 = vld [vmem:[#allocation2 + $0x20] sm:$0x1]
      %v868 = vld [vmem:[#allocation2 + $0x2c] sm:$0x1]
      %v869 = vld [vmem:[#allocation2 + $0x38] sm:$0x1]
      %v870 = vld [vmem:[#allocation2 + $0x44] sm:$0x1]
      %v871 = vld [vmem:[#allocation2 + $0x50] sm:$0x1]
      %v872 = vld [vmem:[#allocation2 + $0x5c] sm:$0x1]
      %v873 = vld [vmem:[#allocation2 + $0x68] sm:$0x1]
      %v874 = vld [vmem:[#allocation2 + $0x74] sm:$0x1]
      %v875 = vld [vmem:[#allocation2 + $0x80] sm:$0x1]
      %v876 = vld [vmem:[#allocation2 + $0x8c] sm:$0x1]
      %v877 = vld [vmem:[#allocation2 + $0x98] sm:$0x1]
      %v878 = vld [vmem:[#allocation2 + $0xa4] sm:$0x1]
      %v879 = vld [vmem:[#allocation2 + $0xb0] sm:$0x1]
      %v880 = vld [vmem:[#allocation2 + $0xbc] sm:$0x1]
      %vm881 = vsmask.f32 3328
      %vm882 = vsmask.f32 7440
      %vm883 = vmor %vm881, %vm882
      %v885 = vshrl.u32 %v832, 16
      %v887 = vrot.slane %v885, 4
      %v888 = vshll.u32 %v832, 16
      %v890 = vrot.slane %v888, 5
      %v891 = vor.u32 %v887, %v890
      %v892 = vrot.slane %v891, 4
      %v894 = vshll.u32 %v833, 16
      %v896 = vrot.slane %v894, 5
      %v897 = vsel %vm883, %v892, %v896
      %v898 = vshrl.u32 %v833, 16
      %v900 = vrot.slane %v898, 4
      %v901 = vor.u32 %v900, %v896
      %v902 = vrot.slane %v901, 4
      %v904 = vshll.u32 %v865, 16
      %v906 = vrot.slane %v904, 5
      %v907 = vsel %vm883, %v902, %v906
      %v909 = vshrl.u32 %v834, 16
      %v911 = vrot.slane %v909, 4
      %v912 = vshll.u32 %v834, 16
      %v914 = vrot.slane %v912, 5
      %v915 = vor.u32 %v911, %v914
      %v916 = vrot.slane %v915, 4
      %v918 = vshll.u32 %v835, 16
      %v920 = vrot.slane %v918, 5
      %v921 = vsel %vm883, %v916, %v920
      %v922 = vshrl.u32 %v835, 16
      %v924 = vrot.slane %v922, 4
      %v925 = vor.u32 %v924, %v920
      %v926 = vrot.slane %v925, 4
      %v928 = vshll.u32 %v866, 16
      %v930 = vrot.slane %v928, 5
      %v931 = vsel %vm883, %v926, %v930
      %v933 = vshrl.u32 %v836, 16
      %v935 = vrot.slane %v933, 4
      %v936 = vshll.u32 %v836, 16
      %v938 = vrot.slane %v936, 5
      %v939 = vor.u32 %v935, %v938
      %v940 = vrot.slane %v939, 4
      %v942 = vshll.u32 %v837, 16
      %v944 = vrot.slane %v942, 5
      %v945 = vsel %vm883, %v940, %v944
      %v946 = vshrl.u32 %v837, 16
      %v948 = vrot.slane %v946, 4
      %v949 = vor.u32 %v948, %v944
      %v950 = vrot.slane %v949, 4
      %v952 = vshll.u32 %v867, 16
      %v954 = vrot.slane %v952, 5
      %v955 = vsel %vm883, %v950, %v954
      %v957 = vshrl.u32 %v838, 16
      %v959 = vrot.slane %v957, 4
      %v960 = vshll.u32 %v838, 16
      %v962 = vrot.slane %v960, 5
      %v963 = vor.u32 %v959, %v962
      %v964 = vrot.slane %v963, 4
      %v966 = vshll.u32 %v839, 16
      %v968 = vrot.slane %v966, 5
      %v969 = vsel %vm883, %v964, %v968
      %v970 = vshrl.u32 %v839, 16
      %v972 = vrot.slane %v970, 4
      %v973 = vor.u32 %v972, %v968
      %v974 = vrot.slane %v973, 4
      %v976 = vshll.u32 %v868, 16
      %v978 = vrot.slane %v976, 5
      %v979 = vsel %vm883, %v974, %v978
      %v981 = vshrl.u32 %v840, 16
      %v983 = vrot.slane %v981, 4
      %v984 = vshll.u32 %v840, 16
      %v986 = vrot.slane %v984, 5
      %v987 = vor.u32 %v983, %v986
      %v988 = vrot.slane %v987, 4
      %v990 = vshll.u32 %v841, 16
      %v992 = vrot.slane %v990, 5
      %v993 = vsel %vm883, %v988, %v992
      %v994 = vshrl.u32 %v841, 16
      %v996 = vrot.slane %v994, 4
      %v997 = vor.u32 %v996, %v992
      %v998 = vrot.slane %v997, 4
      %v1000 = vshll.u32 %v869, 16
      %v1002 = vrot.slane %v1000, 5
      %v1003 = vsel %vm883, %v998, %v1002
      %v1005 = vshrl.u32 %v842, 16
      %v1007 = vrot.slane %v1005, 4
      %v1008 = vshll.u32 %v842, 16
      %v1010 = vrot.slane %v1008, 5
      %v1011 = vor.u32 %v1007, %v1010
      %v1012 = vrot.slane %v1011, 4
      %v1014 = vshll.u32 %v843, 16
      %v1016 = vrot.slane %v1014, 5
      %v1017 = vsel %vm883, %v1012, %v1016
      %v1018 = vshrl.u32 %v843, 16
      %v1020 = vrot.slane %v1018, 4
      %v1021 = vor.u32 %v1020, %v1016
      %v1022 = vrot.slane %v1021, 4
      %v1024 = vshll.u32 %v870, 16
      %v1026 = vrot.slane %v1024, 5
      %v1027 = vsel %vm883, %v1022, %v1026
      %v1029 = vshrl.u32 %v844, 16
      %v1031 = vrot.slane %v1029, 4
      %v1032 = vshll.u32 %v844, 16
      %v1034 = vrot.slane %v1032, 5
      %v1035 = vor.u32 %v1031, %v1034
      %v1036 = vrot.slane %v1035, 4
      %v1038 = vshll.u32 %v845, 16
      %v1040 = vrot.slane %v1038, 5
      %v1041 = vsel %vm883, %v1036, %v1040
      %v1042 = vshrl.u32 %v845, 16
      %v1044 = vrot.slane %v1042, 4
      %v1045 = vor.u32 %v1044, %v1040
      %v1046 = vrot.slane %v1045, 4
      %v1048 = vshll.u32 %v871, 16
      %v1050 = vrot.slane %v1048, 5
      %v1051 = vsel %vm883, %v1046, %v1050
      %v1053 = vshrl.u32 %v846, 16
      %v1055 = vrot.slane %v1053, 4
      %v1056 = vshll.u32 %v846, 16
      %v1058 = vrot.slane %v1056, 5
      %v1059 = vor.u32 %v1055, %v1058
      %v1060 = vrot.slane %v1059, 4
      %v1062 = vshll.u32 %v847, 16
      %v1064 = vrot.slane %v1062, 5
      %v1065 = vsel %vm883, %v1060, %v1064
      %v1066 = vshrl.u32 %v847, 16
      %v1068 = vrot.slane %v1066, 4
      %v1069 = vor.u32 %v1068, %v1064
      %v1070 = vrot.slane %v1069, 4
      %v1072 = vshll.u32 %v872, 16
      %v1074 = vrot.slane %v1072, 5
      %v1075 = vsel %vm883, %v1070, %v1074
      %v1077 = vshrl.u32 %v848, 16
      %v1079 = vrot.slane %v1077, 4
      %v1080 = vshll.u32 %v848, 16
      %v1082 = vrot.slane %v1080, 5
      %v1083 = vor.u32 %v1079, %v1082
      %v1084 = vrot.slane %v1083, 4
      %v1086 = vshll.u32 %v849, 16
      %v1088 = vrot.slane %v1086, 5
      %v1089 = vsel %vm883, %v1084, %v1088
      %v1090 = vshrl.u32 %v849, 16
      %v1092 = vrot.slane %v1090, 4
      %v1093 = vor.u32 %v1092, %v1088
      %v1094 = vrot.slane %v1093, 4
      %v1096 = vshll.u32 %v873, 16
      %v1098 = vrot.slane %v1096, 5
      %v1099 = vsel %vm883, %v1094, %v1098
      %v1101 = vshrl.u32 %v850, 16
      %v1103 = vrot.slane %v1101, 4
      %v1104 = vshll.u32 %v850, 16
      %v1106 = vrot.slane %v1104, 5
      %v1107 = vor.u32 %v1103, %v1106
      %v1108 = vrot.slane %v1107, 4
      %v1110 = vshll.u32 %v851, 16
      %v1112 = vrot.slane %v1110, 5
      %v1113 = vsel %vm883, %v1108, %v1112
      %v1114 = vshrl.u32 %v851, 16
      %v1116 = vrot.slane %v1114, 4
      %v1117 = vor.u32 %v1116, %v1112
      %v1118 = vrot.slane %v1117, 4
      %v1120 = vshll.u32 %v874, 16
      %v1122 = vrot.slane %v1120, 5
      %v1123 = vsel %vm883, %v1118, %v1122
      %v1125 = vshrl.u32 %v852, 16
      %v1127 = vrot.slane %v1125, 4
      %v1128 = vshll.u32 %v852, 16
      %v1130 = vrot.slane %v1128, 5
      %v1131 = vor.u32 %v1127, %v1130
      %v1132 = vrot.slane %v1131, 4
      %v1134 = vshll.u32 %v853, 16
      %v1136 = vrot.slane %v1134, 5
      %v1137 = vsel %vm883, %v1132, %v1136
      %v1138 = vshrl.u32 %v853, 16
      %v1140 = vrot.slane %v1138, 4
      %v1141 = vor.u32 %v1140, %v1136
      %v1142 = vrot.slane %v1141, 4
      %v1144 = vshll.u32 %v875, 16
      %v1146 = vrot.slane %v1144, 5
      %v1147 = vsel %vm883, %v1142, %v1146
      %v1149 = vshrl.u32 %v854, 16
      %v1151 = vrot.slane %v1149, 4
      %v1152 = vshll.u32 %v854, 16
      %v1154 = vrot.slane %v1152, 5
      %v1155 = vor.u32 %v1151, %v1154
      %v1156 = vrot.slane %v1155, 4
      %v1158 = vshll.u32 %v855, 16
      %v1160 = vrot.slane %v1158, 5
      %v1161 = vsel %vm883, %v1156, %v1160
      %v1162 = vshrl.u32 %v855, 16
      %v1164 = vrot.slane %v1162, 4
      %v1165 = vor.u32 %v1164, %v1160
      %v1166 = vrot.slane %v1165, 4
      %v1168 = vshll.u32 %v876, 16
      %v1170 = vrot.slane %v1168, 5
      %v1171 = vsel %vm883, %v1166, %v1170
      %v1173 = vshrl.u32 %v856, 16
      %v1175 = vrot.slane %v1173, 4
      %v1176 = vshll.u32 %v856, 16
      %v1178 = vrot.slane %v1176, 5
      %v1179 = vor.u32 %v1175, %v1178
      %v1180 = vrot.slane %v1179, 4
      %v1182 = vshll.u32 %v857, 16
      %v1184 = vrot.slane %v1182, 5
      %v1185 = vsel %vm883, %v1180, %v1184
      %v1186 = vshrl.u32 %v857, 16
      %v1188 = vrot.slane %v1186, 4
      %v1189 = vor.u32 %v1188, %v1184
      %v1190 = vrot.slane %v1189, 4
      %v1192 = vshll.u32 %v877, 16
      %v1194 = vrot.slane %v1192, 5
      %v1195 = vsel %vm883, %v1190, %v1194
      %v1197 = vshrl.u32 %v858, 16
      %v1199 = vrot.slane %v1197, 4
      %v1200 = vshll.u32 %v858, 16
      %v1202 = vrot.slane %v1200, 5
      %v1203 = vor.u32 %v1199, %v1202
      %v1204 = vrot.slane %v1203, 4
      %v1206 = vshll.u32 %v859, 16
      %v1208 = vrot.slane %v1206, 5
      %v1209 = vsel %vm883, %v1204, %v1208
      %v1210 = vshrl.u32 %v859, 16
      %v1212 = vrot.slane %v1210, 4
      %v1213 = vor.u32 %v1212, %v1208
      %v1214 = vrot.slane %v1213, 4
      %v1216 = vshll.u32 %v878, 16
      %v1218 = vrot.slane %v1216, 5
      %v1219 = vsel %vm883, %v1214, %v1218
      %v1221 = vshrl.u32 %v860, 16
      %v1223 = vrot.slane %v1221, 4
      %v1224 = vshll.u32 %v860, 16
      %v1226 = vrot.slane %v1224, 5
      %v1227 = vor.u32 %v1223, %v1226
      %v1228 = vrot.slane %v1227, 4
      %v1230 = vshll.u32 %v861, 16
      %v1232 = vrot.slane %v1230, 5
      %v1233 = vsel %vm883, %v1228, %v1232
      %v1234 = vshrl.u32 %v861, 16
      %v1236 = vrot.slane %v1234, 4
      %v1237 = vor.u32 %v1236, %v1232
      %v1238 = vrot.slane %v1237, 4
      %v1240 = vshll.u32 %v879, 16
      %v1242 = vrot.slane %v1240, 5
      %v1243 = vsel %vm883, %v1238, %v1242
      %v1245 = vshrl.u32 %v862, 16
      %v1247 = vrot.slane %v1245, 4
      %v1248 = vshll.u32 %v862, 16
      %v1250 = vrot.slane %v1248, 5
      %v1251 = vor.u32 %v1247, %v1250
      %v1252 = vrot.slane %v1251, 4
      %v1254 = vshll.u32 %v863, 16
      %v1256 = vrot.slane %v1254, 5
      %v1257 = vsel %vm883, %v1252, %v1256
      %v1258 = vshrl.u32 %v863, 16
      %v1260 = vrot.slane %v1258, 4
      %v1261 = vor.u32 %v1260, %v1256
      %v1262 = vrot.slane %v1261, 4
      %v1264 = vshll.u32 %v880, 16
      %v1266 = vrot.slane %v1264, 5
      %v1267 = vsel %vm883, %v1262, %v1266
      %s1268 = scalar_lea.vmem %s1, 2
      %v1269 = vld [vmem:[%s1268] sm:$0x3]
      %v1270 = vunpack.c.l.b16 %v897
      %v1271 = vunpack.c.l.b16 %v907
      %v1272 = vunpack.c.l.b16 %v921
      %v1273 = vunpack.c.l.b16 %v931
      %v1274 = vunpack.c.l.b16 %v945
      %v1275 = vunpack.c.l.b16 %v955
      %v1276 = vunpack.c.l.b16 %v969
      %v1277 = vunpack.c.l.b16 %v979
      %v1278 = vunpack.c.l.b16 %v993
      %v1279 = vunpack.c.l.b16 %v1003
      %v1280 = vunpack.c.l.b16 %v1017
      %v1281 = vunpack.c.l.b16 %v1027
      %v1282 = vunpack.c.l.b16 %v1041
      %v1283 = vunpack.c.l.b16 %v1051
      %v1284 = vunpack.c.l.b16 %v1065
      %v1285 = vunpack.c.l.b16 %v1075
      %v1286 = vunpack.c.l.b16 %v1089
      %v1287 = vunpack.c.l.b16 %v1099
      %v1288 = vunpack.c.l.b16 %v1113
      %v1289 = vunpack.c.l.b16 %v1123
      %v1290 = vunpack.c.l.b16 %v1137
      %v1291 = vunpack.c.l.b16 %v1147
      %v1292 = vunpack.c.l.b16 %v1161
      %v1293 = vunpack.c.l.b16 %v1171
      %v1294 = vunpack.c.l.b16 %v1185
      %v1295 = vunpack.c.l.b16 %v1195
      %v1296 = vunpack.c.l.b16 %v1209
      %v1297 = vunpack.c.l.b16 %v1219
      %v1298 = vunpack.c.l.b16 %v1233
      %v1299 = vunpack.c.l.b16 %v1243
      %v1300 = vunpack.c.l.b16 %v1257
      %v1301 = vunpack.c.l.b16 %v1267
      %v1302 = vpack.c.b16 %v1271, %v1270
      %v1303 = vpack.c.b16 %v1273, %v1272
      %v1304 = vpack.c.b16 %v1275, %v1274
      %v1305 = vpack.c.b16 %v1277, %v1276
      %v1306 = vpack.c.b16 %v1279, %v1278
      %v1307 = vpack.c.b16 %v1281, %v1280
      %v1308 = vpack.c.b16 %v1283, %v1282
      %v1309 = vpack.c.b16 %v1285, %v1284
      %v1310 = vpack.c.b16 %v1287, %v1286
      %v1311 = vpack.c.b16 %v1289, %v1288
      %v1312 = vpack.c.b16 %v1291, %v1290
      %v1313 = vpack.c.b16 %v1293, %v1292
      %v1314 = vpack.c.b16 %v1295, %v1294
      %v1315 = vpack.c.b16 %v1297, %v1296
      %v1316 = vpack.c.b16 %v1299, %v1298
      %v1317 = vpack.c.b16 %v1301, %v1300
      %vm1318 = vcmask 31744
      %v1320 = vsel %vm1318, %v1302, 0
      %v1323 = vsel %vm1318, %v1303, 0
      %v1326 = vsel %vm1318, %v1304, 0
      %v1329 = vsel %vm1318, %v1305, 0
      %v1332 = vsel %vm1318, %v1306, 0
      %v1335 = vsel %vm1318, %v1307, 0
      %v1338 = vsel %vm1318, %v1308, 0
      %v1341 = vsel %vm1318, %v1309, 0
      %v1344 = vsel %vm1318, %v1310, 0
      %v1347 = vsel %vm1318, %v1311, 0
      %v1350 = vsel %vm1318, %v1312, 0
      %v1353 = vsel %vm1318, %v1313, 0
      %v1356 = vsel %vm1318, %v1314, 0
      %v1359 = vsel %vm1318, %v1315, 0
      %v1362 = vsel %vm1318, %v1316, 0
      %v1365 = vsel %vm1318, %v1317, 0
      %vm1367 = vcmask 1041408
      %v1369 = vsel %vm1367, %v1269, 0
      %1371 = vmatprep.subr.bf16.mxu0 0
      %1372 = vmatpush1.bf16.msra.mxu0 0
      %1373 = vmatprep.subr.bf16.mxu0 0
      %1374 = vmatpush1.bf16.msra.mxu0 0
      %1375 = vmatprep.subr.bf16.mxu0 0
      %1376 = vmatpush1.bf16.msra.mxu0 0
      %1377 = vmatprep.subr.bf16.mxu0 0
      %1378 = vmatpush1.bf16.msra.mxu0 0
      %1379 = vmatprep.subr.bf16.mxu0 0
      %1380 = vmatpush1.bf16.msra.mxu0 0
      %1381 = vmatprep.subr.bf16.mxu0 0
      %1382 = vmatpush1.bf16.msra.mxu0 0
      %1383 = vmatprep.subr.bf16.mxu0 0
      %1384 = vmatpush1.bf16.msra.mxu0 0
      %1385 = vmatprep.subr.bf16.mxu0 0
      %1386 = vmatpush1.bf16.msra.mxu0 %v1369
      %1387 = vmatprep.subr.bf16.mxu0 0
      %1388 = vmatpush2.bf16.msra.mxu0 0
      %1389 = vmatprep.subr.bf16.mxu0 0
      %1390 = vmatpush2.bf16.msra.mxu0 0
      %1391 = vmatprep.subr.bf16.mxu0 0
      %1392 = vmatpush2.bf16.msra.mxu0 0
      %1393 = vmatprep.subr.bf16.mxu0 0
      %1394 = vmatpush2.bf16.msra.mxu0 0
      %1395 = vmatprep.subr.bf16.mxu0 0
      %1396 = vmatpush2.bf16.msra.mxu0 0
      %1397 = vmatprep.subr.bf16.mxu0 0
      %1398 = vmatpush2.bf16.msra.mxu0 0
      %1399 = vmatprep.subr.bf16.mxu0 0
      %1400 = vmatpush2.bf16.msra.mxu0 0
      %1401 = vmatprep.subr.bf16.mxu0 0
      %1402 = vmatpush2.bf16.msra.mxu0 0
      %1403 = vmatprep.mubr.bf16.mxu0 0
      %1404 = vmatmul.mubr.bf16.gmra.mxu0 %v1320
      %v1405 = vpop.f32.mrf.mxu0
      %v1406 = vadd.f32 0.0, %v1405
      %v1407 = vpop.f32.mrf.mxu0
      %v1408 = vpop.f32.mrf.mxu0
      %v1409 = vadd.f32 0.0, %v1408
      %v1410 = vpop.f32.mrf.mxu0
      %1411 = vmatprep.mubr.bf16.mxu0 0
      %1412 = vmatmul.mubr.bf16.gmra.mxu0 %v1323
      %v1413 = vpop.f32.mrf.mxu0
      %v1414 = vadd.f32 0.0, %v1413
      %v1415 = vpop.f32.mrf.mxu0
      %v1416 = vpop.f32.mrf.mxu0
      %v1417 = vadd.f32 0.0, %v1416
      %v1418 = vpop.f32.mrf.mxu0
      %1419 = vmatprep.mubr.bf16.mxu0 0
      %1420 = vmatmul.mubr.bf16.gmra.mxu0 %v1326
      %v1421 = vpop.f32.mrf.mxu0
      %v1422 = vadd.f32 0.0, %v1421
      %v1423 = vpop.f32.mrf.mxu0
      %v1424 = vpop.f32.mrf.mxu0
      %v1425 = vadd.f32 0.0, %v1424
      %v1426 = vpop.f32.mrf.mxu0
      %1427 = vmatprep.mubr.bf16.mxu0 0
      %1428 = vmatmul.mubr.bf16.gmra.mxu0 %v1329
      %v1429 = vpop.f32.mrf.mxu0
      %v1430 = vadd.f32 0.0, %v1429
      %v1431 = vpop.f32.mrf.mxu0
      %v1432 = vpop.f32.mrf.mxu0
      %v1433 = vadd.f32 0.0, %v1432
      %v1434 = vpop.f32.mrf.mxu0
      %1435 = vmatprep.mubr.bf16.mxu0 0
      %1436 = vmatmul.mubr.bf16.gmra.mxu0 %v1332
      %v1437 = vpop.f32.mrf.mxu0
      %v1438 = vadd.f32 0.0, %v1437
      %v1439 = vpop.f32.mrf.mxu0
      %v1440 = vpop.f32.mrf.mxu0
      %v1441 = vadd.f32 0.0, %v1440
      %v1442 = vpop.f32.mrf.mxu0
      %1443 = vmatprep.mubr.bf16.mxu0 0
      %1444 = vmatmul.mubr.bf16.gmra.mxu0 %v1335
      %v1445 = vpop.f32.mrf.mxu0
      %v1446 = vadd.f32 0.0, %v1445
      %v1447 = vpop.f32.mrf.mxu0
      %v1448 = vpop.f32.mrf.mxu0
      %v1449 = vadd.f32 0.0, %v1448
      %v1450 = vpop.f32.mrf.mxu0
      %1451 = vmatprep.mubr.bf16.mxu0 0
      %1452 = vmatmul.mubr.bf16.gmra.mxu0 %v1338
      %v1453 = vpop.f32.mrf.mxu0
      %v1454 = vadd.f32 0.0, %v1453
      %v1455 = vpop.f32.mrf.mxu0
      %v1456 = vpop.f32.mrf.mxu0
      %v1457 = vadd.f32 0.0, %v1456
      %v1458 = vpop.f32.mrf.mxu0
      %1459 = vmatprep.mubr.bf16.mxu0 0
      %1460 = vmatmul.mubr.bf16.gmra.mxu0 %v1341
      %v1461 = vpop.f32.mrf.mxu0
      %v1462 = vadd.f32 0.0, %v1461
      %v1463 = vpop.f32.mrf.mxu0
      %v1464 = vpop.f32.mrf.mxu0
      %v1465 = vadd.f32 0.0, %v1464
      %v1466 = vpop.f32.mrf.mxu0
      %1467 = vmatprep.mubr.bf16.mxu0 0
      %1468 = vmatmul.mubr.bf16.gmra.mxu0 %v1344
      %v1469 = vpop.f32.mrf.mxu0
      %v1470 = vadd.f32 0.0, %v1469
      %v1471 = vpop.f32.mrf.mxu0
      %v1472 = vpop.f32.mrf.mxu0
      %v1473 = vadd.f32 0.0, %v1472
      %v1474 = vpop.f32.mrf.mxu0
      %1475 = vmatprep.mubr.bf16.mxu0 0
      %1476 = vmatmul.mubr.bf16.gmra.mxu0 %v1347
      %v1477 = vpop.f32.mrf.mxu0
      %v1478 = vadd.f32 0.0, %v1477
      %v1479 = vpop.f32.mrf.mxu0
      %v1480 = vpop.f32.mrf.mxu0
      %v1481 = vadd.f32 0.0, %v1480
      %v1482 = vpop.f32.mrf.mxu0
      %1483 = vmatprep.mubr.bf16.mxu0 0
      %1484 = vmatmul.mubr.bf16.gmra.mxu0 %v1350
      %v1485 = vpop.f32.mrf.mxu0
      %v1486 = vadd.f32 0.0, %v1485
      %v1487 = vpop.f32.mrf.mxu0
      %v1488 = vpop.f32.mrf.mxu0
      %v1489 = vadd.f32 0.0, %v1488
      %v1490 = vpop.f32.mrf.mxu0
      %1491 = vmatprep.mubr.bf16.mxu0 0
      %1492 = vmatmul.mubr.bf16.gmra.mxu0 %v1353
      %v1493 = vpop.f32.mrf.mxu0
      %v1494 = vadd.f32 0.0, %v1493
      %v1495 = vpop.f32.mrf.mxu0
      %v1496 = vpop.f32.mrf.mxu0
      %v1497 = vadd.f32 0.0, %v1496
      %v1498 = vpop.f32.mrf.mxu0
      %1499 = vmatprep.mubr.bf16.mxu0 0
      %1500 = vmatmul.mubr.bf16.gmra.mxu0 %v1356
      %v1501 = vpop.f32.mrf.mxu0
      %v1502 = vadd.f32 0.0, %v1501
      %v1503 = vpop.f32.mrf.mxu0
      %v1504 = vpop.f32.mrf.mxu0
      %v1505 = vadd.f32 0.0, %v1504
      %v1506 = vpop.f32.mrf.mxu0
      %1507 = vmatprep.mubr.bf16.mxu0 0
      %1508 = vmatmul.mubr.bf16.gmra.mxu0 %v1359
      %v1509 = vpop.f32.mrf.mxu0
      %v1510 = vadd.f32 0.0, %v1509
      %v1511 = vpop.f32.mrf.mxu0
      %v1512 = vpop.f32.mrf.mxu0
      %v1513 = vadd.f32 0.0, %v1512
      %v1514 = vpop.f32.mrf.mxu0
      %1515 = vmatprep.mubr.bf16.mxu0 0
      %1516 = vmatmul.mubr.bf16.gmra.mxu0 %v1362
      %v1517 = vpop.f32.mrf.mxu0
      %v1518 = vadd.f32 0.0, %v1517
      %v1519 = vpop.f32.mrf.mxu0
      %v1520 = vpop.f32.mrf.mxu0
      %v1521 = vadd.f32 0.0, %v1520
      %v1522 = vpop.f32.mrf.mxu0
      %1523 = vmatprep.mubr.bf16.mxu0 0
      %1524 = vmatmul.mubr.bf16.gmra.mxu0 %v1365
      %v1525 = vpop.f32.mrf.mxu0
      %v1526 = vadd.f32 0.0, %v1525
      %v1527 = vpop.f32.mrf.mxu0
      %v1528 = vpop.f32.mrf.mxu0
      %v1529 = vadd.f32 0.0, %v1528
      %v1530 = vpop.f32.mrf.mxu0
      %1531 = vdwg.mxu0
      %v1564 = vunpack.c.l.b16 %v832
      %v1565 = vunpack.c.l.b16 %v833
      %v1566 = vunpack.c.l.b16 %v834
      %v1567 = vunpack.c.l.b16 %v835
      %v1568 = vunpack.c.l.b16 %v836
      %v1569 = vunpack.c.l.b16 %v837
      %v1570 = vunpack.c.l.b16 %v838
      %v1571 = vunpack.c.l.b16 %v839
      %v1572 = vunpack.c.l.b16 %v840
      %v1573 = vunpack.c.l.b16 %v841
      %v1574 = vunpack.c.l.b16 %v842
      %v1575 = vunpack.c.l.b16 %v843
      %v1576 = vunpack.c.l.b16 %v844
      %v1577 = vunpack.c.l.b16 %v845
      %v1578 = vunpack.c.l.b16 %v846
      %v1579 = vunpack.c.l.b16 %v847
      %v1580 = vunpack.c.l.b16 %v848
      %v1581 = vunpack.c.l.b16 %v849
      %v1582 = vunpack.c.l.b16 %v850
      %v1583 = vunpack.c.l.b16 %v851
      %v1584 = vunpack.c.l.b16 %v852
      %v1585 = vunpack.c.l.b16 %v853
      %v1586 = vunpack.c.l.b16 %v854
      %v1587 = vunpack.c.l.b16 %v855
      %v1588 = vunpack.c.l.b16 %v856
      %v1589 = vunpack.c.l.b16 %v857
      %v1590 = vunpack.c.l.b16 %v858
      %v1591 = vunpack.c.l.b16 %v859
      %v1592 = vunpack.c.l.b16 %v860
      %v1593 = vunpack.c.l.b16 %v861
      %v1594 = vunpack.c.l.b16 %v862
      %v1595 = vunpack.c.l.b16 %v863
      %v1596 = vpack.c.b16 %v1565, %v1564
      %v1597 = vpack.c.b16 %v1567, %v1566
      %v1598 = vpack.c.b16 %v1569, %v1568
      %v1599 = vpack.c.b16 %v1571, %v1570
      %v1600 = vpack.c.b16 %v1573, %v1572
      %v1601 = vpack.c.b16 %v1575, %v1574
      %v1602 = vpack.c.b16 %v1577, %v1576
      %v1603 = vpack.c.b16 %v1579, %v1578
      %v1604 = vpack.c.b16 %v1581, %v1580
      %v1605 = vpack.c.b16 %v1583, %v1582
      %v1606 = vpack.c.b16 %v1585, %v1584
      %v1607 = vpack.c.b16 %v1587, %v1586
      %v1608 = vpack.c.b16 %v1589, %v1588
      %v1609 = vpack.c.b16 %v1591, %v1590
      %v1610 = vpack.c.b16 %v1593, %v1592
      %v1611 = vpack.c.b16 %v1595, %v1594
      %v1613 = vsel %vm1318, %v1596, 0
      %v1616 = vsel %vm1318, %v1597, 0
      %v1619 = vsel %vm1318, %v1598, 0
      %v1622 = vsel %vm1318, %v1599, 0
      %v1625 = vsel %vm1318, %v1600, 0
      %v1628 = vsel %vm1318, %v1601, 0
      %v1631 = vsel %vm1318, %v1602, 0
      %v1634 = vsel %vm1318, %v1603, 0
      %v1637 = vsel %vm1318, %v1604, 0
      %v1640 = vsel %vm1318, %v1605, 0
      %v1643 = vsel %vm1318, %v1606, 0
      %v1646 = vsel %vm1318, %v1607, 0
      %v1649 = vsel %vm1318, %v1608, 0
      %v1652 = vsel %vm1318, %v1609, 0
      %v1655 = vsel %vm1318, %v1610, 0
      %v1658 = vsel %vm1318, %v1611, 0
      %v1661 = vsel %vm1367, %v864, 0
      %1663 = vmatprep.subr.bf16.mxu0 0
      %1664 = vmatpush1.bf16.msra.mxu0 0
      %1665 = vmatprep.subr.bf16.mxu0 0
      %1666 = vmatpush1.bf16.msra.mxu0 0
      %1667 = vmatprep.subr.bf16.mxu0 0
      %1668 = vmatpush1.bf16.msra.mxu0 0
      %1669 = vmatprep.subr.bf16.mxu0 0
      %1670 = vmatpush1.bf16.msra.mxu0 0
      %1671 = vmatprep.subr.bf16.mxu0 0
      %1672 = vmatpush1.bf16.msra.mxu0 0
      %1673 = vmatprep.subr.bf16.mxu0 0
      %1674 = vmatpush1.bf16.msra.mxu0 0
      %1675 = vmatprep.subr.bf16.mxu0 0
      %1676 = vmatpush1.bf16.msra.mxu0 0
      %1677 = vmatprep.subr.bf16.mxu0 0
      %1678 = vmatpush1.bf16.msra.mxu0 %v1661
      %1679 = vmatprep.subr.bf16.mxu0 0
      %1680 = vmatpush2.bf16.msra.mxu0 0
      %1681 = vmatprep.subr.bf16.mxu0 0
      %1682 = vmatpush2.bf16.msra.mxu0 0
      %1683 = vmatprep.subr.bf16.mxu0 0
      %1684 = vmatpush2.bf16.msra.mxu0 0
      %1685 = vmatprep.subr.bf16.mxu0 0
      %1686 = vmatpush2.bf16.msra.mxu0 0
      %1687 = vmatprep.subr.bf16.mxu0 0
      %1688 = vmatpush2.bf16.msra.mxu0 0
      %1689 = vmatprep.subr.bf16.mxu0 0
      %1690 = vmatpush2.bf16.msra.mxu0 0
      %1691 = vmatprep.subr.bf16.mxu0 0
      %1692 = vmatpush2.bf16.msra.mxu0 0
      %1693 = vmatprep.subr.bf16.mxu0 0
      %1694 = vmatpush2.bf16.msra.mxu0 0
      %1695 = vmatprep.mubr.bf16.mxu0 0
      %1696 = vmatmul.mubr.bf16.gmra.mxu0 %v1613
      %v1697 = vpop.f32.mrf.mxu0
      %v1698 = vadd.f32 %v1406, %v1697
      %v1699 = vpop.f32.mrf.mxu0
      %v1700 = vpop.f32.mrf.mxu0
      %v1701 = vadd.f32 %v1409, %v1700
      %v1702 = vpop.f32.mrf.mxu0
      %1703 = vmatprep.mubr.bf16.mxu0 0
      %1704 = vmatmul.mubr.bf16.gmra.mxu0 %v1616
      %v1705 = vpop.f32.mrf.mxu0
      %v1706 = vadd.f32 %v1414, %v1705
      %v1707 = vpop.f32.mrf.mxu0
      %v1708 = vpop.f32.mrf.mxu0
      %v1709 = vadd.f32 %v1417, %v1708
      %v1710 = vpop.f32.mrf.mxu0
      %1711 = vmatprep.mubr.bf16.mxu0 0
      %1712 = vmatmul.mubr.bf16.gmra.mxu0 %v1619
      %v1713 = vpop.f32.mrf.mxu0
      %v1714 = vadd.f32 %v1422, %v1713
      %v1715 = vpop.f32.mrf.mxu0
      %v1716 = vpop.f32.mrf.mxu0
      %v1717 = vadd.f32 %v1425, %v1716
      %v1718 = vpop.f32.mrf.mxu0
      %1719 = vmatprep.mubr.bf16.mxu0 0
      %1720 = vmatmul.mubr.bf16.gmra.mxu0 %v1622
      %v1721 = vpop.f32.mrf.mxu0
      %v1722 = vadd.f32 %v1430, %v1721
      %v1723 = vpop.f32.mrf.mxu0
      %v1724 = vpop.f32.mrf.mxu0
      %v1725 = vadd.f32 %v1433, %v1724
      %v1726 = vpop.f32.mrf.mxu0
      %1727 = vmatprep.mubr.bf16.mxu0 0
      %1728 = vmatmul.mubr.bf16.gmra.mxu0 %v1625
      %v1729 = vpop.f32.mrf.mxu0
      %v1730 = vadd.f32 %v1438, %v1729
      %v1731 = vpop.f32.mrf.mxu0
      %v1732 = vpop.f32.mrf.mxu0
      %v1733 = vadd.f32 %v1441, %v1732
      %v1734 = vpop.f32.mrf.mxu0
      %1735 = vmatprep.mubr.bf16.mxu0 0
      %1736 = vmatmul.mubr.bf16.gmra.mxu0 %v1628
      %v1737 = vpop.f32.mrf.mxu0
      %v1738 = vadd.f32 %v1446, %v1737
      %v1739 = vpop.f32.mrf.mxu0
      %v1740 = vpop.f32.mrf.mxu0
      %v1741 = vadd.f32 %v1449, %v1740
      %v1742 = vpop.f32.mrf.mxu0
      %1743 = vmatprep.mubr.bf16.mxu0 0
      %1744 = vmatmul.mubr.bf16.gmra.mxu0 %v1631
      %v1745 = vpop.f32.mrf.mxu0
      %v1746 = vadd.f32 %v1454, %v1745
      %v1747 = vpop.f32.mrf.mxu0
      %v1748 = vpop.f32.mrf.mxu0
      %v1749 = vadd.f32 %v1457, %v1748
      %v1750 = vpop.f32.mrf.mxu0
      %1751 = vmatprep.mubr.bf16.mxu0 0
      %1752 = vmatmul.mubr.bf16.gmra.mxu0 %v1634
      %v1753 = vpop.f32.mrf.mxu0
      %v1754 = vadd.f32 %v1462, %v1753
      %v1755 = vpop.f32.mrf.mxu0
      %v1756 = vpop.f32.mrf.mxu0
      %v1757 = vadd.f32 %v1465, %v1756
      %v1758 = vpop.f32.mrf.mxu0
      %1759 = vmatprep.mubr.bf16.mxu0 0
      %1760 = vmatmul.mubr.bf16.gmra.mxu0 %v1637
      %v1761 = vpop.f32.mrf.mxu0
      %v1762 = vadd.f32 %v1470, %v1761
      %v1763 = vpop.f32.mrf.mxu0
      %v1764 = vpop.f32.mrf.mxu0
      %v1765 = vadd.f32 %v1473, %v1764
      %v1766 = vpop.f32.mrf.mxu0
      %1767 = vmatprep.mubr.bf16.mxu0 0
      %1768 = vmatmul.mubr.bf16.gmra.mxu0 %v1640
      %v1769 = vpop.f32.mrf.mxu0
      %v1770 = vadd.f32 %v1478, %v1769
      %v1771 = vpop.f32.mrf.mxu0
      %v1772 = vpop.f32.mrf.mxu0
      %v1773 = vadd.f32 %v1481, %v1772
      %v1774 = vpop.f32.mrf.mxu0
      %1775 = vmatprep.mubr.bf16.mxu0 0
      %1776 = vmatmul.mubr.bf16.gmra.mxu0 %v1643
      %v1777 = vpop.f32.mrf.mxu0
      %v1778 = vadd.f32 %v1486, %v1777
      %v1779 = vpop.f32.mrf.mxu0
      %v1780 = vpop.f32.mrf.mxu0
      %v1781 = vadd.f32 %v1489, %v1780
      %v1782 = vpop.f32.mrf.mxu0
      %1783 = vmatprep.mubr.bf16.mxu0 0
      %1784 = vmatmul.mubr.bf16.gmra.mxu0 %v1646
      %v1785 = vpop.f32.mrf.mxu0
      %v1786 = vadd.f32 %v1494, %v1785
      %v1787 = vpop.f32.mrf.mxu0
      %v1788 = vpop.f32.mrf.mxu0
      %v1789 = vadd.f32 %v1497, %v1788
      %v1790 = vpop.f32.mrf.mxu0
      %1791 = vmatprep.mubr.bf16.mxu0 0
      %1792 = vmatmul.mubr.bf16.gmra.mxu0 %v1649
      %v1793 = vpop.f32.mrf.mxu0
      %v1794 = vadd.f32 %v1502, %v1793
      %v1795 = vpop.f32.mrf.mxu0
      %v1796 = vpop.f32.mrf.mxu0
      %v1797 = vadd.f32 %v1505, %v1796
      %v1798 = vpop.f32.mrf.mxu0
      %1799 = vmatprep.mubr.bf16.mxu0 0
      %1800 = vmatmul.mubr.bf16.gmra.mxu0 %v1652
      %v1801 = vpop.f32.mrf.mxu0
      %v1802 = vadd.f32 %v1510, %v1801
      %v1803 = vpop.f32.mrf.mxu0
      %v1804 = vpop.f32.mrf.mxu0
      %v1805 = vadd.f32 %v1513, %v1804
      %v1806 = vpop.f32.mrf.mxu0
      %1807 = vmatprep.mubr.bf16.mxu0 0
      %1808 = vmatmul.mubr.bf16.gmra.mxu0 %v1655
      %v1809 = vpop.f32.mrf.mxu0
      %v1810 = vadd.f32 %v1518, %v1809
      %v1811 = vpop.f32.mrf.mxu0
      %v1812 = vpop.f32.mrf.mxu0
      %v1813 = vadd.f32 %v1521, %v1812
      %v1814 = vpop.f32.mrf.mxu0
      %1815 = vmatprep.mubr.bf16.mxu0 0
      %1816 = vmatmul.mubr.bf16.gmra.mxu0 %v1658
      %v1817 = vpop.f32.mrf.mxu0
      %v1818 = vadd.f32 %v1526, %v1817
      %v1819 = vpop.f32.mrf.mxu0
      %v1820 = vpop.f32.mrf.mxu0
      %v1821 = vadd.f32 %v1529, %v1820
      %v1822 = vpop.f32.mrf.mxu0
      %1823 = vdwg.mxu0
      %v1824 = vld [vmem:[#allocation2] sm:$0xe]
      %v1825 = vld [vmem:[#allocation2 + $0xc] sm:$0xe]
      %v1826 = vld [vmem:[#allocation2 + $0x18] sm:$0xe]
      %v1827 = vld [vmem:[#allocation2 + $0x24] sm:$0xe]
      %v1828 = vld [vmem:[#allocation2 + $0x30] sm:$0xe]
      %v1829 = vld [vmem:[#allocation2 + $0x3c] sm:$0xe]
      %v1830 = vld [vmem:[#allocation2 + $0x48] sm:$0xe]
      %v1831 = vld [vmem:[#allocation2 + $0x54] sm:$0xe]
      %v1832 = vld [vmem:[#allocation2 + $0x60] sm:$0xe]
      %v1833 = vld [vmem:[#allocation2 + $0x6c] sm:$0xe]
      %v1834 = vld [vmem:[#allocation2 + $0x78] sm:$0xe]
      %v1835 = vld [vmem:[#allocation2 + $0x84] sm:$0xe]
      %v1836 = vld [vmem:[#allocation2 + $0x90] sm:$0xe]
      %v1837 = vld [vmem:[#allocation2 + $0x9c] sm:$0xe]
      %v1838 = vld [vmem:[#allocation2 + $0xa8] sm:$0xe]
      %v1839 = vld [vmem:[#allocation2 + $0xb4] sm:$0xe]
      %vm1872 = vcmask 1042432
      %vm1873 = vcmask 1046532
      %vm1874 = vmor %vm1872, %vm1873
      %v1875 = vrot.slane %v1824, 5
      %v1876 = vrot.slane %v1875, 4
      %v1877 = vrot.slane %v833, 5
      %v1878 = vsel %vm1874, %v1876, %v1877
      %v1879 = vrot.slane %v1877, 4
      %v1880 = vrot.slane %v865, 5
      %v1881 = vsel %vm1874, %v1879, %v1880
      %v1882 = vrot.slane %v1825, 5
      %v1883 = vrot.slane %v1882, 4
      %v1884 = vrot.slane %v835, 5
      %v1885 = vsel %vm1874, %v1883, %v1884
      %v1886 = vrot.slane %v1884, 4
      %v1887 = vrot.slane %v866, 5
      %v1888 = vsel %vm1874, %v1886, %v1887
      %v1889 = vrot.slane %v1826, 5
      %v1890 = vrot.slane %v1889, 4
      %v1891 = vrot.slane %v837, 5
      %v1892 = vsel %vm1874, %v1890, %v1891
      %v1893 = vrot.slane %v1891, 4
      %v1894 = vrot.slane %v867, 5
      %v1895 = vsel %vm1874, %v1893, %v1894
      %v1896 = vrot.slane %v1827, 5
      %v1897 = vrot.slane %v1896, 4
      %v1898 = vrot.slane %v839, 5
      %v1899 = vsel %vm1874, %v1897, %v1898
      %v1900 = vrot.slane %v1898, 4
      %v1901 = vrot.slane %v868, 5
      %v1902 = vsel %vm1874, %v1900, %v1901
      %v1903 = vrot.slane %v1828, 5
      %v1904 = vrot.slane %v1903, 4
      %v1905 = vrot.slane %v841, 5
      %v1906 = vsel %vm1874, %v1904, %v1905
      %v1907 = vrot.slane %v1905, 4
      %v1908 = vrot.slane %v869, 5
      %v1909 = vsel %vm1874, %v1907, %v1908
      %v1910 = vrot.slane %v1829, 5
      %v1911 = vrot.slane %v1910, 4
      %v1912 = vrot.slane %v843, 5
      %v1913 = vsel %vm1874, %v1911, %v1912
      %v1914 = vrot.slane %v1912, 4
      %v1915 = vrot.slane %v870, 5
      %v1916 = vsel %vm1874, %v1914, %v1915
      %v1917 = vrot.slane %v1830, 5
      %v1918 = vrot.slane %v1917, 4
      %v1919 = vrot.slane %v845, 5
      %v1920 = vsel %vm1874, %v1918, %v1919
      %v1921 = vrot.slane %v1919, 4
      %v1922 = vrot.slane %v871, 5
      %v1923 = vsel %vm1874, %v1921, %v1922
      %v1924 = vrot.slane %v1831, 5
      %v1925 = vrot.slane %v1924, 4
      %v1926 = vrot.slane %v847, 5
      %v1927 = vsel %vm1874, %v1925, %v1926
      %v1928 = vrot.slane %v1926, 4
      %v1929 = vrot.slane %v872, 5
      %v1930 = vsel %vm1874, %v1928, %v1929
      %v1931 = vrot.slane %v1832, 5
      %v1932 = vrot.slane %v1931, 4
      %v1933 = vrot.slane %v849, 5
      %v1934 = vsel %vm1874, %v1932, %v1933
      %v1935 = vrot.slane %v1933, 4
      %v1936 = vrot.slane %v873, 5
      %v1937 = vsel %vm1874, %v1935, %v1936
      %v1938 = vrot.slane %v1833, 5
      %v1939 = vrot.slane %v1938, 4
      %v1940 = vrot.slane %v851, 5
      %v1941 = vsel %vm1874, %v1939, %v1940
      %v1942 = vrot.slane %v1940, 4
      %v1943 = vrot.slane %v874, 5
      %v1944 = vsel %vm1874, %v1942, %v1943
      %v1945 = vrot.slane %v1834, 5
      %v1946 = vrot.slane %v1945, 4
      %v1947 = vrot.slane %v853, 5
      %v1948 = vsel %vm1874, %v1946, %v1947
      %v1949 = vrot.slane %v1947, 4
      %v1950 = vrot.slane %v875, 5
      %v1951 = vsel %vm1874, %v1949, %v1950
      %v1952 = vrot.slane %v1835, 5
      %v1953 = vrot.slane %v1952, 4
      %v1954 = vrot.slane %v855, 5
      %v1955 = vsel %vm1874, %v1953, %v1954
      %v1956 = vrot.slane %v1954, 4
      %v1957 = vrot.slane %v876, 5
      %v1958 = vsel %vm1874, %v1956, %v1957
      %v1959 = vrot.slane %v1836, 5
      %v1960 = vrot.slane %v1959, 4
      %v1961 = vrot.slane %v857, 5
      %v1962 = vsel %vm1874, %v1960, %v1961
      %v1963 = vrot.slane %v1961, 4
      %v1964 = vrot.slane %v877, 5
      %v1965 = vsel %vm1874, %v1963, %v1964
      %v1966 = vrot.slane %v1837, 5
      %v1967 = vrot.slane %v1966, 4
      %v1968 = vrot.slane %v859, 5
      %v1969 = vsel %vm1874, %v1967, %v1968
      %v1970 = vrot.slane %v1968, 4
      %v1971 = vrot.slane %v878, 5
      %v1972 = vsel %vm1874, %v1970, %v1971
      %v1973 = vrot.slane %v1838, 5
      %v1974 = vrot.slane %v1973, 4
      %v1975 = vrot.slane %v861, 5
      %v1976 = vsel %vm1874, %v1974, %v1975
      %v1977 = vrot.slane %v1975, 4
      %v1978 = vrot.slane %v879, 5
      %v1979 = vsel %vm1874, %v1977, %v1978
      %v1980 = vrot.slane %v1839, 5
      %v1981 = vrot.slane %v1980, 4
      %v1982 = vrot.slane %v863, 5
      %v1983 = vsel %vm1874, %v1981, %v1982
      %v1984 = vrot.slane %v1982, 4
      %v1985 = vrot.slane %v880, 5
      %v1986 = vsel %vm1874, %v1984, %v1985
      %s1987 = scalar_lea.vmem %s1, 4
      %v1988 = vld [vmem:[%s1987] sm:$0x3]
      %v1989 = vunpack.c.l.b16 %v1878
      %v1990 = vunpack.c.l.b16 %v1881
      %v1991 = vunpack.c.l.b16 %v1885
      %v1992 = vunpack.c.l.b16 %v1888
      %v1993 = vunpack.c.l.b16 %v1892
      %v1994 = vunpack.c.l.b16 %v1895
      %v1995 = vunpack.c.l.b16 %v1899
      %v1996 = vunpack.c.l.b16 %v1902
      %v1997 = vunpack.c.l.b16 %v1906
      %v1998 = vunpack.c.l.b16 %v1909
      %v1999 = vunpack.c.l.b16 %v1913
      %v2000 = vunpack.c.l.b16 %v1916
      %v2001 = vunpack.c.l.b16 %v1920
      %v2002 = vunpack.c.l.b16 %v1923
      %v2003 = vunpack.c.l.b16 %v1927
      %v2004 = vunpack.c.l.b16 %v1930
      %v2005 = vunpack.c.l.b16 %v1934
      %v2006 = vunpack.c.l.b16 %v1937
      %v2007 = vunpack.c.l.b16 %v1941
      %v2008 = vunpack.c.l.b16 %v1944
      %v2009 = vunpack.c.l.b16 %v1948
      %v2010 = vunpack.c.l.b16 %v1951
      %v2011 = vunpack.c.l.b16 %v1955
      %v2012 = vunpack.c.l.b16 %v1958
      %v2013 = vunpack.c.l.b16 %v1962
      %v2014 = vunpack.c.l.b16 %v1965
      %v2015 = vunpack.c.l.b16 %v1969
      %v2016 = vunpack.c.l.b16 %v1972
      %v2017 = vunpack.c.l.b16 %v1976
      %v2018 = vunpack.c.l.b16 %v1979
      %v2019 = vunpack.c.l.b16 %v1983
      %v2020 = vunpack.c.l.b16 %v1986
      %v2021 = vpack.c.b16 %v1990, %v1989
      %v2022 = vpack.c.b16 %v1992, %v1991
      %v2023 = vpack.c.b16 %v1994, %v1993
      %v2024 = vpack.c.b16 %v1996, %v1995
      %v2025 = vpack.c.b16 %v1998, %v1997
      %v2026 = vpack.c.b16 %v2000, %v1999
      %v2027 = vpack.c.b16 %v2002, %v2001
      %v2028 = vpack.c.b16 %v2004, %v2003
      %v2029 = vpack.c.b16 %v2006, %v2005
      %v2030 = vpack.c.b16 %v2008, %v2007
      %v2031 = vpack.c.b16 %v2010, %v2009
      %v2032 = vpack.c.b16 %v2012, %v2011
      %v2033 = vpack.c.b16 %v2014, %v2013
      %v2034 = vpack.c.b16 %v2016, %v2015
      %v2035 = vpack.c.b16 %v2018, %v2017
      %v2036 = vpack.c.b16 %v2020, %v2019
      %v2038 = vsel %vm1318, %v2021, 0
      %v2041 = vsel %vm1318, %v2022, 0
      %v2044 = vsel %vm1318, %v2023, 0
      %v2047 = vsel %vm1318, %v2024, 0
      %v2050 = vsel %vm1318, %v2025, 0
      %v2053 = vsel %vm1318, %v2026, 0
      %v2056 = vsel %vm1318, %v2027, 0
      %v2059 = vsel %vm1318, %v2028, 0
      %v2062 = vsel %vm1318, %v2029, 0
      %v2065 = vsel %vm1318, %v2030, 0
      %v2068 = vsel %vm1318, %v2031, 0
      %v2071 = vsel %vm1318, %v2032, 0
      %v2074 = vsel %vm1318, %v2033, 0
      %v2077 = vsel %vm1318, %v2034, 0
      %v2080 = vsel %vm1318, %v2035, 0
      %v2083 = vsel %vm1318, %v2036, 0
      %v2086 = vsel %vm1367, %v1988, 0
      %2088 = vmatprep.subr.bf16.mxu0 0
      %2089 = vmatpush1.bf16.msra.mxu0 0
      %2090 = vmatprep.subr.bf16.mxu0 0
      %2091 = vmatpush1.bf16.msra.mxu0 0
      %2092 = vmatprep.subr.bf16.mxu0 0
      %2093 = vmatpush1.bf16.msra.mxu0 0
      %2094 = vmatprep.subr.bf16.mxu0 0
      %2095 = vmatpush1.bf16.msra.mxu0 0
      %2096 = vmatprep.subr.bf16.mxu0 0
      %2097 = vmatpush1.bf16.msra.mxu0 0
      %2098 = vmatprep.subr.bf16.mxu0 0
      %2099 = vmatpush1.bf16.msra.mxu0 0
      %2100 = vmatprep.subr.bf16.mxu0 0
      %2101 = vmatpush1.bf16.msra.mxu0 0
      %2102 = vmatprep.subr.bf16.mxu0 0
      %2103 = vmatpush1.bf16.msra.mxu0 %v2086
      %2104 = vmatprep.subr.bf16.mxu0 0
      %2105 = vmatpush2.bf16.msra.mxu0 0
      %2106 = vmatprep.subr.bf16.mxu0 0
      %2107 = vmatpush2.bf16.msra.mxu0 0
      %2108 = vmatprep.subr.bf16.mxu0 0
      %2109 = vmatpush2.bf16.msra.mxu0 0
      %2110 = vmatprep.subr.bf16.mxu0 0
      %2111 = vmatpush2.bf16.msra.mxu0 0
      %2112 = vmatprep.subr.bf16.mxu0 0
      %2113 = vmatpush2.bf16.msra.mxu0 0
      %2114 = vmatprep.subr.bf16.mxu0 0
      %2115 = vmatpush2.bf16.msra.mxu0 0
      %2116 = vmatprep.subr.bf16.mxu0 0
      %2117 = vmatpush2.bf16.msra.mxu0 0
      %2118 = vmatprep.subr.bf16.mxu0 0
      %2119 = vmatpush2.bf16.msra.mxu0 0
      %2120 = vmatprep.mubr.bf16.mxu0 0
      %2121 = vmatmul.mubr.bf16.gmra.mxu0 %v2038
      %v2122 = vpop.f32.mrf.mxu0
      %v2123 = vadd.f32 0.0, %v2122
      %v2124 = vpop.f32.mrf.mxu0
      %v2125 = vpop.f32.mrf.mxu0
      %v2126 = vadd.f32 0.0, %v2125
      %v2127 = vpop.f32.mrf.mxu0
      %2128 = vmatprep.mubr.bf16.mxu0 0
      %2129 = vmatmul.mubr.bf16.gmra.mxu0 %v2041
      %v2130 = vpop.f32.mrf.mxu0
      %v2131 = vadd.f32 0.0, %v2130
      %v2132 = vpop.f32.mrf.mxu0
      %v2133 = vpop.f32.mrf.mxu0
      %v2134 = vadd.f32 0.0, %v2133
      %v2135 = vpop.f32.mrf.mxu0
      %2136 = vmatprep.mubr.bf16.mxu0 0
      %2137 = vmatmul.mubr.bf16.gmra.mxu0 %v2044
      %v2138 = vpop.f32.mrf.mxu0
      %v2139 = vadd.f32 0.0, %v2138
      %v2140 = vpop.f32.mrf.mxu0
      %v2141 = vpop.f32.mrf.mxu0
      %v2142 = vadd.f32 0.0, %v2141
      %v2143 = vpop.f32.mrf.mxu0
      %2144 = vmatprep.mubr.bf16.mxu0 0
      %2145 = vmatmul.mubr.bf16.gmra.mxu0 %v2047
      %v2146 = vpop.f32.mrf.mxu0
      %v2147 = vadd.f32 0.0, %v2146
      %v2148 = vpop.f32.mrf.mxu0
      %v2149 = vpop.f32.mrf.mxu0
      %v2150 = vadd.f32 0.0, %v2149
      %v2151 = vpop.f32.mrf.mxu0
      %2152 = vmatprep.mubr.bf16.mxu0 0
      %2153 = vmatmul.mubr.bf16.gmra.mxu0 %v2050
      %v2154 = vpop.f32.mrf.mxu0
      %v2155 = vadd.f32 0.0, %v2154
      %v2156 = vpop.f32.mrf.mxu0
      %v2157 = vpop.f32.mrf.mxu0
      %v2158 = vadd.f32 0.0, %v2157
      %v2159 = vpop.f32.mrf.mxu0
      %2160 = vmatprep.mubr.bf16.mxu0 0
      %2161 = vmatmul.mubr.bf16.gmra.mxu0 %v2053
      %v2162 = vpop.f32.mrf.mxu0
      %v2163 = vadd.f32 0.0, %v2162
      %v2164 = vpop.f32.mrf.mxu0
      %v2165 = vpop.f32.mrf.mxu0
      %v2166 = vadd.f32 0.0, %v2165
      %v2167 = vpop.f32.mrf.mxu0
      %2168 = vmatprep.mubr.bf16.mxu0 0
      %2169 = vmatmul.mubr.bf16.gmra.mxu0 %v2056
      %v2170 = vpop.f32.mrf.mxu0
      %v2171 = vadd.f32 0.0, %v2170
      %v2172 = vpop.f32.mrf.mxu0
      %v2173 = vpop.f32.mrf.mxu0
      %v2174 = vadd.f32 0.0, %v2173
      %v2175 = vpop.f32.mrf.mxu0
      %2176 = vmatprep.mubr.bf16.mxu0 0
      %2177 = vmatmul.mubr.bf16.gmra.mxu0 %v2059
      %v2178 = vpop.f32.mrf.mxu0
      %v2179 = vadd.f32 0.0, %v2178
      %v2180 = vpop.f32.mrf.mxu0
      %v2181 = vpop.f32.mrf.mxu0
      %v2182 = vadd.f32 0.0, %v2181
      %v2183 = vpop.f32.mrf.mxu0
      %2184 = vmatprep.mubr.bf16.mxu0 0
      %2185 = vmatmul.mubr.bf16.gmra.mxu0 %v2062
      %v2186 = vpop.f32.mrf.mxu0
      %v2187 = vadd.f32 0.0, %v2186
      %v2188 = vpop.f32.mrf.mxu0
      %v2189 = vpop.f32.mrf.mxu0
      %v2190 = vadd.f32 0.0, %v2189
      %v2191 = vpop.f32.mrf.mxu0
      %2192 = vmatprep.mubr.bf16.mxu0 0
      %2193 = vmatmul.mubr.bf16.gmra.mxu0 %v2065
      %v2194 = vpop.f32.mrf.mxu0
      %v2195 = vadd.f32 0.0, %v2194
      %v2196 = vpop.f32.mrf.mxu0
      %v2197 = vpop.f32.mrf.mxu0
      %v2198 = vadd.f32 0.0, %v2197
      %v2199 = vpop.f32.mrf.mxu0
      %2200 = vmatprep.mubr.bf16.mxu0 0
      %2201 = vmatmul.mubr.bf16.gmra.mxu0 %v2068
      %v2202 = vpop.f32.mrf.mxu0
      %v2203 = vadd.f32 0.0, %v2202
      %v2204 = vpop.f32.mrf.mxu0
      %v2205 = vpop.f32.mrf.mxu0
      %v2206 = vadd.f32 0.0, %v2205
      %v2207 = vpop.f32.mrf.mxu0
      %2208 = vmatprep.mubr.bf16.mxu0 0
      %2209 = vmatmul.mubr.bf16.gmra.mxu0 %v2071
      %v2210 = vpop.f32.mrf.mxu0
      %v2211 = vadd.f32 0.0, %v2210
      %v2212 = vpop.f32.mrf.mxu0
      %v2213 = vpop.f32.mrf.mxu0
      %v2214 = vadd.f32 0.0, %v2213
      %v2215 = vpop.f32.mrf.mxu0
      %2216 = vmatprep.mubr.bf16.mxu0 0
      %2217 = vmatmul.mubr.bf16.gmra.mxu0 %v2074
      %v2218 = vpop.f32.mrf.mxu0
      %v2219 = vadd.f32 0.0, %v2218
      %v2220 = vpop.f32.mrf.mxu0
      %v2221 = vpop.f32.mrf.mxu0
      %v2222 = vadd.f32 0.0, %v2221
      %v2223 = vpop.f32.mrf.mxu0
      %2224 = vmatprep.mubr.bf16.mxu0 0
      %2225 = vmatmul.mubr.bf16.gmra.mxu0 %v2077
      %v2226 = vpop.f32.mrf.mxu0
      %v2227 = vadd.f32 0.0, %v2226
      %v2228 = vpop.f32.mrf.mxu0
      %v2229 = vpop.f32.mrf.mxu0
      %v2230 = vadd.f32 0.0, %v2229
      %v2231 = vpop.f32.mrf.mxu0
      %2232 = vmatprep.mubr.bf16.mxu0 0
      %2233 = vmatmul.mubr.bf16.gmra.mxu0 %v2080
      %v2234 = vpop.f32.mrf.mxu0
      %v2235 = vadd.f32 0.0, %v2234
      %v2236 = vpop.f32.mrf.mxu0
      %v2237 = vpop.f32.mrf.mxu0
      %v2238 = vadd.f32 0.0, %v2237
      %v2239 = vpop.f32.mrf.mxu0
      %2240 = vmatprep.mubr.bf16.mxu0 0
      %2241 = vmatmul.mubr.bf16.gmra.mxu0 %v2083
      %v2242 = vpop.f32.mrf.mxu0
      %v2243 = vadd.f32 0.0, %v2242
      %v2244 = vpop.f32.mrf.mxu0
      %v2245 = vpop.f32.mrf.mxu0
      %v2246 = vadd.f32 0.0, %v2245
      %v2247 = vpop.f32.mrf.mxu0
      %2248 = vdwg.mxu0
      %v2249 = vadd.f32 %v1698, %v2123
      %v2250 = vadd.f32 %v1701, %v2126
      %v2251 = vadd.f32 %v1706, %v2131
      %v2252 = vadd.f32 %v1709, %v2134
      %v2253 = vadd.f32 %v1714, %v2139
      %v2254 = vadd.f32 %v1717, %v2142
      %v2255 = vadd.f32 %v1722, %v2147
      %v2256 = vadd.f32 %v1725, %v2150
      %v2257 = vadd.f32 %v1730, %v2155
      %v2258 = vadd.f32 %v1733, %v2158
      %v2259 = vadd.f32 %v1738, %v2163
      %v2260 = vadd.f32 %v1741, %v2166
      %v2261 = vadd.f32 %v1746, %v2171
      %v2262 = vadd.f32 %v1749, %v2174
      %v2263 = vadd.f32 %v1754, %v2179
      %v2264 = vadd.f32 %v1757, %v2182
      %v2265 = vadd.f32 %v1762, %v2187
      %v2266 = vadd.f32 %v1765, %v2190
      %v2267 = vadd.f32 %v1770, %v2195
      %v2268 = vadd.f32 %v1773, %v2198
      %v2269 = vadd.f32 %v1778, %v2203
      %v2270 = vadd.f32 %v1781, %v2206
      %v2271 = vadd.f32 %v1786, %v2211
      %v2272 = vadd.f32 %v1789, %v2214
      %v2273 = vadd.f32 %v1794, %v2219
      %v2274 = vadd.f32 %v1797, %v2222
      %v2275 = vadd.f32 %v1802, %v2227
      %v2276 = vadd.f32 %v1805, %v2230
      %v2277 = vadd.f32 %v1810, %v2235
      %v2278 = vadd.f32 %v1813, %v2238
      %v2279 = vadd.f32 %v1818, %v2243
      %v2280 = vadd.f32 %v1821, %v2246
      %v2281 = vld [vmem:[%s714] sm:$0xf]
      %v2282 = vld [vmem:[%s714 + $0x4] sm:$0xf]
      %v2283 = vld [vmem:[%s714 + $0xc] sm:$0xf]
      %v2284 = vld [vmem:[%s714 + $0x10] sm:$0xf]
      %v2285 = vld [vmem:[%s714 + $0x18] sm:$0xf]
      %v2286 = vld [vmem:[%s714 + $0x1c] sm:$0xf]
      %v2287 = vld [vmem:[%s714 + $0x24] sm:$0xf]
      %v2288 = vld [vmem:[%s714 + $0x28] sm:$0xf]
      %v2289 = vld [vmem:[%s714 + $0x30] sm:$0xf]
      %v2290 = vld [vmem:[%s714 + $0x34] sm:$0xf]
      %v2291 = vld [vmem:[%s714 + $0x3c] sm:$0xf]
      %v2292 = vld [vmem:[%s714 + $0x40] sm:$0xf]
      %v2293 = vld [vmem:[%s714 + $0x48] sm:$0xf]
      %v2294 = vld [vmem:[%s714 + $0x4c] sm:$0xf]
      %v2295 = vld [vmem:[%s714 + $0x54] sm:$0xf]
      %v2296 = vld [vmem:[%s714 + $0x58] sm:$0xf]
      %v2297 = vld [vmem:[%s714 + $0x60] sm:$0xf]
      %v2298 = vld [vmem:[%s714 + $0x64] sm:$0xf]
      %v2299 = vld [vmem:[%s714 + $0x6c] sm:$0xf]
      %v2300 = vld [vmem:[%s714 + $0x70] sm:$0xf]
      %v2301 = vld [vmem:[%s714 + $0x78] sm:$0xf]
      %v2302 = vld [vmem:[%s714 + $0x7c] sm:$0xf]
      %v2303 = vld [vmem:[%s714 + $0x84] sm:$0xf]
      %v2304 = vld [vmem:[%s714 + $0x88] sm:$0xf]
      %v2305 = vld [vmem:[%s714 + $0x90] sm:$0xf]
      %v2306 = vld [vmem:[%s714 + $0x94] sm:$0xf]
      %v2307 = vld [vmem:[%s714 + $0x9c] sm:$0xf]
      %v2308 = vld [vmem:[%s714 + $0xa0] sm:$0xf]
      %v2309 = vld [vmem:[%s714 + $0xa8] sm:$0xf]
      %v2310 = vld [vmem:[%s714 + $0xac] sm:$0xf]
      %v2311 = vld [vmem:[%s714 + $0xb4] sm:$0xf]
      %v2312 = vld [vmem:[%s714 + $0xb8] sm:$0xf]
      %s2313 = scalar_lea.vmem %s1, 6
      %v2314 = vld [vmem:[%s2313] sm:$0x3]
      %v2347 = vunpack.c.l.b16 %v2281
      %v2348 = vunpack.c.l.b16 %v2282
      %v2349 = vunpack.c.l.b16 %v2283
      %v2350 = vunpack.c.l.b16 %v2284
      %v2351 = vunpack.c.l.b16 %v2285
      %v2352 = vunpack.c.l.b16 %v2286
      %v2353 = vunpack.c.l.b16 %v2287
      %v2354 = vunpack.c.l.b16 %v2288
      %v2355 = vunpack.c.l.b16 %v2289
      %v2356 = vunpack.c.l.b16 %v2290
      %v2357 = vunpack.c.l.b16 %v2291
      %v2358 = vunpack.c.l.b16 %v2292
      %v2359 = vunpack.c.l.b16 %v2293
      %v2360 = vunpack.c.l.b16 %v2294
      %v2361 = vunpack.c.l.b16 %v2295
      %v2362 = vunpack.c.l.b16 %v2296
      %v2363 = vunpack.c.l.b16 %v2297
      %v2364 = vunpack.c.l.b16 %v2298
      %v2365 = vunpack.c.l.b16 %v2299
      %v2366 = vunpack.c.l.b16 %v2300
      %v2367 = vunpack.c.l.b16 %v2301
      %v2368 = vunpack.c.l.b16 %v2302
      %v2369 = vunpack.c.l.b16 %v2303
      %v2370 = vunpack.c.l.b16 %v2304
      %v2371 = vunpack.c.l.b16 %v2305
      %v2372 = vunpack.c.l.b16 %v2306
      %v2373 = vunpack.c.l.b16 %v2307
      %v2374 = vunpack.c.l.b16 %v2308
      %v2375 = vunpack.c.l.b16 %v2309
      %v2376 = vunpack.c.l.b16 %v2310
      %v2377 = vunpack.c.l.b16 %v2311
      %v2378 = vunpack.c.l.b16 %v2312
      %v2379 = vpack.c.b16 %v2348, %v2347
      %v2380 = vpack.c.b16 %v2350, %v2349
      %v2381 = vpack.c.b16 %v2352, %v2351
      %v2382 = vpack.c.b16 %v2354, %v2353
      %v2383 = vpack.c.b16 %v2356, %v2355
      %v2384 = vpack.c.b16 %v2358, %v2357
      %v2385 = vpack.c.b16 %v2360, %v2359
      %v2386 = vpack.c.b16 %v2362, %v2361
      %v2387 = vpack.c.b16 %v2364, %v2363
      %v2388 = vpack.c.b16 %v2366, %v2365
      %v2389 = vpack.c.b16 %v2368, %v2367
      %v2390 = vpack.c.b16 %v2370, %v2369
      %v2391 = vpack.c.b16 %v2372, %v2371
      %v2392 = vpack.c.b16 %v2374, %v2373
      %v2393 = vpack.c.b16 %v2376, %v2375
      %v2394 = vpack.c.b16 %v2378, %v2377
      %v2396 = vsel %vm1318, %v2379, 0
      %v2399 = vsel %vm1318, %v2380, 0
      %v2402 = vsel %vm1318, %v2381, 0
      %v2405 = vsel %vm1318, %v2382, 0
      %v2408 = vsel %vm1318, %v2383, 0
      %v2411 = vsel %vm1318, %v2384, 0
      %v2414 = vsel %vm1318, %v2385, 0
      %v2417 = vsel %vm1318, %v2386, 0
      %v2420 = vsel %vm1318, %v2387, 0
      %v2423 = vsel %vm1318, %v2388, 0
      %v2426 = vsel %vm1318, %v2389, 0
      %v2429 = vsel %vm1318, %v2390, 0
      %v2432 = vsel %vm1318, %v2391, 0
      %v2435 = vsel %vm1318, %v2392, 0
      %v2438 = vsel %vm1318, %v2393, 0
      %v2441 = vsel %vm1318, %v2394, 0
      %v2444 = vsel %vm1367, %v2314, 0
      %2446 = vmatprep.subr.bf16.mxu0 0
      %2447 = vmatpush1.bf16.msra.mxu0 0
      %2448 = vmatprep.subr.bf16.mxu0 0
      %2449 = vmatpush1.bf16.msra.mxu0 0
      %2450 = vmatprep.subr.bf16.mxu0 0
      %2451 = vmatpush1.bf16.msra.mxu0 0
      %2452 = vmatprep.subr.bf16.mxu0 0
      %2453 = vmatpush1.bf16.msra.mxu0 0
      %2454 = vmatprep.subr.bf16.mxu0 0
      %2455 = vmatpush1.bf16.msra.mxu0 0
      %2456 = vmatprep.subr.bf16.mxu0 0
      %2457 = vmatpush1.bf16.msra.mxu0 0
      %2458 = vmatprep.subr.bf16.mxu0 0
      %2459 = vmatpush1.bf16.msra.mxu0 0
      %2460 = vmatprep.subr.bf16.mxu0 0
      %2461 = vmatpush1.bf16.msra.mxu0 %v2444
      %2462 = vmatprep.subr.bf16.mxu0 0
      %2463 = vmatpush2.bf16.msra.mxu0 0
      %2464 = vmatprep.subr.bf16.mxu0 0
      %2465 = vmatpush2.bf16.msra.mxu0 0
      %2466 = vmatprep.subr.bf16.mxu0 0
      %2467 = vmatpush2.bf16.msra.mxu0 0
      %2468 = vmatprep.subr.bf16.mxu0 0
      %2469 = vmatpush2.bf16.msra.mxu0 0
      %2470 = vmatprep.subr.bf16.mxu0 0
      %2471 = vmatpush2.bf16.msra.mxu0 0
      %2472 = vmatprep.subr.bf16.mxu0 0
      %2473 = vmatpush2.bf16.msra.mxu0 0
      %2474 = vmatprep.subr.bf16.mxu0 0
      %2475 = vmatpush2.bf16.msra.mxu0 0
      %2476 = vmatprep.subr.bf16.mxu0 0
      %2477 = vmatpush2.bf16.msra.mxu0 0
      %2478 = vmatprep.mubr.bf16.mxu0 0
      %2479 = vmatmul.mubr.bf16.gmra.mxu0 %v2396
      %v2480 = vpop.f32.mrf.mxu0
      %v2481 = vadd.f32 0.0, %v2480
      %v2482 = vpop.f32.mrf.mxu0
      %v2483 = vpop.f32.mrf.mxu0
      %v2484 = vadd.f32 0.0, %v2483
      %v2485 = vpop.f32.mrf.mxu0
      %2486 = vmatprep.mubr.bf16.mxu0 0
      %2487 = vmatmul.mubr.bf16.gmra.mxu0 %v2399
      %v2488 = vpop.f32.mrf.mxu0
      %v2489 = vadd.f32 0.0, %v2488
      %v2490 = vpop.f32.mrf.mxu0
      %v2491 = vpop.f32.mrf.mxu0
      %v2492 = vadd.f32 0.0, %v2491
      %v2493 = vpop.f32.mrf.mxu0
      %2494 = vmatprep.mubr.bf16.mxu0 0
      %2495 = vmatmul.mubr.bf16.gmra.mxu0 %v2402
      %v2496 = vpop.f32.mrf.mxu0
      %v2497 = vadd.f32 0.0, %v2496
      %v2498 = vpop.f32.mrf.mxu0
      %v2499 = vpop.f32.mrf.mxu0
      %v2500 = vadd.f32 0.0, %v2499
      %v2501 = vpop.f32.mrf.mxu0
      %2502 = vmatprep.mubr.bf16.mxu0 0
      %2503 = vmatmul.mubr.bf16.gmra.mxu0 %v2405
      %v2504 = vpop.f32.mrf.mxu0
      %v2505 = vadd.f32 0.0, %v2504
      %v2506 = vpop.f32.mrf.mxu0
      %v2507 = vpop.f32.mrf.mxu0
      %v2508 = vadd.f32 0.0, %v2507
      %v2509 = vpop.f32.mrf.mxu0
      %2510 = vmatprep.mubr.bf16.mxu0 0
      %2511 = vmatmul.mubr.bf16.gmra.mxu0 %v2408
      %v2512 = vpop.f32.mrf.mxu0
      %v2513 = vadd.f32 0.0, %v2512
      %v2514 = vpop.f32.mrf.mxu0
      %v2515 = vpop.f32.mrf.mxu0
      %v2516 = vadd.f32 0.0, %v2515
      %v2517 = vpop.f32.mrf.mxu0
      %2518 = vmatprep.mubr.bf16.mxu0 0
      %2519 = vmatmul.mubr.bf16.gmra.mxu0 %v2411
      %v2520 = vpop.f32.mrf.mxu0
      %v2521 = vadd.f32 0.0, %v2520
      %v2522 = vpop.f32.mrf.mxu0
      %v2523 = vpop.f32.mrf.mxu0
      %v2524 = vadd.f32 0.0, %v2523
      %v2525 = vpop.f32.mrf.mxu0
      %2526 = vmatprep.mubr.bf16.mxu0 0
      %2527 = vmatmul.mubr.bf16.gmra.mxu0 %v2414
      %v2528 = vpop.f32.mrf.mxu0
      %v2529 = vadd.f32 0.0, %v2528
      %v2530 = vpop.f32.mrf.mxu0
      %v2531 = vpop.f32.mrf.mxu0
      %v2532 = vadd.f32 0.0, %v2531
      %v2533 = vpop.f32.mrf.mxu0
      %2534 = vmatprep.mubr.bf16.mxu0 0
      %2535 = vmatmul.mubr.bf16.gmra.mxu0 %v2417
      %v2536 = vpop.f32.mrf.mxu0
      %v2537 = vadd.f32 0.0, %v2536
      %v2538 = vpop.f32.mrf.mxu0
      %v2539 = vpop.f32.mrf.mxu0
      %v2540 = vadd.f32 0.0, %v2539
      %v2541 = vpop.f32.mrf.mxu0
      %2542 = vmatprep.mubr.bf16.mxu0 0
      %2543 = vmatmul.mubr.bf16.gmra.mxu0 %v2420
      %v2544 = vpop.f32.mrf.mxu0
      %v2545 = vadd.f32 0.0, %v2544
      %v2546 = vpop.f32.mrf.mxu0
      %v2547 = vpop.f32.mrf.mxu0
      %v2548 = vadd.f32 0.0, %v2547
      %v2549 = vpop.f32.mrf.mxu0
      %2550 = vmatprep.mubr.bf16.mxu0 0
      %2551 = vmatmul.mubr.bf16.gmra.mxu0 %v2423
      %v2552 = vpop.f32.mrf.mxu0
      %v2553 = vadd.f32 0.0, %v2552
      %v2554 = vpop.f32.mrf.mxu0
      %v2555 = vpop.f32.mrf.mxu0
      %v2556 = vadd.f32 0.0, %v2555
      %v2557 = vpop.f32.mrf.mxu0
      %2558 = vmatprep.mubr.bf16.mxu0 0
      %2559 = vmatmul.mubr.bf16.gmra.mxu0 %v2426
      %v2560 = vpop.f32.mrf.mxu0
      %v2561 = vadd.f32 0.0, %v2560
      %v2562 = vpop.f32.mrf.mxu0
      %v2563 = vpop.f32.mrf.mxu0
      %v2564 = vadd.f32 0.0, %v2563
      %v2565 = vpop.f32.mrf.mxu0
      %2566 = vmatprep.mubr.bf16.mxu0 0
      %2567 = vmatmul.mubr.bf16.gmra.mxu0 %v2429
      %v2568 = vpop.f32.mrf.mxu0
      %v2569 = vadd.f32 0.0, %v2568
      %v2570 = vpop.f32.mrf.mxu0
      %v2571 = vpop.f32.mrf.mxu0
      %v2572 = vadd.f32 0.0, %v2571
      %v2573 = vpop.f32.mrf.mxu0
      %2574 = vmatprep.mubr.bf16.mxu0 0
      %2575 = vmatmul.mubr.bf16.gmra.mxu0 %v2432
      %v2576 = vpop.f32.mrf.mxu0
      %v2577 = vadd.f32 0.0, %v2576
      %v2578 = vpop.f32.mrf.mxu0
      %v2579 = vpop.f32.mrf.mxu0
      %v2580 = vadd.f32 0.0, %v2579
      %v2581 = vpop.f32.mrf.mxu0
      %2582 = vmatprep.mubr.bf16.mxu0 0
      %2583 = vmatmul.mubr.bf16.gmra.mxu0 %v2435
      %v2584 = vpop.f32.mrf.mxu0
      %v2585 = vadd.f32 0.0, %v2584
      %v2586 = vpop.f32.mrf.mxu0
      %v2587 = vpop.f32.mrf.mxu0
      %v2588 = vadd.f32 0.0, %v2587
      %v2589 = vpop.f32.mrf.mxu0
      %2590 = vmatprep.mubr.bf16.mxu0 0
      %2591 = vmatmul.mubr.bf16.gmra.mxu0 %v2438
      %v2592 = vpop.f32.mrf.mxu0
      %v2593 = vadd.f32 0.0, %v2592
      %v2594 = vpop.f32.mrf.mxu0
      %v2595 = vpop.f32.mrf.mxu0
      %v2596 = vadd.f32 0.0, %v2595
      %v2597 = vpop.f32.mrf.mxu0
      %2598 = vmatprep.mubr.bf16.mxu0 0
      %2599 = vmatmul.mubr.bf16.gmra.mxu0 %v2441
      %v2600 = vpop.f32.mrf.mxu0
      %v2601 = vadd.f32 0.0, %v2600
      %v2602 = vpop.f32.mrf.mxu0
      %v2603 = vpop.f32.mrf.mxu0
      %v2604 = vadd.f32 0.0, %v2603
      %v2605 = vpop.f32.mrf.mxu0
      %2606 = vdwg.mxu0
      %v2607 = vadd.f32 %v2249, %v2481
      %v2608 = vadd.f32 %v2250, %v2484
      %v2609 = vadd.f32 %v2251, %v2489
      %v2610 = vadd.f32 %v2252, %v2492
      %v2611 = vadd.f32 %v2253, %v2497
      %v2612 = vadd.f32 %v2254, %v2500
      %v2613 = vadd.f32 %v2255, %v2505
      %v2614 = vadd.f32 %v2256, %v2508
      %v2615 = vadd.f32 %v2257, %v2513
      %v2616 = vadd.f32 %v2258, %v2516
      %v2617 = vadd.f32 %v2259, %v2521
      %v2618 = vadd.f32 %v2260, %v2524
      %v2619 = vadd.f32 %v2261, %v2529
      %v2620 = vadd.f32 %v2262, %v2532
      %v2621 = vadd.f32 %v2263, %v2537
      %v2622 = vadd.f32 %v2264, %v2540
      %v2623 = vadd.f32 %v2265, %v2545
      %v2624 = vadd.f32 %v2266, %v2548
      %v2625 = vadd.f32 %v2267, %v2553
      %v2626 = vadd.f32 %v2268, %v2556
      %v2627 = vadd.f32 %v2269, %v2561
      %v2628 = vadd.f32 %v2270, %v2564
      %v2629 = vadd.f32 %v2271, %v2569
      %v2630 = vadd.f32 %v2272, %v2572
      %v2631 = vadd.f32 %v2273, %v2577
      %v2632 = vadd.f32 %v2274, %v2580
      %v2633 = vadd.f32 %v2275, %v2585
      %v2634 = vadd.f32 %v2276, %v2588
      %v2635 = vadd.f32 %v2277, %v2593
      %v2636 = vadd.f32 %v2278, %v2596
      %v2637 = vadd.f32 %v2279, %v2601
      %v2638 = vadd.f32 %v2280, %v2604
      %v2639 = vld [vmem:[%s714] sm:$0xf]
      %v2640 = vld [vmem:[%s714 + $0x4] sm:$0xf]
      %v2641 = vld [vmem:[%s714 + $0x8] sm:$0x1]
      %v2642 = vld [vmem:[%s714 + $0xc] sm:$0xf]
      %v2643 = vld [vmem:[%s714 + $0x10] sm:$0xf]
      %v2644 = vld [vmem:[%s714 + $0x14] sm:$0x1]
      %v2645 = vld [vmem:[%s714 + $0x18] sm:$0xf]
      %v2646 = vld [vmem:[%s714 + $0x1c] sm:$0xf]
      %v2647 = vld [vmem:[%s714 + $0x20] sm:$0x1]
      %v2648 = vld [vmem:[%s714 + $0x24] sm:$0xf]
      %v2649 = vld [vmem:[%s714 + $0x28] sm:$0xf]
      %v2650 = vld [vmem:[%s714 + $0x2c] sm:$0x1]
      %v2651 = vld [vmem:[%s714 + $0x30] sm:$0xf]
      %v2652 = vld [vmem:[%s714 + $0x34] sm:$0xf]
      %v2653 = vld [vmem:[%s714 + $0x38] sm:$0x1]
      %v2654 = vld [vmem:[%s714 + $0x3c] sm:$0xf]
      %v2655 = vld [vmem:[%s714 + $0x40] sm:$0xf]
      %v2656 = vld [vmem:[%s714 + $0x44] sm:$0x1]
      %v2657 = vld [vmem:[%s714 + $0x48] sm:$0xf]
      %v2658 = vld [vmem:[%s714 + $0x4c] sm:$0xf]
      %v2659 = vld [vmem:[%s714 + $0x50] sm:$0x1]
      %v2660 = vld [vmem:[%s714 + $0x54] sm:$0xf]
      %v2661 = vld [vmem:[%s714 + $0x58] sm:$0xf]
      %v2662 = vld [vmem:[%s714 + $0x5c] sm:$0x1]
      %v2663 = vld [vmem:[%s714 + $0x60] sm:$0xf]
      %v2664 = vld [vmem:[%s714 + $0x64] sm:$0xf]
      %v2665 = vld [vmem:[%s714 + $0x68] sm:$0x1]
      %v2666 = vld [vmem:[%s714 + $0x6c] sm:$0xf]
      %v2667 = vld [vmem:[%s714 + $0x70] sm:$0xf]
      %v2668 = vld [vmem:[%s714 + $0x74] sm:$0x1]
      %v2669 = vld [vmem:[%s714 + $0x78] sm:$0xf]
      %v2670 = vld [vmem:[%s714 + $0x7c] sm:$0xf]
      %v2671 = vld [vmem:[%s714 + $0x80] sm:$0x1]
      %v2672 = vld [vmem:[%s714 + $0x84] sm:$0xf]
      %v2673 = vld [vmem:[%s714 + $0x88] sm:$0xf]
      %v2674 = vld [vmem:[%s714 + $0x8c] sm:$0x1]
      %v2675 = vld [vmem:[%s714 + $0x90] sm:$0xf]
      %v2676 = vld [vmem:[%s714 + $0x94] sm:$0xf]
      %v2677 = vld [vmem:[%s714 + $0x98] sm:$0x1]
      %v2678 = vld [vmem:[%s714 + $0x9c] sm:$0xf]
      %v2679 = vld [vmem:[%s714 + $0xa0] sm:$0xf]
      %v2680 = vld [vmem:[%s714 + $0xa4] sm:$0x1]
      %v2681 = vld [vmem:[%s714 + $0xa8] sm:$0xf]
      %v2682 = vld [vmem:[%s714 + $0xac] sm:$0xf]
      %v2683 = vld [vmem:[%s714 + $0xb0] sm:$0x1]
      %v2684 = vld [vmem:[%s714 + $0xb4] sm:$0xf]
      %v2685 = vld [vmem:[%s714 + $0xb8] sm:$0xf]
      %v2686 = vld [vmem:[%s714 + $0xbc] sm:$0x1]
      %v2688 = vshrl.u32 %v2639, 16
      %v2690 = vrot.slane %v2688, 4
      %v2691 = vshll.u32 %v2639, 16
      %v2693 = vrot.slane %v2691, 5
      %v2694 = vor.u32 %v2690, %v2693
      %v2695 = vrot.slane %v2694, 4
      %v2697 = vshll.u32 %v2640, 16
      %v2699 = vrot.slane %v2697, 5
      %v2700 = vsel %vm883, %v2695, %v2699
      %v2701 = vshrl.u32 %v2640, 16
      %v2703 = vrot.slane %v2701, 4
      %v2704 = vor.u32 %v2703, %v2699
      %v2705 = vrot.slane %v2704, 4
      %v2707 = vshll.u32 %v2641, 16
      %v2709 = vrot.slane %v2707, 5
      %v2710 = vsel %vm883, %v2705, %v2709
      %v2712 = vshrl.u32 %v2642, 16
      %v2714 = vrot.slane %v2712, 4
      %v2715 = vshll.u32 %v2642, 16
      %v2717 = vrot.slane %v2715, 5
      %v2718 = vor.u32 %v2714, %v2717
      %v2719 = vrot.slane %v2718, 4
      %v2721 = vshll.u32 %v2643, 16
      %v2723 = vrot.slane %v2721, 5
      %v2724 = vsel %vm883, %v2719, %v2723
      %v2725 = vshrl.u32 %v2643, 16
      %v2727 = vrot.slane %v2725, 4
      %v2728 = vor.u32 %v2727, %v2723
      %v2729 = vrot.slane %v2728, 4
      %v2731 = vshll.u32 %v2644, 16
      %v2733 = vrot.slane %v2731, 5
      %v2734 = vsel %vm883, %v2729, %v2733
      %v2736 = vshrl.u32 %v2645, 16
      %v2738 = vrot.slane %v2736, 4
      %v2739 = vshll.u32 %v2645, 16
      %v2741 = vrot.slane %v2739, 5
      %v2742 = vor.u32 %v2738, %v2741
      %v2743 = vrot.slane %v2742, 4
      %v2745 = vshll.u32 %v2646, 16
      %v2747 = vrot.slane %v2745, 5
      %v2748 = vsel %vm883, %v2743, %v2747
      %v2749 = vshrl.u32 %v2646, 16
      %v2751 = vrot.slane %v2749, 4
      %v2752 = vor.u32 %v2751, %v2747
      %v2753 = vrot.slane %v2752, 4
      %v2755 = vshll.u32 %v2647, 16
      %v2757 = vrot.slane %v2755, 5
      %v2758 = vsel %vm883, %v2753, %v2757
      %v2760 = vshrl.u32 %v2648, 16
      %v2762 = vrot.slane %v2760, 4
      %v2763 = vshll.u32 %v2648, 16
      %v2765 = vrot.slane %v2763, 5
      %v2766 = vor.u32 %v2762, %v2765
      %v2767 = vrot.slane %v2766, 4
      %v2769 = vshll.u32 %v2649, 16
      %v2771 = vrot.slane %v2769, 5
      %v2772 = vsel %vm883, %v2767, %v2771
      %v2773 = vshrl.u32 %v2649, 16
      %v2775 = vrot.slane %v2773, 4
      %v2776 = vor.u32 %v2775, %v2771
      %v2777 = vrot.slane %v2776, 4
      %v2779 = vshll.u32 %v2650, 16
      %v2781 = vrot.slane %v2779, 5
      %v2782 = vsel %vm883, %v2777, %v2781
      %v2784 = vshrl.u32 %v2651, 16
      %v2786 = vrot.slane %v2784, 4
      %v2787 = vshll.u32 %v2651, 16
      %v2789 = vrot.slane %v2787, 5
      %v2790 = vor.u32 %v2786, %v2789
      %v2791 = vrot.slane %v2790, 4
      %v2793 = vshll.u32 %v2652, 16
      %v2795 = vrot.slane %v2793, 5
      %v2796 = vsel %vm883, %v2791, %v2795
      %v2797 = vshrl.u32 %v2652, 16
      %v2799 = vrot.slane %v2797, 4
      %v2800 = vor.u32 %v2799, %v2795
      %v2801 = vrot.slane %v2800, 4
      %v2803 = vshll.u32 %v2653, 16
      %v2805 = vrot.slane %v2803, 5
      %v2806 = vsel %vm883, %v2801, %v2805
      %v2808 = vshrl.u32 %v2654, 16
      %v2810 = vrot.slane %v2808, 4
      %v2811 = vshll.u32 %v2654, 16
      %v2813 = vrot.slane %v2811, 5
      %v2814 = vor.u32 %v2810, %v2813
      %v2815 = vrot.slane %v2814, 4
      %v2817 = vshll.u32 %v2655, 16
      %v2819 = vrot.slane %v2817, 5
      %v2820 = vsel %vm883, %v2815, %v2819
      %v2821 = vshrl.u32 %v2655, 16
      %v2823 = vrot.slane %v2821, 4
      %v2824 = vor.u32 %v2823, %v2819
      %v2825 = vrot.slane %v2824, 4
      %v2827 = vshll.u32 %v2656, 16
      %v2829 = vrot.slane %v2827, 5
      %v2830 = vsel %vm883, %v2825, %v2829
      %v2832 = vshrl.u32 %v2657, 16
      %v2834 = vrot.slane %v2832, 4
      %v2835 = vshll.u32 %v2657, 16
      %v2837 = vrot.slane %v2835, 5
      %v2838 = vor.u32 %v2834, %v2837
      %v2839 = vrot.slane %v2838, 4
      %v2841 = vshll.u32 %v2658, 16
      %v2843 = vrot.slane %v2841, 5
      %v2844 = vsel %vm883, %v2839, %v2843
      %v2845 = vshrl.u32 %v2658, 16
      %v2847 = vrot.slane %v2845, 4
      %v2848 = vor.u32 %v2847, %v2843
      %v2849 = vrot.slane %v2848, 4
      %v2851 = vshll.u32 %v2659, 16
      %v2853 = vrot.slane %v2851, 5
      %v2854 = vsel %vm883, %v2849, %v2853
      %v2856 = vshrl.u32 %v2660, 16
      %v2858 = vrot.slane %v2856, 4
      %v2859 = vshll.u32 %v2660, 16
      %v2861 = vrot.slane %v2859, 5
      %v2862 = vor.u32 %v2858, %v2861
      %v2863 = vrot.slane %v2862, 4
      %v2865 = vshll.u32 %v2661, 16
      %v2867 = vrot.slane %v2865, 5
      %v2868 = vsel %vm883, %v2863, %v2867
      %v2869 = vshrl.u32 %v2661, 16
      %v2871 = vrot.slane %v2869, 4
      %v2872 = vor.u32 %v2871, %v2867
      %v2873 = vrot.slane %v2872, 4
      %v2875 = vshll.u32 %v2662, 16
      %v2877 = vrot.slane %v2875, 5
      %v2878 = vsel %vm883, %v2873, %v2877
      %v2880 = vshrl.u32 %v2663, 16
      %v2882 = vrot.slane %v2880, 4
      %v2883 = vshll.u32 %v2663, 16
      %v2885 = vrot.slane %v2883, 5
      %v2886 = vor.u32 %v2882, %v2885
      %v2887 = vrot.slane %v2886, 4
      %v2889 = vshll.u32 %v2664, 16
      %v2891 = vrot.slane %v2889, 5
      %v2892 = vsel %vm883, %v2887, %v2891
      %v2893 = vshrl.u32 %v2664, 16
      %v2895 = vrot.slane %v2893, 4
      %v2896 = vor.u32 %v2895, %v2891
      %v2897 = vrot.slane %v2896, 4
      %v2899 = vshll.u32 %v2665, 16
      %v2901 = vrot.slane %v2899, 5
      %v2902 = vsel %vm883, %v2897, %v2901
      %v2904 = vshrl.u32 %v2666, 16
      %v2906 = vrot.slane %v2904, 4
      %v2907 = vshll.u32 %v2666, 16
      %v2909 = vrot.slane %v2907, 5
      %v2910 = vor.u32 %v2906, %v2909
      %v2911 = vrot.slane %v2910, 4
      %v2913 = vshll.u32 %v2667, 16
      %v2915 = vrot.slane %v2913, 5
      %v2916 = vsel %vm883, %v2911, %v2915
      %v2917 = vshrl.u32 %v2667, 16
      %v2919 = vrot.slane %v2917, 4
      %v2920 = vor.u32 %v2919, %v2915
      %v2921 = vrot.slane %v2920, 4
      %v2923 = vshll.u32 %v2668, 16
      %v2925 = vrot.slane %v2923, 5
      %v2926 = vsel %vm883, %v2921, %v2925
      %v2928 = vshrl.u32 %v2669, 16
      %v2930 = vrot.slane %v2928, 4
      %v2931 = vshll.u32 %v2669, 16
      %v2933 = vrot.slane %v2931, 5
      %v2934 = vor.u32 %v2930, %v2933
      %v2935 = vrot.slane %v2934, 4
      %v2937 = vshll.u32 %v2670, 16
      %v2939 = vrot.slane %v2937, 5
      %v2940 = vsel %vm883, %v2935, %v2939
      %v2941 = vshrl.u32 %v2670, 16
      %v2943 = vrot.slane %v2941, 4
      %v2944 = vor.u32 %v2943, %v2939
      %v2945 = vrot.slane %v2944, 4
      %v2947 = vshll.u32 %v2671, 16
      %v2949 = vrot.slane %v2947, 5
      %v2950 = vsel %vm883, %v2945, %v2949
      %v2952 = vshrl.u32 %v2672, 16
      %v2954 = vrot.slane %v2952, 4
      %v2955 = vshll.u32 %v2672, 16
      %v2957 = vrot.slane %v2955, 5
      %v2958 = vor.u32 %v2954, %v2957
      %v2959 = vrot.slane %v2958, 4
      %v2961 = vshll.u32 %v2673, 16
      %v2963 = vrot.slane %v2961, 5
      %v2964 = vsel %vm883, %v2959, %v2963
      %v2965 = vshrl.u32 %v2673, 16
      %v2967 = vrot.slane %v2965, 4
      %v2968 = vor.u32 %v2967, %v2963
      %v2969 = vrot.slane %v2968, 4
      %v2971 = vshll.u32 %v2674, 16
      %v2973 = vrot.slane %v2971, 5
      %v2974 = vsel %vm883, %v2969, %v2973
      %v2976 = vshrl.u32 %v2675, 16
      %v2978 = vrot.slane %v2976, 4
      %v2979 = vshll.u32 %v2675, 16
      %v2981 = vrot.slane %v2979, 5
      %v2982 = vor.u32 %v2978, %v2981
      %v2983 = vrot.slane %v2982, 4
      %v2985 = vshll.u32 %v2676, 16
      %v2987 = vrot.slane %v2985, 5
      %v2988 = vsel %vm883, %v2983, %v2987
      %v2989 = vshrl.u32 %v2676, 16
      %v2991 = vrot.slane %v2989, 4
      %v2992 = vor.u32 %v2991, %v2987
      %v2993 = vrot.slane %v2992, 4
      %v2995 = vshll.u32 %v2677, 16
      %v2997 = vrot.slane %v2995, 5
      %v2998 = vsel %vm883, %v2993, %v2997
      %v3000 = vshrl.u32 %v2678, 16
      %v3002 = vrot.slane %v3000, 4
      %v3003 = vshll.u32 %v2678, 16
      %v3005 = vrot.slane %v3003, 5
      %v3006 = vor.u32 %v3002, %v3005
      %v3007 = vrot.slane %v3006, 4
      %v3009 = vshll.u32 %v2679, 16
      %v3011 = vrot.slane %v3009, 5
      %v3012 = vsel %vm883, %v3007, %v3011
      %v3013 = vshrl.u32 %v2679, 16
      %v3015 = vrot.slane %v3013, 4
      %v3016 = vor.u32 %v3015, %v3011
      %v3017 = vrot.slane %v3016, 4
      %v3019 = vshll.u32 %v2680, 16
      %v3021 = vrot.slane %v3019, 5
      %v3022 = vsel %vm883, %v3017, %v3021
      %v3024 = vshrl.u32 %v2681, 16
      %v3026 = vrot.slane %v3024, 4
      %v3027 = vshll.u32 %v2681, 16
      %v3029 = vrot.slane %v3027, 5
      %v3030 = vor.u32 %v3026, %v3029
      %v3031 = vrot.slane %v3030, 4
      %v3033 = vshll.u32 %v2682, 16
      %v3035 = vrot.slane %v3033, 5
      %v3036 = vsel %vm883, %v3031, %v3035
      %v3037 = vshrl.u32 %v2682, 16
      %v3039 = vrot.slane %v3037, 4
      %v3040 = vor.u32 %v3039, %v3035
      %v3041 = vrot.slane %v3040, 4
      %v3043 = vshll.u32 %v2683, 16
      %v3045 = vrot.slane %v3043, 5
      %v3046 = vsel %vm883, %v3041, %v3045
      %v3048 = vshrl.u32 %v2684, 16
      %v3050 = vrot.slane %v3048, 4
      %v3051 = vshll.u32 %v2684, 16
      %v3053 = vrot.slane %v3051, 5
      %v3054 = vor.u32 %v3050, %v3053
      %v3055 = vrot.slane %v3054, 4
      %v3057 = vshll.u32 %v2685, 16
      %v3059 = vrot.slane %v3057, 5
      %v3060 = vsel %vm883, %v3055, %v3059
      %v3061 = vshrl.u32 %v2685, 16
      %v3063 = vrot.slane %v3061, 4
      %v3064 = vor.u32 %v3063, %v3059
      %v3065 = vrot.slane %v3064, 4
      %v3067 = vshll.u32 %v2686, 16
      %v3069 = vrot.slane %v3067, 5
      %v3070 = vsel %vm883, %v3065, %v3069
      %s3071 = scalar_lea.vmem %s1, 8
      %v3072 = vld [vmem:[%s3071] sm:$0x3]
      %v3073 = vunpack.c.l.b16 %v2700
      %v3074 = vunpack.c.l.b16 %v2710
      %v3075 = vunpack.c.l.b16 %v2724
      %v3076 = vunpack.c.l.b16 %v2734
      %v3077 = vunpack.c.l.b16 %v2748
      %v3078 = vunpack.c.l.b16 %v2758
      %v3079 = vunpack.c.l.b16 %v2772
      %v3080 = vunpack.c.l.b16 %v2782
      %v3081 = vunpack.c.l.b16 %v2796
      %v3082 = vunpack.c.l.b16 %v2806
      %v3083 = vunpack.c.l.b16 %v2820
      %v3084 = vunpack.c.l.b16 %v2830
      %v3085 = vunpack.c.l.b16 %v2844
      %v3086 = vunpack.c.l.b16 %v2854
      %v3087 = vunpack.c.l.b16 %v2868
      %v3088 = vunpack.c.l.b16 %v2878
      %v3089 = vunpack.c.l.b16 %v2892
      %v3090 = vunpack.c.l.b16 %v2902
      %v3091 = vunpack.c.l.b16 %v2916
      %v3092 = vunpack.c.l.b16 %v2926
      %v3093 = vunpack.c.l.b16 %v2940
      %v3094 = vunpack.c.l.b16 %v2950
      %v3095 = vunpack.c.l.b16 %v2964
      %v3096 = vunpack.c.l.b16 %v2974
      %v3097 = vunpack.c.l.b16 %v2988
      %v3098 = vunpack.c.l.b16 %v2998
      %v3099 = vunpack.c.l.b16 %v3012
      %v3100 = vunpack.c.l.b16 %v3022
      %v3101 = vunpack.c.l.b16 %v3036
      %v3102 = vunpack.c.l.b16 %v3046
      %v3103 = vunpack.c.l.b16 %v3060
      %v3104 = vunpack.c.l.b16 %v3070
      %v3105 = vpack.c.b16 %v3074, %v3073
      %v3106 = vpack.c.b16 %v3076, %v3075
      %v3107 = vpack.c.b16 %v3078, %v3077
      %v3108 = vpack.c.b16 %v3080, %v3079
      %v3109 = vpack.c.b16 %v3082, %v3081
      %v3110 = vpack.c.b16 %v3084, %v3083
      %v3111 = vpack.c.b16 %v3086, %v3085
      %v3112 = vpack.c.b16 %v3088, %v3087
      %v3113 = vpack.c.b16 %v3090, %v3089
      %v3114 = vpack.c.b16 %v3092, %v3091
      %v3115 = vpack.c.b16 %v3094, %v3093
      %v3116 = vpack.c.b16 %v3096, %v3095
      %v3117 = vpack.c.b16 %v3098, %v3097
      %v3118 = vpack.c.b16 %v3100, %v3099
      %v3119 = vpack.c.b16 %v3102, %v3101
      %v3120 = vpack.c.b16 %v3104, %v3103
      %v3122 = vsel %vm1318, %v3105, 0
      %v3125 = vsel %vm1318, %v3106, 0
      %v3128 = vsel %vm1318, %v3107, 0
      %v3131 = vsel %vm1318, %v3108, 0
      %v3134 = vsel %vm1318, %v3109, 0
      %v3137 = vsel %vm1318, %v3110, 0
      %v3140 = vsel %vm1318, %v3111, 0
      %v3143 = vsel %vm1318, %v3112, 0
      %v3146 = vsel %vm1318, %v3113, 0
      %v3149 = vsel %vm1318, %v3114, 0
      %v3152 = vsel %vm1318, %v3115, 0
      %v3155 = vsel %vm1318, %v3116, 0
      %v3158 = vsel %vm1318, %v3117, 0
      %v3161 = vsel %vm1318, %v3118, 0
      %v3164 = vsel %vm1318, %v3119, 0
      %v3167 = vsel %vm1318, %v3120, 0
      %v3170 = vsel %vm1367, %v3072, 0
      %3172 = vmatprep.subr.bf16.mxu0 0
      %3173 = vmatpush1.bf16.msra.mxu0 0
      %3174 = vmatprep.subr.bf16.mxu0 0
      %3175 = vmatpush1.bf16.msra.mxu0 0
      %3176 = vmatprep.subr.bf16.mxu0 0
      %3177 = vmatpush1.bf16.msra.mxu0 0
      %3178 = vmatprep.subr.bf16.mxu0 0
      %3179 = vmatpush1.bf16.msra.mxu0 0
      %3180 = vmatprep.subr.bf16.mxu0 0
      %3181 = vmatpush1.bf16.msra.mxu0 0
      %3182 = vmatprep.subr.bf16.mxu0 0
      %3183 = vmatpush1.bf16.msra.mxu0 0
      %3184 = vmatprep.subr.bf16.mxu0 0
      %3185 = vmatpush1.bf16.msra.mxu0 0
      %3186 = vmatprep.subr.bf16.mxu0 0
      %3187 = vmatpush1.bf16.msra.mxu0 %v3170
      %3188 = vmatprep.subr.bf16.mxu0 0
      %3189 = vmatpush2.bf16.msra.mxu0 0
      %3190 = vmatprep.subr.bf16.mxu0 0
      %3191 = vmatpush2.bf16.msra.mxu0 0
      %3192 = vmatprep.subr.bf16.mxu0 0
      %3193 = vmatpush2.bf16.msra.mxu0 0
      %3194 = vmatprep.subr.bf16.mxu0 0
      %3195 = vmatpush2.bf16.msra.mxu0 0
      %3196 = vmatprep.subr.bf16.mxu0 0
      %3197 = vmatpush2.bf16.msra.mxu0 0
      %3198 = vmatprep.subr.bf16.mxu0 0
      %3199 = vmatpush2.bf16.msra.mxu0 0
      %3200 = vmatprep.subr.bf16.mxu0 0
      %3201 = vmatpush2.bf16.msra.mxu0 0
      %3202 = vmatprep.subr.bf16.mxu0 0
      %3203 = vmatpush2.bf16.msra.mxu0 0
      %3204 = vmatprep.mubr.bf16.mxu0 0
      %3205 = vmatmul.mubr.bf16.gmra.mxu0 %v3122
      %v3206 = vpop.f32.mrf.mxu0
      %v3207 = vadd.f32 0.0, %v3206
      %v3208 = vpop.f32.mrf.mxu0
      %v3209 = vpop.f32.mrf.mxu0
      %v3210 = vadd.f32 0.0, %v3209
      %v3211 = vpop.f32.mrf.mxu0
      %3212 = vmatprep.mubr.bf16.mxu0 0
      %3213 = vmatmul.mubr.bf16.gmra.mxu0 %v3125
      %v3214 = vpop.f32.mrf.mxu0
      %v3215 = vadd.f32 0.0, %v3214
      %v3216 = vpop.f32.mrf.mxu0
      %v3217 = vpop.f32.mrf.mxu0
      %v3218 = vadd.f32 0.0, %v3217
      %v3219 = vpop.f32.mrf.mxu0
      %3220 = vmatprep.mubr.bf16.mxu0 0
      %3221 = vmatmul.mubr.bf16.gmra.mxu0 %v3128
      %v3222 = vpop.f32.mrf.mxu0
      %v3223 = vadd.f32 0.0, %v3222
      %v3224 = vpop.f32.mrf.mxu0
      %v3225 = vpop.f32.mrf.mxu0
      %v3226 = vadd.f32 0.0, %v3225
      %v3227 = vpop.f32.mrf.mxu0
      %3228 = vmatprep.mubr.bf16.mxu0 0
      %3229 = vmatmul.mubr.bf16.gmra.mxu0 %v3131
      %v3230 = vpop.f32.mrf.mxu0
      %v3231 = vadd.f32 0.0, %v3230
      %v3232 = vpop.f32.mrf.mxu0
      %v3233 = vpop.f32.mrf.mxu0
      %v3234 = vadd.f32 0.0, %v3233
      %v3235 = vpop.f32.mrf.mxu0
      %3236 = vmatprep.mubr.bf16.mxu0 0
      %3237 = vmatmul.mubr.bf16.gmra.mxu0 %v3134
      %v3238 = vpop.f32.mrf.mxu0
      %v3239 = vadd.f32 0.0, %v3238
      %v3240 = vpop.f32.mrf.mxu0
      %v3241 = vpop.f32.mrf.mxu0
      %v3242 = vadd.f32 0.0, %v3241
      %v3243 = vpop.f32.mrf.mxu0
      %3244 = vmatprep.mubr.bf16.mxu0 0
      %3245 = vmatmul.mubr.bf16.gmra.mxu0 %v3137
      %v3246 = vpop.f32.mrf.mxu0
      %v3247 = vadd.f32 0.0, %v3246
      %v3248 = vpop.f32.mrf.mxu0
      %v3249 = vpop.f32.mrf.mxu0
      %v3250 = vadd.f32 0.0, %v3249
      %v3251 = vpop.f32.mrf.mxu0
      %3252 = vmatprep.mubr.bf16.mxu0 0
      %3253 = vmatmul.mubr.bf16.gmra.mxu0 %v3140
      %v3254 = vpop.f32.mrf.mxu0
      %v3255 = vadd.f32 0.0, %v3254
      %v3256 = vpop.f32.mrf.mxu0
      %v3257 = vpop.f32.mrf.mxu0
      %v3258 = vadd.f32 0.0, %v3257
      %v3259 = vpop.f32.mrf.mxu0
      %3260 = vmatprep.mubr.bf16.mxu0 0
      %3261 = vmatmul.mubr.bf16.gmra.mxu0 %v3143
      %v3262 = vpop.f32.mrf.mxu0
      %v3263 = vadd.f32 0.0, %v3262
      %v3264 = vpop.f32.mrf.mxu0
      %v3265 = vpop.f32.mrf.mxu0
      %v3266 = vadd.f32 0.0, %v3265
      %v3267 = vpop.f32.mrf.mxu0
      %3268 = vmatprep.mubr.bf16.mxu0 0
      %3269 = vmatmul.mubr.bf16.gmra.mxu0 %v3146
      %v3270 = vpop.f32.mrf.mxu0
      %v3271 = vadd.f32 0.0, %v3270
      %v3272 = vpop.f32.mrf.mxu0
      %v3273 = vpop.f32.mrf.mxu0
      %v3274 = vadd.f32 0.0, %v3273
      %v3275 = vpop.f32.mrf.mxu0
      %3276 = vmatprep.mubr.bf16.mxu0 0
      %3277 = vmatmul.mubr.bf16.gmra.mxu0 %v3149
      %v3278 = vpop.f32.mrf.mxu0
      %v3279 = vadd.f32 0.0, %v3278
      %v3280 = vpop.f32.mrf.mxu0
      %v3281 = vpop.f32.mrf.mxu0
      %v3282 = vadd.f32 0.0, %v3281
      %v3283 = vpop.f32.mrf.mxu0
      %3284 = vmatprep.mubr.bf16.mxu0 0
      %3285 = vmatmul.mubr.bf16.gmra.mxu0 %v3152
      %v3286 = vpop.f32.mrf.mxu0
      %v3287 = vadd.f32 0.0, %v3286
      %v3288 = vpop.f32.mrf.mxu0
      %v3289 = vpop.f32.mrf.mxu0
      %v3290 = vadd.f32 0.0, %v3289
      %v3291 = vpop.f32.mrf.mxu0
      %3292 = vmatprep.mubr.bf16.mxu0 0
      %3293 = vmatmul.mubr.bf16.gmra.mxu0 %v3155
      %v3294 = vpop.f32.mrf.mxu0
      %v3295 = vadd.f32 0.0, %v3294
      %v3296 = vpop.f32.mrf.mxu0
      %v3297 = vpop.f32.mrf.mxu0
      %v3298 = vadd.f32 0.0, %v3297
      %v3299 = vpop.f32.mrf.mxu0
      %3300 = vmatprep.mubr.bf16.mxu0 0
      %3301 = vmatmul.mubr.bf16.gmra.mxu0 %v3158
      %v3302 = vpop.f32.mrf.mxu0
      %v3303 = vadd.f32 0.0, %v3302
      %v3304 = vpop.f32.mrf.mxu0
      %v3305 = vpop.f32.mrf.mxu0
      %v3306 = vadd.f32 0.0, %v3305
      %v3307 = vpop.f32.mrf.mxu0
      %3308 = vmatprep.mubr.bf16.mxu0 0
      %3309 = vmatmul.mubr.bf16.gmra.mxu0 %v3161
      %v3310 = vpop.f32.mrf.mxu0
      %v3311 = vadd.f32 0.0, %v3310
      %v3312 = vpop.f32.mrf.mxu0
      %v3313 = vpop.f32.mrf.mxu0
      %v3314 = vadd.f32 0.0, %v3313
      %v3315 = vpop.f32.mrf.mxu0
      %3316 = vmatprep.mubr.bf16.mxu0 0
      %3317 = vmatmul.mubr.bf16.gmra.mxu0 %v3164
      %v3318 = vpop.f32.mrf.mxu0
      %v3319 = vadd.f32 0.0, %v3318
      %v3320 = vpop.f32.mrf.mxu0
      %v3321 = vpop.f32.mrf.mxu0
      %v3322 = vadd.f32 0.0, %v3321
      %v3323 = vpop.f32.mrf.mxu0
      %3324 = vmatprep.mubr.bf16.mxu0 0
      %3325 = vmatmul.mubr.bf16.gmra.mxu0 %v3167
      %v3326 = vpop.f32.mrf.mxu0
      %v3327 = vadd.f32 0.0, %v3326
      %v3328 = vpop.f32.mrf.mxu0
      %v3329 = vpop.f32.mrf.mxu0
      %v3330 = vadd.f32 0.0, %v3329
      %v3331 = vpop.f32.mrf.mxu0
      %3332 = vdwg.mxu0
      %v3333 = vadd.f32 %v2607, %v3207
      %v3334 = vadd.f32 %v2608, %v3210
      %v3335 = vadd.f32 %v2609, %v3215
      %v3336 = vadd.f32 %v2610, %v3218
      %v3337 = vadd.f32 %v2611, %v3223
      %v3338 = vadd.f32 %v2612, %v3226
      %v3339 = vadd.f32 %v2613, %v3231
      %v3340 = vadd.f32 %v2614, %v3234
      %v3341 = vadd.f32 %v2615, %v3239
      %v3342 = vadd.f32 %v2616, %v3242
      %v3343 = vadd.f32 %v2617, %v3247
      %v3344 = vadd.f32 %v2618, %v3250
      %v3345 = vadd.f32 %v2619, %v3255
      %v3346 = vadd.f32 %v2620, %v3258
      %v3347 = vadd.f32 %v2621, %v3263
      %v3348 = vadd.f32 %v2622, %v3266
      %v3349 = vadd.f32 %v2623, %v3271
      %v3350 = vadd.f32 %v2624, %v3274
      %v3351 = vadd.f32 %v2625, %v3279
      %v3352 = vadd.f32 %v2626, %v3282
      %v3353 = vadd.f32 %v2627, %v3287
      %v3354 = vadd.f32 %v2628, %v3290
      %v3355 = vadd.f32 %v2629, %v3295
      %v3356 = vadd.f32 %v2630, %v3298
      %v3357 = vadd.f32 %v2631, %v3303
      %v3358 = vadd.f32 %v2632, %v3306
      %v3359 = vadd.f32 %v2633, %v3311
      %v3360 = vadd.f32 %v2634, %v3314
      %v3361 = vadd.f32 %v2635, %v3319
      %v3362 = vadd.f32 %v2636, %v3322
      %v3363 = vadd.f32 %v2637, %v3327
      %v3364 = vadd.f32 %v2638, %v3330
      %v3365 = vld [vmem:[%s714] sm:$0xe]
      %v3366 = vld [vmem:[%s714 + $0xc] sm:$0xe]
      %v3367 = vld [vmem:[%s714 + $0x18] sm:$0xe]
      %v3368 = vld [vmem:[%s714 + $0x24] sm:$0xe]
      %v3369 = vld [vmem:[%s714 + $0x30] sm:$0xe]
      %v3370 = vld [vmem:[%s714 + $0x3c] sm:$0xe]
      %v3371 = vld [vmem:[%s714 + $0x48] sm:$0xe]
      %v3372 = vld [vmem:[%s714 + $0x54] sm:$0xe]
      %v3373 = vld [vmem:[%s714 + $0x60] sm:$0xe]
      %v3374 = vld [vmem:[%s714 + $0x6c] sm:$0xe]
      %v3375 = vld [vmem:[%s714 + $0x78] sm:$0xe]
      %v3376 = vld [vmem:[%s714 + $0x84] sm:$0xe]
      %v3377 = vld [vmem:[%s714 + $0x90] sm:$0xe]
      %v3378 = vld [vmem:[%s714 + $0x9c] sm:$0xe]
      %v3379 = vld [vmem:[%s714 + $0xa8] sm:$0xe]
      %v3380 = vld [vmem:[%s714 + $0xb4] sm:$0xe]
      %v3429 = vrot.slane %v3365, 5
      %v3430 = vrot.slane %v3429, 4
      %v3431 = vrot.slane %v2640, 5
      %v3432 = vsel %vm1874, %v3430, %v3431
      %v3433 = vrot.slane %v3431, 4
      %v3434 = vrot.slane %v2641, 5
      %v3435 = vsel %vm1874, %v3433, %v3434
      %v3436 = vrot.slane %v3366, 5
      %v3437 = vrot.slane %v3436, 4
      %v3438 = vrot.slane %v2643, 5
      %v3439 = vsel %vm1874, %v3437, %v3438
      %v3440 = vrot.slane %v3438, 4
      %v3441 = vrot.slane %v2644, 5
      %v3442 = vsel %vm1874, %v3440, %v3441
      %v3443 = vrot.slane %v3367, 5
      %v3444 = vrot.slane %v3443, 4
      %v3445 = vrot.slane %v2646, 5
      %v3446 = vsel %vm1874, %v3444, %v3445
      %v3447 = vrot.slane %v3445, 4
      %v3448 = vrot.slane %v2647, 5
      %v3449 = vsel %vm1874, %v3447, %v3448
      %v3450 = vrot.slane %v3368, 5
      %v3451 = vrot.slane %v3450, 4
      %v3452 = vrot.slane %v2649, 5
      %v3453 = vsel %vm1874, %v3451, %v3452
      %v3454 = vrot.slane %v3452, 4
      %v3455 = vrot.slane %v2650, 5
      %v3456 = vsel %vm1874, %v3454, %v3455
      %v3457 = vrot.slane %v3369, 5
      %v3458 = vrot.slane %v3457, 4
      %v3459 = vrot.slane %v2652, 5
      %v3460 = vsel %vm1874, %v3458, %v3459
      %v3461 = vrot.slane %v3459, 4
      %v3462 = vrot.slane %v2653, 5
      %v3463 = vsel %vm1874, %v3461, %v3462
      %v3464 = vrot.slane %v3370, 5
      %v3465 = vrot.slane %v3464, 4
      %v3466 = vrot.slane %v2655, 5
      %v3467 = vsel %vm1874, %v3465, %v3466
      %v3468 = vrot.slane %v3466, 4
      %v3469 = vrot.slane %v2656, 5
      %v3470 = vsel %vm1874, %v3468, %v3469
      %v3471 = vrot.slane %v3371, 5
      %v3472 = vrot.slane %v3471, 4
      %v3473 = vrot.slane %v2658, 5
      %v3474 = vsel %vm1874, %v3472, %v3473
      %v3475 = vrot.slane %v3473, 4
      %v3476 = vrot.slane %v2659, 5
      %v3477 = vsel %vm1874, %v3475, %v3476
      %v3478 = vrot.slane %v3372, 5
      %v3479 = vrot.slane %v3478, 4
      %v3480 = vrot.slane %v2661, 5
      %v3481 = vsel %vm1874, %v3479, %v3480
      %v3482 = vrot.slane %v3480, 4
      %v3483 = vrot.slane %v2662, 5
      %v3484 = vsel %vm1874, %v3482, %v3483
      %v3485 = vrot.slane %v3373, 5
      %v3486 = vrot.slane %v3485, 4
      %v3487 = vrot.slane %v2664, 5
      %v3488 = vsel %vm1874, %v3486, %v3487
      %v3489 = vrot.slane %v3487, 4
      %v3490 = vrot.slane %v2665, 5
      %v3491 = vsel %vm1874, %v3489, %v3490
      %v3492 = vrot.slane %v3374, 5
      %v3493 = vrot.slane %v3492, 4
      %v3494 = vrot.slane %v2667, 5
      %v3495 = vsel %vm1874, %v3493, %v3494
      %v3496 = vrot.slane %v3494, 4
      %v3497 = vrot.slane %v2668, 5
      %v3498 = vsel %vm1874, %v3496, %v3497
      %v3499 = vrot.slane %v3375, 5
      %v3500 = vrot.slane %v3499, 4
      %v3501 = vrot.slane %v2670, 5
      %v3502 = vsel %vm1874, %v3500, %v3501
      %v3503 = vrot.slane %v3501, 4
      %v3504 = vrot.slane %v2671, 5
      %v3505 = vsel %vm1874, %v3503, %v3504
      %v3506 = vrot.slane %v3376, 5
      %v3507 = vrot.slane %v3506, 4
      %v3508 = vrot.slane %v2673, 5
      %v3509 = vsel %vm1874, %v3507, %v3508
      %v3510 = vrot.slane %v3508, 4
      %v3511 = vrot.slane %v2674, 5
      %v3512 = vsel %vm1874, %v3510, %v3511
      %v3513 = vrot.slane %v3377, 5
      %v3514 = vrot.slane %v3513, 4
      %v3515 = vrot.slane %v2676, 5
      %v3516 = vsel %vm1874, %v3514, %v3515
      %v3517 = vrot.slane %v3515, 4
      %v3518 = vrot.slane %v2677, 5
      %v3519 = vsel %vm1874, %v3517, %v3518
      %v3520 = vrot.slane %v3378, 5
      %v3521 = vrot.slane %v3520, 4
      %v3522 = vrot.slane %v2679, 5
      %v3523 = vsel %vm1874, %v3521, %v3522
      %v3524 = vrot.slane %v3522, 4
      %v3525 = vrot.slane %v2680, 5
      %v3526 = vsel %vm1874, %v3524, %v3525
      %v3527 = vrot.slane %v3379, 5
      %v3528 = vrot.slane %v3527, 4
      %v3529 = vrot.slane %v2682, 5
      %v3530 = vsel %vm1874, %v3528, %v3529
      %v3531 = vrot.slane %v3529, 4
      %v3532 = vrot.slane %v2683, 5
      %v3533 = vsel %vm1874, %v3531, %v3532
      %v3534 = vrot.slane %v3380, 5
      %v3535 = vrot.slane %v3534, 4
      %v3536 = vrot.slane %v2685, 5
      %v3537 = vsel %vm1874, %v3535, %v3536
      %v3538 = vrot.slane %v3536, 4
      %v3539 = vrot.slane %v2686, 5
      %v3540 = vsel %vm1874, %v3538, %v3539
      %s3541 = scalar_lea.vmem %s1, 10
      %v3542 = vld [vmem:[%s3541] sm:$0x3]
      %v3543 = vunpack.c.l.b16 %v3432
      %v3544 = vunpack.c.l.b16 %v3435
      %v3545 = vunpack.c.l.b16 %v3439
      %v3546 = vunpack.c.l.b16 %v3442
      %v3547 = vunpack.c.l.b16 %v3446
      %v3548 = vunpack.c.l.b16 %v3449
      %v3549 = vunpack.c.l.b16 %v3453
      %v3550 = vunpack.c.l.b16 %v3456
      %v3551 = vunpack.c.l.b16 %v3460
      %v3552 = vunpack.c.l.b16 %v3463
      %v3553 = vunpack.c.l.b16 %v3467
      %v3554 = vunpack.c.l.b16 %v3470
      %v3555 = vunpack.c.l.b16 %v3474
      %v3556 = vunpack.c.l.b16 %v3477
      %v3557 = vunpack.c.l.b16 %v3481
      %v3558 = vunpack.c.l.b16 %v3484
      %v3559 = vunpack.c.l.b16 %v3488
      %v3560 = vunpack.c.l.b16 %v3491
      %v3561 = vunpack.c.l.b16 %v3495
      %v3562 = vunpack.c.l.b16 %v3498
      %v3563 = vunpack.c.l.b16 %v3502
      %v3564 = vunpack.c.l.b16 %v3505
      %v3565 = vunpack.c.l.b16 %v3509
      %v3566 = vunpack.c.l.b16 %v3512
      %v3567 = vunpack.c.l.b16 %v3516
      %v3568 = vunpack.c.l.b16 %v3519
      %v3569 = vunpack.c.l.b16 %v3523
      %v3570 = vunpack.c.l.b16 %v3526
      %v3571 = vunpack.c.l.b16 %v3530
      %v3572 = vunpack.c.l.b16 %v3533
      %v3573 = vunpack.c.l.b16 %v3537
      %v3574 = vunpack.c.l.b16 %v3540
      %v3575 = vpack.c.b16 %v3544, %v3543
      %v3576 = vpack.c.b16 %v3546, %v3545
      %v3577 = vpack.c.b16 %v3548, %v3547
      %v3578 = vpack.c.b16 %v3550, %v3549
      %v3579 = vpack.c.b16 %v3552, %v3551
      %v3580 = vpack.c.b16 %v3554, %v3553
      %v3581 = vpack.c.b16 %v3556, %v3555
      %v3582 = vpack.c.b16 %v3558, %v3557
      %v3583 = vpack.c.b16 %v3560, %v3559
      %v3584 = vpack.c.b16 %v3562, %v3561
      %v3585 = vpack.c.b16 %v3564, %v3563
      %v3586 = vpack.c.b16 %v3566, %v3565
      %v3587 = vpack.c.b16 %v3568, %v3567
      %v3588 = vpack.c.b16 %v3570, %v3569
      %v3589 = vpack.c.b16 %v3572, %v3571
      %v3590 = vpack.c.b16 %v3574, %v3573
      %v3592 = vsel %vm1318, %v3575, 0
      %v3595 = vsel %vm1318, %v3576, 0
      %v3598 = vsel %vm1318, %v3577, 0
      %v3601 = vsel %vm1318, %v3578, 0
      %v3604 = vsel %vm1318, %v3579, 0
      %v3607 = vsel %vm1318, %v3580, 0
      %v3610 = vsel %vm1318, %v3581, 0
      %v3613 = vsel %vm1318, %v3582, 0
      %v3616 = vsel %vm1318, %v3583, 0
      %v3619 = vsel %vm1318, %v3584, 0
      %v3622 = vsel %vm1318, %v3585, 0
      %v3625 = vsel %vm1318, %v3586, 0
      %v3628 = vsel %vm1318, %v3587, 0
      %v3631 = vsel %vm1318, %v3588, 0
      %v3634 = vsel %vm1318, %v3589, 0
      %v3637 = vsel %vm1318, %v3590, 0
      %v3640 = vsel %vm1367, %v3542, 0
      %3642 = vmatprep.subr.bf16.mxu0 0
      %3643 = vmatpush1.bf16.msra.mxu0 0
      %3644 = vmatprep.subr.bf16.mxu0 0
      %3645 = vmatpush1.bf16.msra.mxu0 0
      %3646 = vmatprep.subr.bf16.mxu0 0
      %3647 = vmatpush1.bf16.msra.mxu0 0
      %3648 = vmatprep.subr.bf16.mxu0 0
      %3649 = vmatpush1.bf16.msra.mxu0 0
      %3650 = vmatprep.subr.bf16.mxu0 0
      %3651 = vmatpush1.bf16.msra.mxu0 0
      %3652 = vmatprep.subr.bf16.mxu0 0
      %3653 = vmatpush1.bf16.msra.mxu0 0
      %3654 = vmatprep.subr.bf16.mxu0 0
      %3655 = vmatpush1.bf16.msra.mxu0 0
      %3656 = vmatprep.subr.bf16.mxu0 0
      %3657 = vmatpush1.bf16.msra.mxu0 %v3640
      %3658 = vmatprep.subr.bf16.mxu0 0
      %3659 = vmatpush2.bf16.msra.mxu0 0
      %3660 = vmatprep.subr.bf16.mxu0 0
      %3661 = vmatpush2.bf16.msra.mxu0 0
      %3662 = vmatprep.subr.bf16.mxu0 0
      %3663 = vmatpush2.bf16.msra.mxu0 0
      %3664 = vmatprep.subr.bf16.mxu0 0
      %3665 = vmatpush2.bf16.msra.mxu0 0
      %3666 = vmatprep.subr.bf16.mxu0 0
      %3667 = vmatpush2.bf16.msra.mxu0 0
      %3668 = vmatprep.subr.bf16.mxu0 0
      %3669 = vmatpush2.bf16.msra.mxu0 0
      %3670 = vmatprep.subr.bf16.mxu0 0
      %3671 = vmatpush2.bf16.msra.mxu0 0
      %3672 = vmatprep.subr.bf16.mxu0 0
      %3673 = vmatpush2.bf16.msra.mxu0 0
      %3674 = vmatprep.mubr.bf16.mxu0 0
      %3675 = vmatmul.mubr.bf16.gmra.mxu0 %v3592
      %v3676 = vpop.f32.mrf.mxu0
      %v3677 = vadd.f32 0.0, %v3676
      %v3678 = vpop.f32.mrf.mxu0
      %v3679 = vpop.f32.mrf.mxu0
      %v3680 = vadd.f32 0.0, %v3679
      %v3681 = vpop.f32.mrf.mxu0
      %3682 = vmatprep.mubr.bf16.mxu0 0
      %3683 = vmatmul.mubr.bf16.gmra.mxu0 %v3595
      %v3684 = vpop.f32.mrf.mxu0
      %v3685 = vadd.f32 0.0, %v3684
      %v3686 = vpop.f32.mrf.mxu0
      %v3687 = vpop.f32.mrf.mxu0
      %v3688 = vadd.f32 0.0, %v3687
      %v3689 = vpop.f32.mrf.mxu0
      %3690 = vmatprep.mubr.bf16.mxu0 0
      %3691 = vmatmul.mubr.bf16.gmra.mxu0 %v3598
      %v3692 = vpop.f32.mrf.mxu0
      %v3693 = vadd.f32 0.0, %v3692
      %v3694 = vpop.f32.mrf.mxu0
      %v3695 = vpop.f32.mrf.mxu0
      %v3696 = vadd.f32 0.0, %v3695
      %v3697 = vpop.f32.mrf.mxu0
      %3698 = vmatprep.mubr.bf16.mxu0 0
      %3699 = vmatmul.mubr.bf16.gmra.mxu0 %v3601
      %v3700 = vpop.f32.mrf.mxu0
      %v3701 = vadd.f32 0.0, %v3700
      %v3702 = vpop.f32.mrf.mxu0
      %v3703 = vpop.f32.mrf.mxu0
      %v3704 = vadd.f32 0.0, %v3703
      %v3705 = vpop.f32.mrf.mxu0
      %3706 = vmatprep.mubr.bf16.mxu0 0
      %3707 = vmatmul.mubr.bf16.gmra.mxu0 %v3604
      %v3708 = vpop.f32.mrf.mxu0
      %v3709 = vadd.f32 0.0, %v3708
      %v3710 = vpop.f32.mrf.mxu0
      %v3711 = vpop.f32.mrf.mxu0
      %v3712 = vadd.f32 0.0, %v3711
      %v3713 = vpop.f32.mrf.mxu0
      %3714 = vmatprep.mubr.bf16.mxu0 0
      %3715 = vmatmul.mubr.bf16.gmra.mxu0 %v3607
      %v3716 = vpop.f32.mrf.mxu0
      %v3717 = vadd.f32 0.0, %v3716
      %v3718 = vpop.f32.mrf.mxu0
      %v3719 = vpop.f32.mrf.mxu0
      %v3720 = vadd.f32 0.0, %v3719
      %v3721 = vpop.f32.mrf.mxu0
      %3722 = vmatprep.mubr.bf16.mxu0 0
      %3723 = vmatmul.mubr.bf16.gmra.mxu0 %v3610
      %v3724 = vpop.f32.mrf.mxu0
      %v3725 = vadd.f32 0.0, %v3724
      %v3726 = vpop.f32.mrf.mxu0
      %v3727 = vpop.f32.mrf.mxu0
      %v3728 = vadd.f32 0.0, %v3727
      %v3729 = vpop.f32.mrf.mxu0
      %3730 = vmatprep.mubr.bf16.mxu0 0
      %3731 = vmatmul.mubr.bf16.gmra.mxu0 %v3613
      %v3732 = vpop.f32.mrf.mxu0
      %v3733 = vadd.f32 0.0, %v3732
      %v3734 = vpop.f32.mrf.mxu0
      %v3735 = vpop.f32.mrf.mxu0
      %v3736 = vadd.f32 0.0, %v3735
      %v3737 = vpop.f32.mrf.mxu0
      %3738 = vmatprep.mubr.bf16.mxu0 0
      %3739 = vmatmul.mubr.bf16.gmra.mxu0 %v3616
      %v3740 = vpop.f32.mrf.mxu0
      %v3741 = vadd.f32 0.0, %v3740
      %v3742 = vpop.f32.mrf.mxu0
      %v3743 = vpop.f32.mrf.mxu0
      %v3744 = vadd.f32 0.0, %v3743
      %v3745 = vpop.f32.mrf.mxu0
      %3746 = vmatprep.mubr.bf16.mxu0 0
      %3747 = vmatmul.mubr.bf16.gmra.mxu0 %v3619
      %v3748 = vpop.f32.mrf.mxu0
      %v3749 = vadd.f32 0.0, %v3748
      %v3750 = vpop.f32.mrf.mxu0
      %v3751 = vpop.f32.mrf.mxu0
      %v3752 = vadd.f32 0.0, %v3751
      %v3753 = vpop.f32.mrf.mxu0
      %3754 = vmatprep.mubr.bf16.mxu0 0
      %3755 = vmatmul.mubr.bf16.gmra.mxu0 %v3622
      %v3756 = vpop.f32.mrf.mxu0
      %v3757 = vadd.f32 0.0, %v3756
      %v3758 = vpop.f32.mrf.mxu0
      %v3759 = vpop.f32.mrf.mxu0
      %v3760 = vadd.f32 0.0, %v3759
      %v3761 = vpop.f32.mrf.mxu0
      %3762 = vmatprep.mubr.bf16.mxu0 0
      %3763 = vmatmul.mubr.bf16.gmra.mxu0 %v3625
      %v3764 = vpop.f32.mrf.mxu0
      %v3765 = vadd.f32 0.0, %v3764
      %v3766 = vpop.f32.mrf.mxu0
      %v3767 = vpop.f32.mrf.mxu0
      %v3768 = vadd.f32 0.0, %v3767
      %v3769 = vpop.f32.mrf.mxu0
      %3770 = vmatprep.mubr.bf16.mxu0 0
      %3771 = vmatmul.mubr.bf16.gmra.mxu0 %v3628
      %v3772 = vpop.f32.mrf.mxu0
      %v3773 = vadd.f32 0.0, %v3772
      %v3774 = vpop.f32.mrf.mxu0
      %v3775 = vpop.f32.mrf.mxu0
      %v3776 = vadd.f32 0.0, %v3775
      %v3777 = vpop.f32.mrf.mxu0
      %3778 = vmatprep.mubr.bf16.mxu0 0
      %3779 = vmatmul.mubr.bf16.gmra.mxu0 %v3631
      %v3780 = vpop.f32.mrf.mxu0
      %v3781 = vadd.f32 0.0, %v3780
      %v3782 = vpop.f32.mrf.mxu0
      %v3783 = vpop.f32.mrf.mxu0
      %v3784 = vadd.f32 0.0, %v3783
      %v3785 = vpop.f32.mrf.mxu0
      %3786 = vmatprep.mubr.bf16.mxu0 0
      %3787 = vmatmul.mubr.bf16.gmra.mxu0 %v3634
      %v3788 = vpop.f32.mrf.mxu0
      %v3789 = vadd.f32 0.0, %v3788
      %v3790 = vpop.f32.mrf.mxu0
      %v3791 = vpop.f32.mrf.mxu0
      %v3792 = vadd.f32 0.0, %v3791
      %v3793 = vpop.f32.mrf.mxu0
      %3794 = vmatprep.mubr.bf16.mxu0 0
      %3795 = vmatmul.mubr.bf16.gmra.mxu0 %v3637
      %v3796 = vpop.f32.mrf.mxu0
      %v3797 = vadd.f32 0.0, %v3796
      %v3798 = vpop.f32.mrf.mxu0
      %v3799 = vpop.f32.mrf.mxu0
      %v3800 = vadd.f32 0.0, %v3799
      %v3801 = vpop.f32.mrf.mxu0
      %3802 = vdwg.mxu0
      %v3803 = vadd.f32 %v3333, %v3677
      %v3804 = vadd.f32 %v3334, %v3680
      %v3805 = vadd.f32 %v3335, %v3685
      %v3806 = vadd.f32 %v3336, %v3688
      %v3807 = vadd.f32 %v3337, %v3693
      %v3808 = vadd.f32 %v3338, %v3696
      %v3809 = vadd.f32 %v3339, %v3701
      %v3810 = vadd.f32 %v3340, %v3704
      %v3811 = vadd.f32 %v3341, %v3709
      %v3812 = vadd.f32 %v3342, %v3712
      %v3813 = vadd.f32 %v3343, %v3717
      %v3814 = vadd.f32 %v3344, %v3720
      %v3815 = vadd.f32 %v3345, %v3725
      %v3816 = vadd.f32 %v3346, %v3728
      %v3817 = vadd.f32 %v3347, %v3733
      %v3818 = vadd.f32 %v3348, %v3736
      %v3819 = vadd.f32 %v3349, %v3741
      %v3820 = vadd.f32 %v3350, %v3744
      %v3821 = vadd.f32 %v3351, %v3749
      %v3822 = vadd.f32 %v3352, %v3752
      %v3823 = vadd.f32 %v3353, %v3757
      %v3824 = vadd.f32 %v3354, %v3760
      %v3825 = vadd.f32 %v3355, %v3765
      %v3826 = vadd.f32 %v3356, %v3768
      %v3827 = vadd.f32 %v3357, %v3773
      %v3828 = vadd.f32 %v3358, %v3776
      %v3829 = vadd.f32 %v3359, %v3781
      %v3830 = vadd.f32 %v3360, %v3784
      %v3831 = vadd.f32 %v3361, %v3789
      %v3832 = vadd.f32 %v3362, %v3792
      %v3833 = vadd.f32 %v3363, %v3797
      %v3834 = vadd.f32 %v3364, %v3800
      %s3835 = scalar_lea.vmem [#allocation2], 24
      %v3836 = vld [vmem:[%s3835] sm:$0xf]
      %v3837 = vld [vmem:[%s3835 + $0x4] sm:$0xf]
      %v3838 = vld [vmem:[%s3835 + $0xc] sm:$0xf]
      %v3839 = vld [vmem:[%s3835 + $0x10] sm:$0xf]
      %v3840 = vld [vmem:[%s3835 + $0x18] sm:$0xf]
      %v3841 = vld [vmem:[%s3835 + $0x1c] sm:$0xf]
      %v3842 = vld [vmem:[%s3835 + $0x24] sm:$0xf]
      %v3843 = vld [vmem:[%s3835 + $0x28] sm:$0xf]
      %v3844 = vld [vmem:[%s3835 + $0x30] sm:$0xf]
      %v3845 = vld [vmem:[%s3835 + $0x34] sm:$0xf]
      %v3846 = vld [vmem:[%s3835 + $0x3c] sm:$0xf]
      %v3847 = vld [vmem:[%s3835 + $0x40] sm:$0xf]
      %v3848 = vld [vmem:[%s3835 + $0x48] sm:$0xf]
      %v3849 = vld [vmem:[%s3835 + $0x4c] sm:$0xf]
      %v3850 = vld [vmem:[%s3835 + $0x54] sm:$0xf]
      %v3851 = vld [vmem:[%s3835 + $0x58] sm:$0xf]
      %v3852 = vld [vmem:[%s3835 + $0x60] sm:$0xf]
      %v3853 = vld [vmem:[%s3835 + $0x64] sm:$0xf]
      %v3854 = vld [vmem:[%s3835 + $0x6c] sm:$0xf]
      %v3855 = vld [vmem:[%s3835 + $0x70] sm:$0xf]
      %v3856 = vld [vmem:[%s3835 + $0x78] sm:$0xf]
      %v3857 = vld [vmem:[%s3835 + $0x7c] sm:$0xf]
      %v3858 = vld [vmem:[%s3835 + $0x84] sm:$0xf]
      %v3859 = vld [vmem:[%s3835 + $0x88] sm:$0xf]
      %v3860 = vld [vmem:[%s3835 + $0x90] sm:$0xf]
      %v3861 = vld [vmem:[%s3835 + $0x94] sm:$0xf]
      %v3862 = vld [vmem:[%s3835 + $0x9c] sm:$0xf]
      %v3863 = vld [vmem:[%s3835 + $0xa0] sm:$0xf]
      %v3864 = vld [vmem:[%s3835 + $0xa8] sm:$0xf]
      %v3865 = vld [vmem:[%s3835 + $0xac] sm:$0xf]
      %v3866 = vld [vmem:[%s3835 + $0xb4] sm:$0xf]
      %v3867 = vld [vmem:[%s3835 + $0xb8] sm:$0xf]
      %s3868 = scalar_lea.vmem %s1, 12
      %v3869 = vld [vmem:[%s3868] sm:$0x3]
      %v3902 = vunpack.c.l.b16 %v3836
      %v3903 = vunpack.c.l.b16 %v3837
      %v3904 = vunpack.c.l.b16 %v3838
      %v3905 = vunpack.c.l.b16 %v3839
      %v3906 = vunpack.c.l.b16 %v3840
      %v3907 = vunpack.c.l.b16 %v3841
      %v3908 = vunpack.c.l.b16 %v3842
      %v3909 = vunpack.c.l.b16 %v3843
      %v3910 = vunpack.c.l.b16 %v3844
      %v3911 = vunpack.c.l.b16 %v3845
      %v3912 = vunpack.c.l.b16 %v3846
      %v3913 = vunpack.c.l.b16 %v3847
      %v3914 = vunpack.c.l.b16 %v3848
      %v3915 = vunpack.c.l.b16 %v3849
      %v3916 = vunpack.c.l.b16 %v3850
      %v3917 = vunpack.c.l.b16 %v3851
      %v3918 = vunpack.c.l.b16 %v3852
      %v3919 = vunpack.c.l.b16 %v3853
      %v3920 = vunpack.c.l.b16 %v3854
      %v3921 = vunpack.c.l.b16 %v3855
      %v3922 = vunpack.c.l.b16 %v3856
      %v3923 = vunpack.c.l.b16 %v3857
      %v3924 = vunpack.c.l.b16 %v3858
      %v3925 = vunpack.c.l.b16 %v3859
      %v3926 = vunpack.c.l.b16 %v3860
      %v3927 = vunpack.c.l.b16 %v3861
      %v3928 = vunpack.c.l.b16 %v3862
      %v3929 = vunpack.c.l.b16 %v3863
      %v3930 = vunpack.c.l.b16 %v3864
      %v3931 = vunpack.c.l.b16 %v3865
      %v3932 = vunpack.c.l.b16 %v3866
      %v3933 = vunpack.c.l.b16 %v3867
      %v3934 = vpack.c.b16 %v3903, %v3902
      %v3935 = vpack.c.b16 %v3905, %v3904
      %v3936 = vpack.c.b16 %v3907, %v3906
      %v3937 = vpack.c.b16 %v3909, %v3908
      %v3938 = vpack.c.b16 %v3911, %v3910
      %v3939 = vpack.c.b16 %v3913, %v3912
      %v3940 = vpack.c.b16 %v3915, %v3914
      %v3941 = vpack.c.b16 %v3917, %v3916
      %v3942 = vpack.c.b16 %v3919, %v3918
      %v3943 = vpack.c.b16 %v3921, %v3920
      %v3944 = vpack.c.b16 %v3923, %v3922
      %v3945 = vpack.c.b16 %v3925, %v3924
      %v3946 = vpack.c.b16 %v3927, %v3926
      %v3947 = vpack.c.b16 %v3929, %v3928
      %v3948 = vpack.c.b16 %v3931, %v3930
      %v3949 = vpack.c.b16 %v3933, %v3932
      %v3951 = vsel %vm1318, %v3934, 0
      %v3954 = vsel %vm1318, %v3935, 0
      %v3957 = vsel %vm1318, %v3936, 0
      %v3960 = vsel %vm1318, %v3937, 0
      %v3963 = vsel %vm1318, %v3938, 0
      %v3966 = vsel %vm1318, %v3939, 0
      %v3969 = vsel %vm1318, %v3940, 0
      %v3972 = vsel %vm1318, %v3941, 0
      %v3975 = vsel %vm1318, %v3942, 0
      %v3978 = vsel %vm1318, %v3943, 0
      %v3981 = vsel %vm1318, %v3944, 0
      %v3984 = vsel %vm1318, %v3945, 0
      %v3987 = vsel %vm1318, %v3946, 0
      %v3990 = vsel %vm1318, %v3947, 0
      %v3993 = vsel %vm1318, %v3948, 0
      %v3996 = vsel %vm1318, %v3949, 0
      %v3999 = vsel %vm1367, %v3869, 0
      %4001 = vmatprep.subr.bf16.mxu0 0
      %4002 = vmatpush1.bf16.msra.mxu0 0
      %4003 = vmatprep.subr.bf16.mxu0 0
      %4004 = vmatpush1.bf16.msra.mxu0 0
      %4005 = vmatprep.subr.bf16.mxu0 0
      %4006 = vmatpush1.bf16.msra.mxu0 0
      %4007 = vmatprep.subr.bf16.mxu0 0
      %4008 = vmatpush1.bf16.msra.mxu0 0
      %4009 = vmatprep.subr.bf16.mxu0 0
      %4010 = vmatpush1.bf16.msra.mxu0 0
      %4011 = vmatprep.subr.bf16.mxu0 0
      %4012 = vmatpush1.bf16.msra.mxu0 0
      %4013 = vmatprep.subr.bf16.mxu0 0
      %4014 = vmatpush1.bf16.msra.mxu0 0
      %4015 = vmatprep.subr.bf16.mxu0 0
      %4016 = vmatpush1.bf16.msra.mxu0 %v3999
      %4017 = vmatprep.subr.bf16.mxu0 0
      %4018 = vmatpush2.bf16.msra.mxu0 0
      %4019 = vmatprep.subr.bf16.mxu0 0
      %4020 = vmatpush2.bf16.msra.mxu0 0
      %4021 = vmatprep.subr.bf16.mxu0 0
      %4022 = vmatpush2.bf16.msra.mxu0 0
      %4023 = vmatprep.subr.bf16.mxu0 0
      %4024 = vmatpush2.bf16.msra.mxu0 0
      %4025 = vmatprep.subr.bf16.mxu0 0
      %4026 = vmatpush2.bf16.msra.mxu0 0
      %4027 = vmatprep.subr.bf16.mxu0 0
      %4028 = vmatpush2.bf16.msra.mxu0 0
      %4029 = vmatprep.subr.bf16.mxu0 0
      %4030 = vmatpush2.bf16.msra.mxu0 0
      %4031 = vmatprep.subr.bf16.mxu0 0
      %4032 = vmatpush2.bf16.msra.mxu0 0
      %4033 = vmatprep.mubr.bf16.mxu0 0
      %4034 = vmatmul.mubr.bf16.gmra.mxu0 %v3951
      %v4035 = vpop.f32.mrf.mxu0
      %v4036 = vadd.f32 0.0, %v4035
      %v4037 = vpop.f32.mrf.mxu0
      %v4038 = vpop.f32.mrf.mxu0
      %v4039 = vadd.f32 0.0, %v4038
      %v4040 = vpop.f32.mrf.mxu0
      %4041 = vmatprep.mubr.bf16.mxu0 0
      %4042 = vmatmul.mubr.bf16.gmra.mxu0 %v3954
      %v4043 = vpop.f32.mrf.mxu0
      %v4044 = vadd.f32 0.0, %v4043
      %v4045 = vpop.f32.mrf.mxu0
      %v4046 = vpop.f32.mrf.mxu0
      %v4047 = vadd.f32 0.0, %v4046
      %v4048 = vpop.f32.mrf.mxu0
      %4049 = vmatprep.mubr.bf16.mxu0 0
      %4050 = vmatmul.mubr.bf16.gmra.mxu0 %v3957
      %v4051 = vpop.f32.mrf.mxu0
      %v4052 = vadd.f32 0.0, %v4051
      %v4053 = vpop.f32.mrf.mxu0
      %v4054 = vpop.f32.mrf.mxu0
      %v4055 = vadd.f32 0.0, %v4054
      %v4056 = vpop.f32.mrf.mxu0
      %4057 = vmatprep.mubr.bf16.mxu0 0
      %4058 = vmatmul.mubr.bf16.gmra.mxu0 %v3960
      %v4059 = vpop.f32.mrf.mxu0
      %v4060 = vadd.f32 0.0, %v4059
      %v4061 = vpop.f32.mrf.mxu0
      %v4062 = vpop.f32.mrf.mxu0
      %v4063 = vadd.f32 0.0, %v4062
      %v4064 = vpop.f32.mrf.mxu0
      %4065 = vmatprep.mubr.bf16.mxu0 0
      %4066 = vmatmul.mubr.bf16.gmra.mxu0 %v3963
      %v4067 = vpop.f32.mrf.mxu0
      %v4068 = vadd.f32 0.0, %v4067
      %v4069 = vpop.f32.mrf.mxu0
      %v4070 = vpop.f32.mrf.mxu0
      %v4071 = vadd.f32 0.0, %v4070
      %v4072 = vpop.f32.mrf.mxu0
      %4073 = vmatprep.mubr.bf16.mxu0 0
      %4074 = vmatmul.mubr.bf16.gmra.mxu0 %v3966
      %v4075 = vpop.f32.mrf.mxu0
      %v4076 = vadd.f32 0.0, %v4075
      %v4077 = vpop.f32.mrf.mxu0
      %v4078 = vpop.f32.mrf.mxu0
      %v4079 = vadd.f32 0.0, %v4078
      %v4080 = vpop.f32.mrf.mxu0
      %4081 = vmatprep.mubr.bf16.mxu0 0
      %4082 = vmatmul.mubr.bf16.gmra.mxu0 %v3969
      %v4083 = vpop.f32.mrf.mxu0
      %v4084 = vadd.f32 0.0, %v4083
      %v4085 = vpop.f32.mrf.mxu0
      %v4086 = vpop.f32.mrf.mxu0
      %v4087 = vadd.f32 0.0, %v4086
      %v4088 = vpop.f32.mrf.mxu0
      %4089 = vmatprep.mubr.bf16.mxu0 0
      %4090 = vmatmul.mubr.bf16.gmra.mxu0 %v3972
      %v4091 = vpop.f32.mrf.mxu0
      %v4092 = vadd.f32 0.0, %v4091
      %v4093 = vpop.f32.mrf.mxu0
      %v4094 = vpop.f32.mrf.mxu0
      %v4095 = vadd.f32 0.0, %v4094
      %v4096 = vpop.f32.mrf.mxu0
      %4097 = vmatprep.mubr.bf16.mxu0 0
      %4098 = vmatmul.mubr.bf16.gmra.mxu0 %v3975
      %v4099 = vpop.f32.mrf.mxu0
      %v4100 = vadd.f32 0.0, %v4099
      %v4101 = vpop.f32.mrf.mxu0
      %v4102 = vpop.f32.mrf.mxu0
      %v4103 = vadd.f32 0.0, %v4102
      %v4104 = vpop.f32.mrf.mxu0
      %4105 = vmatprep.mubr.bf16.mxu0 0
      %4106 = vmatmul.mubr.bf16.gmra.mxu0 %v3978
      %v4107 = vpop.f32.mrf.mxu0
      %v4108 = vadd.f32 0.0, %v4107
      %v4109 = vpop.f32.mrf.mxu0
      %v4110 = vpop.f32.mrf.mxu0
      %v4111 = vadd.f32 0.0, %v4110
      %v4112 = vpop.f32.mrf.mxu0
      %4113 = vmatprep.mubr.bf16.mxu0 0
      %4114 = vmatmul.mubr.bf16.gmra.mxu0 %v3981
      %v4115 = vpop.f32.mrf.mxu0
      %v4116 = vadd.f32 0.0, %v4115
      %v4117 = vpop.f32.mrf.mxu0
      %v4118 = vpop.f32.mrf.mxu0
      %v4119 = vadd.f32 0.0, %v4118
      %v4120 = vpop.f32.mrf.mxu0
      %4121 = vmatprep.mubr.bf16.mxu0 0
      %4122 = vmatmul.mubr.bf16.gmra.mxu0 %v3984
      %v4123 = vpop.f32.mrf.mxu0
      %v4124 = vadd.f32 0.0, %v4123
      %v4125 = vpop.f32.mrf.mxu0
      %v4126 = vpop.f32.mrf.mxu0
      %v4127 = vadd.f32 0.0, %v4126
      %v4128 = vpop.f32.mrf.mxu0
      %4129 = vmatprep.mubr.bf16.mxu0 0
      %4130 = vmatmul.mubr.bf16.gmra.mxu0 %v3987
      %v4131 = vpop.f32.mrf.mxu0
      %v4132 = vadd.f32 0.0, %v4131
      %v4133 = vpop.f32.mrf.mxu0
      %v4134 = vpop.f32.mrf.mxu0
      %v4135 = vadd.f32 0.0, %v4134
      %v4136 = vpop.f32.mrf.mxu0
      %4137 = vmatprep.mubr.bf16.mxu0 0
      %4138 = vmatmul.mubr.bf16.gmra.mxu0 %v3990
      %v4139 = vpop.f32.mrf.mxu0
      %v4140 = vadd.f32 0.0, %v4139
      %v4141 = vpop.f32.mrf.mxu0
      %v4142 = vpop.f32.mrf.mxu0
      %v4143 = vadd.f32 0.0, %v4142
      %v4144 = vpop.f32.mrf.mxu0
      %4145 = vmatprep.mubr.bf16.mxu0 0
      %4146 = vmatmul.mubr.bf16.gmra.mxu0 %v3993
      %v4147 = vpop.f32.mrf.mxu0
      %v4148 = vadd.f32 0.0, %v4147
      %v4149 = vpop.f32.mrf.mxu0
      %v4150 = vpop.f32.mrf.mxu0
      %v4151 = vadd.f32 0.0, %v4150
      %v4152 = vpop.f32.mrf.mxu0
      %4153 = vmatprep.mubr.bf16.mxu0 0
      %4154 = vmatmul.mubr.bf16.gmra.mxu0 %v3996
      %v4155 = vpop.f32.mrf.mxu0
      %v4156 = vadd.f32 0.0, %v4155
      %v4157 = vpop.f32.mrf.mxu0
      %v4158 = vpop.f32.mrf.mxu0
      %v4159 = vadd.f32 0.0, %v4158
      %v4160 = vpop.f32.mrf.mxu0
      %4161 = vdwg.mxu0
      %v4162 = vadd.f32 %v3803, %v4036
      %v4163 = vadd.f32 %v3804, %v4039
      %v4164 = vadd.f32 %v3805, %v4044
      %v4165 = vadd.f32 %v3806, %v4047
      %v4166 = vadd.f32 %v3807, %v4052
      %v4167 = vadd.f32 %v3808, %v4055
      %v4168 = vadd.f32 %v3809, %v4060
      %v4169 = vadd.f32 %v3810, %v4063
      %v4170 = vadd.f32 %v3811, %v4068
      %v4171 = vadd.f32 %v3812, %v4071
      %v4172 = vadd.f32 %v3813, %v4076
      %v4173 = vadd.f32 %v3814, %v4079
      %v4174 = vadd.f32 %v3815, %v4084
      %v4175 = vadd.f32 %v3816, %v4087
      %v4176 = vadd.f32 %v3817, %v4092
      %v4177 = vadd.f32 %v3818, %v4095
      %v4178 = vadd.f32 %v3819, %v4100
      %v4179 = vadd.f32 %v3820, %v4103
      %v4180 = vadd.f32 %v3821, %v4108
      %v4181 = vadd.f32 %v3822, %v4111
      %v4182 = vadd.f32 %v3823, %v4116
      %v4183 = vadd.f32 %v3824, %v4119
      %v4184 = vadd.f32 %v3825, %v4124
      %v4185 = vadd.f32 %v3826, %v4127
      %v4186 = vadd.f32 %v3827, %v4132
      %v4187 = vadd.f32 %v3828, %v4135
      %v4188 = vadd.f32 %v3829, %v4140
      %v4189 = vadd.f32 %v3830, %v4143
      %v4190 = vadd.f32 %v3831, %v4148
      %v4191 = vadd.f32 %v3832, %v4151
      %v4192 = vadd.f32 %v3833, %v4156
      %v4193 = vadd.f32 %v3834, %v4159
      %v4194 = vld [vmem:[%s3835] sm:$0xf]
      %v4195 = vld [vmem:[%s3835 + $0x4] sm:$0xf]
      %v4196 = vld [vmem:[%s3835 + $0x8] sm:$0x1]
      %v4197 = vld [vmem:[%s3835 + $0xc] sm:$0xf]
      %v4198 = vld [vmem:[%s3835 + $0x10] sm:$0xf]
      %v4199 = vld [vmem:[%s3835 + $0x14] sm:$0x1]
      %v4200 = vld [vmem:[%s3835 + $0x18] sm:$0xf]
      %v4201 = vld [vmem:[%s3835 + $0x1c] sm:$0xf]
      %v4202 = vld [vmem:[%s3835 + $0x20] sm:$0x1]
      %v4203 = vld [vmem:[%s3835 + $0x24] sm:$0xf]
      %v4204 = vld [vmem:[%s3835 + $0x28] sm:$0xf]
      %v4205 = vld [vmem:[%s3835 + $0x2c] sm:$0x1]
      %v4206 = vld [vmem:[%s3835 + $0x30] sm:$0xf]
      %v4207 = vld [vmem:[%s3835 + $0x34] sm:$0xf]
      %v4208 = vld [vmem:[%s3835 + $0x38] sm:$0x1]
      %v4209 = vld [vmem:[%s3835 + $0x3c] sm:$0xf]
      %v4210 = vld [vmem:[%s3835 + $0x40] sm:$0xf]
      %v4211 = vld [vmem:[%s3835 + $0x44] sm:$0x1]
      %v4212 = vld [vmem:[%s3835 + $0x48] sm:$0xf]
      %v4213 = vld [vmem:[%s3835 + $0x4c] sm:$0xf]
      %v4214 = vld [vmem:[%s3835 + $0x50] sm:$0x1]
      %v4215 = vld [vmem:[%s3835 + $0x54] sm:$0xf]
      %v4216 = vld [vmem:[%s3835 + $0x58] sm:$0xf]
      %v4217 = vld [vmem:[%s3835 + $0x5c] sm:$0x1]
      %v4218 = vld [vmem:[%s3835 + $0x60] sm:$0xf]
      %v4219 = vld [vmem:[%s3835 + $0x64] sm:$0xf]
      %v4220 = vld [vmem:[%s3835 + $0x68] sm:$0x1]
      %v4221 = vld [vmem:[%s3835 + $0x6c] sm:$0xf]
      %v4222 = vld [vmem:[%s3835 + $0x70] sm:$0xf]
      %v4223 = vld [vmem:[%s3835 + $0x74] sm:$0x1]
      %v4224 = vld [vmem:[%s3835 + $0x78] sm:$0xf]
      %v4225 = vld [vmem:[%s3835 + $0x7c] sm:$0xf]
      %v4226 = vld [vmem:[%s3835 + $0x80] sm:$0x1]
      %v4227 = vld [vmem:[%s3835 + $0x84] sm:$0xf]
      %v4228 = vld [vmem:[%s3835 + $0x88] sm:$0xf]
      %v4229 = vld [vmem:[%s3835 + $0x8c] sm:$0x1]
      %v4230 = vld [vmem:[%s3835 + $0x90] sm:$0xf]
      %v4231 = vld [vmem:[%s3835 + $0x94] sm:$0xf]
      %v4232 = vld [vmem:[%s3835 + $0x98] sm:$0x1]
      %v4233 = vld [vmem:[%s3835 + $0x9c] sm:$0xf]
      %v4234 = vld [vmem:[%s3835 + $0xa0] sm:$0xf]
      %v4235 = vld [vmem:[%s3835 + $0xa4] sm:$0x1]
      %v4236 = vld [vmem:[%s3835 + $0xa8] sm:$0xf]
      %v4237 = vld [vmem:[%s3835 + $0xac] sm:$0xf]
      %v4238 = vld [vmem:[%s3835 + $0xb0] sm:$0x1]
      %v4239 = vld [vmem:[%s3835 + $0xb4] sm:$0xf]
      %v4240 = vld [vmem:[%s3835 + $0xb8] sm:$0xf]
      %v4241 = vld [vmem:[%s3835 + $0xbc] sm:$0x1]
      %v4243 = vshrl.u32 %v4194, 16
      %v4245 = vrot.slane %v4243, 4
      %v4246 = vshll.u32 %v4194, 16
      %v4248 = vrot.slane %v4246, 5
      %v4249 = vor.u32 %v4245, %v4248
      %v4250 = vrot.slane %v4249, 4
      %v4252 = vshll.u32 %v4195, 16
      %v4254 = vrot.slane %v4252, 5
      %v4255 = vsel %vm883, %v4250, %v4254
      %v4256 = vshrl.u32 %v4195, 16
      %v4258 = vrot.slane %v4256, 4
      %v4259 = vor.u32 %v4258, %v4254
      %v4260 = vrot.slane %v4259, 4
      %v4262 = vshll.u32 %v4196, 16
      %v4264 = vrot.slane %v4262, 5
      %v4265 = vsel %vm883, %v4260, %v4264
      %v4267 = vshrl.u32 %v4197, 16
      %v4269 = vrot.slane %v4267, 4
      %v4270 = vshll.u32 %v4197, 16
      %v4272 = vrot.slane %v4270, 5
      %v4273 = vor.u32 %v4269, %v4272
      %v4274 = vrot.slane %v4273, 4
      %v4276 = vshll.u32 %v4198, 16
      %v4278 = vrot.slane %v4276, 5
      %v4279 = vsel %vm883, %v4274, %v4278
      %v4280 = vshrl.u32 %v4198, 16
      %v4282 = vrot.slane %v4280, 4
      %v4283 = vor.u32 %v4282, %v4278
      %v4284 = vrot.slane %v4283, 4
      %v4286 = vshll.u32 %v4199, 16
      %v4288 = vrot.slane %v4286, 5
      %v4289 = vsel %vm883, %v4284, %v4288
      %v4291 = vshrl.u32 %v4200, 16
      %v4293 = vrot.slane %v4291, 4
      %v4294 = vshll.u32 %v4200, 16
      %v4296 = vrot.slane %v4294, 5
      %v4297 = vor.u32 %v4293, %v4296
      %v4298 = vrot.slane %v4297, 4
      %v4300 = vshll.u32 %v4201, 16
      %v4302 = vrot.slane %v4300, 5
      %v4303 = vsel %vm883, %v4298, %v4302
      %v4304 = vshrl.u32 %v4201, 16
      %v4306 = vrot.slane %v4304, 4
      %v4307 = vor.u32 %v4306, %v4302
      %v4308 = vrot.slane %v4307, 4
      %v4310 = vshll.u32 %v4202, 16
      %v4312 = vrot.slane %v4310, 5
      %v4313 = vsel %vm883, %v4308, %v4312
      %v4315 = vshrl.u32 %v4203, 16
      %v4317 = vrot.slane %v4315, 4
      %v4318 = vshll.u32 %v4203, 16
      %v4320 = vrot.slane %v4318, 5
      %v4321 = vor.u32 %v4317, %v4320
      %v4322 = vrot.slane %v4321, 4
      %v4324 = vshll.u32 %v4204, 16
      %v4326 = vrot.slane %v4324, 5
      %v4327 = vsel %vm883, %v4322, %v4326
      %v4328 = vshrl.u32 %v4204, 16
      %v4330 = vrot.slane %v4328, 4
      %v4331 = vor.u32 %v4330, %v4326
      %v4332 = vrot.slane %v4331, 4
      %v4334 = vshll.u32 %v4205, 16
      %v4336 = vrot.slane %v4334, 5
      %v4337 = vsel %vm883, %v4332, %v4336
      %v4339 = vshrl.u32 %v4206, 16
      %v4341 = vrot.slane %v4339, 4
      %v4342 = vshll.u32 %v4206, 16
      %v4344 = vrot.slane %v4342, 5
      %v4345 = vor.u32 %v4341, %v4344
      %v4346 = vrot.slane %v4345, 4
      %v4348 = vshll.u32 %v4207, 16
      %v4350 = vrot.slane %v4348, 5
      %v4351 = vsel %vm883, %v4346, %v4350
      %v4352 = vshrl.u32 %v4207, 16
      %v4354 = vrot.slane %v4352, 4
      %v4355 = vor.u32 %v4354, %v4350
      %v4356 = vrot.slane %v4355, 4
      %v4358 = vshll.u32 %v4208, 16
      %v4360 = vrot.slane %v4358, 5
      %v4361 = vsel %vm883, %v4356, %v4360
      %v4363 = vshrl.u32 %v4209, 16
      %v4365 = vrot.slane %v4363, 4
      %v4366 = vshll.u32 %v4209, 16
      %v4368 = vrot.slane %v4366, 5
      %v4369 = vor.u32 %v4365, %v4368
      %v4370 = vrot.slane %v4369, 4
      %v4372 = vshll.u32 %v4210, 16
      %v4374 = vrot.slane %v4372, 5
      %v4375 = vsel %vm883, %v4370, %v4374
      %v4376 = vshrl.u32 %v4210, 16
      %v4378 = vrot.slane %v4376, 4
      %v4379 = vor.u32 %v4378, %v4374
      %v4380 = vrot.slane %v4379, 4
      %v4382 = vshll.u32 %v4211, 16
      %v4384 = vrot.slane %v4382, 5
      %v4385 = vsel %vm883, %v4380, %v4384
      %v4387 = vshrl.u32 %v4212, 16
      %v4389 = vrot.slane %v4387, 4
      %v4390 = vshll.u32 %v4212, 16
      %v4392 = vrot.slane %v4390, 5
      %v4393 = vor.u32 %v4389, %v4392
      %v4394 = vrot.slane %v4393, 4
      %v4396 = vshll.u32 %v4213, 16
      %v4398 = vrot.slane %v4396, 5
      %v4399 = vsel %vm883, %v4394, %v4398
      %v4400 = vshrl.u32 %v4213, 16
      %v4402 = vrot.slane %v4400, 4
      %v4403 = vor.u32 %v4402, %v4398
      %v4404 = vrot.slane %v4403, 4
      %v4406 = vshll.u32 %v4214, 16
      %v4408 = vrot.slane %v4406, 5
      %v4409 = vsel %vm883, %v4404, %v4408
      %v4411 = vshrl.u32 %v4215, 16
      %v4413 = vrot.slane %v4411, 4
      %v4414 = vshll.u32 %v4215, 16
      %v4416 = vrot.slane %v4414, 5
      %v4417 = vor.u32 %v4413, %v4416
      %v4418 = vrot.slane %v4417, 4
      %v4420 = vshll.u32 %v4216, 16
      %v4422 = vrot.slane %v4420, 5
      %v4423 = vsel %vm883, %v4418, %v4422
      %v4424 = vshrl.u32 %v4216, 16
      %v4426 = vrot.slane %v4424, 4
      %v4427 = vor.u32 %v4426, %v4422
      %v4428 = vrot.slane %v4427, 4
      %v4430 = vshll.u32 %v4217, 16
      %v4432 = vrot.slane %v4430, 5
      %v4433 = vsel %vm883, %v4428, %v4432
      %v4435 = vshrl.u32 %v4218, 16
      %v4437 = vrot.slane %v4435, 4
      %v4438 = vshll.u32 %v4218, 16
      %v4440 = vrot.slane %v4438, 5
      %v4441 = vor.u32 %v4437, %v4440
      %v4442 = vrot.slane %v4441, 4
      %v4444 = vshll.u32 %v4219, 16
      %v4446 = vrot.slane %v4444, 5
      %v4447 = vsel %vm883, %v4442, %v4446
      %v4448 = vshrl.u32 %v4219, 16
      %v4450 = vrot.slane %v4448, 4
      %v4451 = vor.u32 %v4450, %v4446
      %v4452 = vrot.slane %v4451, 4
      %v4454 = vshll.u32 %v4220, 16
      %v4456 = vrot.slane %v4454, 5
      %v4457 = vsel %vm883, %v4452, %v4456
      %v4459 = vshrl.u32 %v4221, 16
      %v4461 = vrot.slane %v4459, 4
      %v4462 = vshll.u32 %v4221, 16
      %v4464 = vrot.slane %v4462, 5
      %v4465 = vor.u32 %v4461, %v4464
      %v4466 = vrot.slane %v4465, 4
      %v4468 = vshll.u32 %v4222, 16
      %v4470 = vrot.slane %v4468, 5
      %v4471 = vsel %vm883, %v4466, %v4470
      %v4472 = vshrl.u32 %v4222, 16
      %v4474 = vrot.slane %v4472, 4
      %v4475 = vor.u32 %v4474, %v4470
      %v4476 = vrot.slane %v4475, 4
      %v4478 = vshll.u32 %v4223, 16
      %v4480 = vrot.slane %v4478, 5
      %v4481 = vsel %vm883, %v4476, %v4480
      %v4483 = vshrl.u32 %v4224, 16
      %v4485 = vrot.slane %v4483, 4
      %v4486 = vshll.u32 %v4224, 16
      %v4488 = vrot.slane %v4486, 5
      %v4489 = vor.u32 %v4485, %v4488
      %v4490 = vrot.slane %v4489, 4
      %v4492 = vshll.u32 %v4225, 16
      %v4494 = vrot.slane %v4492, 5
      %v4495 = vsel %vm883, %v4490, %v4494
      %v4496 = vshrl.u32 %v4225, 16
      %v4498 = vrot.slane %v4496, 4
      %v4499 = vor.u32 %v4498, %v4494
      %v4500 = vrot.slane %v4499, 4
      %v4502 = vshll.u32 %v4226, 16
      %v4504 = vrot.slane %v4502, 5
      %v4505 = vsel %vm883, %v4500, %v4504
      %v4507 = vshrl.u32 %v4227, 16
      %v4509 = vrot.slane %v4507, 4
      %v4510 = vshll.u32 %v4227, 16
      %v4512 = vrot.slane %v4510, 5
      %v4513 = vor.u32 %v4509, %v4512
      %v4514 = vrot.slane %v4513, 4
      %v4516 = vshll.u32 %v4228, 16
      %v4518 = vrot.slane %v4516, 5
      %v4519 = vsel %vm883, %v4514, %v4518
      %v4520 = vshrl.u32 %v4228, 16
      %v4522 = vrot.slane %v4520, 4
      %v4523 = vor.u32 %v4522, %v4518
      %v4524 = vrot.slane %v4523, 4
      %v4526 = vshll.u32 %v4229, 16
      %v4528 = vrot.slane %v4526, 5
      %v4529 = vsel %vm883, %v4524, %v4528
      %v4531 = vshrl.u32 %v4230, 16
      %v4533 = vrot.slane %v4531, 4
      %v4534 = vshll.u32 %v4230, 16
      %v4536 = vrot.slane %v4534, 5
      %v4537 = vor.u32 %v4533, %v4536
      %v4538 = vrot.slane %v4537, 4
      %v4540 = vshll.u32 %v4231, 16
      %v4542 = vrot.slane %v4540, 5
      %v4543 = vsel %vm883, %v4538, %v4542
      %v4544 = vshrl.u32 %v4231, 16
      %v4546 = vrot.slane %v4544, 4
      %v4547 = vor.u32 %v4546, %v4542
      %v4548 = vrot.slane %v4547, 4
      %v4550 = vshll.u32 %v4232, 16
      %v4552 = vrot.slane %v4550, 5
      %v4553 = vsel %vm883, %v4548, %v4552
      %v4555 = vshrl.u32 %v4233, 16
      %v4557 = vrot.slane %v4555, 4
      %v4558 = vshll.u32 %v4233, 16
      %v4560 = vrot.slane %v4558, 5
      %v4561 = vor.u32 %v4557, %v4560
      %v4562 = vrot.slane %v4561, 4
      %v4564 = vshll.u32 %v4234, 16
      %v4566 = vrot.slane %v4564, 5
      %v4567 = vsel %vm883, %v4562, %v4566
      %v4568 = vshrl.u32 %v4234, 16
      %v4570 = vrot.slane %v4568, 4
      %v4571 = vor.u32 %v4570, %v4566
      %v4572 = vrot.slane %v4571, 4
      %v4574 = vshll.u32 %v4235, 16
      %v4576 = vrot.slane %v4574, 5
      %v4577 = vsel %vm883, %v4572, %v4576
      %v4579 = vshrl.u32 %v4236, 16
      %v4581 = vrot.slane %v4579, 4
      %v4582 = vshll.u32 %v4236, 16
      %v4584 = vrot.slane %v4582, 5
      %v4585 = vor.u32 %v4581, %v4584
      %v4586 = vrot.slane %v4585, 4
      %v4588 = vshll.u32 %v4237, 16
      %v4590 = vrot.slane %v4588, 5
      %v4591 = vsel %vm883, %v4586, %v4590
      %v4592 = vshrl.u32 %v4237, 16
      %v4594 = vrot.slane %v4592, 4
      %v4595 = vor.u32 %v4594, %v4590
      %v4596 = vrot.slane %v4595, 4
      %v4598 = vshll.u32 %v4238, 16
      %v4600 = vrot.slane %v4598, 5
      %v4601 = vsel %vm883, %v4596, %v4600
      %v4603 = vshrl.u32 %v4239, 16
      %v4605 = vrot.slane %v4603, 4
      %v4606 = vshll.u32 %v4239, 16
      %v4608 = vrot.slane %v4606, 5
      %v4609 = vor.u32 %v4605, %v4608
      %v4610 = vrot.slane %v4609, 4
      %v4612 = vshll.u32 %v4240, 16
      %v4614 = vrot.slane %v4612, 5
      %v4615 = vsel %vm883, %v4610, %v4614
      %v4616 = vshrl.u32 %v4240, 16
      %v4618 = vrot.slane %v4616, 4
      %v4619 = vor.u32 %v4618, %v4614
      %v4620 = vrot.slane %v4619, 4
      %v4622 = vshll.u32 %v4241, 16
      %v4624 = vrot.slane %v4622, 5
      %v4625 = vsel %vm883, %v4620, %v4624
      %s4626 = scalar_lea.vmem %s1, 14
      %v4627 = vld [vmem:[%s4626] sm:$0x3]
      %v4628 = vunpack.c.l.b16 %v4255
      %v4629 = vunpack.c.l.b16 %v4265
      %v4630 = vunpack.c.l.b16 %v4279
      %v4631 = vunpack.c.l.b16 %v4289
      %v4632 = vunpack.c.l.b16 %v4303
      %v4633 = vunpack.c.l.b16 %v4313
      %v4634 = vunpack.c.l.b16 %v4327
      %v4635 = vunpack.c.l.b16 %v4337
      %v4636 = vunpack.c.l.b16 %v4351
      %v4637 = vunpack.c.l.b16 %v4361
      %v4638 = vunpack.c.l.b16 %v4375
      %v4639 = vunpack.c.l.b16 %v4385
      %v4640 = vunpack.c.l.b16 %v4399
      %v4641 = vunpack.c.l.b16 %v4409
      %v4642 = vunpack.c.l.b16 %v4423
      %v4643 = vunpack.c.l.b16 %v4433
      %v4644 = vunpack.c.l.b16 %v4447
      %v4645 = vunpack.c.l.b16 %v4457
      %v4646 = vunpack.c.l.b16 %v4471
      %v4647 = vunpack.c.l.b16 %v4481
      %v4648 = vunpack.c.l.b16 %v4495
      %v4649 = vunpack.c.l.b16 %v4505
      %v4650 = vunpack.c.l.b16 %v4519
      %v4651 = vunpack.c.l.b16 %v4529
      %v4652 = vunpack.c.l.b16 %v4543
      %v4653 = vunpack.c.l.b16 %v4553
      %v4654 = vunpack.c.l.b16 %v4567
      %v4655 = vunpack.c.l.b16 %v4577
      %v4656 = vunpack.c.l.b16 %v4591
      %v4657 = vunpack.c.l.b16 %v4601
      %v4658 = vunpack.c.l.b16 %v4615
      %v4659 = vunpack.c.l.b16 %v4625
      %v4660 = vpack.c.b16 %v4629, %v4628
      %v4661 = vpack.c.b16 %v4631, %v4630
      %v4662 = vpack.c.b16 %v4633, %v4632
      %v4663 = vpack.c.b16 %v4635, %v4634
      %v4664 = vpack.c.b16 %v4637, %v4636
      %v4665 = vpack.c.b16 %v4639, %v4638
      %v4666 = vpack.c.b16 %v4641, %v4640
      %v4667 = vpack.c.b16 %v4643, %v4642
      %v4668 = vpack.c.b16 %v4645, %v4644
      %v4669 = vpack.c.b16 %v4647, %v4646
      %v4670 = vpack.c.b16 %v4649, %v4648
      %v4671 = vpack.c.b16 %v4651, %v4650
      %v4672 = vpack.c.b16 %v4653, %v4652
      %v4673 = vpack.c.b16 %v4655, %v4654
      %v4674 = vpack.c.b16 %v4657, %v4656
      %v4675 = vpack.c.b16 %v4659, %v4658
      %v4677 = vsel %vm1318, %v4660, 0
      %v4680 = vsel %vm1318, %v4661, 0
      %v4683 = vsel %vm1318, %v4662, 0
      %v4686 = vsel %vm1318, %v4663, 0
      %v4689 = vsel %vm1318, %v4664, 0
      %v4692 = vsel %vm1318, %v4665, 0
      %v4695 = vsel %vm1318, %v4666, 0
      %v4698 = vsel %vm1318, %v4667, 0
      %v4701 = vsel %vm1318, %v4668, 0
      %v4704 = vsel %vm1318, %v4669, 0
      %v4707 = vsel %vm1318, %v4670, 0
      %v4710 = vsel %vm1318, %v4671, 0
      %v4713 = vsel %vm1318, %v4672, 0
      %v4716 = vsel %vm1318, %v4673, 0
      %v4719 = vsel %vm1318, %v4674, 0
      %v4722 = vsel %vm1318, %v4675, 0
      %v4725 = vsel %vm1367, %v4627, 0
      %4727 = vmatprep.subr.bf16.mxu0 0
      %4728 = vmatpush1.bf16.msra.mxu0 0
      %4729 = vmatprep.subr.bf16.mxu0 0
      %4730 = vmatpush1.bf16.msra.mxu0 0
      %4731 = vmatprep.subr.bf16.mxu0 0
      %4732 = vmatpush1.bf16.msra.mxu0 0
      %4733 = vmatprep.subr.bf16.mxu0 0
      %4734 = vmatpush1.bf16.msra.mxu0 0
      %4735 = vmatprep.subr.bf16.mxu0 0
      %4736 = vmatpush1.bf16.msra.mxu0 0
      %4737 = vmatprep.subr.bf16.mxu0 0
      %4738 = vmatpush1.bf16.msra.mxu0 0
      %4739 = vmatprep.subr.bf16.mxu0 0
      %4740 = vmatpush1.bf16.msra.mxu0 0
      %4741 = vmatprep.subr.bf16.mxu0 0
      %4742 = vmatpush1.bf16.msra.mxu0 %v4725
      %4743 = vmatprep.subr.bf16.mxu0 0
      %4744 = vmatpush2.bf16.msra.mxu0 0
      %4745 = vmatprep.subr.bf16.mxu0 0
      %4746 = vmatpush2.bf16.msra.mxu0 0
      %4747 = vmatprep.subr.bf16.mxu0 0
      %4748 = vmatpush2.bf16.msra.mxu0 0
      %4749 = vmatprep.subr.bf16.mxu0 0
      %4750 = vmatpush2.bf16.msra.mxu0 0
      %4751 = vmatprep.subr.bf16.mxu0 0
      %4752 = vmatpush2.bf16.msra.mxu0 0
      %4753 = vmatprep.subr.bf16.mxu0 0
      %4754 = vmatpush2.bf16.msra.mxu0 0
      %4755 = vmatprep.subr.bf16.mxu0 0
      %4756 = vmatpush2.bf16.msra.mxu0 0
      %4757 = vmatprep.subr.bf16.mxu0 0
      %4758 = vmatpush2.bf16.msra.mxu0 0
      %4759 = vmatprep.mubr.bf16.mxu0 0
      %4760 = vmatmul.mubr.bf16.gmra.mxu0 %v4677
      %v4761 = vpop.f32.mrf.mxu0
      %v4762 = vadd.f32 0.0, %v4761
      %v4763 = vpop.f32.mrf.mxu0
      %v4764 = vpop.f32.mrf.mxu0
      %v4765 = vadd.f32 0.0, %v4764
      %v4766 = vpop.f32.mrf.mxu0
      %4767 = vmatprep.mubr.bf16.mxu0 0
      %4768 = vmatmul.mubr.bf16.gmra.mxu0 %v4680
      %v4769 = vpop.f32.mrf.mxu0
      %v4770 = vadd.f32 0.0, %v4769
      %v4771 = vpop.f32.mrf.mxu0
      %v4772 = vpop.f32.mrf.mxu0
      %v4773 = vadd.f32 0.0, %v4772
      %v4774 = vpop.f32.mrf.mxu0
      %4775 = vmatprep.mubr.bf16.mxu0 0
      %4776 = vmatmul.mubr.bf16.gmra.mxu0 %v4683
      %v4777 = vpop.f32.mrf.mxu0
      %v4778 = vadd.f32 0.0, %v4777
      %v4779 = vpop.f32.mrf.mxu0
      %v4780 = vpop.f32.mrf.mxu0
      %v4781 = vadd.f32 0.0, %v4780
      %v4782 = vpop.f32.mrf.mxu0
      %4783 = vmatprep.mubr.bf16.mxu0 0
      %4784 = vmatmul.mubr.bf16.gmra.mxu0 %v4686
      %v4785 = vpop.f32.mrf.mxu0
      %v4786 = vadd.f32 0.0, %v4785
      %v4787 = vpop.f32.mrf.mxu0
      %v4788 = vpop.f32.mrf.mxu0
      %v4789 = vadd.f32 0.0, %v4788
      %v4790 = vpop.f32.mrf.mxu0
      %4791 = vmatprep.mubr.bf16.mxu0 0
      %4792 = vmatmul.mubr.bf16.gmra.mxu0 %v4689
      %v4793 = vpop.f32.mrf.mxu0
      %v4794 = vadd.f32 0.0, %v4793
      %v4795 = vpop.f32.mrf.mxu0
      %v4796 = vpop.f32.mrf.mxu0
      %v4797 = vadd.f32 0.0, %v4796
      %v4798 = vpop.f32.mrf.mxu0
      %4799 = vmatprep.mubr.bf16.mxu0 0
      %4800 = vmatmul.mubr.bf16.gmra.mxu0 %v4692
      %v4801 = vpop.f32.mrf.mxu0
      %v4802 = vadd.f32 0.0, %v4801
      %v4803 = vpop.f32.mrf.mxu0
      %v4804 = vpop.f32.mrf.mxu0
      %v4805 = vadd.f32 0.0, %v4804
      %v4806 = vpop.f32.mrf.mxu0
      %4807 = vmatprep.mubr.bf16.mxu0 0
      %4808 = vmatmul.mubr.bf16.gmra.mxu0 %v4695
      %v4809 = vpop.f32.mrf.mxu0
      %v4810 = vadd.f32 0.0, %v4809
      %v4811 = vpop.f32.mrf.mxu0
      %v4812 = vpop.f32.mrf.mxu0
      %v4813 = vadd.f32 0.0, %v4812
      %v4814 = vpop.f32.mrf.mxu0
      %4815 = vmatprep.mubr.bf16.mxu0 0
      %4816 = vmatmul.mubr.bf16.gmra.mxu0 %v4698
      %v4817 = vpop.f32.mrf.mxu0
      %v4818 = vadd.f32 0.0, %v4817
      %v4819 = vpop.f32.mrf.mxu0
      %v4820 = vpop.f32.mrf.mxu0
      %v4821 = vadd.f32 0.0, %v4820
      %v4822 = vpop.f32.mrf.mxu0
      %4823 = vmatprep.mubr.bf16.mxu0 0
      %4824 = vmatmul.mubr.bf16.gmra.mxu0 %v4701
      %v4825 = vpop.f32.mrf.mxu0
      %v4826 = vadd.f32 0.0, %v4825
      %v4827 = vpop.f32.mrf.mxu0
      %v4828 = vpop.f32.mrf.mxu0
      %v4829 = vadd.f32 0.0, %v4828
      %v4830 = vpop.f32.mrf.mxu0
      %4831 = vmatprep.mubr.bf16.mxu0 0
      %4832 = vmatmul.mubr.bf16.gmra.mxu0 %v4704
      %v4833 = vpop.f32.mrf.mxu0
      %v4834 = vadd.f32 0.0, %v4833
      %v4835 = vpop.f32.mrf.mxu0
      %v4836 = vpop.f32.mrf.mxu0
      %v4837 = vadd.f32 0.0, %v4836
      %v4838 = vpop.f32.mrf.mxu0
      %4839 = vmatprep.mubr.bf16.mxu0 0
      %4840 = vmatmul.mubr.bf16.gmra.mxu0 %v4707
      %v4841 = vpop.f32.mrf.mxu0
      %v4842 = vadd.f32 0.0, %v4841
      %v4843 = vpop.f32.mrf.mxu0
      %v4844 = vpop.f32.mrf.mxu0
      %v4845 = vadd.f32 0.0, %v4844
      %v4846 = vpop.f32.mrf.mxu0
      %4847 = vmatprep.mubr.bf16.mxu0 0
      %4848 = vmatmul.mubr.bf16.gmra.mxu0 %v4710
      %v4849 = vpop.f32.mrf.mxu0
      %v4850 = vadd.f32 0.0, %v4849
      %v4851 = vpop.f32.mrf.mxu0
      %v4852 = vpop.f32.mrf.mxu0
      %v4853 = vadd.f32 0.0, %v4852
      %v4854 = vpop.f32.mrf.mxu0
      %4855 = vmatprep.mubr.bf16.mxu0 0
      %4856 = vmatmul.mubr.bf16.gmra.mxu0 %v4713
      %v4857 = vpop.f32.mrf.mxu0
      %v4858 = vadd.f32 0.0, %v4857
      %v4859 = vpop.f32.mrf.mxu0
      %v4860 = vpop.f32.mrf.mxu0
      %v4861 = vadd.f32 0.0, %v4860
      %v4862 = vpop.f32.mrf.mxu0
      %4863 = vmatprep.mubr.bf16.mxu0 0
      %4864 = vmatmul.mubr.bf16.gmra.mxu0 %v4716
      %v4865 = vpop.f32.mrf.mxu0
      %v4866 = vadd.f32 0.0, %v4865
      %v4867 = vpop.f32.mrf.mxu0
      %v4868 = vpop.f32.mrf.mxu0
      %v4869 = vadd.f32 0.0, %v4868
      %v4870 = vpop.f32.mrf.mxu0
      %4871 = vmatprep.mubr.bf16.mxu0 0
      %4872 = vmatmul.mubr.bf16.gmra.mxu0 %v4719
      %v4873 = vpop.f32.mrf.mxu0
      %v4874 = vadd.f32 0.0, %v4873
      %v4875 = vpop.f32.mrf.mxu0
      %v4876 = vpop.f32.mrf.mxu0
      %v4877 = vadd.f32 0.0, %v4876
      %v4878 = vpop.f32.mrf.mxu0
      %4879 = vmatprep.mubr.bf16.mxu0 0
      %4880 = vmatmul.mubr.bf16.gmra.mxu0 %v4722
      %v4881 = vpop.f32.mrf.mxu0
      %v4882 = vadd.f32 0.0, %v4881
      %v4883 = vpop.f32.mrf.mxu0
      %v4884 = vpop.f32.mrf.mxu0
      %v4885 = vadd.f32 0.0, %v4884
      %v4886 = vpop.f32.mrf.mxu0
      %4887 = vdwg.mxu0
      %v4888 = vadd.f32 %v4162, %v4762
      %v4889 = vadd.f32 %v4163, %v4765
      %v4890 = vadd.f32 %v4164, %v4770
      %v4891 = vadd.f32 %v4165, %v4773
      %v4892 = vadd.f32 %v4166, %v4778
      %v4893 = vadd.f32 %v4167, %v4781
      %v4894 = vadd.f32 %v4168, %v4786
      %v4895 = vadd.f32 %v4169, %v4789
      %v4896 = vadd.f32 %v4170, %v4794
      %v4897 = vadd.f32 %v4171, %v4797
      %v4898 = vadd.f32 %v4172, %v4802
      %v4899 = vadd.f32 %v4173, %v4805
      %v4900 = vadd.f32 %v4174, %v4810
      %v4901 = vadd.f32 %v4175, %v4813
      %v4902 = vadd.f32 %v4176, %v4818
      %v4903 = vadd.f32 %v4177, %v4821
      %v4904 = vadd.f32 %v4178, %v4826
      %v4905 = vadd.f32 %v4179, %v4829
      %v4906 = vadd.f32 %v4180, %v4834
      %v4907 = vadd.f32 %v4181, %v4837
      %v4908 = vadd.f32 %v4182, %v4842
      %v4909 = vadd.f32 %v4183, %v4845
      %v4910 = vadd.f32 %v4184, %v4850
      %v4911 = vadd.f32 %v4185, %v4853
      %v4912 = vadd.f32 %v4186, %v4858
      %v4913 = vadd.f32 %v4187, %v4861
      %v4914 = vadd.f32 %v4188, %v4866
      %v4915 = vadd.f32 %v4189, %v4869
      %v4916 = vadd.f32 %v4190, %v4874
      %v4917 = vadd.f32 %v4191, %v4877
      %v4918 = vadd.f32 %v4192, %v4882
      %v4919 = vadd.f32 %v4193, %v4885
      %v4920 = vld [vmem:[%s3835] sm:$0xe]
      %v4921 = vld [vmem:[%s3835 + $0xc] sm:$0xe]
      %v4922 = vld [vmem:[%s3835 + $0x18] sm:$0xe]
      %v4923 = vld [vmem:[%s3835 + $0x24] sm:$0xe]
      %v4924 = vld [vmem:[%s3835 + $0x30] sm:$0xe]
      %v4925 = vld [vmem:[%s3835 + $0x3c] sm:$0xe]
      %v4926 = vld [vmem:[%s3835 + $0x48] sm:$0xe]
      %v4927 = vld [vmem:[%s3835 + $0x54] sm:$0xe]
      %v4928 = vld [vmem:[%s3835 + $0x60] sm:$0xe]
      %v4929 = vld [vmem:[%s3835 + $0x6c] sm:$0xe]
      %v4930 = vld [vmem:[%s3835 + $0x78] sm:$0xe]
      %v4931 = vld [vmem:[%s3835 + $0x84] sm:$0xe]
      %v4932 = vld [vmem:[%s3835 + $0x90] sm:$0xe]
      %v4933 = vld [vmem:[%s3835 + $0x9c] sm:$0xe]
      %v4934 = vld [vmem:[%s3835 + $0xa8] sm:$0xe]
      %v4935 = vld [vmem:[%s3835 + $0xb4] sm:$0xe]
      %v4984 = vrot.slane %v4920, 5
      %v4985 = vrot.slane %v4984, 4
      %v4986 = vrot.slane %v4195, 5
      %v4987 = vsel %vm1874, %v4985, %v4986
      %v4988 = vrot.slane %v4986, 4
      %v4989 = vrot.slane %v4196, 5
      %v4990 = vsel %vm1874, %v4988, %v4989
      %v4991 = vrot.slane %v4921, 5
      %v4992 = vrot.slane %v4991, 4
      %v4993 = vrot.slane %v4198, 5
      %v4994 = vsel %vm1874, %v4992, %v4993
      %v4995 = vrot.slane %v4993, 4
      %v4996 = vrot.slane %v4199, 5
      %v4997 = vsel %vm1874, %v4995, %v4996
      %v4998 = vrot.slane %v4922, 5
      %v4999 = vrot.slane %v4998, 4
      %v5000 = vrot.slane %v4201, 5
      %v5001 = vsel %vm1874, %v4999, %v5000
      %v5002 = vrot.slane %v5000, 4
      %v5003 = vrot.slane %v4202, 5
      %v5004 = vsel %vm1874, %v5002, %v5003
      %v5005 = vrot.slane %v4923, 5
      %v5006 = vrot.slane %v5005, 4
      %v5007 = vrot.slane %v4204, 5
      %v5008 = vsel %vm1874, %v5006, %v5007
      %v5009 = vrot.slane %v5007, 4
      %v5010 = vrot.slane %v4205, 5
      %v5011 = vsel %vm1874, %v5009, %v5010
      %v5012 = vrot.slane %v4924, 5
      %v5013 = vrot.slane %v5012, 4
      %v5014 = vrot.slane %v4207, 5
      %v5015 = vsel %vm1874, %v5013, %v5014
      %v5016 = vrot.slane %v5014, 4
      %v5017 = vrot.slane %v4208, 5
      %v5018 = vsel %vm1874, %v5016, %v5017
      %v5019 = vrot.slane %v4925, 5
      %v5020 = vrot.slane %v5019, 4
      %v5021 = vrot.slane %v4210, 5
      %v5022 = vsel %vm1874, %v5020, %v5021
      %v5023 = vrot.slane %v5021, 4
      %v5024 = vrot.slane %v4211, 5
      %v5025 = vsel %vm1874, %v5023, %v5024
      %v5026 = vrot.slane %v4926, 5
      %v5027 = vrot.slane %v5026, 4
      %v5028 = vrot.slane %v4213, 5
      %v5029 = vsel %vm1874, %v5027, %v5028
      %v5030 = vrot.slane %v5028, 4
      %v5031 = vrot.slane %v4214, 5
      %v5032 = vsel %vm1874, %v5030, %v5031
      %v5033 = vrot.slane %v4927, 5
      %v5034 = vrot.slane %v5033, 4
      %v5035 = vrot.slane %v4216, 5
      %v5036 = vsel %vm1874, %v5034, %v5035
      %v5037 = vrot.slane %v5035, 4
      %v5038 = vrot.slane %v4217, 5
      %v5039 = vsel %vm1874, %v5037, %v5038
      %v5040 = vrot.slane %v4928, 5
      %v5041 = vrot.slane %v5040, 4
      %v5042 = vrot.slane %v4219, 5
      %v5043 = vsel %vm1874, %v5041, %v5042
      %v5044 = vrot.slane %v5042, 4
      %v5045 = vrot.slane %v4220, 5
      %v5046 = vsel %vm1874, %v5044, %v5045
      %v5047 = vrot.slane %v4929, 5
      %v5048 = vrot.slane %v5047, 4
      %v5049 = vrot.slane %v4222, 5
      %v5050 = vsel %vm1874, %v5048, %v5049
      %v5051 = vrot.slane %v5049, 4
      %v5052 = vrot.slane %v4223, 5
      %v5053 = vsel %vm1874, %v5051, %v5052
      %v5054 = vrot.slane %v4930, 5
      %v5055 = vrot.slane %v5054, 4
      %v5056 = vrot.slane %v4225, 5
      %v5057 = vsel %vm1874, %v5055, %v5056
      %v5058 = vrot.slane %v5056, 4
      %v5059 = vrot.slane %v4226, 5
      %v5060 = vsel %vm1874, %v5058, %v5059
      %v5061 = vrot.slane %v4931, 5
      %v5062 = vrot.slane %v5061, 4
      %v5063 = vrot.slane %v4228, 5
      %v5064 = vsel %vm1874, %v5062, %v5063
      %v5065 = vrot.slane %v5063, 4
      %v5066 = vrot.slane %v4229, 5
      %v5067 = vsel %vm1874, %v5065, %v5066
      %v5068 = vrot.slane %v4932, 5
      %v5069 = vrot.slane %v5068, 4
      %v5070 = vrot.slane %v4231, 5
      %v5071 = vsel %vm1874, %v5069, %v5070
      %v5072 = vrot.slane %v5070, 4
      %v5073 = vrot.slane %v4232, 5
      %v5074 = vsel %vm1874, %v5072, %v5073
      %v5075 = vrot.slane %v4933, 5
      %v5076 = vrot.slane %v5075, 4
      %v5077 = vrot.slane %v4234, 5
      %v5078 = vsel %vm1874, %v5076, %v5077
      %v5079 = vrot.slane %v5077, 4
      %v5080 = vrot.slane %v4235, 5
      %v5081 = vsel %vm1874, %v5079, %v5080
      %v5082 = vrot.slane %v4934, 5
      %v5083 = vrot.slane %v5082, 4
      %v5084 = vrot.slane %v4237, 5
      %v5085 = vsel %vm1874, %v5083, %v5084
      %v5086 = vrot.slane %v5084, 4
      %v5087 = vrot.slane %v4238, 5
      %v5088 = vsel %vm1874, %v5086, %v5087
      %v5089 = vrot.slane %v4935, 5
      %v5090 = vrot.slane %v5089, 4
      %v5091 = vrot.slane %v4240, 5
      %v5092 = vsel %vm1874, %v5090, %v5091
      %v5093 = vrot.slane %v5091, 4
      %v5094 = vrot.slane %v4241, 5
      %v5095 = vsel %vm1874, %v5093, %v5094
      %s5096 = scalar_lea.vmem %s1, 16
      %v5097 = vld [vmem:[%s5096] sm:$0x3]
      %v5098 = vunpack.c.l.b16 %v4987
      %v5099 = vunpack.c.l.b16 %v4990
      %v5100 = vunpack.c.l.b16 %v4994
      %v5101 = vunpack.c.l.b16 %v4997
      %v5102 = vunpack.c.l.b16 %v5001
      %v5103 = vunpack.c.l.b16 %v5004
      %v5104 = vunpack.c.l.b16 %v5008
      %v5105 = vunpack.c.l.b16 %v5011
      %v5106 = vunpack.c.l.b16 %v5015
      %v5107 = vunpack.c.l.b16 %v5018
      %v5108 = vunpack.c.l.b16 %v5022
      %v5109 = vunpack.c.l.b16 %v5025
      %v5110 = vunpack.c.l.b16 %v5029
      %v5111 = vunpack.c.l.b16 %v5032
      %v5112 = vunpack.c.l.b16 %v5036
      %v5113 = vunpack.c.l.b16 %v5039
      %v5114 = vunpack.c.l.b16 %v5043
      %v5115 = vunpack.c.l.b16 %v5046
      %v5116 = vunpack.c.l.b16 %v5050
      %v5117 = vunpack.c.l.b16 %v5053
      %v5118 = vunpack.c.l.b16 %v5057
      %v5119 = vunpack.c.l.b16 %v5060
      %v5120 = vunpack.c.l.b16 %v5064
      %v5121 = vunpack.c.l.b16 %v5067
      %v5122 = vunpack.c.l.b16 %v5071
      %v5123 = vunpack.c.l.b16 %v5074
      %v5124 = vunpack.c.l.b16 %v5078
      %v5125 = vunpack.c.l.b16 %v5081
      %v5126 = vunpack.c.l.b16 %v5085
      %v5127 = vunpack.c.l.b16 %v5088
      %v5128 = vunpack.c.l.b16 %v5092
      %v5129 = vunpack.c.l.b16 %v5095
      %v5130 = vpack.c.b16 %v5099, %v5098
      %v5131 = vpack.c.b16 %v5101, %v5100
      %v5132 = vpack.c.b16 %v5103, %v5102
      %v5133 = vpack.c.b16 %v5105, %v5104
      %v5134 = vpack.c.b16 %v5107, %v5106
      %v5135 = vpack.c.b16 %v5109, %v5108
      %v5136 = vpack.c.b16 %v5111, %v5110
      %v5137 = vpack.c.b16 %v5113, %v5112
      %v5138 = vpack.c.b16 %v5115, %v5114
      %v5139 = vpack.c.b16 %v5117, %v5116
      %v5140 = vpack.c.b16 %v5119, %v5118
      %v5141 = vpack.c.b16 %v5121, %v5120
      %v5142 = vpack.c.b16 %v5123, %v5122
      %v5143 = vpack.c.b16 %v5125, %v5124
      %v5144 = vpack.c.b16 %v5127, %v5126
      %v5145 = vpack.c.b16 %v5129, %v5128
      %v5147 = vsel %vm1318, %v5130, 0
      %v5150 = vsel %vm1318, %v5131, 0
      %v5153 = vsel %vm1318, %v5132, 0
      %v5156 = vsel %vm1318, %v5133, 0
      %v5159 = vsel %vm1318, %v5134, 0
      %v5162 = vsel %vm1318, %v5135, 0
      %v5165 = vsel %vm1318, %v5136, 0
      %v5168 = vsel %vm1318, %v5137, 0
      %v5171 = vsel %vm1318, %v5138, 0
      %v5174 = vsel %vm1318, %v5139, 0
      %v5177 = vsel %vm1318, %v5140, 0
      %v5180 = vsel %vm1318, %v5141, 0
      %v5183 = vsel %vm1318, %v5142, 0
      %v5186 = vsel %vm1318, %v5143, 0
      %v5189 = vsel %vm1318, %v5144, 0
      %v5192 = vsel %vm1318, %v5145, 0
      %v5195 = vsel %vm1367, %v5097, 0
      %5197 = vmatprep.subr.bf16.mxu0 0
      %5198 = vmatpush1.bf16.msra.mxu0 0
      %5199 = vmatprep.subr.bf16.mxu0 0
      %5200 = vmatpush1.bf16.msra.mxu0 0
      %5201 = vmatprep.subr.bf16.mxu0 0
      %5202 = vmatpush1.bf16.msra.mxu0 0
      %5203 = vmatprep.subr.bf16.mxu0 0
      %5204 = vmatpush1.bf16.msra.mxu0 0
      %5205 = vmatprep.subr.bf16.mxu0 0
      %5206 = vmatpush1.bf16.msra.mxu0 0
      %5207 = vmatprep.subr.bf16.mxu0 0
      %5208 = vmatpush1.bf16.msra.mxu0 0
      %5209 = vmatprep.subr.bf16.mxu0 0
      %5210 = vmatpush1.bf16.msra.mxu0 0
      %5211 = vmatprep.subr.bf16.mxu0 0
      %5212 = vmatpush1.bf16.msra.mxu0 %v5195
      %5213 = vmatprep.subr.bf16.mxu0 0
      %5214 = vmatpush2.bf16.msra.mxu0 0
      %5215 = vmatprep.subr.bf16.mxu0 0
      %5216 = vmatpush2.bf16.msra.mxu0 0
      %5217 = vmatprep.subr.bf16.mxu0 0
      %5218 = vmatpush2.bf16.msra.mxu0 0
      %5219 = vmatprep.subr.bf16.mxu0 0
      %5220 = vmatpush2.bf16.msra.mxu0 0
      %5221 = vmatprep.subr.bf16.mxu0 0
      %5222 = vmatpush2.bf16.msra.mxu0 0
      %5223 = vmatprep.subr.bf16.mxu0 0
      %5224 = vmatpush2.bf16.msra.mxu0 0
      %5225 = vmatprep.subr.bf16.mxu0 0
      %5226 = vmatpush2.bf16.msra.mxu0 0
      %5227 = vmatprep.subr.bf16.mxu0 0
      %5228 = vmatpush2.bf16.msra.mxu0 0
      %5229 = vmatprep.mubr.bf16.mxu0 0
      %5230 = vmatmul.mubr.bf16.gmra.mxu0 %v5147
      %v5231 = vpop.f32.mrf.mxu0
      %v5232 = vadd.f32 0.0, %v5231
      %v5233 = vpop.f32.mrf.mxu0
      %v5234 = vpop.f32.mrf.mxu0
      %v5235 = vadd.f32 0.0, %v5234
      %v5236 = vpop.f32.mrf.mxu0
      %5237 = vmatprep.mubr.bf16.mxu0 0
      %5238 = vmatmul.mubr.bf16.gmra.mxu0 %v5150
      %v5239 = vpop.f32.mrf.mxu0
      %v5240 = vadd.f32 0.0, %v5239
      %v5241 = vpop.f32.mrf.mxu0
      %v5242 = vpop.f32.mrf.mxu0
      %v5243 = vadd.f32 0.0, %v5242
      %v5244 = vpop.f32.mrf.mxu0
      %5245 = vmatprep.mubr.bf16.mxu0 0
      %5246 = vmatmul.mubr.bf16.gmra.mxu0 %v5153
      %v5247 = vpop.f32.mrf.mxu0
      %v5248 = vadd.f32 0.0, %v5247
      %v5249 = vpop.f32.mrf.mxu0
      %v5250 = vpop.f32.mrf.mxu0
      %v5251 = vadd.f32 0.0, %v5250
      %v5252 = vpop.f32.mrf.mxu0
      %5253 = vmatprep.mubr.bf16.mxu0 0
      %5254 = vmatmul.mubr.bf16.gmra.mxu0 %v5156
      %v5255 = vpop.f32.mrf.mxu0
      %v5256 = vadd.f32 0.0, %v5255
      %v5257 = vpop.f32.mrf.mxu0
      %v5258 = vpop.f32.mrf.mxu0
      %v5259 = vadd.f32 0.0, %v5258
      %v5260 = vpop.f32.mrf.mxu0
      %5261 = vmatprep.mubr.bf16.mxu0 0
      %5262 = vmatmul.mubr.bf16.gmra.mxu0 %v5159
      %v5263 = vpop.f32.mrf.mxu0
      %v5264 = vadd.f32 0.0, %v5263
      %v5265 = vpop.f32.mrf.mxu0
      %v5266 = vpop.f32.mrf.mxu0
      %v5267 = vadd.f32 0.0, %v5266
      %v5268 = vpop.f32.mrf.mxu0
      %5269 = vmatprep.mubr.bf16.mxu0 0
      %5270 = vmatmul.mubr.bf16.gmra.mxu0 %v5162
      %v5271 = vpop.f32.mrf.mxu0
      %v5272 = vadd.f32 0.0, %v5271
      %v5273 = vpop.f32.mrf.mxu0
      %v5274 = vpop.f32.mrf.mxu0
      %v5275 = vadd.f32 0.0, %v5274
      %v5276 = vpop.f32.mrf.mxu0
      %5277 = vmatprep.mubr.bf16.mxu0 0
      %5278 = vmatmul.mubr.bf16.gmra.mxu0 %v5165
      %v5279 = vpop.f32.mrf.mxu0
      %v5280 = vadd.f32 0.0, %v5279
      %v5281 = vpop.f32.mrf.mxu0
      %v5282 = vpop.f32.mrf.mxu0
      %v5283 = vadd.f32 0.0, %v5282
      %v5284 = vpop.f32.mrf.mxu0
      %5285 = vmatprep.mubr.bf16.mxu0 0
      %5286 = vmatmul.mubr.bf16.gmra.mxu0 %v5168
      %v5287 = vpop.f32.mrf.mxu0
      %v5288 = vadd.f32 0.0, %v5287
      %v5289 = vpop.f32.mrf.mxu0
      %v5290 = vpop.f32.mrf.mxu0
      %v5291 = vadd.f32 0.0, %v5290
      %v5292 = vpop.f32.mrf.mxu0
      %5293 = vmatprep.mubr.bf16.mxu0 0
      %5294 = vmatmul.mubr.bf16.gmra.mxu0 %v5171
      %v5295 = vpop.f32.mrf.mxu0
      %v5296 = vadd.f32 0.0, %v5295
      %v5297 = vpop.f32.mrf.mxu0
      %v5298 = vpop.f32.mrf.mxu0
      %v5299 = vadd.f32 0.0, %v5298
      %v5300 = vpop.f32.mrf.mxu0
      %5301 = vmatprep.mubr.bf16.mxu0 0
      %5302 = vmatmul.mubr.bf16.gmra.mxu0 %v5174
      %v5303 = vpop.f32.mrf.mxu0
      %v5304 = vadd.f32 0.0, %v5303
      %v5305 = vpop.f32.mrf.mxu0
      %v5306 = vpop.f32.mrf.mxu0
      %v5307 = vadd.f32 0.0, %v5306
      %v5308 = vpop.f32.mrf.mxu0
      %5309 = vmatprep.mubr.bf16.mxu0 0
      %5310 = vmatmul.mubr.bf16.gmra.mxu0 %v5177
      %v5311 = vpop.f32.mrf.mxu0
      %v5312 = vadd.f32 0.0, %v5311
      %v5313 = vpop.f32.mrf.mxu0
      %v5314 = vpop.f32.mrf.mxu0
      %v5315 = vadd.f32 0.0, %v5314
      %v5316 = vpop.f32.mrf.mxu0
      %5317 = vmatprep.mubr.bf16.mxu0 0
      %5318 = vmatmul.mubr.bf16.gmra.mxu0 %v5180
      %v5319 = vpop.f32.mrf.mxu0
      %v5320 = vadd.f32 0.0, %v5319
      %v5321 = vpop.f32.mrf.mxu0
      %v5322 = vpop.f32.mrf.mxu0
      %v5323 = vadd.f32 0.0, %v5322
      %v5324 = vpop.f32.mrf.mxu0
      %5325 = vmatprep.mubr.bf16.mxu0 0
      %5326 = vmatmul.mubr.bf16.gmra.mxu0 %v5183
      %v5327 = vpop.f32.mrf.mxu0
      %v5328 = vadd.f32 0.0, %v5327
      %v5329 = vpop.f32.mrf.mxu0
      %v5330 = vpop.f32.mrf.mxu0
      %v5331 = vadd.f32 0.0, %v5330
      %v5332 = vpop.f32.mrf.mxu0
      %5333 = vmatprep.mubr.bf16.mxu0 0
      %5334 = vmatmul.mubr.bf16.gmra.mxu0 %v5186
      %v5335 = vpop.f32.mrf.mxu0
      %v5336 = vadd.f32 0.0, %v5335
      %v5337 = vpop.f32.mrf.mxu0
      %v5338 = vpop.f32.mrf.mxu0
      %v5339 = vadd.f32 0.0, %v5338
      %v5340 = vpop.f32.mrf.mxu0
      %5341 = vmatprep.mubr.bf16.mxu0 0
      %5342 = vmatmul.mubr.bf16.gmra.mxu0 %v5189
      %v5343 = vpop.f32.mrf.mxu0
      %v5344 = vadd.f32 0.0, %v5343
      %v5345 = vpop.f32.mrf.mxu0
      %v5346 = vpop.f32.mrf.mxu0
      %v5347 = vadd.f32 0.0, %v5346
      %v5348 = vpop.f32.mrf.mxu0
      %5349 = vmatprep.mubr.bf16.mxu0 0
      %5350 = vmatmul.mubr.bf16.gmra.mxu0 %v5192
      %v5351 = vpop.f32.mrf.mxu0
      %v5352 = vadd.f32 0.0, %v5351
      %v5353 = vpop.f32.mrf.mxu0
      %v5354 = vpop.f32.mrf.mxu0
      %v5355 = vadd.f32 0.0, %v5354
      %v5356 = vpop.f32.mrf.mxu0
      %5357 = vdwg.mxu0
      %v5358 = vadd.f32 %v4888, %v5232
      %v5359 = vadd.f32 %v4889, %v5235
      %v5360 = vadd.f32 %v4890, %v5240
      %v5361 = vadd.f32 %v4891, %v5243
      %v5362 = vadd.f32 %v4892, %v5248
      %v5363 = vadd.f32 %v4893, %v5251
      %v5364 = vadd.f32 %v4894, %v5256
      %v5365 = vadd.f32 %v4895, %v5259
      %v5366 = vadd.f32 %v4896, %v5264
      %v5367 = vadd.f32 %v4897, %v5267
      %v5368 = vadd.f32 %v4898, %v5272
      %v5369 = vadd.f32 %v4899, %v5275
      %v5370 = vadd.f32 %v4900, %v5280
      %v5371 = vadd.f32 %v4901, %v5283
      %v5372 = vadd.f32 %v4902, %v5288
      %v5373 = vadd.f32 %v4903, %v5291
      %v5374 = vadd.f32 %v4904, %v5296
      %v5375 = vadd.f32 %v4905, %v5299
      %v5376 = vadd.f32 %v4906, %v5304
      %v5377 = vadd.f32 %v4907, %v5307
      %v5378 = vadd.f32 %v4908, %v5312
      %v5379 = vadd.f32 %v4909, %v5315
      %v5380 = vadd.f32 %v4910, %v5320
      %v5381 = vadd.f32 %v4911, %v5323
      %v5382 = vadd.f32 %v4912, %v5328
      %v5383 = vadd.f32 %v4913, %v5331
      %v5384 = vadd.f32 %v4914, %v5336
      %v5385 = vadd.f32 %v4915, %v5339
      %v5386 = vadd.f32 %v4916, %v5344
      %v5387 = vadd.f32 %v4917, %v5347
      %v5388 = vadd.f32 %v4918, %v5352
      %v5389 = vadd.f32 %v4919, %v5355
      %v5390 = vld [vmem:[%s2] sm:$0x1]
      %v5392 = vlaneseq
      %v5393 = vshrl.u32 %v5392, 7
      %v5394 = vsub.s32 0, %v5393
      %v5395 = vrot.slane %v5390, %v5394
      %v5397 = vadd.f32 %v5358, %v5395
      %v5398 = vadd.f32 %v5359, %v5395
      %v5399 = vadd.f32 %v5360, %v5395
      %v5400 = vadd.f32 %v5361, %v5395
      %v5401 = vadd.f32 %v5362, %v5395
      %v5402 = vadd.f32 %v5363, %v5395
      %v5403 = vadd.f32 %v5364, %v5395
      %v5404 = vadd.f32 %v5365, %v5395
      %v5405 = vadd.f32 %v5366, %v5395
      %v5406 = vadd.f32 %v5367, %v5395
      %v5407 = vadd.f32 %v5368, %v5395
      %v5408 = vadd.f32 %v5369, %v5395
      %v5409 = vadd.f32 %v5370, %v5395
      %v5410 = vadd.f32 %v5371, %v5395
      %v5411 = vadd.f32 %v5372, %v5395
      %v5412 = vadd.f32 %v5373, %v5395
      %v5413 = vadd.f32 %v5374, %v5395
      %v5414 = vadd.f32 %v5375, %v5395
      %v5415 = vadd.f32 %v5376, %v5395
      %v5416 = vadd.f32 %v5377, %v5395
      %v5417 = vadd.f32 %v5378, %v5395
      %v5418 = vadd.f32 %v5379, %v5395
      %v5419 = vadd.f32 %v5380, %v5395
      %v5420 = vadd.f32 %v5381, %v5395
      %v5421 = vadd.f32 %v5382, %v5395
      %v5422 = vadd.f32 %v5383, %v5395
      %v5423 = vadd.f32 %v5384, %v5395
      %v5424 = vadd.f32 %v5385, %v5395
      %v5425 = vadd.f32 %v5386, %v5395
      %v5426 = vadd.f32 %v5387, %v5395
      %v5427 = vadd.f32 %v5388, %v5395
      %v5428 = vadd.f32 %v5389, %v5395
      %v5429 = vmax.f32 %v5397, 0.0
      %v5430 = vmax.f32 %v5398, 0.0
      %v5431 = vmax.f32 %v5399, 0.0
      %v5432 = vmax.f32 %v5400, 0.0
      %v5433 = vmax.f32 %v5401, 0.0
      %v5434 = vmax.f32 %v5402, 0.0
      %v5435 = vmax.f32 %v5403, 0.0
      %v5436 = vmax.f32 %v5404, 0.0
      %v5437 = vmax.f32 %v5405, 0.0
      %v5438 = vmax.f32 %v5406, 0.0
      %v5439 = vmax.f32 %v5407, 0.0
      %v5440 = vmax.f32 %v5408, 0.0
      %v5441 = vmax.f32 %v5409, 0.0
      %v5442 = vmax.f32 %v5410, 0.0
      %v5443 = vmax.f32 %v5411, 0.0
      %v5444 = vmax.f32 %v5412, 0.0
      %v5445 = vmax.f32 %v5413, 0.0
      %v5446 = vmax.f32 %v5414, 0.0
      %v5447 = vmax.f32 %v5415, 0.0
      %v5448 = vmax.f32 %v5416, 0.0
      %v5449 = vmax.f32 %v5417, 0.0
      %v5450 = vmax.f32 %v5418, 0.0
      %v5451 = vmax.f32 %v5419, 0.0
      %v5452 = vmax.f32 %v5420, 0.0
      %v5453 = vmax.f32 %v5421, 0.0
      %v5454 = vmax.f32 %v5422, 0.0
      %v5455 = vmax.f32 %v5423, 0.0
      %v5456 = vmax.f32 %v5424, 0.0
      %v5457 = vmax.f32 %v5425, 0.0
      %v5458 = vmax.f32 %v5426, 0.0
      %v5459 = vmax.f32 %v5427, 0.0
      %v5460 = vmax.f32 %v5428, 0.0
      %v5461 = vld [vmem:[%s3] sm:$0x3]
      %v5462 = vld [vmem:[%s4] sm:$0x1]
      %v5464 = vlaneseq
      %v5465 = vshrl.u32 %v5464, 7
      %v5466 = vsub.s32 0, %v5465
      %v5467 = vrot.slane %v5462, %v5466
      %v5470 = vsel %vm1367, %v5461, 0
      %5472 = vmatprep.subr.bf16.mxu0 0
      %5473 = vmatpush1.bf16.msra.mxu0 0
      %5474 = vmatprep.subr.bf16.mxu0 0
      %5475 = vmatpush1.bf16.msra.mxu0 0
      %5476 = vmatprep.subr.bf16.mxu0 0
      %5477 = vmatpush1.bf16.msra.mxu0 0
      %5478 = vmatprep.subr.bf16.mxu0 0
      %5479 = vmatpush1.bf16.msra.mxu0 0
      %5480 = vmatprep.subr.bf16.mxu0 0
      %5481 = vmatpush1.bf16.msra.mxu0 0
      %5482 = vmatprep.subr.bf16.mxu0 0
      %5483 = vmatpush1.bf16.msra.mxu0 0
      %5484 = vmatprep.subr.bf16.mxu0 0
      %5485 = vmatpush1.bf16.msra.mxu0 0
      %5486 = vmatprep.subr.bf16.mxu0 0
      %5487 = vmatpush1.bf16.msra.mxu0 %v5470
      %5488 = vmatprep.subr.bf16.mxu0 0
      %5489 = vmatpush2.bf16.msra.mxu0 0
      %5490 = vmatprep.subr.bf16.mxu0 0
      %5491 = vmatpush2.bf16.msra.mxu0 0
      %5492 = vmatprep.subr.bf16.mxu0 0
      %5493 = vmatpush2.bf16.msra.mxu0 0
      %5494 = vmatprep.subr.bf16.mxu0 0
      %5495 = vmatpush2.bf16.msra.mxu0 0
      %5496 = vmatprep.subr.bf16.mxu0 0
      %5497 = vmatpush2.bf16.msra.mxu0 0
      %5498 = vmatprep.subr.bf16.mxu0 0
      %5499 = vmatpush2.bf16.msra.mxu0 0
      %5500 = vmatprep.subr.bf16.mxu0 0
      %5501 = vmatpush2.bf16.msra.mxu0 0
      %5502 = vmatprep.subr.bf16.mxu0 0
      %5503 = vmatpush2.bf16.msra.mxu0 0
      %5504 = vmatprep.mubr.bf16.mxu0 0
      %5505 = vmatmul.mubr.bf16.gmra.mxu0 %v3122
      %v5506 = vpop.f32.mrf.mxu0
      %v5507 = vadd.f32 %v5467, %v5506
      %v5508 = vpop.f32.mrf.mxu0
      %v5509 = vpop.f32.mrf.mxu0
      %v5510 = vadd.f32 %v5467, %v5509
      %v5511 = vpop.f32.mrf.mxu0
      %5512 = vmatprep.mubr.bf16.mxu0 0
      %5513 = vmatmul.mubr.bf16.gmra.mxu0 %v3125
      %v5514 = vpop.f32.mrf.mxu0
      %v5515 = vadd.f32 %v5467, %v5514
      %v5516 = vpop.f32.mrf.mxu0
      %v5517 = vpop.f32.mrf.mxu0
      %v5518 = vadd.f32 %v5467, %v5517
      %v5519 = vpop.f32.mrf.mxu0
      %5520 = vmatprep.mubr.bf16.mxu0 0
      %5521 = vmatmul.mubr.bf16.gmra.mxu0 %v3128
      %v5522 = vpop.f32.mrf.mxu0
      %v5523 = vadd.f32 %v5467, %v5522
      %v5524 = vpop.f32.mrf.mxu0
      %v5525 = vpop.f32.mrf.mxu0
      %v5526 = vadd.f32 %v5467, %v5525
      %v5527 = vpop.f32.mrf.mxu0
      %5528 = vmatprep.mubr.bf16.mxu0 0
      %5529 = vmatmul.mubr.bf16.gmra.mxu0 %v3131
      %v5530 = vpop.f32.mrf.mxu0
      %v5531 = vadd.f32 %v5467, %v5530
      %v5532 = vpop.f32.mrf.mxu0
      %v5533 = vpop.f32.mrf.mxu0
      %v5534 = vadd.f32 %v5467, %v5533
      %v5535 = vpop.f32.mrf.mxu0
      %5536 = vmatprep.mubr.bf16.mxu0 0
      %5537 = vmatmul.mubr.bf16.gmra.mxu0 %v3134
      %v5538 = vpop.f32.mrf.mxu0
      %v5539 = vadd.f32 %v5467, %v5538
      %v5540 = vpop.f32.mrf.mxu0
      %v5541 = vpop.f32.mrf.mxu0
      %v5542 = vadd.f32 %v5467, %v5541
      %v5543 = vpop.f32.mrf.mxu0
      %5544 = vmatprep.mubr.bf16.mxu0 0
      %5545 = vmatmul.mubr.bf16.gmra.mxu0 %v3137
      %v5546 = vpop.f32.mrf.mxu0
      %v5547 = vadd.f32 %v5467, %v5546
      %v5548 = vpop.f32.mrf.mxu0
      %v5549 = vpop.f32.mrf.mxu0
      %v5550 = vadd.f32 %v5467, %v5549
      %v5551 = vpop.f32.mrf.mxu0
      %5552 = vmatprep.mubr.bf16.mxu0 0
      %5553 = vmatmul.mubr.bf16.gmra.mxu0 %v3140
      %v5554 = vpop.f32.mrf.mxu0
      %v5555 = vadd.f32 %v5467, %v5554
      %v5556 = vpop.f32.mrf.mxu0
      %v5557 = vpop.f32.mrf.mxu0
      %v5558 = vadd.f32 %v5467, %v5557
      %v5559 = vpop.f32.mrf.mxu0
      %5560 = vmatprep.mubr.bf16.mxu0 0
      %5561 = vmatmul.mubr.bf16.gmra.mxu0 %v3143
      %v5562 = vpop.f32.mrf.mxu0
      %v5563 = vadd.f32 %v5467, %v5562
      %v5564 = vpop.f32.mrf.mxu0
      %v5565 = vpop.f32.mrf.mxu0
      %v5566 = vadd.f32 %v5467, %v5565
      %v5567 = vpop.f32.mrf.mxu0
      %5568 = vmatprep.mubr.bf16.mxu0 0
      %5569 = vmatmul.mubr.bf16.gmra.mxu0 %v3146
      %v5570 = vpop.f32.mrf.mxu0
      %v5571 = vadd.f32 %v5467, %v5570
      %v5572 = vpop.f32.mrf.mxu0
      %v5573 = vpop.f32.mrf.mxu0
      %v5574 = vadd.f32 %v5467, %v5573
      %v5575 = vpop.f32.mrf.mxu0
      %5576 = vmatprep.mubr.bf16.mxu0 0
      %5577 = vmatmul.mubr.bf16.gmra.mxu0 %v3149
      %v5578 = vpop.f32.mrf.mxu0
      %v5579 = vadd.f32 %v5467, %v5578
      %v5580 = vpop.f32.mrf.mxu0
      %v5581 = vpop.f32.mrf.mxu0
      %v5582 = vadd.f32 %v5467, %v5581
      %v5583 = vpop.f32.mrf.mxu0
      %5584 = vmatprep.mubr.bf16.mxu0 0
      %5585 = vmatmul.mubr.bf16.gmra.mxu0 %v3152
      %v5586 = vpop.f32.mrf.mxu0
      %v5587 = vadd.f32 %v5467, %v5586
      %v5588 = vpop.f32.mrf.mxu0
      %v5589 = vpop.f32.mrf.mxu0
      %v5590 = vadd.f32 %v5467, %v5589
      %v5591 = vpop.f32.mrf.mxu0
      %5592 = vmatprep.mubr.bf16.mxu0 0
      %5593 = vmatmul.mubr.bf16.gmra.mxu0 %v3155
      %v5594 = vpop.f32.mrf.mxu0
      %v5595 = vadd.f32 %v5467, %v5594
      %v5596 = vpop.f32.mrf.mxu0
      %v5597 = vpop.f32.mrf.mxu0
      %v5598 = vadd.f32 %v5467, %v5597
      %v5599 = vpop.f32.mrf.mxu0
      %5600 = vmatprep.mubr.bf16.mxu0 0
      %5601 = vmatmul.mubr.bf16.gmra.mxu0 %v3158
      %v5602 = vpop.f32.mrf.mxu0
      %v5603 = vadd.f32 %v5467, %v5602
      %v5604 = vpop.f32.mrf.mxu0
      %v5605 = vpop.f32.mrf.mxu0
      %v5606 = vadd.f32 %v5467, %v5605
      %v5607 = vpop.f32.mrf.mxu0
      %5608 = vmatprep.mubr.bf16.mxu0 0
      %5609 = vmatmul.mubr.bf16.gmra.mxu0 %v3161
      %v5610 = vpop.f32.mrf.mxu0
      %v5611 = vadd.f32 %v5467, %v5610
      %v5612 = vpop.f32.mrf.mxu0
      %v5613 = vpop.f32.mrf.mxu0
      %v5614 = vadd.f32 %v5467, %v5613
      %v5615 = vpop.f32.mrf.mxu0
      %5616 = vmatprep.mubr.bf16.mxu0 0
      %5617 = vmatmul.mubr.bf16.gmra.mxu0 %v3164
      %v5618 = vpop.f32.mrf.mxu0
      %v5619 = vadd.f32 %v5467, %v5618
      %v5620 = vpop.f32.mrf.mxu0
      %v5621 = vpop.f32.mrf.mxu0
      %v5622 = vadd.f32 %v5467, %v5621
      %v5623 = vpop.f32.mrf.mxu0
      %5624 = vmatprep.mubr.bf16.mxu0 0
      %5625 = vmatmul.mubr.bf16.gmra.mxu0 %v3167
      %v5626 = vpop.f32.mrf.mxu0
      %v5627 = vadd.f32 %v5467, %v5626
      %v5628 = vpop.f32.mrf.mxu0
      %v5629 = vpop.f32.mrf.mxu0
      %v5630 = vadd.f32 %v5467, %v5629
      %v5631 = vpop.f32.mrf.mxu0
      %5632 = vdwg.mxu0
      %v5633 = vpack.c.bf16 %v5430, %v5429
      %v5634 = vpack.c.bf16 %v5432, %v5431
      %v5635 = vpack.c.bf16 %v5434, %v5433
      %v5636 = vpack.c.bf16 %v5436, %v5435
      %v5637 = vpack.c.bf16 %v5438, %v5437
      %v5638 = vpack.c.bf16 %v5440, %v5439
      %v5639 = vpack.c.bf16 %v5442, %v5441
      %v5640 = vpack.c.bf16 %v5444, %v5443
      %v5641 = vpack.c.bf16 %v5446, %v5445
      %v5642 = vpack.c.bf16 %v5448, %v5447
      %v5643 = vpack.c.bf16 %v5450, %v5449
      %v5644 = vpack.c.bf16 %v5452, %v5451
      %v5645 = vpack.c.bf16 %v5454, %v5453
      %v5646 = vpack.c.bf16 %v5456, %v5455
      %v5647 = vpack.c.bf16 %v5458, %v5457
      %v5648 = vpack.c.bf16 %v5460, %v5459
      %v5665 = vunpack.c.l.b16 %v5633
      %v5666 = vunpack.c.h.b16 %v5633
      %v5667 = vunpack.c.l.b16 %v5634
      %v5668 = vunpack.c.h.b16 %v5634
      %v5669 = vunpack.c.l.b16 %v5635
      %v5670 = vunpack.c.h.b16 %v5635
      %v5671 = vunpack.c.l.b16 %v5636
      %v5672 = vunpack.c.h.b16 %v5636
      %v5673 = vunpack.c.l.b16 %v5637
      %v5674 = vunpack.c.h.b16 %v5637
      %v5675 = vunpack.c.l.b16 %v5638
      %v5676 = vunpack.c.h.b16 %v5638
      %v5677 = vunpack.c.l.b16 %v5639
      %v5678 = vunpack.c.h.b16 %v5639
      %v5679 = vunpack.c.l.b16 %v5640
      %v5680 = vunpack.c.h.b16 %v5640
      %v5681 = vunpack.c.l.b16 %v5641
      %v5682 = vunpack.c.h.b16 %v5641
      %v5683 = vunpack.c.l.b16 %v5642
      %v5684 = vunpack.c.h.b16 %v5642
      %v5685 = vunpack.c.l.b16 %v5643
      %v5686 = vunpack.c.h.b16 %v5643
      %v5687 = vunpack.c.l.b16 %v5644
      %v5688 = vunpack.c.h.b16 %v5644
      %v5689 = vunpack.c.l.b16 %v5645
      %v5690 = vunpack.c.h.b16 %v5645
      %v5691 = vunpack.c.l.b16 %v5646
      %v5692 = vunpack.c.h.b16 %v5646
      %v5693 = vunpack.c.l.b16 %v5647
      %v5694 = vunpack.c.h.b16 %v5647
      %v5695 = vunpack.c.l.b16 %v5648
      %v5696 = vunpack.c.h.b16 %v5648
      %v5697 = vpack.c.b16 %v5665, %v5665
      %v5698 = vpack.c.b16 %v5666, %v5666
      %v5699 = vpack.c.b16 %v5667, %v5667
      %v5700 = vpack.c.b16 %v5668, %v5668
      %v5701 = vpack.c.b16 %v5669, %v5669
      %v5702 = vpack.c.b16 %v5670, %v5670
      %v5703 = vpack.c.b16 %v5671, %v5671
      %v5704 = vpack.c.b16 %v5672, %v5672
      %v5705 = vpack.c.b16 %v5673, %v5673
      %v5706 = vpack.c.b16 %v5674, %v5674
      %v5707 = vpack.c.b16 %v5675, %v5675
      %v5708 = vpack.c.b16 %v5676, %v5676
      %v5709 = vpack.c.b16 %v5677, %v5677
      %v5710 = vpack.c.b16 %v5678, %v5678
      %v5711 = vpack.c.b16 %v5679, %v5679
      %v5712 = vpack.c.b16 %v5680, %v5680
      %v5713 = vpack.c.b16 %v5681, %v5681
      %v5714 = vpack.c.b16 %v5682, %v5682
      %v5715 = vpack.c.b16 %v5683, %v5683
      %v5716 = vpack.c.b16 %v5684, %v5684
      %v5717 = vpack.c.b16 %v5685, %v5685
      %v5718 = vpack.c.b16 %v5686, %v5686
      %v5719 = vpack.c.b16 %v5687, %v5687
      %v5720 = vpack.c.b16 %v5688, %v5688
      %v5721 = vpack.c.b16 %v5689, %v5689
      %v5722 = vpack.c.b16 %v5690, %v5690
      %v5723 = vpack.c.b16 %v5691, %v5691
      %v5724 = vpack.c.b16 %v5692, %v5692
      %v5725 = vpack.c.b16 %v5693, %v5693
      %v5726 = vpack.c.b16 %v5694, %v5694
      %v5727 = vpack.c.b16 %v5695, %v5695
      %v5728 = vpack.c.b16 %v5696, %v5696
      %5761 = vst [vmem:[%s292] sm:$0xf] %v5697
      %5762 = vst [vmem:[%s292 + $0x4] sm:$0xf] %v5698
      %5763 = vst [vmem:[%s292 + $0x8] sm:$0xf] %v5699
      %5764 = vst [vmem:[%s292 + $0xc] sm:$0xf] %v5700
      %5765 = vst [vmem:[%s292 + $0x10] sm:$0xf] %v5701
      %5766 = vst [vmem:[%s292 + $0x14] sm:$0xf] %v5702
      %5767 = vst [vmem:[%s292 + $0x18] sm:$0xf] %v5703
      %5768 = vst [vmem:[%s292 + $0x1c] sm:$0xf] %v5704
      %5769 = vst [vmem:[%s292 + $0x20] sm:$0xf] %v5705
      %5770 = vst [vmem:[%s292 + $0x24] sm:$0xf] %v5706
      %5771 = vst [vmem:[%s292 + $0x28] sm:$0xf] %v5707
      %5772 = vst [vmem:[%s292 + $0x2c] sm:$0xf] %v5708
      %5773 = vst [vmem:[%s292 + $0x30] sm:$0xf] %v5709
      %5774 = vst [vmem:[%s292 + $0x34] sm:$0xf] %v5710
      %5775 = vst [vmem:[%s292 + $0x38] sm:$0xf] %v5711
      %5776 = vst [vmem:[%s292 + $0x3c] sm:$0xf] %v5712
      %5777 = vst [vmem:[%s292 + $0x40] sm:$0xf] %v5713
      %5778 = vst [vmem:[%s292 + $0x44] sm:$0xf] %v5714
      %5779 = vst [vmem:[%s292 + $0x48] sm:$0xf] %v5715
      %5780 = vst [vmem:[%s292 + $0x4c] sm:$0xf] %v5716
      %5781 = vst [vmem:[%s292 + $0x50] sm:$0xf] %v5717
      %5782 = vst [vmem:[%s292 + $0x54] sm:$0xf] %v5718
      %5783 = vst [vmem:[%s292 + $0x58] sm:$0xf] %v5719
      %5784 = vst [vmem:[%s292 + $0x5c] sm:$0xf] %v5720
      %5785 = vst [vmem:[%s292 + $0x60] sm:$0xf] %v5721
      %5786 = vst [vmem:[%s292 + $0x64] sm:$0xf] %v5722
      %5787 = vst [vmem:[%s292 + $0x68] sm:$0xf] %v5723
      %5788 = vst [vmem:[%s292 + $0x6c] sm:$0xf] %v5724
      %5789 = vst [vmem:[%s292 + $0x70] sm:$0xf] %v5725
      %5790 = vst [vmem:[%s292 + $0x74] sm:$0xf] %v5726
      %5791 = vst [vmem:[%s292 + $0x78] sm:$0xf] %v5727
      %5792 = vst [vmem:[%s292 + $0x7c] sm:$0xf] %v5728
      %v5793 = vpack.c.bf16 %v5510, %v5507
      %v5794 = vpack.c.bf16 %v5518, %v5515
      %v5795 = vpack.c.bf16 %v5526, %v5523
      %v5796 = vpack.c.bf16 %v5534, %v5531
      %v5797 = vpack.c.bf16 %v5542, %v5539
      %v5798 = vpack.c.bf16 %v5550, %v5547
      %v5799 = vpack.c.bf16 %v5558, %v5555
      %v5800 = vpack.c.bf16 %v5566, %v5563
      %v5801 = vpack.c.bf16 %v5574, %v5571
      %v5802 = vpack.c.bf16 %v5582, %v5579
      %v5803 = vpack.c.bf16 %v5590, %v5587
      %v5804 = vpack.c.bf16 %v5598, %v5595
      %v5805 = vpack.c.bf16 %v5606, %v5603
      %v5806 = vpack.c.bf16 %v5614, %v5611
      %v5807 = vpack.c.bf16 %v5622, %v5619
      %v5808 = vpack.c.bf16 %v5630, %v5627
      %v5825 = vunpack.c.l.b16 %v5793
      %v5826 = vunpack.c.h.b16 %v5793
      %v5827 = vunpack.c.l.b16 %v5794
      %v5828 = vunpack.c.h.b16 %v5794
      %v5829 = vunpack.c.l.b16 %v5795
      %v5830 = vunpack.c.h.b16 %v5795
      %v5831 = vunpack.c.l.b16 %v5796
      %v5832 = vunpack.c.h.b16 %v5796
      %v5833 = vunpack.c.l.b16 %v5797
      %v5834 = vunpack.c.h.b16 %v5797
      %v5835 = vunpack.c.l.b16 %v5798
      %v5836 = vunpack.c.h.b16 %v5798
      %v5837 = vunpack.c.l.b16 %v5799
      %v5838 = vunpack.c.h.b16 %v5799
      %v5839 = vunpack.c.l.b16 %v5800
      %v5840 = vunpack.c.h.b16 %v5800
      %v5841 = vunpack.c.l.b16 %v5801
      %v5842 = vunpack.c.h.b16 %v5801
      %v5843 = vunpack.c.l.b16 %v5802
      %v5844 = vunpack.c.h.b16 %v5802
      %v5845 = vunpack.c.l.b16 %v5803
      %v5846 = vunpack.c.h.b16 %v5803
      %v5847 = vunpack.c.l.b16 %v5804
      %v5848 = vunpack.c.h.b16 %v5804
      %v5849 = vunpack.c.l.b16 %v5805
      %v5850 = vunpack.c.h.b16 %v5805
      %v5851 = vunpack.c.l.b16 %v5806
      %v5852 = vunpack.c.h.b16 %v5806
      %v5853 = vunpack.c.l.b16 %v5807
      %v5854 = vunpack.c.h.b16 %v5807
      %v5855 = vunpack.c.l.b16 %v5808
      %v5856 = vunpack.c.h.b16 %v5808
      %v5857 = vpack.c.b16 %v5825, %v5825
      %v5858 = vpack.c.b16 %v5826, %v5826
      %v5859 = vpack.c.b16 %v5827, %v5827
      %v5860 = vpack.c.b16 %v5828, %v5828
      %v5861 = vpack.c.b16 %v5829, %v5829
      %v5862 = vpack.c.b16 %v5830, %v5830
      %v5863 = vpack.c.b16 %v5831, %v5831
      %v5864 = vpack.c.b16 %v5832, %v5832
      %v5865 = vpack.c.b16 %v5833, %v5833
      %v5866 = vpack.c.b16 %v5834, %v5834
      %v5867 = vpack.c.b16 %v5835, %v5835
      %v5868 = vpack.c.b16 %v5836, %v5836
      %v5869 = vpack.c.b16 %v5837, %v5837
      %v5870 = vpack.c.b16 %v5838, %v5838
      %v5871 = vpack.c.b16 %v5839, %v5839
      %v5872 = vpack.c.b16 %v5840, %v5840
      %v5873 = vpack.c.b16 %v5841, %v5841
      %v5874 = vpack.c.b16 %v5842, %v5842
      %v5875 = vpack.c.b16 %v5843, %v5843
      %v5876 = vpack.c.b16 %v5844, %v5844
      %v5877 = vpack.c.b16 %v5845, %v5845
      %v5878 = vpack.c.b16 %v5846, %v5846
      %v5879 = vpack.c.b16 %v5847, %v5847
      %v5880 = vpack.c.b16 %v5848, %v5848
      %v5881 = vpack.c.b16 %v5849, %v5849
      %v5882 = vpack.c.b16 %v5850, %v5850
      %v5883 = vpack.c.b16 %v5851, %v5851
      %v5884 = vpack.c.b16 %v5852, %v5852
      %v5885 = vpack.c.b16 %v5853, %v5853
      %v5886 = vpack.c.b16 %v5854, %v5854
      %v5887 = vpack.c.b16 %v5855, %v5855
      %v5888 = vpack.c.b16 %v5856, %v5856
      %5921 = vst [vmem:[%s297] sm:$0xf] %v5857
      %5922 = vst [vmem:[%s297 + $0x4] sm:$0xf] %v5858
      %5923 = vst [vmem:[%s297 + $0x8] sm:$0xf] %v5859
      %5924 = vst [vmem:[%s297 + $0xc] sm:$0xf] %v5860
      %5925 = vst [vmem:[%s297 + $0x10] sm:$0xf] %v5861
      %5926 = vst [vmem:[%s297 + $0x14] sm:$0xf] %v5862
      %5927 = vst [vmem:[%s297 + $0x18] sm:$0xf] %v5863
      %5928 = vst [vmem:[%s297 + $0x1c] sm:$0xf] %v5864
      %5929 = vst [vmem:[%s297 + $0x20] sm:$0xf] %v5865
      %5930 = vst [vmem:[%s297 + $0x24] sm:$0xf] %v5866
      %5931 = vst [vmem:[%s297 + $0x28] sm:$0xf] %v5867
      %5932 = vst [vmem:[%s297 + $0x2c] sm:$0xf] %v5868
      %5933 = vst [vmem:[%s297 + $0x30] sm:$0xf] %v5869
      %5934 = vst [vmem:[%s297 + $0x34] sm:$0xf] %v5870
      %5935 = vst [vmem:[%s297 + $0x38] sm:$0xf] %v5871
      %5936 = vst [vmem:[%s297 + $0x3c] sm:$0xf] %v5872
      %5937 = vst [vmem:[%s297 + $0x40] sm:$0xf] %v5873
      %5938 = vst [vmem:[%s297 + $0x44] sm:$0xf] %v5874
      %5939 = vst [vmem:[%s297 + $0x48] sm:$0xf] %v5875
      %5940 = vst [vmem:[%s297 + $0x4c] sm:$0xf] %v5876
      %5941 = vst [vmem:[%s297 + $0x50] sm:$0xf] %v5877
      %5942 = vst [vmem:[%s297 + $0x54] sm:$0xf] %v5878
      %5943 = vst [vmem:[%s297 + $0x58] sm:$0xf] %v5879
      %5944 = vst [vmem:[%s297 + $0x5c] sm:$0xf] %v5880
      %5945 = vst [vmem:[%s297 + $0x60] sm:$0xf] %v5881
      %5946 = vst [vmem:[%s297 + $0x64] sm:$0xf] %v5882
      %5947 = vst [vmem:[%s297 + $0x68] sm:$0xf] %v5883
      %5948 = vst [vmem:[%s297 + $0x6c] sm:$0xf] %v5884
      %5949 = vst [vmem:[%s297 + $0x70] sm:$0xf] %v5885
      %5950 = vst [vmem:[%s297 + $0x74] sm:$0xf] %v5886
      %5951 = vst [vmem:[%s297 + $0x78] sm:$0xf] %v5887
      %5952 = vst [vmem:[%s297 + $0x7c] sm:$0xf] %v5888
      %v5953 = vadd.f32 %v5429, %v5430
      %v5954 = vadd.f32 %v5953, %v5431
      %v5955 = vadd.f32 %v5954, %v5432
      %v5956 = vadd.f32 %v5955, %v5433
      %v5957 = vadd.f32 %v5956, %v5434
      %v5958 = vadd.f32 %v5957, %v5435
      %v5959 = vadd.f32 %v5958, %v5436
      %v5960 = vadd.f32 %v5959, %v5437
      %v5961 = vadd.f32 %v5960, %v5438
      %v5962 = vadd.f32 %v5961, %v5439
      %v5963 = vadd.f32 %v5962, %v5440
      %v5964 = vadd.f32 %v5963, %v5441
      %v5965 = vadd.f32 %v5964, %v5442
      %v5966 = vadd.f32 %v5965, %v5443
      %v5967 = vadd.f32 %v5966, %v5444
      %v5968 = vadd.f32 %v5967, %v5445
      %v5969 = vadd.f32 %v5968, %v5446
      %v5970 = vadd.f32 %v5969, %v5447
      %v5971 = vadd.f32 %v5970, %v5448
      %v5972 = vadd.f32 %v5971, %v5449
      %v5973 = vadd.f32 %v5972, %v5450
      %v5974 = vadd.f32 %v5973, %v5451
      %v5975 = vadd.f32 %v5974, %v5452
      %v5976 = vadd.f32 %v5975, %v5453
      %v5977 = vadd.f32 %v5976, %v5454
      %v5978 = vadd.f32 %v5977, %v5455
      %v5979 = vadd.f32 %v5978, %v5456
      %v5980 = vadd.f32 %v5979, %v5457
      %v5981 = vadd.f32 %v5980, %v5458
      %v5982 = vadd.f32 %v5981, %v5459
      %v5983 = vadd.f32 %v5982, %v5460
      %v5984 = vrot.slane %v5983, 4
      %v5985 = vadd.f32 %v5983, %v5984
      %v5986 = vrot.slane %v5985, 2
      %v5987 = vadd.f32 %v5985, %v5986
      %v5988 = vrot.slane %v5987, 1
      %v5989 = vadd.f32 %v5987, %v5988
      %5990 = vst [vmem:[%s301] sm:$0x1] %v5989
      %v5991 = vmul.f32 %v5429, %v5429
      %v5992 = vmul.f32 %v5430, %v5430
      %v5993 = vmul.f32 %v5431, %v5431
      %v5994 = vmul.f32 %v5432, %v5432
      %v5995 = vmul.f32 %v5433, %v5433
      %v5996 = vmul.f32 %v5434, %v5434
      %v5997 = vmul.f32 %v5435, %v5435
      %v5998 = vmul.f32 %v5436, %v5436
      %v5999 = vmul.f32 %v5437, %v5437
      %v6000 = vmul.f32 %v5438, %v5438
      %v6001 = vmul.f32 %v5439, %v5439
      %v6002 = vmul.f32 %v5440, %v5440
      %v6003 = vmul.f32 %v5441, %v5441
      %v6004 = vmul.f32 %v5442, %v5442
      %v6005 = vmul.f32 %v5443, %v5443
      %v6006 = vmul.f32 %v5444, %v5444
      %v6007 = vmul.f32 %v5445, %v5445
      %v6008 = vmul.f32 %v5446, %v5446
      %v6009 = vmul.f32 %v5447, %v5447
      %v6010 = vmul.f32 %v5448, %v5448
      %v6011 = vmul.f32 %v5449, %v5449
      %v6012 = vmul.f32 %v5450, %v5450
      %v6013 = vmul.f32 %v5451, %v5451
      %v6014 = vmul.f32 %v5452, %v5452
      %v6015 = vmul.f32 %v5453, %v5453
      %v6016 = vmul.f32 %v5454, %v5454
      %v6017 = vmul.f32 %v5455, %v5455
      %v6018 = vmul.f32 %v5456, %v5456
      %v6019 = vmul.f32 %v5457, %v5457
      %v6020 = vmul.f32 %v5458, %v5458
      %v6021 = vmul.f32 %v5459, %v5459
      %v6022 = vmul.f32 %v5460, %v5460
      %v6023 = vadd.f32 %v5991, %v5992
      %v6024 = vadd.f32 %v6023, %v5993
      %v6025 = vadd.f32 %v6024, %v5994
      %v6026 = vadd.f32 %v6025, %v5995
      %v6027 = vadd.f32 %v6026, %v5996
      %v6028 = vadd.f32 %v6027, %v5997
      %v6029 = vadd.f32 %v6028, %v5998
      %v6030 = vadd.f32 %v6029, %v5999
      %v6031 = vadd.f32 %v6030, %v6000
      %v6032 = vadd.f32 %v6031, %v6001
      %v6033 = vadd.f32 %v6032, %v6002
      %v6034 = vadd.f32 %v6033, %v6003
      %v6035 = vadd.f32 %v6034, %v6004
      %v6036 = vadd.f32 %v6035, %v6005
      %v6037 = vadd.f32 %v6036, %v6006
      %v6038 = vadd.f32 %v6037, %v6007
      %v6039 = vadd.f32 %v6038, %v6008
      %v6040 = vadd.f32 %v6039, %v6009
      %v6041 = vadd.f32 %v6040, %v6010
      %v6042 = vadd.f32 %v6041, %v6011
      %v6043 = vadd.f32 %v6042, %v6012
      %v6044 = vadd.f32 %v6043, %v6013
      %v6045 = vadd.f32 %v6044, %v6014
      %v6046 = vadd.f32 %v6045, %v6015
      %v6047 = vadd.f32 %v6046, %v6016
      %v6048 = vadd.f32 %v6047, %v6017
      %v6049 = vadd.f32 %v6048, %v6018
      %v6050 = vadd.f32 %v6049, %v6019
      %v6051 = vadd.f32 %v6050, %v6020
      %v6052 = vadd.f32 %v6051, %v6021
      %v6053 = vadd.f32 %v6052, %v6022
      %v6054 = vrot.slane %v6053, 4
      %v6055 = vadd.f32 %v6053, %v6054
      %v6056 = vrot.slane %v6055, 2
      %v6057 = vadd.f32 %v6055, %v6056
      %v6058 = vrot.slane %v6057, 1
      %v6059 = vadd.f32 %v6057, %v6058
      %6060 = vst [vmem:[%s301 + $0x1] sm:$0x1] %v6059
      %v6061 = vadd.f32 %v5507, %v5510
      %v6062 = vadd.f32 %v6061, %v5515
      %v6063 = vadd.f32 %v6062, %v5518
      %v6064 = vadd.f32 %v6063, %v5523
      %v6065 = vadd.f32 %v6064, %v5526
      %v6066 = vadd.f32 %v6065, %v5531
      %v6067 = vadd.f32 %v6066, %v5534
      %v6068 = vadd.f32 %v6067, %v5539
      %v6069 = vadd.f32 %v6068, %v5542
      %v6070 = vadd.f32 %v6069, %v5547
      %v6071 = vadd.f32 %v6070, %v5550
      %v6072 = vadd.f32 %v6071, %v5555
      %v6073 = vadd.f32 %v6072, %v5558
      %v6074 = vadd.f32 %v6073, %v5563
      %v6075 = vadd.f32 %v6074, %v5566
      %v6076 = vadd.f32 %v6075, %v5571
      %v6077 = vadd.f32 %v6076, %v5574
      %v6078 = vadd.f32 %v6077, %v5579
      %v6079 = vadd.f32 %v6078, %v5582
      %v6080 = vadd.f32 %v6079, %v5587
      %v6081 = vadd.f32 %v6080, %v5590
      %v6082 = vadd.f32 %v6081, %v5595
      %v6083 = vadd.f32 %v6082, %v5598
      %v6084 = vadd.f32 %v6083, %v5603
      %v6085 = vadd.f32 %v6084, %v5606
      %v6086 = vadd.f32 %v6085, %v5611
      %v6087 = vadd.f32 %v6086, %v5614
      %v6088 = vadd.f32 %v6087, %v5619
      %v6089 = vadd.f32 %v6088, %v5622
      %v6090 = vadd.f32 %v6089, %v5627
      %v6091 = vadd.f32 %v6090, %v5630
      %v6092 = vrot.slane %v6091, 4
      %v6093 = vadd.f32 %v6091, %v6092
      %v6094 = vrot.slane %v6093, 2
      %v6095 = vadd.f32 %v6093, %v6094
      %v6096 = vrot.slane %v6095, 1
      %v6097 = vadd.f32 %v6095, %v6096
      %6098 = vst [vmem:[%s301 + $0x2] sm:$0x1] %v6097
      %v6099 = vmul.f32 %v5507, %v5507
      %v6100 = vmul.f32 %v5510, %v5510
      %v6101 = vmul.f32 %v5515, %v5515
      %v6102 = vmul.f32 %v5518, %v5518
      %v6103 = vmul.f32 %v5523, %v5523
      %v6104 = vmul.f32 %v5526, %v5526
      %v6105 = vmul.f32 %v5531, %v5531
      %v6106 = vmul.f32 %v5534, %v5534
      %v6107 = vmul.f32 %v5539, %v5539
      %v6108 = vmul.f32 %v5542, %v5542
      %v6109 = vmul.f32 %v5547, %v5547
      %v6110 = vmul.f32 %v5550, %v5550
      %v6111 = vmul.f32 %v5555, %v5555
      %v6112 = vmul.f32 %v5558, %v5558
      %v6113 = vmul.f32 %v5563, %v5563
      %v6114 = vmul.f32 %v5566, %v5566
      %v6115 = vmul.f32 %v5571, %v5571
      %v6116 = vmul.f32 %v5574, %v5574
      %v6117 = vmul.f32 %v5579, %v5579
      %v6118 = vmul.f32 %v5582, %v5582
      %v6119 = vmul.f32 %v5587, %v5587
      %v6120 = vmul.f32 %v5590, %v5590
      %v6121 = vmul.f32 %v5595, %v5595
      %v6122 = vmul.f32 %v5598, %v5598
      %v6123 = vmul.f32 %v5603, %v5603
      %v6124 = vmul.f32 %v5606, %v5606
      %v6125 = vmul.f32 %v5611, %v5611
      %v6126 = vmul.f32 %v5614, %v5614
      %v6127 = vmul.f32 %v5619, %v5619
      %v6128 = vmul.f32 %v5622, %v5622
      %v6129 = vmul.f32 %v5627, %v5627
      %v6130 = vmul.f32 %v5630, %v5630
      %v6131 = vadd.f32 %v6099, %v6100
      %v6132 = vadd.f32 %v6131, %v6101
      %v6133 = vadd.f32 %v6132, %v6102
      %v6134 = vadd.f32 %v6133, %v6103
      %v6135 = vadd.f32 %v6134, %v6104
      %v6136 = vadd.f32 %v6135, %v6105
      %v6137 = vadd.f32 %v6136, %v6106
      %v6138 = vadd.f32 %v6137, %v6107
      %v6139 = vadd.f32 %v6138, %v6108
      %v6140 = vadd.f32 %v6139, %v6109
      %v6141 = vadd.f32 %v6140, %v6110
      %v6142 = vadd.f32 %v6141, %v6111
      %v6143 = vadd.f32 %v6142, %v6112
      %v6144 = vadd.f32 %v6143, %v6113
      %v6145 = vadd.f32 %v6144, %v6114
      %v6146 = vadd.f32 %v6145, %v6115
      %v6147 = vadd.f32 %v6146, %v6116
      %v6148 = vadd.f32 %v6147, %v6117
      %v6149 = vadd.f32 %v6148, %v6118
      %v6150 = vadd.f32 %v6149, %v6119
      %v6151 = vadd.f32 %v6150, %v6120
      %v6152 = vadd.f32 %v6151, %v6121
      %v6153 = vadd.f32 %v6152, %v6122
      %v6154 = vadd.f32 %v6153, %v6123
      %v6155 = vadd.f32 %v6154, %v6124
      %v6156 = vadd.f32 %v6155, %v6125
      %v6157 = vadd.f32 %v6156, %v6126
      %v6158 = vadd.f32 %v6157, %v6127
      %v6159 = vadd.f32 %v6158, %v6128
      %v6160 = vadd.f32 %v6159, %v6129
      %v6161 = vadd.f32 %v6160, %v6130
      %v6162 = vrot.slane %v6161, 4
      %v6163 = vadd.f32 %v6161, %v6162
      %v6164 = vrot.slane %v6163, 2
      %v6165 = vadd.f32 %v6163, %v6164
      %v6166 = vrot.slane %v6165, 1
      %v6167 = vadd.f32 %v6165, %v6166
      %6168 = vst [vmem:[%s301 + $0x3] sm:$0x1] %v6167
      %p6169 = scmp.lt.s32.totalorder %s19, 1
      %s6170 = scalar_select %p6169, %s19, 1
      %s6171 = smul.addr %s6170, 32
      %s6172 = smul.addr %s6171, 4
      %s6173 = scalar_lea.vmem %s5, %s6172
      %p6174 = scmp.lt.s32.totalorder %s19, 1
      %s6175 = scalar_select %p6174, %s19, 1
      %s6176 = smul.addr %s6175, 32
      %s6177 = smul.addr %s6176, 4
      %s6178 = scalar_lea.vmem %s6, %s6177
      %p6179 = scmp.lt.s32.totalorder %s19, 1
      %s6180 = scalar_select %p6179, %s19, 1
      %s6181 = smul.addr %s6180, 4
      %s6182 = scalar_lea.vmem %s7, %s6181
      // Predicated region
      $region41: #{conv_res_forward.3} parent=39 // pred_check
        %p6183 = pneg %p147
      $region42: #{conv_res_forward.3} parent=39 // pred_check_branch
        %6185 = sbr.rel (%p6183) target = $region44
      $region43: #{conv_res_forward.3} parent=39 // pred_region
        _
      $region44: #{conv_res_forward.3} parent=39 // pred_fallthru
        _
      // Predicated region
      $region45: #{conv_res_forward.3} parent=39 // pred_check
        %p6186 = pneg %p173
      $region46: #{conv_res_forward.3} parent=39 // pred_check_branch
        %6188 = sbr.rel (%p6186) target = $region48
      $region47: #{conv_res_forward.3} parent=39 // pred_region
        _
      $region48: #{conv_res_forward.3} parent=39 // pred_fallthru
        _
      // Predicated region
      $region49: #{conv_res_forward.3} parent=39 // pred_check
        %p6189 = pneg %p199
      $region50: #{conv_res_forward.3} parent=39 // pred_check_branch
        %6191 = sbr.rel (%p6189) target = $region52
      $region51: #{conv_res_forward.3} parent=39 // pred_region
        _
      $region52: #{conv_res_forward.3} parent=39 // pred_fallthru
        _
    $region40: #{conv_res_forward.3} parent=5 // pred_fallthru
      _
    %p6192 = scmp.le.s32.totalorder 2, %s14
    // Predicated region
    $region53: #{conv_res_forward.3} parent=5 // pred_check
      %p6193 = pneg %p6192
    $region54: #{conv_res_forward.3} parent=5 // pred_check_branch
      %6195 = sbr.rel (%p6193) target = $region56
    $region55: #{conv_res_forward.3} parent=5 // pred_region
      %s6196 = ssub.s32 %s14, 2
      // Predicated region
      $region57: #{conv_res_forward.3} parent=55 // pred_check
        %p6197 = pneg %p153
      $region58: #{conv_res_forward.3} parent=55 // pred_check_branch
        %6199 = sbr.rel (%p6197) target = $region60
      $region59: #{conv_res_forward.3} parent=55 // pred_region
        %p6200 = scmp.lt.s32.totalorder %s20, 1
        %s6201 = scalar_select %p6200, %s20, 1
        %s6202 = smul.addr %s6201, 32
        %s6203 = smul.addr %s6202, 4
        %s6204 = scalar_lea.vmem %s5, %s6203
      $region60: #{conv_res_forward.3} parent=55 // pred_fallthru
        _
      // Predicated region
      $region61: #{conv_res_forward.3} parent=55 // pred_check
        %p6205 = pneg %p179
      $region62: #{conv_res_forward.3} parent=55 // pred_check_branch
        %6207 = sbr.rel (%p6205) target = $region64
      $region63: #{conv_res_forward.3} parent=55 // pred_region
        %p6208 = scmp.lt.s32.totalorder %s20, 1
        %s6209 = scalar_select %p6208, %s20, 1
        %s6210 = smul.addr %s6209, 32
        %s6211 = smul.addr %s6210, 4
        %s6212 = scalar_lea.vmem %s6, %s6211
      $region64: #{conv_res_forward.3} parent=55 // pred_fallthru
        _
      // Predicated region
      $region65: #{conv_res_forward.3} parent=55 // pred_check
        %p6213 = pneg %p205
      $region66: #{conv_res_forward.3} parent=55 // pred_check_branch
        %6215 = sbr.rel (%p6213) target = $region68
      $region67: #{conv_res_forward.3} parent=55 // pred_region
        %p6216 = scmp.lt.s32.totalorder %s20, 1
        %s6217 = scalar_select %p6216, %s20, 1
        %s6218 = smul.addr %s6217, 4
        %s6219 = scalar_lea.vmem %s7, %s6218
      $region68: #{conv_res_forward.3} parent=55 // pred_fallthru
        _
    $region56: #{conv_res_forward.3} parent=5 // pred_fallthru
      _
  $region6: #{conv_res_forward.3} parent=0 // loop_footer
    %s18 = sadd.s32 1, %s14
  $region7: #{conv_res_forward.3} parent=0 // loop_footer_branch
    %13 = sbr.rel target = $region3
  $region8: #{conv_res_forward.3} parent=0 // loop_exit
    _

// kernel: conv_res_forward.4
$region0: #{conv_res_forward.4}
  #allocation0 [shape = 'u32[]', space=smem, size = 0x4, offset = 0x4, fixed_abs, tag = 'smem constant byte address 0x4 - core index']
  #allocation1 [shape = 'u32[144,128]{1,0:T(1,128)}', space=vmem, size = 0x12000, scoped, tag = 'internal scratch']
  #allocation2 [shape = 'bf16[18,18,128]{2,1,0:T(8,128)(2,1)}', space=vmem, size = 0x1b000, scoped, tag = 'scratch operand']
  %s0 = inlined_call_operand.vmem [shape: bf16[2,256,128], index: 0, kind: input, shape index: {}]
  %s1 = inlined_call_operand.vmem [shape: bf16[9,128,128], index: 1, kind: input, shape index: {}]
  %s2 = inlined_call_operand.vmem [shape: f32[1,128], index: 2, kind: input, shape index: {}]
  %s3 = inlined_call_operand.vmem [shape: f32[1,128], index: 3, kind: input, shape index: {}]
  %s4 = inlined_call_operand.vmem [shape: f32[1,128], index: 4, kind: input, shape index: {}]
  %s5 = inlined_call_operand.vmem [shape: bf16[2,256,128], index: 5, kind: output, shape index: {0}]
  %s6 = inlined_call_operand.vmem [shape: f32[2,2,128], index: 6, kind: output, shape index: {1}]
  %7 = xla_tuple %s5, %s6
  %s8 = sld [smem:[#allocation0]]
  $region61: #{conv_res_forward.4} parent=0
    _
  %s10 = ssub.s32 1, %s8
  %s11 = scalar_select 0, %s10, %s8
  loop: start=0, step=1, limit=4
  $region2: #{conv_res_forward.4} parent=0 // loop_pre_header
    _
  $region3: #{conv_res_forward.4} parent=0 // loop_header
    %s13 = sphi 0, %s17
    %p14 = scmp.ge.s32.totalorder %s13, 4
    %s23 = sphi 0, %s25
    %s26 = sphi 0, %s23
    %s27 = sphi 0, %s26
    %s43 = sphi 0, %s27
    %s47 = sphi 0, %s47
    %s49 = sphi 0, %s47
    %s50 = sphi 0, %s49
    %s64 = sphi 0, %s50
    %s68 = sphi 0, %s68
    %s70 = sphi 0, %s68
    %s71 = sphi 0, %s70
    %s85 = sphi 0, %s71
    %s89 = sphi 0, %s89
    %s91 = sphi 0, %s89
    %s92 = sphi 0, %s91
    %s106 = sphi 0, %s92
    %s110 = sphi 0, %s110
    %s112 = sphi 0, %s110
    %s113 = sphi 0, %s112
    %s127 = sphi 0, %s113
    %s133 = sphi 0, %s135
    %s136 = sphi 0, %s133
    %s137 = sphi 0, %s136
    %s153 = sphi 0, %s137
    %s159 = sphi 0, %s161
    %s162 = sphi 0, %s159
    %s163 = sphi 0, %s162
    %s179 = sphi 0, %s163
  $region4: #{conv_res_forward.4} parent=0 // loop_header_branch
    %16 = sbr.rel (%p14) target = $region8
  $region5: #{conv_res_forward.4} parent=0 // loop_body
    %s18 = ssub.s32 %s13, 1
    %s19 = ssub.s32 %s13, 2
    %s20 = sadd.s32 %s13, 1
    %s21 = ssub.s32 %s13, %s20
    %p22 = scmp.eq.s32.totalorder %s21, 0
    %s24 = sadd.s32 %s23, 1
    %s25 = scalar_select %p22, %s23, %s24
    %p28 = pneg %p22
    %p29 = scmp.eq.s32.totalorder %s13, 1
    %p30 = por %p28, %p29
    %p31 = scmp.ne.s32.totalorder %s23, %s26
    %p32 = scmp.eq.s32.totalorder %s13, 0
    %p33 = por %p31, %p32
    %p34 = scmp.ne.s32.totalorder %s23, %s26
    %p35 = scmp.eq.s32.totalorder %s18, 1
    %p36 = por %p34, %p35
    %p37 = scmp.ne.s32.totalorder %s26, %s27
    %p38 = scmp.eq.s32.totalorder %s18, 0
    %p39 = por %p37, %p38
    %p40 = scmp.ne.s32.totalorder %s26, %s27
    %p41 = scmp.eq.s32.totalorder %s19, 1
    %p42 = por %p40, %p41
    %p44 = scmp.ne.s32.totalorder %s27, %s43
    %p45 = scmp.eq.s32.totalorder %s19, 0
    %p46 = por %p44, %p45
    %s48 = sadd.s32 %s47, 1
    %p51 = scmp.eq.s32.totalorder %s13, 1
    %p52 = scmp.ne.s32.totalorder %s47, %s49
    %p53 = scmp.eq.s32.totalorder %s13, 0
    %p54 = por %p52, %p53
    %p55 = scmp.ne.s32.totalorder %s47, %s49
    %p56 = scmp.eq.s32.totalorder %s18, 1
    %p57 = por %p55, %p56
    %p58 = scmp.ne.s32.totalorder %s49, %s50
    %p59 = scmp.eq.s32.totalorder %s18, 0
    %p60 = por %p58, %p59
    %p61 = scmp.ne.s32.totalorder %s49, %s50
    %p62 = scmp.eq.s32.totalorder %s19, 1
    %p63 = por %p61, %p62
    %p65 = scmp.ne.s32.totalorder %s50, %s64
    %p66 = scmp.eq.s32.totalorder %s19, 0
    %p67 = por %p65, %p66
    %s69 = sadd.s32 %s68, 1
    %p72 = scmp.eq.s32.totalorder %s13, 1
    %p73 = scmp.ne.s32.totalorder %s68, %s70
    %p74 = scmp.eq.s32.totalorder %s13, 0
    %p75 = por %p73, %p74
    %p76 = scmp.ne.s32.totalorder %s68, %s70
    %p77 = scmp.eq.s32.totalorder %s18, 1
    %p78 = por %p76, %p77
    %p79 = scmp.ne.s32.totalorder %s70, %s71
    %p80 = scmp.eq.s32.totalorder %s18, 0
    %p81 = por %p79, %p80
    %p82 = scmp.ne.s32.totalorder %s70, %s71
    %p83 = scmp.eq.s32.totalorder %s19, 1
    %p84 = por %p82, %p83
    %p86 = scmp.ne.s32.totalorder %s71, %s85
    %p87 = scmp.eq.s32.totalorder %s19, 0
    %p88 = por %p86, %p87
    %s90 = sadd.s32 %s89, 1
    %p93 = scmp.eq.s32.totalorder %s13, 1
    %p94 = scmp.ne.s32.totalorder %s89, %s91
    %p95 = scmp.eq.s32.totalorder %s13, 0
    %p96 = por %p94, %p95
    %p97 = scmp.ne.s32.totalorder %s89, %s91
    %p98 = scmp.eq.s32.totalorder %s18, 1
    %p99 = por %p97, %p98
    %p100 = scmp.ne.s32.totalorder %s91, %s92
    %p101 = scmp.eq.s32.totalorder %s18, 0
    %p102 = por %p100, %p101
    %p103 = scmp.ne.s32.totalorder %s91, %s92
    %p104 = scmp.eq.s32.totalorder %s19, 1
    %p105 = por %p103, %p104
    %p107 = scmp.ne.s32.totalorder %s92, %s106
    %p108 = scmp.eq.s32.totalorder %s19, 0
    %p109 = por %p107, %p108
    %s111 = sadd.s32 %s110, 1
    %p114 = scmp.eq.s32.totalorder %s13, 1
    %p115 = scmp.ne.s32.totalorder %s110, %s112
    %p116 = scmp.eq.s32.totalorder %s13, 0
    %p117 = por %p115, %p116
    %p118 = scmp.ne.s32.totalorder %s110, %s112
    %p119 = scmp.eq.s32.totalorder %s18, 1
    %p120 = por %p118, %p119
    %p121 = scmp.ne.s32.totalorder %s112, %s113
    %p122 = scmp.eq.s32.totalorder %s18, 0
    %p123 = por %p121, %p122
    %p124 = scmp.ne.s32.totalorder %s112, %s113
    %p125 = scmp.eq.s32.totalorder %s19, 1
    %p126 = por %p124, %p125
    %p128 = scmp.ne.s32.totalorder %s113, %s127
    %p129 = scmp.eq.s32.totalorder %s19, 0
    %p130 = por %p128, %p129
    %s131 = ssub.s32 %s13, %s20
    %p132 = scmp.eq.s32.totalorder %s131, 0
    %s134 = sadd.s32 %s133, 1
    %s135 = scalar_select %p132, %s133, %s134
    %p138 = pneg %p132
    %p139 = scmp.eq.s32.totalorder %s13, 1
    %p140 = por %p138, %p139
    %p141 = scmp.ne.s32.totalorder %s133, %s136
    %p142 = scmp.eq.s32.totalorder %s13, 0
    %p143 = por %p141, %p142
    %p144 = scmp.ne.s32.totalorder %s133, %s136
    %p145 = scmp.eq.s32.totalorder %s18, 1
    %p146 = por %p144, %p145
    %p147 = scmp.ne.s32.totalorder %s136, %s137
    %p148 = scmp.eq.s32.totalorder %s18, 0
    %p149 = por %p147, %p148
    %p150 = scmp.ne.s32.totalorder %s136, %s137
    %p151 = scmp.eq.s32.totalorder %s19, 1
    %p152 = por %p150, %p151
    %p154 = scmp.ne.s32.totalorder %s137, %s153
    %p155 = scmp.eq.s32.totalorder %s19, 0
    %p156 = por %p154, %p155
    %s157 = ssub.s32 %s13, %s20
    %p158 = scmp.eq.s32.totalorder %s157, 0
    %s160 = sadd.s32 %s159, 1
    %s161 = scalar_select %p158, %s159, %s160
    %p164 = pneg %p158
    %p165 = scmp.eq.s32.totalorder %s13, 1
    %p166 = por %p164, %p165
    %p167 = scmp.ne.s32.totalorder %s159, %s162
    %p168 = scmp.eq.s32.totalorder %s13, 0
    %p169 = por %p167, %p168
    %p170 = scmp.ne.s32.totalorder %s159, %s162
    %p171 = scmp.eq.s32.totalorder %s18, 1
    %p172 = por %p170, %p171
    %p173 = scmp.ne.s32.totalorder %s162, %s163
    %p174 = scmp.eq.s32.totalorder %s18, 0
    %p175 = por %p173, %p174
    %p176 = scmp.ne.s32.totalorder %s162, %s163
    %p177 = scmp.eq.s32.totalorder %s19, 1
    %p178 = por %p176, %p177
    %p180 = scmp.ne.s32.totalorder %s163, %s179
    %p181 = scmp.eq.s32.totalorder %s19, 0
    %p182 = por %p180, %p181
    %p183 = scmp.le.s32.totalorder 1, %s13
    %p184 = scmp.lt.s32.totalorder %s13, 3
    %p185 = pnand %p183, %p184
    %p186 = pneg %p185
    // Predicated region
    $region9: #{conv_res_forward.4} parent=5 // pred_check
      _
    $region10: #{conv_res_forward.4} parent=5 // pred_check_branch
      %188 = sbr.rel (%p185) target = $region12
    $region11: #{conv_res_forward.4} parent=5 // pred_region
      %s189 = ssub.s32 %s13, 1
      // Predicated region
      $region13: #{conv_res_forward.4} parent=11 // pred_check
        %p190 = pneg %p60
      $region14: #{conv_res_forward.4} parent=11 // pred_check_branch
        %192 = sbr.rel (%p190) target = $region16
      $region15: #{conv_res_forward.4} parent=11 // pred_region
        _
      $region16: #{conv_res_forward.4} parent=11 // pred_fallthru
        _
      // Predicated region
      $region17: #{conv_res_forward.4} parent=11 // pred_check
        %p193 = pneg %p81
      $region18: #{conv_res_forward.4} parent=11 // pred_check_branch
        %195 = sbr.rel (%p193) target = $region20
      $region19: #{conv_res_forward.4} parent=11 // pred_region
        _
      $region20: #{conv_res_forward.4} parent=11 // pred_fallthru
        _
      // Predicated region
      $region21: #{conv_res_forward.4} parent=11 // pred_check
        %p196 = pneg %p102
      $region22: #{conv_res_forward.4} parent=11 // pred_check_branch
        %198 = sbr.rel (%p196) target = $region24
      $region23: #{conv_res_forward.4} parent=11 // pred_region
        _
      $region24: #{conv_res_forward.4} parent=11 // pred_fallthru
        _
      // Predicated region
      $region25: #{conv_res_forward.4} parent=11 // pred_check
        %p199 = pneg %p123
      $region26: #{conv_res_forward.4} parent=11 // pred_check_branch
        %201 = sbr.rel (%p199) target = $region28
      $region27: #{conv_res_forward.4} parent=11 // pred_region
        _
      $region28: #{conv_res_forward.4} parent=11 // pred_fallthru
        _
    $region12: #{conv_res_forward.4} parent=5 // pred_fallthru
      _
    %p202 = scmp.lt.s32.totalorder %s13, 2
    // Predicated region
    $region29: #{conv_res_forward.4} parent=5 // pred_check
      %p203 = pneg %p202
    $region30: #{conv_res_forward.4} parent=5 // pred_check_branch
      %205 = sbr.rel (%p203) target = $region32
    $region31: #{conv_res_forward.4} parent=5 // pred_region
      // Predicated region
      $region33: #{conv_res_forward.4} parent=31 // pred_check
        %p206 = pneg %p33
      $region34: #{conv_res_forward.4} parent=31 // pred_check_branch
        %208 = sbr.rel (%p206) target = $region36
      $region35: #{conv_res_forward.4} parent=31 // pred_region
        %p209 = scmp.lt.s32.totalorder %s13, 1
        %s210 = scalar_select %p209, %s13, 1
        %s211 = smul.addr %s210, 32
        %s212 = smul.addr %s211, 4
        %s213 = scalar_lea.vmem %s0, %s212
      $region36: #{conv_res_forward.4} parent=31 // pred_fallthru
        _
    $region32: #{conv_res_forward.4} parent=5 // pred_fallthru
      _
    %p214 = scmp.le.s32.totalorder 1, %s13
    %p215 = scmp.lt.s32.totalorder %s13, 3
    %p216 = pnand %p214, %p215
    %p217 = pneg %p216
    // Predicated region
    $region37: #{conv_res_forward.4} parent=5 // pred_check
      _
    $region38: #{conv_res_forward.4} parent=5 // pred_check_branch
      %219 = sbr.rel (%p216) target = $region40
    $region39: #{conv_res_forward.4} parent=5 // pred_region
      %s220 = ssub.s32 %s13, 1
      %p221 = scmp.lt.s32.totalorder %s18, 1
      %s222 = scalar_select %p221, %s18, 1
      %s223 = smul.addr %s222, 32
      %s224 = smul.addr %s223, 4
      %s225 = scalar_lea.vmem %s0, %s224
      %p226 = pneg %p39
      %p227 = pneg %p36
      %p228 = pneg %p60
      %p229 = pneg %p57
      %p230 = pneg %p81
      %p231 = pneg %p78
      %p232 = pneg %p102
      %p233 = pneg %p99
      %p234 = pneg %p123
      %p235 = pneg %p120
      %p236 = pneg %p149
      %p237 = pneg %p146
      %p238 = scmp.lt.s32.totalorder %s18, 1
      %s239 = scalar_select %p238, %s18, 1
      %s240 = smul.addr %s239, 32
      %s241 = smul.addr %s240, 4
      %s242 = scalar_lea.vmem %s5, %s241
      %p243 = pneg %p175
      %p244 = pneg %p172
      %p245 = scmp.lt.s32.totalorder %s18, 1
      %s246 = scalar_select %p245, %s18, 1
      %s247 = smul.addr %s246, 2
      %s248 = scalar_lea.vmem %s6, %s247
      %p249 = scmp.lt.s32.totalorder %s18, 1
      %s250 = scalar_select %p249, %s18, 1
      %s251 = smul.addr %s250, 32
      %s252 = smul.addr %s251, 4
      %s253 = scalar_lea.vmem %s0, %s252
      %p254 = scmp.lt.s32.totalorder %s18, 1
      %s255 = scalar_select %p254, %s18, 1
      %s256 = smul.addr %s255, 32
      %s257 = smul.addr %s256, 4
      %s258 = scalar_lea.vmem %s5, %s257
      %p259 = scmp.lt.s32.totalorder %s18, 1
      %s260 = scalar_select %p259, %s18, 1
      %s261 = smul.addr %s260, 2
      %s262 = scalar_lea.vmem %s6, %s261
      %v264 = vld [vmem:[%s253] sm:$0xf]
      %v265 = vld [vmem:[%s253 + $0x4] sm:$0xf]
      %v266 = vld [vmem:[%s253 + $0x8] sm:$0xf]
      %v267 = vld [vmem:[%s253 + $0xc] sm:$0xf]
      %v268 = vld [vmem:[%s253 + $0x10] sm:$0xf]
      %v269 = vld [vmem:[%s253 + $0x14] sm:$0xf]
      %v270 = vld [vmem:[%s253 + $0x18] sm:$0xf]
      %v271 = vld [vmem:[%s253 + $0x1c] sm:$0xf]
      %v272 = vld [vmem:[%s253 + $0x20] sm:$0xf]
      %v273 = vld [vmem:[%s253 + $0x24] sm:$0xf]
      %v274 = vld [vmem:[%s253 + $0x28] sm:$0xf]
      %v275 = vld [vmem:[%s253 + $0x2c] sm:$0xf]
      %v276 = vld [vmem:[%s253 + $0x30] sm:$0xf]
      %v277 = vld [vmem:[%s253 + $0x34] sm:$0xf]
      %v278 = vld [vmem:[%s253 + $0x38] sm:$0xf]
      %v279 = vld [vmem:[%s253 + $0x3c] sm:$0xf]
      %v280 = vld [vmem:[%s253 + $0x40] sm:$0xf]
      %v281 = vld [vmem:[%s253 + $0x44] sm:$0xf]
      %v282 = vld [vmem:[%s253 + $0x48] sm:$0xf]
      %v283 = vld [vmem:[%s253 + $0x4c] sm:$0xf]
      %v284 = vld [vmem:[%s253 + $0x50] sm:$0xf]
      %v285 = vld [vmem:[%s253 + $0x54] sm:$0xf]
      %v286 = vld [vmem:[%s253 + $0x58] sm:$0xf]
      %v287 = vld [vmem:[%s253 + $0x5c] sm:$0xf]
      %v288 = vld [vmem:[%s253 + $0x60] sm:$0xf]
      %v289 = vld [vmem:[%s253 + $0x64] sm:$0xf]
      %v290 = vld [vmem:[%s253 + $0x68] sm:$0xf]
      %v291 = vld [vmem:[%s253 + $0x6c] sm:$0xf]
      %v292 = vld [vmem:[%s253 + $0x70] sm:$0xf]
      %v293 = vld [vmem:[%s253 + $0x74] sm:$0xf]
      %v294 = vld [vmem:[%s253 + $0x78] sm:$0xf]
      %v295 = vld [vmem:[%s253 + $0x7c] sm:$0xf]
      %v296 = vunpack.c.l.bf16 %v264
      %v297 = vunpack.c.l.bf16 %v265
      %v298 = vunpack.c.l.bf16 %v266
      %v299 = vunpack.c.l.bf16 %v267
      %v300 = vunpack.c.l.bf16 %v268
      %v301 = vunpack.c.l.bf16 %v269
      %v302 = vunpack.c.l.bf16 %v270
      %v303 = vunpack.c.l.bf16 %v271
      %v304 = vunpack.c.l.bf16 %v272
      %v305 = vunpack.c.l.bf16 %v273
      %v306 = vunpack.c.l.bf16 %v274
      %v307 = vunpack.c.l.bf16 %v275
      %v308 = vunpack.c.l.bf16 %v276
      %v309 = vunpack.c.l.bf16 %v277
      %v310 = vunpack.c.l.bf16 %v278
      %v311 = vunpack.c.l.bf16 %v279
      %v312 = vunpack.c.l.bf16 %v280
      %v313 = vunpack.c.l.bf16 %v281
      %v314 = vunpack.c.l.bf16 %v282
      %v315 = vunpack.c.l.bf16 %v283
      %v316 = vunpack.c.l.bf16 %v284
      %v317 = vunpack.c.l.bf16 %v285
      %v318 = vunpack.c.l.bf16 %v286
      %v319 = vunpack.c.l.bf16 %v287
      %v320 = vunpack.c.l.bf16 %v288
      %v321 = vunpack.c.l.bf16 %v289
      %v322 = vunpack.c.l.bf16 %v290
      %v323 = vunpack.c.l.bf16 %v291
      %v324 = vunpack.c.l.bf16 %v292
      %v325 = vunpack.c.l.bf16 %v293
      %v326 = vunpack.c.l.bf16 %v294
      %v327 = vunpack.c.l.bf16 %v295
      %v328 = vld [vmem:[%s3] sm:$0x1]
      %v330 = vlaneseq
      %v331 = vshrl.u32 %v330, 7
      %v332 = vsub.s32 0, %v331
      %v333 = vrot.slane %v328, %v332
      %v335 = vmul.f32 %v296, %v333
      %v336 = vmul.f32 %v297, %v333
      %v337 = vmul.f32 %v298, %v333
      %v338 = vmul.f32 %v299, %v333
      %v339 = vmul.f32 %v300, %v333
      %v340 = vmul.f32 %v301, %v333
      %v341 = vmul.f32 %v302, %v333
      %v342 = vmul.f32 %v303, %v333
      %v343 = vmul.f32 %v304, %v333
      %v344 = vmul.f32 %v305, %v333
      %v345 = vmul.f32 %v306, %v333
      %v346 = vmul.f32 %v307, %v333
      %v347 = vmul.f32 %v308, %v333
      %v348 = vmul.f32 %v309, %v333
      %v349 = vmul.f32 %v310, %v333
      %v350 = vmul.f32 %v311, %v333
      %v351 = vmul.f32 %v312, %v333
      %v352 = vmul.f32 %v313, %v333
      %v353 = vmul.f32 %v314, %v333
      %v354 = vmul.f32 %v315, %v333
      %v355 = vmul.f32 %v316, %v333
      %v356 = vmul.f32 %v317, %v333
      %v357 = vmul.f32 %v318, %v333
      %v358 = vmul.f32 %v319, %v333
      %v359 = vmul.f32 %v320, %v333
      %v360 = vmul.f32 %v321, %v333
      %v361 = vmul.f32 %v322, %v333
      %v362 = vmul.f32 %v323, %v333
      %v363 = vmul.f32 %v324, %v333
      %v364 = vmul.f32 %v325, %v333
      %v365 = vmul.f32 %v326, %v333
      %v366 = vmul.f32 %v327, %v333
      %v367 = vld [vmem:[%s4] sm:$0x1]
      %v369 = vlaneseq
      %v370 = vshrl.u32 %v369, 7
      %v371 = vsub.s32 0, %v370
      %v372 = vrot.slane %v367, %v371
      %v374 = vadd.f32 %v335, %v372
      %v375 = vadd.f32 %v336, %v372
      %v376 = vadd.f32 %v337, %v372
      %v377 = vadd.f32 %v338, %v372
      %v378 = vadd.f32 %v339, %v372
      %v379 = vadd.f32 %v340, %v372
      %v380 = vadd.f32 %v341, %v372
      %v381 = vadd.f32 %v342, %v372
      %v382 = vadd.f32 %v343, %v372
      %v383 = vadd.f32 %v344, %v372
      %v384 = vadd.f32 %v345, %v372
      %v385 = vadd.f32 %v346, %v372
      %v386 = vadd.f32 %v347, %v372
      %v387 = vadd.f32 %v348, %v372
      %v388 = vadd.f32 %v349, %v372
      %v389 = vadd.f32 %v350, %v372
      %v390 = vadd.f32 %v351, %v372
      %v391 = vadd.f32 %v352, %v372
      %v392 = vadd.f32 %v353, %v372
      %v393 = vadd.f32 %v354, %v372
      %v394 = vadd.f32 %v355, %v372
      %v395 = vadd.f32 %v356, %v372
      %v396 = vadd.f32 %v357, %v372
      %v397 = vadd.f32 %v358, %v372
      %v398 = vadd.f32 %v359, %v372
      %v399 = vadd.f32 %v360, %v372
      %v400 = vadd.f32 %v361, %v372
      %v401 = vadd.f32 %v362, %v372
      %v402 = vadd.f32 %v363, %v372
      %v403 = vadd.f32 %v364, %v372
      %v404 = vadd.f32 %v365, %v372
      %v405 = vadd.f32 %v366, %v372
      %406 = vst [vmem:[#allocation2] sm:$0xf] 0
      %407 = vst [vmem:[#allocation2 + $0x4] sm:$0xf] 0
      %408 = vst [vmem:[#allocation2 + $0x8] sm:$0x1] 0
      %409 = vst [vmem:[#allocation2 + $0xc] sm:$0xf] 0
      %410 = vst [vmem:[#allocation2 + $0x10] sm:$0xf] 0
      %411 = vst [vmem:[#allocation2 + $0x14] sm:$0x1] 0
      %412 = vst [vmem:[#allocation2 + $0x18] sm:$0xf] 0
      %413 = vst [vmem:[#allocation2 + $0x1c] sm:$0xf] 0
      %414 = vst [vmem:[#allocation2 + $0x20] sm:$0x1] 0
      %415 = vst [vmem:[#allocation2 + $0x24] sm:$0xf] 0
      %416 = vst [vmem:[#allocation2 + $0x28] sm:$0xf] 0
      %417 = vst [vmem:[#allocation2 + $0x2c] sm:$0x1] 0
      %418 = vst [vmem:[#allocation2 + $0x30] sm:$0xf] 0
      %419 = vst [vmem:[#allocation2 + $0x34] sm:$0xf] 0
      %420 = vst [vmem:[#allocation2 + $0x38] sm:$0x1] 0
      %421 = vst [vmem:[#allocation2 + $0x3c] sm:$0xf] 0
      %422 = vst [vmem:[#allocation2 + $0x40] sm:$0xf] 0
      %423 = vst [vmem:[#allocation2 + $0x44] sm:$0x1] 0
      %424 = vst [vmem:[#allocation2 + $0x48] sm:$0xf] 0
      %425 = vst [vmem:[#allocation2 + $0x4c] sm:$0xf] 0
      %426 = vst [vmem:[#allocation2 + $0x50] sm:$0x1] 0
      %427 = vst [vmem:[#allocation2 + $0x54] sm:$0xf] 0
      %428 = vst [vmem:[#allocation2 + $0x58] sm:$0xf] 0
      %429 = vst [vmem:[#allocation2 + $0x5c] sm:$0x1] 0
      %430 = vst [vmem:[#allocation2 + $0x60] sm:$0xf] 0
      %431 = vst [vmem:[#allocation2 + $0x64] sm:$0xf] 0
      %432 = vst [vmem:[#allocation2 + $0x68] sm:$0x1] 0
      %433 = vst [vmem:[#allocation2 + $0x6c] sm:$0xf] 0
      %434 = vst [vmem:[#allocation2 + $0x70] sm:$0xf] 0
      %435 = vst [vmem:[#allocation2 + $0x74] sm:$0x1] 0
      %436 = vst [vmem:[#allocation2 + $0x78] sm:$0xf] 0
      %437 = vst [vmem:[#allocation2 + $0x7c] sm:$0xf] 0
      %438 = vst [vmem:[#allocation2 + $0x80] sm:$0x1] 0
      %439 = vst [vmem:[#allocation2 + $0x84] sm:$0xf] 0
      %440 = vst [vmem:[#allocation2 + $0x88] sm:$0xf] 0
      %441 = vst [vmem:[#allocation2 + $0x8c] sm:$0x1] 0
      %442 = vst [vmem:[#allocation2 + $0x90] sm:$0xf] 0
      %443 = vst [vmem:[#allocation2 + $0x94] sm:$0xf] 0
      %444 = vst [vmem:[#allocation2 + $0x98] sm:$0x1] 0
      %445 = vst [vmem:[#allocation2 + $0x9c] sm:$0xf] 0
      %446 = vst [vmem:[#allocation2 + $0xa0] sm:$0xf] 0
      %447 = vst [vmem:[#allocation2 + $0xa4] sm:$0x1] 0
      %448 = vst [vmem:[#allocation2 + $0xa8] sm:$0xf] 0
      %449 = vst [vmem:[#allocation2 + $0xac] sm:$0xf] 0
      %450 = vst [vmem:[#allocation2 + $0xb0] sm:$0x1] 0
      %451 = vst [vmem:[#allocation2 + $0xb4] sm:$0xf] 0
      %452 = vst [vmem:[#allocation2 + $0xb8] sm:$0xf] 0
      %453 = vst [vmem:[#allocation2 + $0xbc] sm:$0x1] 0
      %454 = vst [vmem:[#allocation2 + $0xc0] sm:$0xf] 0
      %455 = vst [vmem:[#allocation2 + $0xc4] sm:$0xf] 0
      %456 = vst [vmem:[#allocation2 + $0xc8] sm:$0x1] 0
      %457 = vst [vmem:[#allocation2 + $0xcc] sm:$0xf] 0
      %458 = vst [vmem:[#allocation2 + $0xd0] sm:$0xf] 0
      %459 = vst [vmem:[#allocation2 + $0xd4] sm:$0x1] 0
      %v460 = vpack.c.bf16 %v375, %v374
      %v461 = vpack.c.bf16 %v377, %v376
      %v462 = vpack.c.bf16 %v379, %v378
      %v463 = vpack.c.bf16 %v381, %v380
      %v464 = vpack.c.bf16 %v383, %v382
      %v465 = vpack.c.bf16 %v385, %v384
      %v466 = vpack.c.bf16 %v387, %v386
      %v467 = vpack.c.bf16 %v389, %v388
      %v468 = vpack.c.bf16 %v391, %v390
      %v469 = vpack.c.bf16 %v393, %v392
      %v470 = vpack.c.bf16 %v395, %v394
      %v471 = vpack.c.bf16 %v397, %v396
      %v472 = vpack.c.bf16 %v399, %v398
      %v473 = vpack.c.bf16 %v401, %v400
      %v474 = vpack.c.bf16 %v403, %v402
      %v475 = vpack.c.bf16 %v405, %v404
      %v492 = vunpack.c.l.b16 %v460
      %v493 = vunpack.c.h.b16 %v460
      %v494 = vunpack.c.l.b16 %v461
      %v495 = vunpack.c.h.b16 %v461
      %v496 = vunpack.c.l.b16 %v462
      %v497 = vunpack.c.h.b16 %v462
      %v498 = vunpack.c.l.b16 %v463
      %v499 = vunpack.c.h.b16 %v463
      %v500 = vunpack.c.l.b16 %v464
      %v501 = vunpack.c.h.b16 %v464
      %v502 = vunpack.c.l.b16 %v465
      %v503 = vunpack.c.h.b16 %v465
      %v504 = vunpack.c.l.b16 %v466
      %v505 = vunpack.c.h.b16 %v466
      %v506 = vunpack.c.l.b16 %v467
      %v507 = vunpack.c.h.b16 %v467
      %v508 = vunpack.c.l.b16 %v468
      %v509 = vunpack.c.h.b16 %v468
      %v510 = vunpack.c.l.b16 %v469
      %v511 = vunpack.c.h.b16 %v469
      %v512 = vunpack.c.l.b16 %v470
      %v513 = vunpack.c.h.b16 %v470
      %v514 = vunpack.c.l.b16 %v471
      %v515 = vunpack.c.h.b16 %v471
      %v516 = vunpack.c.l.b16 %v472
      %v517 = vunpack.c.h.b16 %v472
      %v518 = vunpack.c.l.b16 %v473
      %v519 = vunpack.c.h.b16 %v473
      %v520 = vunpack.c.l.b16 %v474
      %v521 = vunpack.c.h.b16 %v474
      %v522 = vunpack.c.l.b16 %v475
      %v523 = vunpack.c.h.b16 %v475
      %v524 = vpack.c.b16 %v492, %v492
      %v525 = vpack.c.b16 %v493, %v493
      %v526 = vpack.c.b16 %v494, %v494
      %v527 = vpack.c.b16 %v495, %v495
      %v528 = vpack.c.b16 %v496, %v496
      %v529 = vpack.c.b16 %v497, %v497
      %v530 = vpack.c.b16 %v498, %v498
      %v531 = vpack.c.b16 %v499, %v499
      %v532 = vpack.c.b16 %v500, %v500
      %v533 = vpack.c.b16 %v501, %v501
      %v534 = vpack.c.b16 %v502, %v502
      %v535 = vpack.c.b16 %v503, %v503
      %v536 = vpack.c.b16 %v504, %v504
      %v537 = vpack.c.b16 %v505, %v505
      %v538 = vpack.c.b16 %v506, %v506
      %v539 = vpack.c.b16 %v507, %v507
      %v540 = vpack.c.b16 %v508, %v508
      %v541 = vpack.c.b16 %v509, %v509
      %v542 = vpack.c.b16 %v510, %v510
      %v543 = vpack.c.b16 %v511, %v511
      %v544 = vpack.c.b16 %v512, %v512
      %v545 = vpack.c.b16 %v513, %v513
      %v546 = vpack.c.b16 %v514, %v514
      %v547 = vpack.c.b16 %v515, %v515
      %v548 = vpack.c.b16 %v516, %v516
      %v549 = vpack.c.b16 %v517, %v517
      %v550 = vpack.c.b16 %v518, %v518
      %v551 = vpack.c.b16 %v519, %v519
      %v552 = vpack.c.b16 %v520, %v520
      %v553 = vpack.c.b16 %v521, %v521
      %v554 = vpack.c.b16 %v522, %v522
      %v555 = vpack.c.b16 %v523, %v523
      %vm556 = vsmask.f32 256
      %vm557 = vsmask.f32 4368
      %vm558 = vmor %vm556, %vm557
      %v560 = vshrl.u32 %v524, 16
      %v562 = vrot.slane %v560, 7
      %v563 = vshll.u32 %v524, 16
      %v565 = vor.u32 %v562, %v563
      %v566 = vrot.slane %v562, 4
      %v568 = vshrl.u32 %v525, 16
      %v570 = vrot.slane %v568, 7
      %v571 = vshll.u32 %v525, 16
      %v573 = vor.u32 %v570, %v571
      %v574 = vsel %vm558, %v566, %v573
      %v575 = vrot.slane %v570, 4
      %v577 = vshrl.u32 %v526, 16
      %v579 = vrot.slane %v577, 7
      %v580 = vshll.u32 %v526, 16
      %v582 = vor.u32 %v579, %v580
      %v583 = vrot.slane %v579, 4
      %v585 = vshrl.u32 %v527, 16
      %v587 = vrot.slane %v585, 7
      %v588 = vshll.u32 %v527, 16
      %v590 = vor.u32 %v587, %v588
      %v591 = vsel %vm558, %v583, %v590
      %v592 = vrot.slane %v587, 4
      %v594 = vshrl.u32 %v528, 16
      %v596 = vrot.slane %v594, 7
      %v597 = vshll.u32 %v528, 16
      %v599 = vor.u32 %v596, %v597
      %v600 = vrot.slane %v596, 4
      %v602 = vshrl.u32 %v529, 16
      %v604 = vrot.slane %v602, 7
      %v605 = vshll.u32 %v529, 16
      %v607 = vor.u32 %v604, %v605
      %v608 = vsel %vm558, %v600, %v607
      %v609 = vrot.slane %v604, 4
      %v611 = vshrl.u32 %v530, 16
      %v613 = vrot.slane %v611, 7
      %v614 = vshll.u32 %v530, 16
      %v616 = vor.u32 %v613, %v614
      %v617 = vrot.slane %v613, 4
      %v619 = vshrl.u32 %v531, 16
      %v621 = vrot.slane %v619, 7
      %v622 = vshll.u32 %v531, 16
      %v624 = vor.u32 %v621, %v622
      %v625 = vsel %vm558, %v617, %v624
      %v626 = vrot.slane %v621, 4
      %v628 = vshrl.u32 %v532, 16
      %v630 = vrot.slane %v628, 7
      %v631 = vshll.u32 %v532, 16
      %v633 = vor.u32 %v630, %v631
      %v634 = vrot.slane %v630, 4
      %v636 = vshrl.u32 %v533, 16
      %v638 = vrot.slane %v636, 7
      %v639 = vshll.u32 %v533, 16
      %v641 = vor.u32 %v638, %v639
      %v642 = vsel %vm558, %v634, %v641
      %v643 = vrot.slane %v638, 4
      %v645 = vshrl.u32 %v534, 16
      %v647 = vrot.slane %v645, 7
      %v648 = vshll.u32 %v534, 16
      %v650 = vor.u32 %v647, %v648
      %v651 = vrot.slane %v647, 4
      %v653 = vshrl.u32 %v535, 16
      %v655 = vrot.slane %v653, 7
      %v656 = vshll.u32 %v535, 16
      %v658 = vor.u32 %v655, %v656
      %v659 = vsel %vm558, %v651, %v658
      %v660 = vrot.slane %v655, 4
      %v662 = vshrl.u32 %v536, 16
      %v664 = vrot.slane %v662, 7
      %v665 = vshll.u32 %v536, 16
      %v667 = vor.u32 %v664, %v665
      %v668 = vrot.slane %v664, 4
      %v670 = vshrl.u32 %v537, 16
      %v672 = vrot.slane %v670, 7
      %v673 = vshll.u32 %v537, 16
      %v675 = vor.u32 %v672, %v673
      %v676 = vsel %vm558, %v668, %v675
      %v677 = vrot.slane %v672, 4
      %v679 = vshrl.u32 %v538, 16
      %v681 = vrot.slane %v679, 7
      %v682 = vshll.u32 %v538, 16
      %v684 = vor.u32 %v681, %v682
      %v685 = vrot.slane %v681, 4
      %v687 = vshrl.u32 %v539, 16
      %v689 = vrot.slane %v687, 7
      %v690 = vshll.u32 %v539, 16
      %v692 = vor.u32 %v689, %v690
      %v693 = vsel %vm558, %v685, %v692
      %v694 = vrot.slane %v689, 4
      %v696 = vshrl.u32 %v540, 16
      %v698 = vrot.slane %v696, 7
      %v699 = vshll.u32 %v540, 16
      %v701 = vor.u32 %v698, %v699
      %v702 = vrot.slane %v698, 4
      %v704 = vshrl.u32 %v541, 16
      %v706 = vrot.slane %v704, 7
      %v707 = vshll.u32 %v541, 16
      %v709 = vor.u32 %v706, %v707
      %v710 = vsel %vm558, %v702, %v709
      %v711 = vrot.slane %v706, 4
      %v713 = vshrl.u32 %v542, 16
      %v715 = vrot.slane %v713, 7
      %v716 = vshll.u32 %v542, 16
      %v718 = vor.u32 %v715, %v716
      %v719 = vrot.slane %v715, 4
      %v721 = vshrl.u32 %v543, 16
      %v723 = vrot.slane %v721, 7
      %v724 = vshll.u32 %v543, 16
      %v726 = vor.u32 %v723, %v724
      %v727 = vsel %vm558, %v719, %v726
      %v728 = vrot.slane %v723, 4
      %v730 = vshrl.u32 %v544, 16
      %v732 = vrot.slane %v730, 7
      %v733 = vshll.u32 %v544, 16
      %v735 = vor.u32 %v732, %v733
      %v736 = vrot.slane %v732, 4
      %v738 = vshrl.u32 %v545, 16
      %v740 = vrot.slane %v738, 7
      %v741 = vshll.u32 %v545, 16
      %v743 = vor.u32 %v740, %v741
      %v744 = vsel %vm558, %v736, %v743
      %v745 = vrot.slane %v740, 4
      %v747 = vshrl.u32 %v546, 16
      %v749 = vrot.slane %v747, 7
      %v750 = vshll.u32 %v546, 16
      %v752 = vor.u32 %v749, %v750
      %v753 = vrot.slane %v749, 4
      %v755 = vshrl.u32 %v547, 16
      %v757 = vrot.slane %v755, 7
      %v758 = vshll.u32 %v547, 16
      %v760 = vor.u32 %v757, %v758
      %v761 = vsel %vm558, %v753, %v760
      %v762 = vrot.slane %v757, 4
      %v764 = vshrl.u32 %v548, 16
      %v766 = vrot.slane %v764, 7
      %v767 = vshll.u32 %v548, 16
      %v769 = vor.u32 %v766, %v767
      %v770 = vrot.slane %v766, 4
      %v772 = vshrl.u32 %v549, 16
      %v774 = vrot.slane %v772, 7
      %v775 = vshll.u32 %v549, 16
      %v777 = vor.u32 %v774, %v775
      %v778 = vsel %vm558, %v770, %v777
      %v779 = vrot.slane %v774, 4
      %v781 = vshrl.u32 %v550, 16
      %v783 = vrot.slane %v781, 7
      %v784 = vshll.u32 %v550, 16
      %v786 = vor.u32 %v783, %v784
      %v787 = vrot.slane %v783, 4
      %v789 = vshrl.u32 %v551, 16
      %v791 = vrot.slane %v789, 7
      %v792 = vshll.u32 %v551, 16
      %v794 = vor.u32 %v791, %v792
      %v795 = vsel %vm558, %v787, %v794
      %v796 = vrot.slane %v791, 4
      %v798 = vshrl.u32 %v552, 16
      %v800 = vrot.slane %v798, 7
      %v801 = vshll.u32 %v552, 16
      %v803 = vor.u32 %v800, %v801
      %v804 = vrot.slane %v800, 4
      %v806 = vshrl.u32 %v553, 16
      %v808 = vrot.slane %v806, 7
      %v809 = vshll.u32 %v553, 16
      %v811 = vor.u32 %v808, %v809
      %v812 = vsel %vm558, %v804, %v811
      %v813 = vrot.slane %v808, 4
      %v815 = vshrl.u32 %v554, 16
      %v817 = vrot.slane %v815, 7
      %v818 = vshll.u32 %v554, 16
      %v820 = vor.u32 %v817, %v818
      %v821 = vrot.slane %v817, 4
      %v823 = vshrl.u32 %v555, 16
      %v825 = vrot.slane %v823, 7
      %v826 = vshll.u32 %v555, 16
      %v828 = vor.u32 %v825, %v826
      %v829 = vsel %vm558, %v821, %v828
      %v830 = vrot.slane %v825, 4
      %s879 = scalar_lea.vmem [#allocation2], 12
      %vm880 = vcmask 1043456
      %vm881 = vsmask.f32 7938
      %vm882 = vmand %vm880, %vm881
      %v883 = vld [vmem:[%s879] sm:$0xf]
      %v884 = vsel %vm882, %v565, %v883
      %885 = vst [vmem:[%s879] sm:$0xf] %v884
      %886 = vst [vmem:[%s879 + $0x4] sm:$0xf] %v574
      %vm887 = vcmask 1040384
      %vm888 = vmand %vm887, %vm556
      %v889 = vld [vmem:[%s879 + $0x8] sm:$0x1]
      %v890 = vsel %vm888, %v575, %v889
      %891 = vst [vmem:[%s879 + $0x8] sm:$0x1] %v890
      %v892 = vld [vmem:[%s879 + $0xc] sm:$0xf]
      %v893 = vsel %vm882, %v582, %v892
      %894 = vst [vmem:[%s879 + $0xc] sm:$0xf] %v893
      %895 = vst [vmem:[%s879 + $0x10] sm:$0xf] %v591
      %v896 = vld [vmem:[%s879 + $0x14] sm:$0x1]
      %v897 = vsel %vm888, %v592, %v896
      %898 = vst [vmem:[%s879 + $0x14] sm:$0x1] %v897
      %v899 = vld [vmem:[%s879 + $0x18] sm:$0xf]
      %v900 = vsel %vm882, %v599, %v899
      %901 = vst [vmem:[%s879 + $0x18] sm:$0xf] %v900
      %902 = vst [vmem:[%s879 + $0x1c] sm:$0xf] %v608
      %v903 = vld [vmem:[%s879 + $0x20] sm:$0x1]
      %v904 = vsel %vm888, %v609, %v903
      %905 = vst [vmem:[%s879 + $0x20] sm:$0x1] %v904
      %v906 = vld [vmem:[%s879 + $0x24] sm:$0xf]
      %v907 = vsel %vm882, %v616, %v906
      %908 = vst [vmem:[%s879 + $0x24] sm:$0xf] %v907
      %909 = vst [vmem:[%s879 + $0x28] sm:$0xf] %v625
      %v910 = vld [vmem:[%s879 + $0x2c] sm:$0x1]
      %v911 = vsel %vm888, %v626, %v910
      %912 = vst [vmem:[%s879 + $0x2c] sm:$0x1] %v911
      %v913 = vld [vmem:[%s879 + $0x30] sm:$0xf]
      %v914 = vsel %vm882, %v633, %v913
      %915 = vst [vmem:[%s879 + $0x30] sm:$0xf] %v914
      %916 = vst [vmem:[%s879 + $0x34] sm:$0xf] %v642
      %v917 = vld [vmem:[%s879 + $0x38] sm:$0x1]
      %v918 = vsel %vm888, %v643, %v917
      %919 = vst [vmem:[%s879 + $0x38] sm:$0x1] %v918
      %v920 = vld [vmem:[%s879 + $0x3c] sm:$0xf]
      %v921 = vsel %vm882, %v650, %v920
      %922 = vst [vmem:[%s879 + $0x3c] sm:$0xf] %v921
      %923 = vst [vmem:[%s879 + $0x40] sm:$0xf] %v659
      %v924 = vld [vmem:[%s879 + $0x44] sm:$0x1]
      %v925 = vsel %vm888, %v660, %v924
      %926 = vst [vmem:[%s879 + $0x44] sm:$0x1] %v925
      %v927 = vld [vmem:[%s879 + $0x48] sm:$0xf]
      %v928 = vsel %vm882, %v667, %v927
      %929 = vst [vmem:[%s879 + $0x48] sm:$0xf] %v928
      %930 = vst [vmem:[%s879 + $0x4c] sm:$0xf] %v676
      %v931 = vld [vmem:[%s879 + $0x50] sm:$0x1]
      %v932 = vsel %vm888, %v677, %v931
      %933 = vst [vmem:[%s879 + $0x50] sm:$0x1] %v932
      %v934 = vld [vmem:[%s879 + $0x54] sm:$0xf]
      %v935 = vsel %vm882, %v684, %v934
      %936 = vst [vmem:[%s879 + $0x54] sm:$0xf] %v935
      %937 = vst [vmem:[%s879 + $0x58] sm:$0xf] %v693
      %v938 = vld [vmem:[%s879 + $0x5c] sm:$0x1]
      %v939 = vsel %vm888, %v694, %v938
      %940 = vst [vmem:[%s879 + $0x5c] sm:$0x1] %v939
      %v941 = vld [vmem:[%s879 + $0x60] sm:$0xf]
      %v942 = vsel %vm882, %v701, %v941
      %943 = vst [vmem:[%s879 + $0x60] sm:$0xf] %v942
      %944 = vst [vmem:[%s879 + $0x64] sm:$0xf] %v710
      %v945 = vld [vmem:[%s879 + $0x68] sm:$0x1]
      %v946 = vsel %vm888, %v711, %v945
      %947 = vst [vmem:[%s879 + $0x68] sm:$0x1] %v946
      %v948 = vld [vmem:[%s879 + $0x6c] sm:$0xf]
      %v949 = vsel %vm882, %v718, %v948
      %950 = vst [vmem:[%s879 + $0x6c] sm:$0xf] %v949
      %951 = vst [vmem:[%s879 + $0x70] sm:$0xf] %v727
      %v952 = vld [vmem:[%s879 + $0x74] sm:$0x1]
      %v953 = vsel %vm888, %v728, %v952
      %954 = vst [vmem:[%s879 + $0x74] sm:$0x1] %v953
      %v955 = vld [vmem:[%s879 + $0x78] sm:$0xf]
      %v956 = vsel %vm882, %v735, %v955
      %957 = vst [vmem:[%s879 + $0x78] sm:$0xf] %v956
      %958 = vst [vmem:[%s879 + $0x7c] sm:$0xf] %v744
      %v959 = vld [vmem:[%s879 + $0x80] sm:$0x1]
      %v960 = vsel %vm888, %v745, %v959
      %961 = vst [vmem:[%s879 + $0x80] sm:$0x1] %v960
      %v962 = vld [vmem:[%s879 + $0x84] sm:$0xf]
      %v963 = vsel %vm882, %v752, %v962
      %964 = vst [vmem:[%s879 + $0x84] sm:$0xf] %v963
      %965 = vst [vmem:[%s879 + $0x88] sm:$0xf] %v761
      %v966 = vld [vmem:[%s879 + $0x8c] sm:$0x1]
      %v967 = vsel %vm888, %v762, %v966
      %968 = vst [vmem:[%s879 + $0x8c] sm:$0x1] %v967
      %v969 = vld [vmem:[%s879 + $0x90] sm:$0xf]
      %v970 = vsel %vm882, %v769, %v969
      %971 = vst [vmem:[%s879 + $0x90] sm:$0xf] %v970
      %972 = vst [vmem:[%s879 + $0x94] sm:$0xf] %v778
      %v973 = vld [vmem:[%s879 + $0x98] sm:$0x1]
      %v974 = vsel %vm888, %v779, %v973
      %975 = vst [vmem:[%s879 + $0x98] sm:$0x1] %v974
      %v976 = vld [vmem:[%s879 + $0x9c] sm:$0xf]
      %v977 = vsel %vm882, %v786, %v976
      %978 = vst [vmem:[%s879 + $0x9c] sm:$0xf] %v977
      %979 = vst [vmem:[%s879 + $0xa0] sm:$0xf] %v795
      %v980 = vld [vmem:[%s879 + $0xa4] sm:$0x1]
      %v981 = vsel %vm888, %v796, %v980
      %982 = vst [vmem:[%s879 + $0xa4] sm:$0x1] %v981
      %v983 = vld [vmem:[%s879 + $0xa8] sm:$0xf]
      %v984 = vsel %vm882, %v803, %v983
      %985 = vst [vmem:[%s879 + $0xa8] sm:$0xf] %v984
      %986 = vst [vmem:[%s879 + $0xac] sm:$0xf] %v812
      %v987 = vld [vmem:[%s879 + $0xb0] sm:$0x1]
      %v988 = vsel %vm888, %v813, %v987
      %989 = vst [vmem:[%s879 + $0xb0] sm:$0x1] %v988
      %v990 = vld [vmem:[%s879 + $0xb4] sm:$0xf]
      %v991 = vsel %vm882, %v820, %v990
      %992 = vst [vmem:[%s879 + $0xb4] sm:$0xf] %v991
      %993 = vst [vmem:[%s879 + $0xb8] sm:$0xf] %v829
      %v994 = vld [vmem:[%s879 + $0xbc] sm:$0x1]
      %v995 = vsel %vm888, %v830, %v994
      %996 = vst [vmem:[%s879 + $0xbc] sm:$0x1] %v995
      %v997 = vld [vmem:[#allocation2] sm:$0xf]
      %v998 = vld [vmem:[#allocation2 + $0x4] sm:$0xf]
      %v999 = vld [vmem:[#allocation2 + $0xc] sm:$0xf]
      %v1000 = vld [vmem:[#allocation2 + $0x10] sm:$0xf]
      %v1001 = vld [vmem:[#allocation2 + $0x18] sm:$0xf]
      %v1002 = vld [vmem:[#allocation2 + $0x1c] sm:$0xf]
      %v1003 = vld [vmem:[#allocation2 + $0x24] sm:$0xf]
      %v1004 = vld [vmem:[#allocation2 + $0x28] sm:$0xf]
      %v1005 = vld [vmem:[#allocation2 + $0x30] sm:$0xf]
      %v1006 = vld [vmem:[#allocation2 + $0x34] sm:$0xf]
      %v1007 = vld [vmem:[#allocation2 + $0x3c] sm:$0xf]
      %v1008 = vld [vmem:[#allocation2 + $0x40] sm:$0xf]
      %v1009 = vld [vmem:[#allocation2 + $0x48] sm:$0xf]
      %v1010 = vld [vmem:[#allocation2 + $0x4c] sm:$0xf]
      %v1011 = vld [vmem:[#allocation2 + $0x54] sm:$0xf]
      %v1012 = vld [vmem:[#allocation2 + $0x58] sm:$0xf]
      %v1013 = vld [vmem:[#allocation2 + $0x60] sm:$0xf]
      %v1014 = vld [vmem:[#allocation2 + $0x64] sm:$0xf]
      %v1015 = vld [vmem:[#allocation2 + $0x6c] sm:$0xf]
      %v1016 = vld [vmem:[#allocation2 + $0x70] sm:$0xf]
      %v1017 = vld [vmem:[#allocation2 + $0x78] sm:$0xf]
      %v1018 = vld [vmem:[#allocation2 + $0x7c] sm:$0xf]
      %v1019 = vld [vmem:[#allocation2 + $0x84] sm:$0xf]
      %v1020 = vld [vmem:[#allocation2 + $0x88] sm:$0xf]
      %v1021 = vld [vmem:[#allocation2 + $0x90] sm:$0xf]
      %v1022 = vld [vmem:[#allocation2 + $0x94] sm:$0xf]
      %v1023 = vld [vmem:[#allocation2 + $0x9c] sm:$0xf]
      %v1024 = vld [vmem:[#allocation2 + $0xa0] sm:$0xf]
      %v1025 = vld [vmem:[#allocation2 + $0xa8] sm:$0xf]
      %v1026 = vld [vmem:[#allocation2 + $0xac] sm:$0xf]
      %v1027 = vld [vmem:[#allocation2 + $0xb4] sm:$0xf]
      %v1028 = vld [vmem:[#allocation2 + $0xb8] sm:$0xf]
      %v1029 = vld [vmem:[%s1] sm:$0xf]
      %v1030 = vld [vmem:[%s1 + $0x4] sm:$0xf]
      %v1031 = vld [vmem:[%s1 + $0x8] sm:$0xf]
      %v1032 = vld [vmem:[%s1 + $0xc] sm:$0xf]
      %v1033 = vld [vmem:[%s1 + $0x10] sm:$0xf]
      %v1034 = vld [vmem:[%s1 + $0x14] sm:$0xf]
      %v1035 = vld [vmem:[%s1 + $0x18] sm:$0xf]
      %v1036 = vld [vmem:[%s1 + $0x1c] sm:$0xf]
      %v1037 = vld [vmem:[%s1 + $0x20] sm:$0xf]
      %v1038 = vld [vmem:[%s1 + $0x24] sm:$0xf]
      %v1039 = vld [vmem:[%s1 + $0x28] sm:$0xf]
      %v1040 = vld [vmem:[%s1 + $0x2c] sm:$0xf]
      %v1041 = vld [vmem:[%s1 + $0x30] sm:$0xf]
      %v1042 = vld [vmem:[%s1 + $0x34] sm:$0xf]
      %v1043 = vld [vmem:[%s1 + $0x38] sm:$0xf]
      %v1044 = vld [vmem:[%s1 + $0x3c] sm:$0xf]
      %v1045 = vld [vmem:[#allocation2 + $0x8] sm:$0x1]
      %v1046 = vld [vmem:[#allocation2 + $0x14] sm:$0x1]
      %v1047 = vld [vmem:[#allocation2 + $0x20] sm:$0x1]
      %v1048 = vld [vmem:[#allocation2 + $0x2c] sm:$0x1]
      %v1049 = vld [vmem:[#allocation2 + $0x38] sm:$0x1]
      %v1050 = vld [vmem:[#allocation2 + $0x44] sm:$0x1]
      %v1051 = vld [vmem:[#allocation2 + $0x50] sm:$0x1]
      %v1052 = vld [vmem:[#allocation2 + $0x5c] sm:$0x1]
      %v1053 = vld [vmem:[#allocation2 + $0x68] sm:$0x1]
      %v1054 = vld [vmem:[#allocation2 + $0x74] sm:$0x1]
      %v1055 = vld [vmem:[#allocation2 + $0x80] sm:$0x1]
      %v1056 = vld [vmem:[#allocation2 + $0x8c] sm:$0x1]
      %v1057 = vld [vmem:[#allocation2 + $0x98] sm:$0x1]
      %v1058 = vld [vmem:[#allocation2 + $0xa4] sm:$0x1]
      %v1059 = vld [vmem:[#allocation2 + $0xb0] sm:$0x1]
      %v1060 = vld [vmem:[#allocation2 + $0xbc] sm:$0x1]
      %vm1061 = vsmask.f32 3328
      %vm1062 = vsmask.f32 7440
      %vm1063 = vmor %vm1061, %vm1062
      %v1065 = vshrl.u32 %v997, 16
      %v1067 = vrot.slane %v1065, 4
      %v1068 = vshll.u32 %v997, 16
      %v1070 = vrot.slane %v1068, 5
      %v1071 = vor.u32 %v1067, %v1070
      %v1072 = vrot.slane %v1071, 4
      %v1074 = vshll.u32 %v998, 16
      %v1076 = vrot.slane %v1074, 5
      %v1077 = vsel %vm1063, %v1072, %v1076
      %v1078 = vshrl.u32 %v998, 16
      %v1080 = vrot.slane %v1078, 4
      %v1081 = vor.u32 %v1080, %v1076
      %v1082 = vrot.slane %v1081, 4
      %v1084 = vshll.u32 %v1045, 16
      %v1086 = vrot.slane %v1084, 5
      %v1087 = vsel %vm1063, %v1082, %v1086
      %v1089 = vshrl.u32 %v999, 16
      %v1091 = vrot.slane %v1089, 4
      %v1092 = vshll.u32 %v999, 16
      %v1094 = vrot.slane %v1092, 5
      %v1095 = vor.u32 %v1091, %v1094
      %v1096 = vrot.slane %v1095, 4
      %v1098 = vshll.u32 %v1000, 16
      %v1100 = vrot.slane %v1098, 5
      %v1101 = vsel %vm1063, %v1096, %v1100
      %v1102 = vshrl.u32 %v1000, 16
      %v1104 = vrot.slane %v1102, 4
      %v1105 = vor.u32 %v1104, %v1100
      %v1106 = vrot.slane %v1105, 4
      %v1108 = vshll.u32 %v1046, 16
      %v1110 = vrot.slane %v1108, 5
      %v1111 = vsel %vm1063, %v1106, %v1110
      %v1113 = vshrl.u32 %v1001, 16
      %v1115 = vrot.slane %v1113, 4
      %v1116 = vshll.u32 %v1001, 16
      %v1118 = vrot.slane %v1116, 5
      %v1119 = vor.u32 %v1115, %v1118
      %v1120 = vrot.slane %v1119, 4
      %v1122 = vshll.u32 %v1002, 16
      %v1124 = vrot.slane %v1122, 5
      %v1125 = vsel %vm1063, %v1120, %v1124
      %v1126 = vshrl.u32 %v1002, 16
      %v1128 = vrot.slane %v1126, 4
      %v1129 = vor.u32 %v1128, %v1124
      %v1130 = vrot.slane %v1129, 4
      %v1132 = vshll.u32 %v1047, 16
      %v1134 = vrot.slane %v1132, 5
      %v1135 = vsel %vm1063, %v1130, %v1134
      %v1137 = vshrl.u32 %v1003, 16
      %v1139 = vrot.slane %v1137, 4
      %v1140 = vshll.u32 %v1003, 16
      %v1142 = vrot.slane %v1140, 5
      %v1143 = vor.u32 %v1139, %v1142
      %v1144 = vrot.slane %v1143, 4
      %v1146 = vshll.u32 %v1004, 16
      %v1148 = vrot.slane %v1146, 5
      %v1149 = vsel %vm1063, %v1144, %v1148
      %v1150 = vshrl.u32 %v1004, 16
      %v1152 = vrot.slane %v1150, 4
      %v1153 = vor.u32 %v1152, %v1148
      %v1154 = vrot.slane %v1153, 4
      %v1156 = vshll.u32 %v1048, 16
      %v1158 = vrot.slane %v1156, 5
      %v1159 = vsel %vm1063, %v1154, %v1158
      %v1161 = vshrl.u32 %v1005, 16
      %v1163 = vrot.slane %v1161, 4
      %v1164 = vshll.u32 %v1005, 16
      %v1166 = vrot.slane %v1164, 5
      %v1167 = vor.u32 %v1163, %v1166
      %v1168 = vrot.slane %v1167, 4
      %v1170 = vshll.u32 %v1006, 16
      %v1172 = vrot.slane %v1170, 5
      %v1173 = vsel %vm1063, %v1168, %v1172
      %v1174 = vshrl.u32 %v1006, 16
      %v1176 = vrot.slane %v1174, 4
      %v1177 = vor.u32 %v1176, %v1172
      %v1178 = vrot.slane %v1177, 4
      %v1180 = vshll.u32 %v1049, 16
      %v1182 = vrot.slane %v1180, 5
      %v1183 = vsel %vm1063, %v1178, %v1182
      %v1185 = vshrl.u32 %v1007, 16
      %v1187 = vrot.slane %v1185, 4
      %v1188 = vshll.u32 %v1007, 16
      %v1190 = vrot.slane %v1188, 5
      %v1191 = vor.u32 %v1187, %v1190
      %v1192 = vrot.slane %v1191, 4
      %v1194 = vshll.u32 %v1008, 16
      %v1196 = vrot.slane %v1194, 5
      %v1197 = vsel %vm1063, %v1192, %v1196
      %v1198 = vshrl.u32 %v1008, 16
      %v1200 = vrot.slane %v1198, 4
      %v1201 = vor.u32 %v1200, %v1196
      %v1202 = vrot.slane %v1201, 4
      %v1204 = vshll.u32 %v1050, 16
      %v1206 = vrot.slane %v1204, 5
      %v1207 = vsel %vm1063, %v1202, %v1206
      %v1209 = vshrl.u32 %v1009, 16
      %v1211 = vrot.slane %v1209, 4
      %v1212 = vshll.u32 %v1009, 16
      %v1214 = vrot.slane %v1212, 5
      %v1215 = vor.u32 %v1211, %v1214
      %v1216 = vrot.slane %v1215, 4
      %v1218 = vshll.u32 %v1010, 16
      %v1220 = vrot.slane %v1218, 5
      %v1221 = vsel %vm1063, %v1216, %v1220
      %v1222 = vshrl.u32 %v1010, 16
      %v1224 = vrot.slane %v1222, 4
      %v1225 = vor.u32 %v1224, %v1220
      %v1226 = vrot.slane %v1225, 4
      %v1228 = vshll.u32 %v1051, 16
      %v1230 = vrot.slane %v1228, 5
      %v1231 = vsel %vm1063, %v1226, %v1230
      %v1233 = vshrl.u32 %v1011, 16
      %v1235 = vrot.slane %v1233, 4
      %v1236 = vshll.u32 %v1011, 16
      %v1238 = vrot.slane %v1236, 5
      %v1239 = vor.u32 %v1235, %v1238
      %v1240 = vrot.slane %v1239, 4
      %v1242 = vshll.u32 %v1012, 16
      %v1244 = vrot.slane %v1242, 5
      %v1245 = vsel %vm1063, %v1240, %v1244
      %v1246 = vshrl.u32 %v1012, 16
      %v1248 = vrot.slane %v1246, 4
      %v1249 = vor.u32 %v1248, %v1244
      %v1250 = vrot.slane %v1249, 4
      %v1252 = vshll.u32 %v1052, 16
      %v1254 = vrot.slane %v1252, 5
      %v1255 = vsel %vm1063, %v1250, %v1254
      %v1257 = vshrl.u32 %v1013, 16
      %v1259 = vrot.slane %v1257, 4
      %v1260 = vshll.u32 %v1013, 16
      %v1262 = vrot.slane %v1260, 5
      %v1263 = vor.u32 %v1259, %v1262
      %v1264 = vrot.slane %v1263, 4
      %v1266 = vshll.u32 %v1014, 16
      %v1268 = vrot.slane %v1266, 5
      %v1269 = vsel %vm1063, %v1264, %v1268
      %v1270 = vshrl.u32 %v1014, 16
      %v1272 = vrot.slane %v1270, 4
      %v1273 = vor.u32 %v1272, %v1268
      %v1274 = vrot.slane %v1273, 4
      %v1276 = vshll.u32 %v1053, 16
      %v1278 = vrot.slane %v1276, 5
      %v1279 = vsel %vm1063, %v1274, %v1278
      %v1281 = vshrl.u32 %v1015, 16
      %v1283 = vrot.slane %v1281, 4
      %v1284 = vshll.u32 %v1015, 16
      %v1286 = vrot.slane %v1284, 5
      %v1287 = vor.u32 %v1283, %v1286
      %v1288 = vrot.slane %v1287, 4
      %v1290 = vshll.u32 %v1016, 16
      %v1292 = vrot.slane %v1290, 5
      %v1293 = vsel %vm1063, %v1288, %v1292
      %v1294 = vshrl.u32 %v1016, 16
      %v1296 = vrot.slane %v1294, 4
      %v1297 = vor.u32 %v1296, %v1292
      %v1298 = vrot.slane %v1297, 4
      %v1300 = vshll.u32 %v1054, 16
      %v1302 = vrot.slane %v1300, 5
      %v1303 = vsel %vm1063, %v1298, %v1302
      %v1305 = vshrl.u32 %v1017, 16
      %v1307 = vrot.slane %v1305, 4
      %v1308 = vshll.u32 %v1017, 16
      %v1310 = vrot.slane %v1308, 5
      %v1311 = vor.u32 %v1307, %v1310
      %v1312 = vrot.slane %v1311, 4
      %v1314 = vshll.u32 %v1018, 16
      %v1316 = vrot.slane %v1314, 5
      %v1317 = vsel %vm1063, %v1312, %v1316
      %v1318 = vshrl.u32 %v1018, 16
      %v1320 = vrot.slane %v1318, 4
      %v1321 = vor.u32 %v1320, %v1316
      %v1322 = vrot.slane %v1321, 4
      %v1324 = vshll.u32 %v1055, 16
      %v1326 = vrot.slane %v1324, 5
      %v1327 = vsel %vm1063, %v1322, %v1326
      %v1329 = vshrl.u32 %v1019, 16
      %v1331 = vrot.slane %v1329, 4
      %v1332 = vshll.u32 %v1019, 16
      %v1334 = vrot.slane %v1332, 5
      %v1335 = vor.u32 %v1331, %v1334
      %v1336 = vrot.slane %v1335, 4
      %v1338 = vshll.u32 %v1020, 16
      %v1340 = vrot.slane %v1338, 5
      %v1341 = vsel %vm1063, %v1336, %v1340
      %v1342 = vshrl.u32 %v1020, 16
      %v1344 = vrot.slane %v1342, 4
      %v1345 = vor.u32 %v1344, %v1340
      %v1346 = vrot.slane %v1345, 4
      %v1348 = vshll.u32 %v1056, 16
      %v1350 = vrot.slane %v1348, 5
      %v1351 = vsel %vm1063, %v1346, %v1350
      %v1353 = vshrl.u32 %v1021, 16
      %v1355 = vrot.slane %v1353, 4
      %v1356 = vshll.u32 %v1021, 16
      %v1358 = vrot.slane %v1356, 5
      %v1359 = vor.u32 %v1355, %v1358
      %v1360 = vrot.slane %v1359, 4
      %v1362 = vshll.u32 %v1022, 16
      %v1364 = vrot.slane %v1362, 5
      %v1365 = vsel %vm1063, %v1360, %v1364
      %v1366 = vshrl.u32 %v1022, 16
      %v1368 = vrot.slane %v1366, 4
      %v1369 = vor.u32 %v1368, %v1364
      %v1370 = vrot.slane %v1369, 4
      %v1372 = vshll.u32 %v1057, 16
      %v1374 = vrot.slane %v1372, 5
      %v1375 = vsel %vm1063, %v1370, %v1374
      %v1377 = vshrl.u32 %v1023, 16
      %v1379 = vrot.slane %v1377, 4
      %v1380 = vshll.u32 %v1023, 16
      %v1382 = vrot.slane %v1380, 5
      %v1383 = vor.u32 %v1379, %v1382
      %v1384 = vrot.slane %v1383, 4
      %v1386 = vshll.u32 %v1024, 16
      %v1388 = vrot.slane %v1386, 5
      %v1389 = vsel %vm1063, %v1384, %v1388
      %v1390 = vshrl.u32 %v1024, 16
      %v1392 = vrot.slane %v1390, 4
      %v1393 = vor.u32 %v1392, %v1388
      %v1394 = vrot.slane %v1393, 4
      %v1396 = vshll.u32 %v1058, 16
      %v1398 = vrot.slane %v1396, 5
      %v1399 = vsel %vm1063, %v1394, %v1398
      %v1401 = vshrl.u32 %v1025, 16
      %v1403 = vrot.slane %v1401, 4
      %v1404 = vshll.u32 %v1025, 16
      %v1406 = vrot.slane %v1404, 5
      %v1407 = vor.u32 %v1403, %v1406
      %v1408 = vrot.slane %v1407, 4
      %v1410 = vshll.u32 %v1026, 16
      %v1412 = vrot.slane %v1410, 5
      %v1413 = vsel %vm1063, %v1408, %v1412
      %v1414 = vshrl.u32 %v1026, 16
      %v1416 = vrot.slane %v1414, 4
      %v1417 = vor.u32 %v1416, %v1412
      %v1418 = vrot.slane %v1417, 4
      %v1420 = vshll.u32 %v1059, 16
      %v1422 = vrot.slane %v1420, 5
      %v1423 = vsel %vm1063, %v1418, %v1422
      %v1425 = vshrl.u32 %v1027, 16
      %v1427 = vrot.slane %v1425, 4
      %v1428 = vshll.u32 %v1027, 16
      %v1430 = vrot.slane %v1428, 5
      %v1431 = vor.u32 %v1427, %v1430
      %v1432 = vrot.slane %v1431, 4
      %v1434 = vshll.u32 %v1028, 16
      %v1436 = vrot.slane %v1434, 5
      %v1437 = vsel %vm1063, %v1432, %v1436
      %v1438 = vshrl.u32 %v1028, 16
      %v1440 = vrot.slane %v1438, 4
      %v1441 = vor.u32 %v1440, %v1436
      %v1442 = vrot.slane %v1441, 4
      %v1444 = vshll.u32 %v1060, 16
      %v1446 = vrot.slane %v1444, 5
      %v1447 = vsel %vm1063, %v1442, %v1446
      %s1448 = scalar_lea.vmem %s1, 64
      %v1449 = vld [vmem:[%s1448] sm:$0xf]
      %v1450 = vld [vmem:[%s1448 + $0x4] sm:$0xf]
      %v1451 = vld [vmem:[%s1448 + $0x8] sm:$0xf]
      %v1452 = vld [vmem:[%s1448 + $0xc] sm:$0xf]
      %v1453 = vld [vmem:[%s1448 + $0x10] sm:$0xf]
      %v1454 = vld [vmem:[%s1448 + $0x14] sm:$0xf]
      %v1455 = vld [vmem:[%s1448 + $0x18] sm:$0xf]
      %v1456 = vld [vmem:[%s1448 + $0x1c] sm:$0xf]
      %v1457 = vld [vmem:[%s1448 + $0x20] sm:$0xf]
      %v1458 = vld [vmem:[%s1448 + $0x24] sm:$0xf]
      %v1459 = vld [vmem:[%s1448 + $0x28] sm:$0xf]
      %v1460 = vld [vmem:[%s1448 + $0x2c] sm:$0xf]
      %v1461 = vld [vmem:[%s1448 + $0x30] sm:$0xf]
      %v1462 = vld [vmem:[%s1448 + $0x34] sm:$0xf]
      %v1463 = vld [vmem:[%s1448 + $0x38] sm:$0xf]
      %v1464 = vld [vmem:[%s1448 + $0x3c] sm:$0xf]
      %v1465 = vunpack.c.l.b16 %v1077
      %v1466 = vunpack.c.l.b16 %v1087
      %v1467 = vunpack.c.l.b16 %v1101
      %v1468 = vunpack.c.l.b16 %v1111
      %v1469 = vunpack.c.l.b16 %v1125
      %v1470 = vunpack.c.l.b16 %v1135
      %v1471 = vunpack.c.l.b16 %v1149
      %v1472 = vunpack.c.l.b16 %v1159
      %v1473 = vunpack.c.l.b16 %v1173
      %v1474 = vunpack.c.l.b16 %v1183
      %v1475 = vunpack.c.l.b16 %v1197
      %v1476 = vunpack.c.l.b16 %v1207
      %v1477 = vunpack.c.l.b16 %v1221
      %v1478 = vunpack.c.l.b16 %v1231
      %v1479 = vunpack.c.l.b16 %v1245
      %v1480 = vunpack.c.l.b16 %v1255
      %v1481 = vunpack.c.l.b16 %v1269
      %v1482 = vunpack.c.l.b16 %v1279
      %v1483 = vunpack.c.l.b16 %v1293
      %v1484 = vunpack.c.l.b16 %v1303
      %v1485 = vunpack.c.l.b16 %v1317
      %v1486 = vunpack.c.l.b16 %v1327
      %v1487 = vunpack.c.l.b16 %v1341
      %v1488 = vunpack.c.l.b16 %v1351
      %v1489 = vunpack.c.l.b16 %v1365
      %v1490 = vunpack.c.l.b16 %v1375
      %v1491 = vunpack.c.l.b16 %v1389
      %v1492 = vunpack.c.l.b16 %v1399
      %v1493 = vunpack.c.l.b16 %v1413
      %v1494 = vunpack.c.l.b16 %v1423
      %v1495 = vunpack.c.l.b16 %v1437
      %v1496 = vunpack.c.l.b16 %v1447
      %v1497 = vpack.c.b16 %v1466, %v1465
      %v1498 = vpack.c.b16 %v1468, %v1467
      %v1499 = vpack.c.b16 %v1470, %v1469
      %v1500 = vpack.c.b16 %v1472, %v1471
      %v1501 = vpack.c.b16 %v1474, %v1473
      %v1502 = vpack.c.b16 %v1476, %v1475
      %v1503 = vpack.c.b16 %v1478, %v1477
      %v1504 = vpack.c.b16 %v1480, %v1479
      %v1505 = vpack.c.b16 %v1482, %v1481
      %v1506 = vpack.c.b16 %v1484, %v1483
      %v1507 = vpack.c.b16 %v1486, %v1485
      %v1508 = vpack.c.b16 %v1488, %v1487
      %v1509 = vpack.c.b16 %v1490, %v1489
      %v1510 = vpack.c.b16 %v1492, %v1491
      %v1511 = vpack.c.b16 %v1494, %v1493
      %v1512 = vpack.c.b16 %v1496, %v1495
      %v1545 = vunpack.c.l.b16 %v1449
      %v1546 = vunpack.c.l.b16 %v1450
      %v1547 = vunpack.c.l.b16 %v1451
      %v1548 = vunpack.c.l.b16 %v1452
      %v1549 = vunpack.c.l.b16 %v1453
      %v1550 = vunpack.c.l.b16 %v1454
      %v1551 = vunpack.c.l.b16 %v1455
      %v1552 = vunpack.c.l.b16 %v1456
      %v1553 = vunpack.c.l.b16 %v1457
      %v1554 = vunpack.c.l.b16 %v1458
      %v1555 = vunpack.c.l.b16 %v1459
      %v1556 = vunpack.c.l.b16 %v1460
      %v1557 = vunpack.c.l.b16 %v1461
      %v1558 = vunpack.c.l.b16 %v1462
      %v1559 = vunpack.c.l.b16 %v1463
      %v1560 = vunpack.c.l.b16 %v1464
      %v1561 = vpack.c.b16 %v1546, %v1545
      %v1562 = vpack.c.b16 %v1548, %v1547
      %v1563 = vpack.c.b16 %v1550, %v1549
      %v1564 = vpack.c.b16 %v1552, %v1551
      %v1565 = vpack.c.b16 %v1554, %v1553
      %v1566 = vpack.c.b16 %v1556, %v1555
      %v1567 = vpack.c.b16 %v1558, %v1557
      %v1568 = vpack.c.b16 %v1560, %v1559
      %1577 = vmatprep.subr.bf16.mxu0 0
      %1578 = vmatpush1.bf16.msra.mxu0 %v1568
      %1579 = vmatprep.subr.bf16.mxu0 0
      %1580 = vmatpush1.bf16.msra.mxu0 %v1567
      %1581 = vmatprep.subr.bf16.mxu0 0
      %1582 = vmatpush1.bf16.msra.mxu0 %v1566
      %1583 = vmatprep.subr.bf16.mxu0 0
      %1584 = vmatpush1.bf16.msra.mxu0 %v1565
      %1585 = vmatprep.subr.bf16.mxu0 0
      %1586 = vmatpush1.bf16.msra.mxu0 %v1564
      %1587 = vmatprep.subr.bf16.mxu0 0
      %1588 = vmatpush1.bf16.msra.mxu0 %v1563
      %1589 = vmatprep.subr.bf16.mxu0 0
      %1590 = vmatpush1.bf16.msra.mxu0 %v1562
      %1591 = vmatprep.subr.bf16.mxu0 0
      %1592 = vmatpush1.bf16.msra.mxu0 %v1561
      %1593 = vmatprep.subr.bf16.mxu0 0
      %1594 = vmatpush2.bf16.msra.mxu0 0
      %1595 = vmatprep.subr.bf16.mxu0 0
      %1596 = vmatpush2.bf16.msra.mxu0 0
      %1597 = vmatprep.subr.bf16.mxu0 0
      %1598 = vmatpush2.bf16.msra.mxu0 0
      %1599 = vmatprep.subr.bf16.mxu0 0
      %1600 = vmatpush2.bf16.msra.mxu0 0
      %1601 = vmatprep.subr.bf16.mxu0 0
      %1602 = vmatpush2.bf16.msra.mxu0 0
      %1603 = vmatprep.subr.bf16.mxu0 0
      %1604 = vmatpush2.bf16.msra.mxu0 0
      %1605 = vmatprep.subr.bf16.mxu0 0
      %1606 = vmatpush2.bf16.msra.mxu0 0
      %1607 = vmatprep.subr.bf16.mxu0 0
      %1608 = vmatpush2.bf16.msra.mxu0 0
      %1609 = vmatprep.mubr.bf16.mxu0 0
      %1610 = vmatmul.mubr.bf16.gmra.mxu0 %v1497
      %v1611 = vpop.f32.mrf.mxu0
      %v1612 = vadd.f32 0.0, %v1611
      %v1613 = vpop.f32.mrf.mxu0
      %v1614 = vpop.f32.mrf.mxu0
      %v1615 = vadd.f32 0.0, %v1614
      %v1616 = vpop.f32.mrf.mxu0
      %1617 = vmatprep.mubr.bf16.mxu0 0
      %1618 = vmatmul.mubr.bf16.gmra.mxu0 %v1498
      %v1619 = vpop.f32.mrf.mxu0
      %v1620 = vadd.f32 0.0, %v1619
      %v1621 = vpop.f32.mrf.mxu0
      %v1622 = vpop.f32.mrf.mxu0
      %v1623 = vadd.f32 0.0, %v1622
      %v1624 = vpop.f32.mrf.mxu0
      %1625 = vmatprep.mubr.bf16.mxu0 0
      %1626 = vmatmul.mubr.bf16.gmra.mxu0 %v1499
      %v1627 = vpop.f32.mrf.mxu0
      %v1628 = vadd.f32 0.0, %v1627
      %v1629 = vpop.f32.mrf.mxu0
      %v1630 = vpop.f32.mrf.mxu0
      %v1631 = vadd.f32 0.0, %v1630
      %v1632 = vpop.f32.mrf.mxu0
      %1633 = vmatprep.mubr.bf16.mxu0 0
      %1634 = vmatmul.mubr.bf16.gmra.mxu0 %v1500
      %v1635 = vpop.f32.mrf.mxu0
      %v1636 = vadd.f32 0.0, %v1635
      %v1637 = vpop.f32.mrf.mxu0
      %v1638 = vpop.f32.mrf.mxu0
      %v1639 = vadd.f32 0.0, %v1638
      %v1640 = vpop.f32.mrf.mxu0
      %1641 = vmatprep.mubr.bf16.mxu0 0
      %1642 = vmatmul.mubr.bf16.gmra.mxu0 %v1501
      %v1643 = vpop.f32.mrf.mxu0
      %v1644 = vadd.f32 0.0, %v1643
      %v1645 = vpop.f32.mrf.mxu0
      %v1646 = vpop.f32.mrf.mxu0
      %v1647 = vadd.f32 0.0, %v1646
      %v1648 = vpop.f32.mrf.mxu0
      %1649 = vmatprep.mubr.bf16.mxu0 0
      %1650 = vmatmul.mubr.bf16.gmra.mxu0 %v1502
      %v1651 = vpop.f32.mrf.mxu0
      %v1652 = vadd.f32 0.0, %v1651
      %v1653 = vpop.f32.mrf.mxu0
      %v1654 = vpop.f32.mrf.mxu0
      %v1655 = vadd.f32 0.0, %v1654
      %v1656 = vpop.f32.mrf.mxu0
      %1657 = vmatprep.mubr.bf16.mxu0 0
      %1658 = vmatmul.mubr.bf16.gmra.mxu0 %v1503
      %v1659 = vpop.f32.mrf.mxu0
      %v1660 = vadd.f32 0.0, %v1659
      %v1661 = vpop.f32.mrf.mxu0
      %v1662 = vpop.f32.mrf.mxu0
      %v1663 = vadd.f32 0.0, %v1662
      %v1664 = vpop.f32.mrf.mxu0
      %1665 = vmatprep.mubr.bf16.mxu0 0
      %1666 = vmatmul.mubr.bf16.gmra.mxu0 %v1504
      %v1667 = vpop.f32.mrf.mxu0
      %v1668 = vadd.f32 0.0, %v1667
      %v1669 = vpop.f32.mrf.mxu0
      %v1670 = vpop.f32.mrf.mxu0
      %v1671 = vadd.f32 0.0, %v1670
      %v1672 = vpop.f32.mrf.mxu0
      %1673 = vmatprep.mubr.bf16.mxu0 0
      %1674 = vmatmul.mubr.bf16.gmra.mxu0 %v1505
      %v1675 = vpop.f32.mrf.mxu0
      %v1676 = vadd.f32 0.0, %v1675
      %v1677 = vpop.f32.mrf.mxu0
      %v1678 = vpop.f32.mrf.mxu0
      %v1679 = vadd.f32 0.0, %v1678
      %v1680 = vpop.f32.mrf.mxu0
      %1681 = vmatprep.mubr.bf16.mxu0 0
      %1682 = vmatmul.mubr.bf16.gmra.mxu0 %v1506
      %v1683 = vpop.f32.mrf.mxu0
      %v1684 = vadd.f32 0.0, %v1683
      %v1685 = vpop.f32.mrf.mxu0
      %v1686 = vpop.f32.mrf.mxu0
      %v1687 = vadd.f32 0.0, %v1686
      %v1688 = vpop.f32.mrf.mxu0
      %1689 = vmatprep.mubr.bf16.mxu0 0
      %1690 = vmatmul.mubr.bf16.gmra.mxu0 %v1507
      %v1691 = vpop.f32.mrf.mxu0
      %v1692 = vadd.f32 0.0, %v1691
      %v1693 = vpop.f32.mrf.mxu0
      %v1694 = vpop.f32.mrf.mxu0
      %v1695 = vadd.f32 0.0, %v1694
      %v1696 = vpop.f32.mrf.mxu0
      %1697 = vmatprep.mubr.bf16.mxu0 0
      %1698 = vmatmul.mubr.bf16.gmra.mxu0 %v1508
      %v1699 = vpop.f32.mrf.mxu0
      %v1700 = vadd.f32 0.0, %v1699
      %v1701 = vpop.f32.mrf.mxu0
      %v1702 = vpop.f32.mrf.mxu0
      %v1703 = vadd.f32 0.0, %v1702
      %v1704 = vpop.f32.mrf.mxu0
      %1705 = vmatprep.mubr.bf16.mxu0 0
      %1706 = vmatmul.mubr.bf16.gmra.mxu0 %v1509
      %v1707 = vpop.f32.mrf.mxu0
      %v1708 = vadd.f32 0.0, %v1707
      %v1709 = vpop.f32.mrf.mxu0
      %v1710 = vpop.f32.mrf.mxu0
      %v1711 = vadd.f32 0.0, %v1710
      %v1712 = vpop.f32.mrf.mxu0
      %1713 = vmatprep.mubr.bf16.mxu0 0
      %1714 = vmatmul.mubr.bf16.gmra.mxu0 %v1510
      %v1715 = vpop.f32.mrf.mxu0
      %v1716 = vadd.f32 0.0, %v1715
      %v1717 = vpop.f32.mrf.mxu0
      %v1718 = vpop.f32.mrf.mxu0
      %v1719 = vadd.f32 0.0, %v1718
      %v1720 = vpop.f32.mrf.mxu0
      %1721 = vmatprep.mubr.bf16.mxu0 0
      %1722 = vmatmul.mubr.bf16.gmra.mxu0 %v1511
      %v1723 = vpop.f32.mrf.mxu0
      %v1724 = vadd.f32 0.0, %v1723
      %v1725 = vpop.f32.mrf.mxu0
      %v1726 = vpop.f32.mrf.mxu0
      %v1727 = vadd.f32 0.0, %v1726
      %v1728 = vpop.f32.mrf.mxu0
      %1729 = vmatprep.mubr.bf16.mxu0 0
      %1730 = vmatmul.mubr.bf16.gmra.mxu0 %v1512
      %v1731 = vpop.f32.mrf.mxu0
      %v1732 = vadd.f32 0.0, %v1731
      %v1733 = vpop.f32.mrf.mxu0
      %v1734 = vpop.f32.mrf.mxu0
      %v1735 = vadd.f32 0.0, %v1734
      %v1736 = vpop.f32.mrf.mxu0
      %1737 = vdwg.mxu0
      %v1770 = vunpack.c.l.b16 %v997
      %v1771 = vunpack.c.l.b16 %v998
      %v1772 = vunpack.c.l.b16 %v999
      %v1773 = vunpack.c.l.b16 %v1000
      %v1774 = vunpack.c.l.b16 %v1001
      %v1775 = vunpack.c.l.b16 %v1002
      %v1776 = vunpack.c.l.b16 %v1003
      %v1777 = vunpack.c.l.b16 %v1004
      %v1778 = vunpack.c.l.b16 %v1005
      %v1779 = vunpack.c.l.b16 %v1006
      %v1780 = vunpack.c.l.b16 %v1007
      %v1781 = vunpack.c.l.b16 %v1008
      %v1782 = vunpack.c.l.b16 %v1009
      %v1783 = vunpack.c.l.b16 %v1010
      %v1784 = vunpack.c.l.b16 %v1011
      %v1785 = vunpack.c.l.b16 %v1012
      %v1786 = vunpack.c.l.b16 %v1013
      %v1787 = vunpack.c.l.b16 %v1014
      %v1788 = vunpack.c.l.b16 %v1015
      %v1789 = vunpack.c.l.b16 %v1016
      %v1790 = vunpack.c.l.b16 %v1017
      %v1791 = vunpack.c.l.b16 %v1018
      %v1792 = vunpack.c.l.b16 %v1019
      %v1793 = vunpack.c.l.b16 %v1020
      %v1794 = vunpack.c.l.b16 %v1021
      %v1795 = vunpack.c.l.b16 %v1022
      %v1796 = vunpack.c.l.b16 %v1023
      %v1797 = vunpack.c.l.b16 %v1024
      %v1798 = vunpack.c.l.b16 %v1025
      %v1799 = vunpack.c.l.b16 %v1026
      %v1800 = vunpack.c.l.b16 %v1027
      %v1801 = vunpack.c.l.b16 %v1028
      %v1802 = vpack.c.b16 %v1771, %v1770
      %v1803 = vpack.c.b16 %v1773, %v1772
      %v1804 = vpack.c.b16 %v1775, %v1774
      %v1805 = vpack.c.b16 %v1777, %v1776
      %v1806 = vpack.c.b16 %v1779, %v1778
      %v1807 = vpack.c.b16 %v1781, %v1780
      %v1808 = vpack.c.b16 %v1783, %v1782
      %v1809 = vpack.c.b16 %v1785, %v1784
      %v1810 = vpack.c.b16 %v1787, %v1786
      %v1811 = vpack.c.b16 %v1789, %v1788
      %v1812 = vpack.c.b16 %v1791, %v1790
      %v1813 = vpack.c.b16 %v1793, %v1792
      %v1814 = vpack.c.b16 %v1795, %v1794
      %v1815 = vpack.c.b16 %v1797, %v1796
      %v1816 = vpack.c.b16 %v1799, %v1798
      %v1817 = vpack.c.b16 %v1801, %v1800
      %v1850 = vunpack.c.l.b16 %v1029
      %v1851 = vunpack.c.l.b16 %v1030
      %v1852 = vunpack.c.l.b16 %v1031
      %v1853 = vunpack.c.l.b16 %v1032
      %v1854 = vunpack.c.l.b16 %v1033
      %v1855 = vunpack.c.l.b16 %v1034
      %v1856 = vunpack.c.l.b16 %v1035
      %v1857 = vunpack.c.l.b16 %v1036
      %v1858 = vunpack.c.l.b16 %v1037
      %v1859 = vunpack.c.l.b16 %v1038
      %v1860 = vunpack.c.l.b16 %v1039
      %v1861 = vunpack.c.l.b16 %v1040
      %v1862 = vunpack.c.l.b16 %v1041
      %v1863 = vunpack.c.l.b16 %v1042
      %v1864 = vunpack.c.l.b16 %v1043
      %v1865 = vunpack.c.l.b16 %v1044
      %v1866 = vpack.c.b16 %v1851, %v1850
      %v1867 = vpack.c.b16 %v1853, %v1852
      %v1868 = vpack.c.b16 %v1855, %v1854
      %v1869 = vpack.c.b16 %v1857, %v1856
      %v1870 = vpack.c.b16 %v1859, %v1858
      %v1871 = vpack.c.b16 %v1861, %v1860
      %v1872 = vpack.c.b16 %v1863, %v1862
      %v1873 = vpack.c.b16 %v1865, %v1864
      %1882 = vmatprep.subr.bf16.mxu0 0
      %1883 = vmatpush1.bf16.msra.mxu0 %v1873
      %1884 = vmatprep.subr.bf16.mxu0 0
      %1885 = vmatpush1.bf16.msra.mxu0 %v1872
      %1886 = vmatprep.subr.bf16.mxu0 0
      %1887 = vmatpush1.bf16.msra.mxu0 %v1871
      %1888 = vmatprep.subr.bf16.mxu0 0
      %1889 = vmatpush1.bf16.msra.mxu0 %v1870
      %1890 = vmatprep.subr.bf16.mxu0 0
      %1891 = vmatpush1.bf16.msra.mxu0 %v1869
      %1892 = vmatprep.subr.bf16.mxu0 0
      %1893 = vmatpush1.bf16.msra.mxu0 %v1868
      %1894 = vmatprep.subr.bf16.mxu0 0
      %1895 = vmatpush1.bf16.msra.mxu0 %v1867
      %1896 = vmatprep.subr.bf16.mxu0 0
      %1897 = vmatpush1.bf16.msra.mxu0 %v1866
      %1898 = vmatprep.subr.bf16.mxu0 0
      %1899 = vmatpush2.bf16.msra.mxu0 0
      %1900 = vmatprep.subr.bf16.mxu0 0
      %1901 = vmatpush2.bf16.msra.mxu0 0
      %1902 = vmatprep.subr.bf16.mxu0 0
      %1903 = vmatpush2.bf16.msra.mxu0 0
      %1904 = vmatprep.subr.bf16.mxu0 0
      %1905 = vmatpush2.bf16.msra.mxu0 0
      %1906 = vmatprep.subr.bf16.mxu0 0
      %1907 = vmatpush2.bf16.msra.mxu0 0
      %1908 = vmatprep.subr.bf16.mxu0 0
      %1909 = vmatpush2.bf16.msra.mxu0 0
      %1910 = vmatprep.subr.bf16.mxu0 0
      %1911 = vmatpush2.bf16.msra.mxu0 0
      %1912 = vmatprep.subr.bf16.mxu0 0
      %1913 = vmatpush2.bf16.msra.mxu0 0
      %1914 = vmatprep.mubr.bf16.mxu0 0
      %1915 = vmatmul.mubr.bf16.gmra.mxu0 %v1802
      %v1916 = vpop.f32.mrf.mxu0
      %v1917 = vadd.f32 %v1612, %v1916
      %v1918 = vpop.f32.mrf.mxu0
      %v1919 = vpop.f32.mrf.mxu0
      %v1920 = vadd.f32 %v1615, %v1919
      %v1921 = vpop.f32.mrf.mxu0
      %1922 = vmatprep.mubr.bf16.mxu0 0
      %1923 = vmatmul.mubr.bf16.gmra.mxu0 %v1803
      %v1924 = vpop.f32.mrf.mxu0
      %v1925 = vadd.f32 %v1620, %v1924
      %v1926 = vpop.f32.mrf.mxu0
      %v1927 = vpop.f32.mrf.mxu0
      %v1928 = vadd.f32 %v1623, %v1927
      %v1929 = vpop.f32.mrf.mxu0
      %1930 = vmatprep.mubr.bf16.mxu0 0
      %1931 = vmatmul.mubr.bf16.gmra.mxu0 %v1804
      %v1932 = vpop.f32.mrf.mxu0
      %v1933 = vadd.f32 %v1628, %v1932
      %v1934 = vpop.f32.mrf.mxu0
      %v1935 = vpop.f32.mrf.mxu0
      %v1936 = vadd.f32 %v1631, %v1935
      %v1937 = vpop.f32.mrf.mxu0
      %1938 = vmatprep.mubr.bf16.mxu0 0
      %1939 = vmatmul.mubr.bf16.gmra.mxu0 %v1805
      %v1940 = vpop.f32.mrf.mxu0
      %v1941 = vadd.f32 %v1636, %v1940
      %v1942 = vpop.f32.mrf.mxu0
      %v1943 = vpop.f32.mrf.mxu0
      %v1944 = vadd.f32 %v1639, %v1943
      %v1945 = vpop.f32.mrf.mxu0
      %1946 = vmatprep.mubr.bf16.mxu0 0
      %1947 = vmatmul.mubr.bf16.gmra.mxu0 %v1806
      %v1948 = vpop.f32.mrf.mxu0
      %v1949 = vadd.f32 %v1644, %v1948
      %v1950 = vpop.f32.mrf.mxu0
      %v1951 = vpop.f32.mrf.mxu0
      %v1952 = vadd.f32 %v1647, %v1951
      %v1953 = vpop.f32.mrf.mxu0
      %1954 = vmatprep.mubr.bf16.mxu0 0
      %1955 = vmatmul.mubr.bf16.gmra.mxu0 %v1807
      %v1956 = vpop.f32.mrf.mxu0
      %v1957 = vadd.f32 %v1652, %v1956
      %v1958 = vpop.f32.mrf.mxu0
      %v1959 = vpop.f32.mrf.mxu0
      %v1960 = vadd.f32 %v1655, %v1959
      %v1961 = vpop.f32.mrf.mxu0
      %1962 = vmatprep.mubr.bf16.mxu0 0
      %1963 = vmatmul.mubr.bf16.gmra.mxu0 %v1808
      %v1964 = vpop.f32.mrf.mxu0
      %v1965 = vadd.f32 %v1660, %v1964
      %v1966 = vpop.f32.mrf.mxu0
      %v1967 = vpop.f32.mrf.mxu0
      %v1968 = vadd.f32 %v1663, %v1967
      %v1969 = vpop.f32.mrf.mxu0
      %1970 = vmatprep.mubr.bf16.mxu0 0
      %1971 = vmatmul.mubr.bf16.gmra.mxu0 %v1809
      %v1972 = vpop.f32.mrf.mxu0
      %v1973 = vadd.f32 %v1668, %v1972
      %v1974 = vpop.f32.mrf.mxu0
      %v1975 = vpop.f32.mrf.mxu0
      %v1976 = vadd.f32 %v1671, %v1975
      %v1977 = vpop.f32.mrf.mxu0
      %1978 = vmatprep.mubr.bf16.mxu0 0
      %1979 = vmatmul.mubr.bf16.gmra.mxu0 %v1810
      %v1980 = vpop.f32.mrf.mxu0
      %v1981 = vadd.f32 %v1676, %v1980
      %v1982 = vpop.f32.mrf.mxu0
      %v1983 = vpop.f32.mrf.mxu0
      %v1984 = vadd.f32 %v1679, %v1983
      %v1985 = vpop.f32.mrf.mxu0
      %1986 = vmatprep.mubr.bf16.mxu0 0
      %1987 = vmatmul.mubr.bf16.gmra.mxu0 %v1811
      %v1988 = vpop.f32.mrf.mxu0
      %v1989 = vadd.f32 %v1684, %v1988
      %v1990 = vpop.f32.mrf.mxu0
      %v1991 = vpop.f32.mrf.mxu0
      %v1992 = vadd.f32 %v1687, %v1991
      %v1993 = vpop.f32.mrf.mxu0
      %1994 = vmatprep.mubr.bf16.mxu0 0
      %1995 = vmatmul.mubr.bf16.gmra.mxu0 %v1812
      %v1996 = vpop.f32.mrf.mxu0
      %v1997 = vadd.f32 %v1692, %v1996
      %v1998 = vpop.f32.mrf.mxu0
      %v1999 = vpop.f32.mrf.mxu0
      %v2000 = vadd.f32 %v1695, %v1999
      %v2001 = vpop.f32.mrf.mxu0
      %2002 = vmatprep.mubr.bf16.mxu0 0
      %2003 = vmatmul.mubr.bf16.gmra.mxu0 %v1813
      %v2004 = vpop.f32.mrf.mxu0
      %v2005 = vadd.f32 %v1700, %v2004
      %v2006 = vpop.f32.mrf.mxu0
      %v2007 = vpop.f32.mrf.mxu0
      %v2008 = vadd.f32 %v1703, %v2007
      %v2009 = vpop.f32.mrf.mxu0
      %2010 = vmatprep.mubr.bf16.mxu0 0
      %2011 = vmatmul.mubr.bf16.gmra.mxu0 %v1814
      %v2012 = vpop.f32.mrf.mxu0
      %v2013 = vadd.f32 %v1708, %v2012
      %v2014 = vpop.f32.mrf.mxu0
      %v2015 = vpop.f32.mrf.mxu0
      %v2016 = vadd.f32 %v1711, %v2015
      %v2017 = vpop.f32.mrf.mxu0
      %2018 = vmatprep.mubr.bf16.mxu0 0
      %2019 = vmatmul.mubr.bf16.gmra.mxu0 %v1815
      %v2020 = vpop.f32.mrf.mxu0
      %v2021 = vadd.f32 %v1716, %v2020
      %v2022 = vpop.f32.mrf.mxu0
      %v2023 = vpop.f32.mrf.mxu0
      %v2024 = vadd.f32 %v1719, %v2023
      %v2025 = vpop.f32.mrf.mxu0
      %2026 = vmatprep.mubr.bf16.mxu0 0
      %2027 = vmatmul.mubr.bf16.gmra.mxu0 %v1816
      %v2028 = vpop.f32.mrf.mxu0
      %v2029 = vadd.f32 %v1724, %v2028
      %v2030 = vpop.f32.mrf.mxu0
      %v2031 = vpop.f32.mrf.mxu0
      %v2032 = vadd.f32 %v1727, %v2031
      %v2033 = vpop.f32.mrf.mxu0
      %2034 = vmatprep.mubr.bf16.mxu0 0
      %2035 = vmatmul.mubr.bf16.gmra.mxu0 %v1817
      %v2036 = vpop.f32.mrf.mxu0
      %v2037 = vadd.f32 %v1732, %v2036
      %v2038 = vpop.f32.mrf.mxu0
      %v2039 = vpop.f32.mrf.mxu0
      %v2040 = vadd.f32 %v1735, %v2039
      %v2041 = vpop.f32.mrf.mxu0
      %2042 = vdwg.mxu0
      %v2043 = vld [vmem:[#allocation2] sm:$0xe]
      %v2044 = vld [vmem:[#allocation2 + $0xc] sm:$0xe]
      %v2045 = vld [vmem:[#allocation2 + $0x18] sm:$0xe]
      %v2046 = vld [vmem:[#allocation2 + $0x24] sm:$0xe]
      %v2047 = vld [vmem:[#allocation2 + $0x30] sm:$0xe]
      %v2048 = vld [vmem:[#allocation2 + $0x3c] sm:$0xe]
      %v2049 = vld [vmem:[#allocation2 + $0x48] sm:$0xe]
      %v2050 = vld [vmem:[#allocation2 + $0x54] sm:$0xe]
      %v2051 = vld [vmem:[#allocation2 + $0x60] sm:$0xe]
      %v2052 = vld [vmem:[#allocation2 + $0x6c] sm:$0xe]
      %v2053 = vld [vmem:[#allocation2 + $0x78] sm:$0xe]
      %v2054 = vld [vmem:[#allocation2 + $0x84] sm:$0xe]
      %v2055 = vld [vmem:[#allocation2 + $0x90] sm:$0xe]
      %v2056 = vld [vmem:[#allocation2 + $0x9c] sm:$0xe]
      %v2057 = vld [vmem:[#allocation2 + $0xa8] sm:$0xe]
      %v2058 = vld [vmem:[#allocation2 + $0xb4] sm:$0xe]
      %vm2091 = vcmask 1042432
      %vm2092 = vcmask 1046532
      %vm2093 = vmor %vm2091, %vm2092
      %v2094 = vrot.slane %v2043, 5
      %v2095 = vrot.slane %v2094, 4
      %v2096 = vrot.slane %v998, 5
      %v2097 = vsel %vm2093, %v2095, %v2096
      %v2098 = vrot.slane %v2096, 4
      %v2099 = vrot.slane %v1045, 5
      %v2100 = vsel %vm2093, %v2098, %v2099
      %v2101 = vrot.slane %v2044, 5
      %v2102 = vrot.slane %v2101, 4
      %v2103 = vrot.slane %v1000, 5
      %v2104 = vsel %vm2093, %v2102, %v2103
      %v2105 = vrot.slane %v2103, 4
      %v2106 = vrot.slane %v1046, 5
      %v2107 = vsel %vm2093, %v2105, %v2106
      %v2108 = vrot.slane %v2045, 5
      %v2109 = vrot.slane %v2108, 4
      %v2110 = vrot.slane %v1002, 5
      %v2111 = vsel %vm2093, %v2109, %v2110
      %v2112 = vrot.slane %v2110, 4
      %v2113 = vrot.slane %v1047, 5
      %v2114 = vsel %vm2093, %v2112, %v2113
      %v2115 = vrot.slane %v2046, 5
      %v2116 = vrot.slane %v2115, 4
      %v2117 = vrot.slane %v1004, 5
      %v2118 = vsel %vm2093, %v2116, %v2117
      %v2119 = vrot.slane %v2117, 4
      %v2120 = vrot.slane %v1048, 5
      %v2121 = vsel %vm2093, %v2119, %v2120
      %v2122 = vrot.slane %v2047, 5
      %v2123 = vrot.slane %v2122, 4
      %v2124 = vrot.slane %v1006, 5
      %v2125 = vsel %vm2093, %v2123, %v2124
      %v2126 = vrot.slane %v2124, 4
      %v2127 = vrot.slane %v1049, 5
      %v2128 = vsel %vm2093, %v2126, %v2127
      %v2129 = vrot.slane %v2048, 5
      %v2130 = vrot.slane %v2129, 4
      %v2131 = vrot.slane %v1008, 5
      %v2132 = vsel %vm2093, %v2130, %v2131
      %v2133 = vrot.slane %v2131, 4
      %v2134 = vrot.slane %v1050, 5
      %v2135 = vsel %vm2093, %v2133, %v2134
      %v2136 = vrot.slane %v2049, 5
      %v2137 = vrot.slane %v2136, 4
      %v2138 = vrot.slane %v1010, 5
      %v2139 = vsel %vm2093, %v2137, %v2138
      %v2140 = vrot.slane %v2138, 4
      %v2141 = vrot.slane %v1051, 5
      %v2142 = vsel %vm2093, %v2140, %v2141
      %v2143 = vrot.slane %v2050, 5
      %v2144 = vrot.slane %v2143, 4
      %v2145 = vrot.slane %v1012, 5
      %v2146 = vsel %vm2093, %v2144, %v2145
      %v2147 = vrot.slane %v2145, 4
      %v2148 = vrot.slane %v1052, 5
      %v2149 = vsel %vm2093, %v2147, %v2148
      %v2150 = vrot.slane %v2051, 5
      %v2151 = vrot.slane %v2150, 4
      %v2152 = vrot.slane %v1014, 5
      %v2153 = vsel %vm2093, %v2151, %v2152
      %v2154 = vrot.slane %v2152, 4
      %v2155 = vrot.slane %v1053, 5
      %v2156 = vsel %vm2093, %v2154, %v2155
      %v2157 = vrot.slane %v2052, 5
      %v2158 = vrot.slane %v2157, 4
      %v2159 = vrot.slane %v1016, 5
      %v2160 = vsel %vm2093, %v2158, %v2159
      %v2161 = vrot.slane %v2159, 4
      %v2162 = vrot.slane %v1054, 5
      %v2163 = vsel %vm2093, %v2161, %v2162
      %v2164 = vrot.slane %v2053, 5
      %v2165 = vrot.slane %v2164, 4
      %v2166 = vrot.slane %v1018, 5
      %v2167 = vsel %vm2093, %v2165, %v2166
      %v2168 = vrot.slane %v2166, 4
      %v2169 = vrot.slane %v1055, 5
      %v2170 = vsel %vm2093, %v2168, %v2169
      %v2171 = vrot.slane %v2054, 5
      %v2172 = vrot.slane %v2171, 4
      %v2173 = vrot.slane %v1020, 5
      %v2174 = vsel %vm2093, %v2172, %v2173
      %v2175 = vrot.slane %v2173, 4
      %v2176 = vrot.slane %v1056, 5
      %v2177 = vsel %vm2093, %v2175, %v2176
      %v2178 = vrot.slane %v2055, 5
      %v2179 = vrot.slane %v2178, 4
      %v2180 = vrot.slane %v1022, 5
      %v2181 = vsel %vm2093, %v2179, %v2180
      %v2182 = vrot.slane %v2180, 4
      %v2183 = vrot.slane %v1057, 5
      %v2184 = vsel %vm2093, %v2182, %v2183
      %v2185 = vrot.slane %v2056, 5
      %v2186 = vrot.slane %v2185, 4
      %v2187 = vrot.slane %v1024, 5
      %v2188 = vsel %vm2093, %v2186, %v2187
      %v2189 = vrot.slane %v2187, 4
      %v2190 = vrot.slane %v1058, 5
      %v2191 = vsel %vm2093, %v2189, %v2190
      %v2192 = vrot.slane %v2057, 5
      %v2193 = vrot.slane %v2192, 4
      %v2194 = vrot.slane %v1026, 5
      %v2195 = vsel %vm2093, %v2193, %v2194
      %v2196 = vrot.slane %v2194, 4
      %v2197 = vrot.slane %v1059, 5
      %v2198 = vsel %vm2093, %v2196, %v2197
      %v2199 = vrot.slane %v2058, 5
      %v2200 = vrot.slane %v2199, 4
      %v2201 = vrot.slane %v1028, 5
      %v2202 = vsel %vm2093, %v2200, %v2201
      %v2203 = vrot.slane %v2201, 4
      %v2204 = vrot.slane %v1060, 5
      %v2205 = vsel %vm2093, %v2203, %v2204
      %s2206 = scalar_lea.vmem %s1, 128
      %v2207 = vld [vmem:[%s2206] sm:$0xf]
      %v2208 = vld [vmem:[%s2206 + $0x4] sm:$0xf]
      %v2209 = vld [vmem:[%s2206 + $0x8] sm:$0xf]
      %v2210 = vld [vmem:[%s2206 + $0xc] sm:$0xf]
      %v2211 = vld [vmem:[%s2206 + $0x10] sm:$0xf]
      %v2212 = vld [vmem:[%s2206 + $0x14] sm:$0xf]
      %v2213 = vld [vmem:[%s2206 + $0x18] sm:$0xf]
      %v2214 = vld [vmem:[%s2206 + $0x1c] sm:$0xf]
      %v2215 = vld [vmem:[%s2206 + $0x20] sm:$0xf]
      %v2216 = vld [vmem:[%s2206 + $0x24] sm:$0xf]
      %v2217 = vld [vmem:[%s2206 + $0x28] sm:$0xf]
      %v2218 = vld [vmem:[%s2206 + $0x2c] sm:$0xf]
      %v2219 = vld [vmem:[%s2206 + $0x30] sm:$0xf]
      %v2220 = vld [vmem:[%s2206 + $0x34] sm:$0xf]
      %v2221 = vld [vmem:[%s2206 + $0x38] sm:$0xf]
      %v2222 = vld [vmem:[%s2206 + $0x3c] sm:$0xf]
      %v2223 = vunpack.c.l.b16 %v2097
      %v2224 = vunpack.c.l.b16 %v2100
      %v2225 = vunpack.c.l.b16 %v2104
      %v2226 = vunpack.c.l.b16 %v2107
      %v2227 = vunpack.c.l.b16 %v2111
      %v2228 = vunpack.c.l.b16 %v2114
      %v2229 = vunpack.c.l.b16 %v2118
      %v2230 = vunpack.c.l.b16 %v2121
      %v2231 = vunpack.c.l.b16 %v2125
      %v2232 = vunpack.c.l.b16 %v2128
      %v2233 = vunpack.c.l.b16 %v2132
      %v2234 = vunpack.c.l.b16 %v2135
      %v2235 = vunpack.c.l.b16 %v2139
      %v2236 = vunpack.c.l.b16 %v2142
      %v2237 = vunpack.c.l.b16 %v2146
      %v2238 = vunpack.c.l.b16 %v2149
      %v2239 = vunpack.c.l.b16 %v2153
      %v2240 = vunpack.c.l.b16 %v2156
      %v2241 = vunpack.c.l.b16 %v2160
      %v2242 = vunpack.c.l.b16 %v2163
      %v2243 = vunpack.c.l.b16 %v2167
      %v2244 = vunpack.c.l.b16 %v2170
      %v2245 = vunpack.c.l.b16 %v2174
      %v2246 = vunpack.c.l.b16 %v2177
      %v2247 = vunpack.c.l.b16 %v2181
      %v2248 = vunpack.c.l.b16 %v2184
      %v2249 = vunpack.c.l.b16 %v2188
      %v2250 = vunpack.c.l.b16 %v2191
      %v2251 = vunpack.c.l.b16 %v2195
      %v2252 = vunpack.c.l.b16 %v2198
      %v2253 = vunpack.c.l.b16 %v2202
      %v2254 = vunpack.c.l.b16 %v2205
      %v2255 = vpack.c.b16 %v2224, %v2223
      %v2256 = vpack.c.b16 %v2226, %v2225
      %v2257 = vpack.c.b16 %v2228, %v2227
      %v2258 = vpack.c.b16 %v2230, %v2229
      %v2259 = vpack.c.b16 %v2232, %v2231
      %v2260 = vpack.c.b16 %v2234, %v2233
      %v2261 = vpack.c.b16 %v2236, %v2235
      %v2262 = vpack.c.b16 %v2238, %v2237
      %v2263 = vpack.c.b16 %v2240, %v2239
      %v2264 = vpack.c.b16 %v2242, %v2241
      %v2265 = vpack.c.b16 %v2244, %v2243
      %v2266 = vpack.c.b16 %v2246, %v2245
      %v2267 = vpack.c.b16 %v2248, %v2247
      %v2268 = vpack.c.b16 %v2250, %v2249
      %v2269 = vpack.c.b16 %v2252, %v2251
      %v2270 = vpack.c.b16 %v2254, %v2253
      %v2303 = vunpack.c.l.b16 %v2207
      %v2304 = vunpack.c.l.b16 %v2208
      %v2305 = vunpack.c.l.b16 %v2209
      %v2306 = vunpack.c.l.b16 %v2210
      %v2307 = vunpack.c.l.b16 %v2211
      %v2308 = vunpack.c.l.b16 %v2212
      %v2309 = vunpack.c.l.b16 %v2213
      %v2310 = vunpack.c.l.b16 %v2214
      %v2311 = vunpack.c.l.b16 %v2215
      %v2312 = vunpack.c.l.b16 %v2216
      %v2313 = vunpack.c.l.b16 %v2217
      %v2314 = vunpack.c.l.b16 %v2218
      %v2315 = vunpack.c.l.b16 %v2219
      %v2316 = vunpack.c.l.b16 %v2220
      %v2317 = vunpack.c.l.b16 %v2221
      %v2318 = vunpack.c.l.b16 %v2222
      %v2319 = vpack.c.b16 %v2304, %v2303
      %v2320 = vpack.c.b16 %v2306, %v2305
      %v2321 = vpack.c.b16 %v2308, %v2307
      %v2322 = vpack.c.b16 %v2310, %v2309
      %v2323 = vpack.c.b16 %v2312, %v2311
      %v2324 = vpack.c.b16 %v2314, %v2313
      %v2325 = vpack.c.b16 %v2316, %v2315
      %v2326 = vpack.c.b16 %v2318, %v2317
      %2335 = vmatprep.subr.bf16.mxu0 0
      %2336 = vmatpush1.bf16.msra.mxu0 %v2326
      %2337 = vmatprep.subr.bf16.mxu0 0
      %2338 = vmatpush1.bf16.msra.mxu0 %v2325
      %2339 = vmatprep.subr.bf16.mxu0 0
      %2340 = vmatpush1.bf16.msra.mxu0 %v2324
      %2341 = vmatprep.subr.bf16.mxu0 0
      %2342 = vmatpush1.bf16.msra.mxu0 %v2323
      %2343 = vmatprep.subr.bf16.mxu0 0
      %2344 = vmatpush1.bf16.msra.mxu0 %v2322
      %2345 = vmatprep.subr.bf16.mxu0 0
      %2346 = vmatpush1.bf16.msra.mxu0 %v2321
      %2347 = vmatprep.subr.bf16.mxu0 0
      %2348 = vmatpush1.bf16.msra.mxu0 %v2320
      %2349 = vmatprep.subr.bf16.mxu0 0
      %2350 = vmatpush1.bf16.msra.mxu0 %v2319
      %2351 = vmatprep.subr.bf16.mxu0 0
      %2352 = vmatpush2.bf16.msra.mxu0 0
      %2353 = vmatprep.subr.bf16.mxu0 0
      %2354 = vmatpush2.bf16.msra.mxu0 0
      %2355 = vmatprep.subr.bf16.mxu0 0
      %2356 = vmatpush2.bf16.msra.mxu0 0
      %2357 = vmatprep.subr.bf16.mxu0 0
      %2358 = vmatpush2.bf16.msra.mxu0 0
      %2359 = vmatprep.subr.bf16.mxu0 0
      %2360 = vmatpush2.bf16.msra.mxu0 0
      %2361 = vmatprep.subr.bf16.mxu0 0
      %2362 = vmatpush2.bf16.msra.mxu0 0
      %2363 = vmatprep.subr.bf16.mxu0 0
      %2364 = vmatpush2.bf16.msra.mxu0 0
      %2365 = vmatprep.subr.bf16.mxu0 0
      %2366 = vmatpush2.bf16.msra.mxu0 0
      %2367 = vmatprep.mubr.bf16.mxu0 0
      %2368 = vmatmul.mubr.bf16.gmra.mxu0 %v2255
      %v2369 = vpop.f32.mrf.mxu0
      %v2370 = vadd.f32 0.0, %v2369
      %v2371 = vpop.f32.mrf.mxu0
      %v2372 = vpop.f32.mrf.mxu0
      %v2373 = vadd.f32 0.0, %v2372
      %v2374 = vpop.f32.mrf.mxu0
      %2375 = vmatprep.mubr.bf16.mxu0 0
      %2376 = vmatmul.mubr.bf16.gmra.mxu0 %v2256
      %v2377 = vpop.f32.mrf.mxu0
      %v2378 = vadd.f32 0.0, %v2377
      %v2379 = vpop.f32.mrf.mxu0
      %v2380 = vpop.f32.mrf.mxu0
      %v2381 = vadd.f32 0.0, %v2380
      %v2382 = vpop.f32.mrf.mxu0
      %2383 = vmatprep.mubr.bf16.mxu0 0
      %2384 = vmatmul.mubr.bf16.gmra.mxu0 %v2257
      %v2385 = vpop.f32.mrf.mxu0
      %v2386 = vadd.f32 0.0, %v2385
      %v2387 = vpop.f32.mrf.mxu0
      %v2388 = vpop.f32.mrf.mxu0
      %v2389 = vadd.f32 0.0, %v2388
      %v2390 = vpop.f32.mrf.mxu0
      %2391 = vmatprep.mubr.bf16.mxu0 0
      %2392 = vmatmul.mubr.bf16.gmra.mxu0 %v2258
      %v2393 = vpop.f32.mrf.mxu0
      %v2394 = vadd.f32 0.0, %v2393
      %v2395 = vpop.f32.mrf.mxu0
      %v2396 = vpop.f32.mrf.mxu0
      %v2397 = vadd.f32 0.0, %v2396
      %v2398 = vpop.f32.mrf.mxu0
      %2399 = vmatprep.mubr.bf16.mxu0 0
      %2400 = vmatmul.mubr.bf16.gmra.mxu0 %v2259
      %v2401 = vpop.f32.mrf.mxu0
      %v2402 = vadd.f32 0.0, %v2401
      %v2403 = vpop.f32.mrf.mxu0
      %v2404 = vpop.f32.mrf.mxu0
      %v2405 = vadd.f32 0.0, %v2404
      %v2406 = vpop.f32.mrf.mxu0
      %2407 = vmatprep.mubr.bf16.mxu0 0
      %2408 = vmatmul.mubr.bf16.gmra.mxu0 %v2260
      %v2409 = vpop.f32.mrf.mxu0
      %v2410 = vadd.f32 0.0, %v2409
      %v2411 = vpop.f32.mrf.mxu0
      %v2412 = vpop.f32.mrf.mxu0
      %v2413 = vadd.f32 0.0, %v2412
      %v2414 = vpop.f32.mrf.mxu0
      %2415 = vmatprep.mubr.bf16.mxu0 0
      %2416 = vmatmul.mubr.bf16.gmra.mxu0 %v2261
      %v2417 = vpop.f32.mrf.mxu0
      %v2418 = vadd.f32 0.0, %v2417
      %v2419 = vpop.f32.mrf.mxu0
      %v2420 = vpop.f32.mrf.mxu0
      %v2421 = vadd.f32 0.0, %v2420
      %v2422 = vpop.f32.mrf.mxu0
      %2423 = vmatprep.mubr.bf16.mxu0 0
      %2424 = vmatmul.mubr.bf16.gmra.mxu0 %v2262
      %v2425 = vpop.f32.mrf.mxu0
      %v2426 = vadd.f32 0.0, %v2425
      %v2427 = vpop.f32.mrf.mxu0
      %v2428 = vpop.f32.mrf.mxu0
      %v2429 = vadd.f32 0.0, %v2428
      %v2430 = vpop.f32.mrf.mxu0
      %2431 = vmatprep.mubr.bf16.mxu0 0
      %2432 = vmatmul.mubr.bf16.gmra.mxu0 %v2263
      %v2433 = vpop.f32.mrf.mxu0
      %v2434 = vadd.f32 0.0, %v2433
      %v2435 = vpop.f32.mrf.mxu0
      %v2436 = vpop.f32.mrf.mxu0
      %v2437 = vadd.f32 0.0, %v2436
      %v2438 = vpop.f32.mrf.mxu0
      %2439 = vmatprep.mubr.bf16.mxu0 0
      %2440 = vmatmul.mubr.bf16.gmra.mxu0 %v2264
      %v2441 = vpop.f32.mrf.mxu0
      %v2442 = vadd.f32 0.0, %v2441
      %v2443 = vpop.f32.mrf.mxu0
      %v2444 = vpop.f32.mrf.mxu0
      %v2445 = vadd.f32 0.0, %v2444
      %v2446 = vpop.f32.mrf.mxu0
      %2447 = vmatprep.mubr.bf16.mxu0 0
      %2448 = vmatmul.mubr.bf16.gmra.mxu0 %v2265
      %v2449 = vpop.f32.mrf.mxu0
      %v2450 = vadd.f32 0.0, %v2449
      %v2451 = vpop.f32.mrf.mxu0
      %v2452 = vpop.f32.mrf.mxu0
      %v2453 = vadd.f32 0.0, %v2452
      %v2454 = vpop.f32.mrf.mxu0
      %2455 = vmatprep.mubr.bf16.mxu0 0
      %2456 = vmatmul.mubr.bf16.gmra.mxu0 %v2266
      %v2457 = vpop.f32.mrf.mxu0
      %v2458 = vadd.f32 0.0, %v2457
      %v2459 = vpop.f32.mrf.mxu0
      %v2460 = vpop.f32.mrf.mxu0
      %v2461 = vadd.f32 0.0, %v2460
      %v2462 = vpop.f32.mrf.mxu0
      %2463 = vmatprep.mubr.bf16.mxu0 0
      %2464 = vmatmul.mubr.bf16.gmra.mxu0 %v2267
      %v2465 = vpop.f32.mrf.mxu0
      %v2466 = vadd.f32 0.0, %v2465
      %v2467 = vpop.f32.mrf.mxu0
      %v2468 = vpop.f32.mrf.mxu0
      %v2469 = vadd.f32 0.0, %v2468
      %v2470 = vpop.f32.mrf.mxu0
      %2471 = vmatprep.mubr.bf16.mxu0 0
      %2472 = vmatmul.mubr.bf16.gmra.mxu0 %v2268
      %v2473 = vpop.f32.mrf.mxu0
      %v2474 = vadd.f32 0.0, %v2473
      %v2475 = vpop.f32.mrf.mxu0
      %v2476 = vpop.f32.mrf.mxu0
      %v2477 = vadd.f32 0.0, %v2476
      %v2478 = vpop.f32.mrf.mxu0
      %2479 = vmatprep.mubr.bf16.mxu0 0
      %2480 = vmatmul.mubr.bf16.gmra.mxu0 %v2269
      %v2481 = vpop.f32.mrf.mxu0
      %v2482 = vadd.f32 0.0, %v2481
      %v2483 = vpop.f32.mrf.mxu0
      %v2484 = vpop.f32.mrf.mxu0
      %v2485 = vadd.f32 0.0, %v2484
      %v2486 = vpop.f32.mrf.mxu0
      %2487 = vmatprep.mubr.bf16.mxu0 0
      %2488 = vmatmul.mubr.bf16.gmra.mxu0 %v2270
      %v2489 = vpop.f32.mrf.mxu0
      %v2490 = vadd.f32 0.0, %v2489
      %v2491 = vpop.f32.mrf.mxu0
      %v2492 = vpop.f32.mrf.mxu0
      %v2493 = vadd.f32 0.0, %v2492
      %v2494 = vpop.f32.mrf.mxu0
      %2495 = vdwg.mxu0
      %v2496 = vadd.f32 %v1917, %v2370
      %v2497 = vadd.f32 %v1920, %v2373
      %v2498 = vadd.f32 %v1925, %v2378
      %v2499 = vadd.f32 %v1928, %v2381
      %v2500 = vadd.f32 %v1933, %v2386
      %v2501 = vadd.f32 %v1936, %v2389
      %v2502 = vadd.f32 %v1941, %v2394
      %v2503 = vadd.f32 %v1944, %v2397
      %v2504 = vadd.f32 %v1949, %v2402
      %v2505 = vadd.f32 %v1952, %v2405
      %v2506 = vadd.f32 %v1957, %v2410
      %v2507 = vadd.f32 %v1960, %v2413
      %v2508 = vadd.f32 %v1965, %v2418
      %v2509 = vadd.f32 %v1968, %v2421
      %v2510 = vadd.f32 %v1973, %v2426
      %v2511 = vadd.f32 %v1976, %v2429
      %v2512 = vadd.f32 %v1981, %v2434
      %v2513 = vadd.f32 %v1984, %v2437
      %v2514 = vadd.f32 %v1989, %v2442
      %v2515 = vadd.f32 %v1992, %v2445
      %v2516 = vadd.f32 %v1997, %v2450
      %v2517 = vadd.f32 %v2000, %v2453
      %v2518 = vadd.f32 %v2005, %v2458
      %v2519 = vadd.f32 %v2008, %v2461
      %v2520 = vadd.f32 %v2013, %v2466
      %v2521 = vadd.f32 %v2016, %v2469
      %v2522 = vadd.f32 %v2021, %v2474
      %v2523 = vadd.f32 %v2024, %v2477
      %v2524 = vadd.f32 %v2029, %v2482
      %v2525 = vadd.f32 %v2032, %v2485
      %v2526 = vadd.f32 %v2037, %v2490
      %v2527 = vadd.f32 %v2040, %v2493
      %v2528 = vld [vmem:[%s879] sm:$0xf]
      %v2529 = vld [vmem:[%s879 + $0x4] sm:$0xf]
      %v2530 = vld [vmem:[%s879 + $0xc] sm:$0xf]
      %v2531 = vld [vmem:[%s879 + $0x10] sm:$0xf]
      %v2532 = vld [vmem:[%s879 + $0x18] sm:$0xf]
      %v2533 = vld [vmem:[%s879 + $0x1c] sm:$0xf]
      %v2534 = vld [vmem:[%s879 + $0x24] sm:$0xf]
      %v2535 = vld [vmem:[%s879 + $0x28] sm:$0xf]
      %v2536 = vld [vmem:[%s879 + $0x30] sm:$0xf]
      %v2537 = vld [vmem:[%s879 + $0x34] sm:$0xf]
      %v2538 = vld [vmem:[%s879 + $0x3c] sm:$0xf]
      %v2539 = vld [vmem:[%s879 + $0x40] sm:$0xf]
      %v2540 = vld [vmem:[%s879 + $0x48] sm:$0xf]
      %v2541 = vld [vmem:[%s879 + $0x4c] sm:$0xf]
      %v2542 = vld [vmem:[%s879 + $0x54] sm:$0xf]
      %v2543 = vld [vmem:[%s879 + $0x58] sm:$0xf]
      %v2544 = vld [vmem:[%s879 + $0x60] sm:$0xf]
      %v2545 = vld [vmem:[%s879 + $0x64] sm:$0xf]
      %v2546 = vld [vmem:[%s879 + $0x6c] sm:$0xf]
      %v2547 = vld [vmem:[%s879 + $0x70] sm:$0xf]
      %v2548 = vld [vmem:[%s879 + $0x78] sm:$0xf]
      %v2549 = vld [vmem:[%s879 + $0x7c] sm:$0xf]
      %v2550 = vld [vmem:[%s879 + $0x84] sm:$0xf]
      %v2551 = vld [vmem:[%s879 + $0x88] sm:$0xf]
      %v2552 = vld [vmem:[%s879 + $0x90] sm:$0xf]
      %v2553 = vld [vmem:[%s879 + $0x94] sm:$0xf]
      %v2554 = vld [vmem:[%s879 + $0x9c] sm:$0xf]
      %v2555 = vld [vmem:[%s879 + $0xa0] sm:$0xf]
      %v2556 = vld [vmem:[%s879 + $0xa8] sm:$0xf]
      %v2557 = vld [vmem:[%s879 + $0xac] sm:$0xf]
      %v2558 = vld [vmem:[%s879 + $0xb4] sm:$0xf]
      %v2559 = vld [vmem:[%s879 + $0xb8] sm:$0xf]
      %s2560 = scalar_lea.vmem %s1, 192
      %v2561 = vld [vmem:[%s2560] sm:$0xf]
      %v2562 = vld [vmem:[%s2560 + $0x4] sm:$0xf]
      %v2563 = vld [vmem:[%s2560 + $0x8] sm:$0xf]
      %v2564 = vld [vmem:[%s2560 + $0xc] sm:$0xf]
      %v2565 = vld [vmem:[%s2560 + $0x10] sm:$0xf]
      %v2566 = vld [vmem:[%s2560 + $0x14] sm:$0xf]
      %v2567 = vld [vmem:[%s2560 + $0x18] sm:$0xf]
      %v2568 = vld [vmem:[%s2560 + $0x1c] sm:$0xf]
      %v2569 = vld [vmem:[%s2560 + $0x20] sm:$0xf]
      %v2570 = vld [vmem:[%s2560 + $0x24] sm:$0xf]
      %v2571 = vld [vmem:[%s2560 + $0x28] sm:$0xf]
      %v2572 = vld [vmem:[%s2560 + $0x2c] sm:$0xf]
      %v2573 = vld [vmem:[%s2560 + $0x30] sm:$0xf]
      %v2574 = vld [vmem:[%s2560 + $0x34] sm:$0xf]
      %v2575 = vld [vmem:[%s2560 + $0x38] sm:$0xf]
      %v2576 = vld [vmem:[%s2560 + $0x3c] sm:$0xf]
      %v2609 = vunpack.c.l.b16 %v2528
      %v2610 = vunpack.c.l.b16 %v2529
      %v2611 = vunpack.c.l.b16 %v2530
      %v2612 = vunpack.c.l.b16 %v2531
      %v2613 = vunpack.c.l.b16 %v2532
      %v2614 = vunpack.c.l.b16 %v2533
      %v2615 = vunpack.c.l.b16 %v2534
      %v2616 = vunpack.c.l.b16 %v2535
      %v2617 = vunpack.c.l.b16 %v2536
      %v2618 = vunpack.c.l.b16 %v2537
      %v2619 = vunpack.c.l.b16 %v2538
      %v2620 = vunpack.c.l.b16 %v2539
      %v2621 = vunpack.c.l.b16 %v2540
      %v2622 = vunpack.c.l.b16 %v2541
      %v2623 = vunpack.c.l.b16 %v2542
      %v2624 = vunpack.c.l.b16 %v2543
      %v2625 = vunpack.c.l.b16 %v2544
      %v2626 = vunpack.c.l.b16 %v2545
      %v2627 = vunpack.c.l.b16 %v2546
      %v2628 = vunpack.c.l.b16 %v2547
      %v2629 = vunpack.c.l.b16 %v2548
      %v2630 = vunpack.c.l.b16 %v2549
      %v2631 = vunpack.c.l.b16 %v2550
      %v2632 = vunpack.c.l.b16 %v2551
      %v2633 = vunpack.c.l.b16 %v2552
      %v2634 = vunpack.c.l.b16 %v2553
      %v2635 = vunpack.c.l.b16 %v2554
      %v2636 = vunpack.c.l.b16 %v2555
      %v2637 = vunpack.c.l.b16 %v2556
      %v2638 = vunpack.c.l.b16 %v2557
      %v2639 = vunpack.c.l.b16 %v2558
      %v2640 = vunpack.c.l.b16 %v2559
      %v2641 = vpack.c.b16 %v2610, %v2609
      %v2642 = vpack.c.b16 %v2612, %v2611
      %v2643 = vpack.c.b16 %v2614, %v2613
      %v2644 = vpack.c.b16 %v2616, %v2615
      %v2645 = vpack.c.b16 %v2618, %v2617
      %v2646 = vpack.c.b16 %v2620, %v2619
      %v2647 = vpack.c.b16 %v2622, %v2621
      %v2648 = vpack.c.b16 %v2624, %v2623
      %v2649 = vpack.c.b16 %v2626, %v2625
      %v2650 = vpack.c.b16 %v2628, %v2627
      %v2651 = vpack.c.b16 %v2630, %v2629
      %v2652 = vpack.c.b16 %v2632, %v2631
      %v2653 = vpack.c.b16 %v2634, %v2633
      %v2654 = vpack.c.b16 %v2636, %v2635
      %v2655 = vpack.c.b16 %v2638, %v2637
      %v2656 = vpack.c.b16 %v2640, %v2639
      %v2689 = vunpack.c.l.b16 %v2561
      %v2690 = vunpack.c.l.b16 %v2562
      %v2691 = vunpack.c.l.b16 %v2563
      %v2692 = vunpack.c.l.b16 %v2564
      %v2693 = vunpack.c.l.b16 %v2565
      %v2694 = vunpack.c.l.b16 %v2566
      %v2695 = vunpack.c.l.b16 %v2567
      %v2696 = vunpack.c.l.b16 %v2568
      %v2697 = vunpack.c.l.b16 %v2569
      %v2698 = vunpack.c.l.b16 %v2570
      %v2699 = vunpack.c.l.b16 %v2571
      %v2700 = vunpack.c.l.b16 %v2572
      %v2701 = vunpack.c.l.b16 %v2573
      %v2702 = vunpack.c.l.b16 %v2574
      %v2703 = vunpack.c.l.b16 %v2575
      %v2704 = vunpack.c.l.b16 %v2576
      %v2705 = vpack.c.b16 %v2690, %v2689
      %v2706 = vpack.c.b16 %v2692, %v2691
      %v2707 = vpack.c.b16 %v2694, %v2693
      %v2708 = vpack.c.b16 %v2696, %v2695
      %v2709 = vpack.c.b16 %v2698, %v2697
      %v2710 = vpack.c.b16 %v2700, %v2699
      %v2711 = vpack.c.b16 %v2702, %v2701
      %v2712 = vpack.c.b16 %v2704, %v2703
      %2721 = vmatprep.subr.bf16.mxu0 0
      %2722 = vmatpush1.bf16.msra.mxu0 %v2712
      %2723 = vmatprep.subr.bf16.mxu0 0
      %2724 = vmatpush1.bf16.msra.mxu0 %v2711
      %2725 = vmatprep.subr.bf16.mxu0 0
      %2726 = vmatpush1.bf16.msra.mxu0 %v2710
      %2727 = vmatprep.subr.bf16.mxu0 0
      %2728 = vmatpush1.bf16.msra.mxu0 %v2709
      %2729 = vmatprep.subr.bf16.mxu0 0
      %2730 = vmatpush1.bf16.msra.mxu0 %v2708
      %2731 = vmatprep.subr.bf16.mxu0 0
      %2732 = vmatpush1.bf16.msra.mxu0 %v2707
      %2733 = vmatprep.subr.bf16.mxu0 0
      %2734 = vmatpush1.bf16.msra.mxu0 %v2706
      %2735 = vmatprep.subr.bf16.mxu0 0
      %2736 = vmatpush1.bf16.msra.mxu0 %v2705
      %2737 = vmatprep.subr.bf16.mxu0 0
      %2738 = vmatpush2.bf16.msra.mxu0 0
      %2739 = vmatprep.subr.bf16.mxu0 0
      %2740 = vmatpush2.bf16.msra.mxu0 0
      %2741 = vmatprep.subr.bf16.mxu0 0
      %2742 = vmatpush2.bf16.msra.mxu0 0
      %2743 = vmatprep.subr.bf16.mxu0 0
      %2744 = vmatpush2.bf16.msra.mxu0 0
      %2745 = vmatprep.subr.bf16.mxu0 0
      %2746 = vmatpush2.bf16.msra.mxu0 0
      %2747 = vmatprep.subr.bf16.mxu0 0
      %2748 = vmatpush2.bf16.msra.mxu0 0
      %2749 = vmatprep.subr.bf16.mxu0 0
      %2750 = vmatpush2.bf16.msra.mxu0 0
      %2751 = vmatprep.subr.bf16.mxu0 0
      %2752 = vmatpush2.bf16.msra.mxu0 0
      %2753 = vmatprep.mubr.bf16.mxu0 0
      %2754 = vmatmul.mubr.bf16.gmra.mxu0 %v2641
      %v2755 = vpop.f32.mrf.mxu0
      %v2756 = vadd.f32 0.0, %v2755
      %v2757 = vpop.f32.mrf.mxu0
      %v2758 = vpop.f32.mrf.mxu0
      %v2759 = vadd.f32 0.0, %v2758
      %v2760 = vpop.f32.mrf.mxu0
      %2761 = vmatprep.mubr.bf16.mxu0 0
      %2762 = vmatmul.mubr.bf16.gmra.mxu0 %v2642
      %v2763 = vpop.f32.mrf.mxu0
      %v2764 = vadd.f32 0.0, %v2763
      %v2765 = vpop.f32.mrf.mxu0
      %v2766 = vpop.f32.mrf.mxu0
      %v2767 = vadd.f32 0.0, %v2766
      %v2768 = vpop.f32.mrf.mxu0
      %2769 = vmatprep.mubr.bf16.mxu0 0
      %2770 = vmatmul.mubr.bf16.gmra.mxu0 %v2643
      %v2771 = vpop.f32.mrf.mxu0
      %v2772 = vadd.f32 0.0, %v2771
      %v2773 = vpop.f32.mrf.mxu0
      %v2774 = vpop.f32.mrf.mxu0
      %v2775 = vadd.f32 0.0, %v2774
      %v2776 = vpop.f32.mrf.mxu0
      %2777 = vmatprep.mubr.bf16.mxu0 0
      %2778 = vmatmul.mubr.bf16.gmra.mxu0 %v2644
      %v2779 = vpop.f32.mrf.mxu0
      %v2780 = vadd.f32 0.0, %v2779
      %v2781 = vpop.f32.mrf.mxu0
      %v2782 = vpop.f32.mrf.mxu0
      %v2783 = vadd.f32 0.0, %v2782
      %v2784 = vpop.f32.mrf.mxu0
      %2785 = vmatprep.mubr.bf16.mxu0 0
      %2786 = vmatmul.mubr.bf16.gmra.mxu0 %v2645
      %v2787 = vpop.f32.mrf.mxu0
      %v2788 = vadd.f32 0.0, %v2787
      %v2789 = vpop.f32.mrf.mxu0
      %v2790 = vpop.f32.mrf.mxu0
      %v2791 = vadd.f32 0.0, %v2790
      %v2792 = vpop.f32.mrf.mxu0
      %2793 = vmatprep.mubr.bf16.mxu0 0
      %2794 = vmatmul.mubr.bf16.gmra.mxu0 %v2646
      %v2795 = vpop.f32.mrf.mxu0
      %v2796 = vadd.f32 0.0, %v2795
      %v2797 = vpop.f32.mrf.mxu0
      %v2798 = vpop.f32.mrf.mxu0
      %v2799 = vadd.f32 0.0, %v2798
      %v2800 = vpop.f32.mrf.mxu0
      %2801 = vmatprep.mubr.bf16.mxu0 0
      %2802 = vmatmul.mubr.bf16.gmra.mxu0 %v2647
      %v2803 = vpop.f32.mrf.mxu0
      %v2804 = vadd.f32 0.0, %v2803
      %v2805 = vpop.f32.mrf.mxu0
      %v2806 = vpop.f32.mrf.mxu0
      %v2807 = vadd.f32 0.0, %v2806
      %v2808 = vpop.f32.mrf.mxu0
      %2809 = vmatprep.mubr.bf16.mxu0 0
      %2810 = vmatmul.mubr.bf16.gmra.mxu0 %v2648
      %v2811 = vpop.f32.mrf.mxu0
      %v2812 = vadd.f32 0.0, %v2811
      %v2813 = vpop.f32.mrf.mxu0
      %v2814 = vpop.f32.mrf.mxu0
      %v2815 = vadd.f32 0.0, %v2814
      %v2816 = vpop.f32.mrf.mxu0
      %2817 = vmatprep.mubr.bf16.mxu0 0
      %2818 = vmatmul.mubr.bf16.gmra.mxu0 %v2649
      %v2819 = vpop.f32.mrf.mxu0
      %v2820 = vadd.f32 0.0, %v2819
      %v2821 = vpop.f32.mrf.mxu0
      %v2822 = vpop.f32.mrf.mxu0
      %v2823 = vadd.f32 0.0, %v2822
      %v2824 = vpop.f32.mrf.mxu0
      %2825 = vmatprep.mubr.bf16.mxu0 0
      %2826 = vmatmul.mubr.bf16.gmra.mxu0 %v2650
      %v2827 = vpop.f32.mrf.mxu0
      %v2828 = vadd.f32 0.0, %v2827
      %v2829 = vpop.f32.mrf.mxu0
      %v2830 = vpop.f32.mrf.mxu0
      %v2831 = vadd.f32 0.0, %v2830
      %v2832 = vpop.f32.mrf.mxu0
      %2833 = vmatprep.mubr.bf16.mxu0 0
      %2834 = vmatmul.mubr.bf16.gmra.mxu0 %v2651
      %v2835 = vpop.f32.mrf.mxu0
      %v2836 = vadd.f32 0.0, %v2835
      %v2837 = vpop.f32.mrf.mxu0
      %v2838 = vpop.f32.mrf.mxu0
      %v2839 = vadd.f32 0.0, %v2838
      %v2840 = vpop.f32.mrf.mxu0
      %2841 = vmatprep.mubr.bf16.mxu0 0
      %2842 = vmatmul.mubr.bf16.gmra.mxu0 %v2652
      %v2843 = vpop.f32.mrf.mxu0
      %v2844 = vadd.f32 0.0, %v2843
      %v2845 = vpop.f32.mrf.mxu0
      %v2846 = vpop.f32.mrf.mxu0
      %v2847 = vadd.f32 0.0, %v2846
      %v2848 = vpop.f32.mrf.mxu0
      %2849 = vmatprep.mubr.bf16.mxu0 0
      %2850 = vmatmul.mubr.bf16.gmra.mxu0 %v2653
      %v2851 = vpop.f32.mrf.mxu0
      %v2852 = vadd.f32 0.0, %v2851
      %v2853 = vpop.f32.mrf.mxu0
      %v2854 = vpop.f32.mrf.mxu0
      %v2855 = vadd.f32 0.0, %v2854
      %v2856 = vpop.f32.mrf.mxu0
      %2857 = vmatprep.mubr.bf16.mxu0 0
      %2858 = vmatmul.mubr.bf16.gmra.mxu0 %v2654
      %v2859 = vpop.f32.mrf.mxu0
      %v2860 = vadd.f32 0.0, %v2859
      %v2861 = vpop.f32.mrf.mxu0
      %v2862 = vpop.f32.mrf.mxu0
      %v2863 = vadd.f32 0.0, %v2862
      %v2864 = vpop.f32.mrf.mxu0
      %2865 = vmatprep.mubr.bf16.mxu0 0
      %2866 = vmatmul.mubr.bf16.gmra.mxu0 %v2655
      %v2867 = vpop.f32.mrf.mxu0
      %v2868 = vadd.f32 0.0, %v2867
      %v2869 = vpop.f32.mrf.mxu0
      %v2870 = vpop.f32.mrf.mxu0
      %v2871 = vadd.f32 0.0, %v2870
      %v2872 = vpop.f32.mrf.mxu0
      %2873 = vmatprep.mubr.bf16.mxu0 0
      %2874 = vmatmul.mubr.bf16.gmra.mxu0 %v2656
      %v2875 = vpop.f32.mrf.mxu0
      %v2876 = vadd.f32 0.0, %v2875
      %v2877 = vpop.f32.mrf.mxu0
      %v2878 = vpop.f32.mrf.mxu0
      %v2879 = vadd.f32 0.0, %v2878
      %v2880 = vpop.f32.mrf.mxu0
      %2881 = vdwg.mxu0
      %v2882 = vadd.f32 %v2496, %v2756
      %v2883 = vadd.f32 %v2497, %v2759
      %v2884 = vadd.f32 %v2498, %v2764
      %v2885 = vadd.f32 %v2499, %v2767
      %v2886 = vadd.f32 %v2500, %v2772
      %v2887 = vadd.f32 %v2501, %v2775
      %v2888 = vadd.f32 %v2502, %v2780
      %v2889 = vadd.f32 %v2503, %v2783
      %v2890 = vadd.f32 %v2504, %v2788
      %v2891 = vadd.f32 %v2505, %v2791
      %v2892 = vadd.f32 %v2506, %v2796
      %v2893 = vadd.f32 %v2507, %v2799
      %v2894 = vadd.f32 %v2508, %v2804
      %v2895 = vadd.f32 %v2509, %v2807
      %v2896 = vadd.f32 %v2510, %v2812
      %v2897 = vadd.f32 %v2511, %v2815
      %v2898 = vadd.f32 %v2512, %v2820
      %v2899 = vadd.f32 %v2513, %v2823
      %v2900 = vadd.f32 %v2514, %v2828
      %v2901 = vadd.f32 %v2515, %v2831
      %v2902 = vadd.f32 %v2516, %v2836
      %v2903 = vadd.f32 %v2517, %v2839
      %v2904 = vadd.f32 %v2518, %v2844
      %v2905 = vadd.f32 %v2519, %v2847
      %v2906 = vadd.f32 %v2520, %v2852
      %v2907 = vadd.f32 %v2521, %v2855
      %v2908 = vadd.f32 %v2522, %v2860
      %v2909 = vadd.f32 %v2523, %v2863
      %v2910 = vadd.f32 %v2524, %v2868
      %v2911 = vadd.f32 %v2525, %v2871
      %v2912 = vadd.f32 %v2526, %v2876
      %v2913 = vadd.f32 %v2527, %v2879
      %v2914 = vld [vmem:[%s879] sm:$0xf]
      %v2915 = vld [vmem:[%s879 + $0x4] sm:$0xf]
      %v2916 = vld [vmem:[%s879 + $0x8] sm:$0x1]
      %v2917 = vld [vmem:[%s879 + $0xc] sm:$0xf]
      %v2918 = vld [vmem:[%s879 + $0x10] sm:$0xf]
      %v2919 = vld [vmem:[%s879 + $0x14] sm:$0x1]
      %v2920 = vld [vmem:[%s879 + $0x18] sm:$0xf]
      %v2921 = vld [vmem:[%s879 + $0x1c] sm:$0xf]
      %v2922 = vld [vmem:[%s879 + $0x20] sm:$0x1]
      %v2923 = vld [vmem:[%s879 + $0x24] sm:$0xf]
      %v2924 = vld [vmem:[%s879 + $0x28] sm:$0xf]
      %v2925 = vld [vmem:[%s879 + $0x2c] sm:$0x1]
      %v2926 = vld [vmem:[%s879 + $0x30] sm:$0xf]
      %v2927 = vld [vmem:[%s879 + $0x34] sm:$0xf]
      %v2928 = vld [vmem:[%s879 + $0x38] sm:$0x1]
      %v2929 = vld [vmem:[%s879 + $0x3c] sm:$0xf]
      %v2930 = vld [vmem:[%s879 + $0x40] sm:$0xf]
      %v2931 = vld [vmem:[%s879 + $0x44] sm:$0x1]
      %v2932 = vld [vmem:[%s879 + $0x48] sm:$0xf]
      %v2933 = vld [vmem:[%s879 + $0x4c] sm:$0xf]
      %v2934 = vld [vmem:[%s879 + $0x50] sm:$0x1]
      %v2935 = vld [vmem:[%s879 + $0x54] sm:$0xf]
      %v2936 = vld [vmem:[%s879 + $0x58] sm:$0xf]
      %v2937 = vld [vmem:[%s879 + $0x5c] sm:$0x1]
      %v2938 = vld [vmem:[%s879 + $0x60] sm:$0xf]
      %v2939 = vld [vmem:[%s879 + $0x64] sm:$0xf]
      %v2940 = vld [vmem:[%s879 + $0x68] sm:$0x1]
      %v2941 = vld [vmem:[%s879 + $0x6c] sm:$0xf]
      %v2942 = vld [vmem:[%s879 + $0x70] sm:$0xf]
      %v2943 = vld [vmem:[%s879 + $0x74] sm:$0x1]
      %v2944 = vld [vmem:[%s879 + $0x78] sm:$0xf]
      %v2945 = vld [vmem:[%s879 + $0x7c] sm:$0xf]
      %v2946 = vld [vmem:[%s879 + $0x80] sm:$0x1]
      %v2947 = vld [vmem:[%s879 + $0x84] sm:$0xf]
      %v2948 = vld [vmem:[%s879 + $0x88] sm:$0xf]
      %v2949 = vld [vmem:[%s879 + $0x8c] sm:$0x1]
      %v2950 = vld [vmem:[%s879 + $0x90] sm:$0xf]
      %v2951 = vld [vmem:[%s879 + $0x94] sm:$0xf]
      %v2952 = vld [vmem:[%s879 + $0x98] sm:$0x1]
      %v2953 = vld [vmem:[%s879 + $0x9c] sm:$0xf]
      %v2954 = vld [vmem:[%s879 + $0xa0] sm:$0xf]
      %v2955 = vld [vmem:[%s879 + $0xa4] sm:$0x1]
      %v2956 = vld [vmem:[%s879 + $0xa8] sm:$0xf]
      %v2957 = vld [vmem:[%s879 + $0xac] sm:$0xf]
      %v2958 = vld [vmem:[%s879 + $0xb0] sm:$0x1]
      %v2959 = vld [vmem:[%s879 + $0xb4] sm:$0xf]
      %v2960 = vld [vmem:[%s879 + $0xb8] sm:$0xf]
      %v2961 = vld [vmem:[%s879 + $0xbc] sm:$0x1]
      %v2963 = vshrl.u32 %v2914, 16
      %v2965 = vrot.slane %v2963, 4
      %v2966 = vshll.u32 %v2914, 16
      %v2968 = vrot.slane %v2966, 5
      %v2969 = vor.u32 %v2965, %v2968
      %v2970 = vrot.slane %v2969, 4
      %v2972 = vshll.u32 %v2915, 16
      %v2974 = vrot.slane %v2972, 5
      %v2975 = vsel %vm1063, %v2970, %v2974
      %v2976 = vshrl.u32 %v2915, 16
      %v2978 = vrot.slane %v2976, 4
      %v2979 = vor.u32 %v2978, %v2974
      %v2980 = vrot.slane %v2979, 4
      %v2982 = vshll.u32 %v2916, 16
      %v2984 = vrot.slane %v2982, 5
      %v2985 = vsel %vm1063, %v2980, %v2984
      %v2987 = vshrl.u32 %v2917, 16
      %v2989 = vrot.slane %v2987, 4
      %v2990 = vshll.u32 %v2917, 16
      %v2992 = vrot.slane %v2990, 5
      %v2993 = vor.u32 %v2989, %v2992
      %v2994 = vrot.slane %v2993, 4
      %v2996 = vshll.u32 %v2918, 16
      %v2998 = vrot.slane %v2996, 5
      %v2999 = vsel %vm1063, %v2994, %v2998
      %v3000 = vshrl.u32 %v2918, 16
      %v3002 = vrot.slane %v3000, 4
      %v3003 = vor.u32 %v3002, %v2998
      %v3004 = vrot.slane %v3003, 4
      %v3006 = vshll.u32 %v2919, 16
      %v3008 = vrot.slane %v3006, 5
      %v3009 = vsel %vm1063, %v3004, %v3008
      %v3011 = vshrl.u32 %v2920, 16
      %v3013 = vrot.slane %v3011, 4
      %v3014 = vshll.u32 %v2920, 16
      %v3016 = vrot.slane %v3014, 5
      %v3017 = vor.u32 %v3013, %v3016
      %v3018 = vrot.slane %v3017, 4
      %v3020 = vshll.u32 %v2921, 16
      %v3022 = vrot.slane %v3020, 5
      %v3023 = vsel %vm1063, %v3018, %v3022
      %v3024 = vshrl.u32 %v2921, 16
      %v3026 = vrot.slane %v3024, 4
      %v3027 = vor.u32 %v3026, %v3022
      %v3028 = vrot.slane %v3027, 4
      %v3030 = vshll.u32 %v2922, 16
      %v3032 = vrot.slane %v3030, 5
      %v3033 = vsel %vm1063, %v3028, %v3032
      %v3035 = vshrl.u32 %v2923, 16
      %v3037 = vrot.slane %v3035, 4
      %v3038 = vshll.u32 %v2923, 16
      %v3040 = vrot.slane %v3038, 5
      %v3041 = vor.u32 %v3037, %v3040
      %v3042 = vrot.slane %v3041, 4
      %v3044 = vshll.u32 %v2924, 16
      %v3046 = vrot.slane %v3044, 5
      %v3047 = vsel %vm1063, %v3042, %v3046
      %v3048 = vshrl.u32 %v2924, 16
      %v3050 = vrot.slane %v3048, 4
      %v3051 = vor.u32 %v3050, %v3046
      %v3052 = vrot.slane %v3051, 4
      %v3054 = vshll.u32 %v2925, 16
      %v3056 = vrot.slane %v3054, 5
      %v3057 = vsel %vm1063, %v3052, %v3056
      %v3059 = vshrl.u32 %v2926, 16
      %v3061 = vrot.slane %v3059, 4
      %v3062 = vshll.u32 %v2926, 16
      %v3064 = vrot.slane %v3062, 5
      %v3065 = vor.u32 %v3061, %v3064
      %v3066 = vrot.slane %v3065, 4
      %v3068 = vshll.u32 %v2927, 16
      %v3070 = vrot.slane %v3068, 5
      %v3071 = vsel %vm1063, %v3066, %v3070
      %v3072 = vshrl.u32 %v2927, 16
      %v3074 = vrot.slane %v3072, 4
      %v3075 = vor.u32 %v3074, %v3070
      %v3076 = vrot.slane %v3075, 4
      %v3078 = vshll.u32 %v2928, 16
      %v3080 = vrot.slane %v3078, 5
      %v3081 = vsel %vm1063, %v3076, %v3080
      %v3083 = vshrl.u32 %v2929, 16
      %v3085 = vrot.slane %v3083, 4
      %v3086 = vshll.u32 %v2929, 16
      %v3088 = vrot.slane %v3086, 5
      %v3089 = vor.u32 %v3085, %v3088
      %v3090 = vrot.slane %v3089, 4
      %v3092 = vshll.u32 %v2930, 16
      %v3094 = vrot.slane %v3092, 5
      %v3095 = vsel %vm1063, %v3090, %v3094
      %v3096 = vshrl.u32 %v2930, 16
      %v3098 = vrot.slane %v3096, 4
      %v3099 = vor.u32 %v3098, %v3094
      %v3100 = vrot.slane %v3099, 4
      %v3102 = vshll.u32 %v2931, 16
      %v3104 = vrot.slane %v3102, 5
      %v3105 = vsel %vm1063, %v3100, %v3104
      %v3107 = vshrl.u32 %v2932, 16
      %v3109 = vrot.slane %v3107, 4
      %v3110 = vshll.u32 %v2932, 16
      %v3112 = vrot.slane %v3110, 5
      %v3113 = vor.u32 %v3109, %v3112
      %v3114 = vrot.slane %v3113, 4
      %v3116 = vshll.u32 %v2933, 16
      %v3118 = vrot.slane %v3116, 5
      %v3119 = vsel %vm1063, %v3114, %v3118
      %v3120 = vshrl.u32 %v2933, 16
      %v3122 = vrot.slane %v3120, 4
      %v3123 = vor.u32 %v3122, %v3118
      %v3124 = vrot.slane %v3123, 4
      %v3126 = vshll.u32 %v2934, 16
      %v3128 = vrot.slane %v3126, 5
      %v3129 = vsel %vm1063, %v3124, %v3128
      %v3131 = vshrl.u32 %v2935, 16
      %v3133 = vrot.slane %v3131, 4
      %v3134 = vshll.u32 %v2935, 16
      %v3136 = vrot.slane %v3134, 5
      %v3137 = vor.u32 %v3133, %v3136
      %v3138 = vrot.slane %v3137, 4
      %v3140 = vshll.u32 %v2936, 16
      %v3142 = vrot.slane %v3140, 5
      %v3143 = vsel %vm1063, %v3138, %v3142
      %v3144 = vshrl.u32 %v2936, 16
      %v3146 = vrot.slane %v3144, 4
      %v3147 = vor.u32 %v3146, %v3142
      %v3148 = vrot.slane %v3147, 4
      %v3150 = vshll.u32 %v2937, 16
      %v3152 = vrot.slane %v3150, 5
      %v3153 = vsel %vm1063, %v3148, %v3152
      %v3155 = vshrl.u32 %v2938, 16
      %v3157 = vrot.slane %v3155, 4
      %v3158 = vshll.u32 %v2938, 16
      %v3160 = vrot.slane %v3158, 5
      %v3161 = vor.u32 %v3157, %v3160
      %v3162 = vrot.slane %v3161, 4
      %v3164 = vshll.u32 %v2939, 16
      %v3166 = vrot.slane %v3164, 5
      %v3167 = vsel %vm1063, %v3162, %v3166
      %v3168 = vshrl.u32 %v2939, 16
      %v3170 = vrot.slane %v3168, 4
      %v3171 = vor.u32 %v3170, %v3166
      %v3172 = vrot.slane %v3171, 4
      %v3174 = vshll.u32 %v2940, 16
      %v3176 = vrot.slane %v3174, 5
      %v3177 = vsel %vm1063, %v3172, %v3176
      %v3179 = vshrl.u32 %v2941, 16
      %v3181 = vrot.slane %v3179, 4
      %v3182 = vshll.u32 %v2941, 16
      %v3184 = vrot.slane %v3182, 5
      %v3185 = vor.u32 %v3181, %v3184
      %v3186 = vrot.slane %v3185, 4
      %v3188 = vshll.u32 %v2942, 16
      %v3190 = vrot.slane %v3188, 5
      %v3191 = vsel %vm1063, %v3186, %v3190
      %v3192 = vshrl.u32 %v2942, 16
      %v3194 = vrot.slane %v3192, 4
      %v3195 = vor.u32 %v3194, %v3190
      %v3196 = vrot.slane %v3195, 4
      %v3198 = vshll.u32 %v2943, 16
      %v3200 = vrot.slane %v3198, 5
      %v3201 = vsel %vm1063, %v3196, %v3200
      %v3203 = vshrl.u32 %v2944, 16
      %v3205 = vrot.slane %v3203, 4
      %v3206 = vshll.u32 %v2944, 16
      %v3208 = vrot.slane %v3206, 5
      %v3209 = vor.u32 %v3205, %v3208
      %v3210 = vrot.slane %v3209, 4
      %v3212 = vshll.u32 %v2945, 16
      %v3214 = vrot.slane %v3212, 5
      %v3215 = vsel %vm1063, %v3210, %v3214
      %v3216 = vshrl.u32 %v2945, 16
      %v3218 = vrot.slane %v3216, 4
      %v3219 = vor.u32 %v3218, %v3214
      %v3220 = vrot.slane %v3219, 4
      %v3222 = vshll.u32 %v2946, 16
      %v3224 = vrot.slane %v3222, 5
      %v3225 = vsel %vm1063, %v3220, %v3224
      %v3227 = vshrl.u32 %v2947, 16
      %v3229 = vrot.slane %v3227, 4
      %v3230 = vshll.u32 %v2947, 16
      %v3232 = vrot.slane %v3230, 5
      %v3233 = vor.u32 %v3229, %v3232
      %v3234 = vrot.slane %v3233, 4
      %v3236 = vshll.u32 %v2948, 16
      %v3238 = vrot.slane %v3236, 5
      %v3239 = vsel %vm1063, %v3234, %v3238
      %v3240 = vshrl.u32 %v2948, 16
      %v3242 = vrot.slane %v3240, 4
      %v3243 = vor.u32 %v3242, %v3238
      %v3244 = vrot.slane %v3243, 4
      %v3246 = vshll.u32 %v2949, 16
      %v3248 = vrot.slane %v3246, 5
      %v3249 = vsel %vm1063, %v3244, %v3248
      %v3251 = vshrl.u32 %v2950, 16
      %v3253 = vrot.slane %v3251, 4
      %v3254 = vshll.u32 %v2950, 16
      %v3256 = vrot.slane %v3254, 5
      %v3257 = vor.u32 %v3253, %v3256
      %v3258 = vrot.slane %v3257, 4
      %v3260 = vshll.u32 %v2951, 16
      %v3262 = vrot.slane %v3260, 5
      %v3263 = vsel %vm1063, %v3258, %v3262
      %v3264 = vshrl.u32 %v2951, 16
      %v3266 = vrot.slane %v3264, 4
      %v3267 = vor.u32 %v3266, %v3262
      %v3268 = vrot.slane %v3267, 4
      %v3270 = vshll.u32 %v2952, 16
      %v3272 = vrot.slane %v3270, 5
      %v3273 = vsel %vm1063, %v3268, %v3272
      %v3275 = vshrl.u32 %v2953, 16
      %v3277 = vrot.slane %v3275, 4
      %v3278 = vshll.u32 %v2953, 16
      %v3280 = vrot.slane %v3278, 5
      %v3281 = vor.u32 %v3277, %v3280
      %v3282 = vrot.slane %v3281, 4
      %v3284 = vshll.u32 %v2954, 16
      %v3286 = vrot.slane %v3284, 5
      %v3287 = vsel %vm1063, %v3282, %v3286
      %v3288 = vshrl.u32 %v2954, 16
      %v3290 = vrot.slane %v3288, 4
      %v3291 = vor.u32 %v3290, %v3286
      %v3292 = vrot.slane %v3291, 4
      %v3294 = vshll.u32 %v2955, 16
      %v3296 = vrot.slane %v3294, 5
      %v3297 = vsel %vm1063, %v3292, %v3296
      %v3299 = vshrl.u32 %v2956, 16
      %v3301 = vrot.slane %v3299, 4
      %v3302 = vshll.u32 %v2956, 16
      %v3304 = vrot.slane %v3302, 5
      %v3305 = vor.u32 %v3301, %v3304
      %v3306 = vrot.slane %v3305, 4
      %v3308 = vshll.u32 %v2957, 16
      %v3310 = vrot.slane %v3308, 5
      %v3311 = vsel %vm1063, %v3306, %v3310
      %v3312 = vshrl.u32 %v2957, 16
      %v3314 = vrot.slane %v3312, 4
      %v3315 = vor.u32 %v3314, %v3310
      %v3316 = vrot.slane %v3315, 4
      %v3318 = vshll.u32 %v2958, 16
      %v3320 = vrot.slane %v3318, 5
      %v3321 = vsel %vm1063, %v3316, %v3320
      %v3323 = vshrl.u32 %v2959, 16
      %v3325 = vrot.slane %v3323, 4
      %v3326 = vshll.u32 %v2959, 16
      %v3328 = vrot.slane %v3326, 5
      %v3329 = vor.u32 %v3325, %v3328
      %v3330 = vrot.slane %v3329, 4
      %v3332 = vshll.u32 %v2960, 16
      %v3334 = vrot.slane %v3332, 5
      %v3335 = vsel %vm1063, %v3330, %v3334
      %v3336 = vshrl.u32 %v2960, 16
      %v3338 = vrot.slane %v3336, 4
      %v3339 = vor.u32 %v3338, %v3334
      %v3340 = vrot.slane %v3339, 4
      %v3342 = vshll.u32 %v2961, 16
      %v3344 = vrot.slane %v3342, 5
      %v3345 = vsel %vm1063, %v3340, %v3344
      %s3346 = scalar_lea.vmem %s1, 256
      %v3347 = vld [vmem:[%s3346] sm:$0xf]
      %v3348 = vld [vmem:[%s3346 + $0x4] sm:$0xf]
      %v3349 = vld [vmem:[%s3346 + $0x8] sm:$0xf]
      %v3350 = vld [vmem:[%s3346 + $0xc] sm:$0xf]
      %v3351 = vld [vmem:[%s3346 + $0x10] sm:$0xf]
      %v3352 = vld [vmem:[%s3346 + $0x14] sm:$0xf]
      %v3353 = vld [vmem:[%s3346 + $0x18] sm:$0xf]
      %v3354 = vld [vmem:[%s3346 + $0x1c] sm:$0xf]
      %v3355 = vld [vmem:[%s3346 + $0x20] sm:$0xf]
      %v3356 = vld [vmem:[%s3346 + $0x24] sm:$0xf]
      %v3357 = vld [vmem:[%s3346 + $0x28] sm:$0xf]
      %v3358 = vld [vmem:[%s3346 + $0x2c] sm:$0xf]
      %v3359 = vld [vmem:[%s3346 + $0x30] sm:$0xf]
      %v3360 = vld [vmem:[%s3346 + $0x34] sm:$0xf]
      %v3361 = vld [vmem:[%s3346 + $0x38] sm:$0xf]
      %v3362 = vld [vmem:[%s3346 + $0x3c] sm:$0xf]
      %v3363 = vunpack.c.l.b16 %v2975
      %v3364 = vunpack.c.l.b16 %v2985
      %v3365 = vunpack.c.l.b16 %v2999
      %v3366 = vunpack.c.l.b16 %v3009
      %v3367 = vunpack.c.l.b16 %v3023
      %v3368 = vunpack.c.l.b16 %v3033
      %v3369 = vunpack.c.l.b16 %v3047
      %v3370 = vunpack.c.l.b16 %v3057
      %v3371 = vunpack.c.l.b16 %v3071
      %v3372 = vunpack.c.l.b16 %v3081
      %v3373 = vunpack.c.l.b16 %v3095
      %v3374 = vunpack.c.l.b16 %v3105
      %v3375 = vunpack.c.l.b16 %v3119
      %v3376 = vunpack.c.l.b16 %v3129
      %v3377 = vunpack.c.l.b16 %v3143
      %v3378 = vunpack.c.l.b16 %v3153
      %v3379 = vunpack.c.l.b16 %v3167
      %v3380 = vunpack.c.l.b16 %v3177
      %v3381 = vunpack.c.l.b16 %v3191
      %v3382 = vunpack.c.l.b16 %v3201
      %v3383 = vunpack.c.l.b16 %v3215
      %v3384 = vunpack.c.l.b16 %v3225
      %v3385 = vunpack.c.l.b16 %v3239
      %v3386 = vunpack.c.l.b16 %v3249
      %v3387 = vunpack.c.l.b16 %v3263
      %v3388 = vunpack.c.l.b16 %v3273
      %v3389 = vunpack.c.l.b16 %v3287
      %v3390 = vunpack.c.l.b16 %v3297
      %v3391 = vunpack.c.l.b16 %v3311
      %v3392 = vunpack.c.l.b16 %v3321
      %v3393 = vunpack.c.l.b16 %v3335
      %v3394 = vunpack.c.l.b16 %v3345
      %v3395 = vpack.c.b16 %v3364, %v3363
      %v3396 = vpack.c.b16 %v3366, %v3365
      %v3397 = vpack.c.b16 %v3368, %v3367
      %v3398 = vpack.c.b16 %v3370, %v3369
      %v3399 = vpack.c.b16 %v3372, %v3371
      %v3400 = vpack.c.b16 %v3374, %v3373
      %v3401 = vpack.c.b16 %v3376, %v3375
      %v3402 = vpack.c.b16 %v3378, %v3377
      %v3403 = vpack.c.b16 %v3380, %v3379
      %v3404 = vpack.c.b16 %v3382, %v3381
      %v3405 = vpack.c.b16 %v3384, %v3383
      %v3406 = vpack.c.b16 %v3386, %v3385
      %v3407 = vpack.c.b16 %v3388, %v3387
      %v3408 = vpack.c.b16 %v3390, %v3389
      %v3409 = vpack.c.b16 %v3392, %v3391
      %v3410 = vpack.c.b16 %v3394, %v3393
      %v3443 = vunpack.c.l.b16 %v3347
      %v3444 = vunpack.c.l.b16 %v3348
      %v3445 = vunpack.c.l.b16 %v3349
      %v3446 = vunpack.c.l.b16 %v3350
      %v3447 = vunpack.c.l.b16 %v3351
      %v3448 = vunpack.c.l.b16 %v3352
      %v3449 = vunpack.c.l.b16 %v3353
      %v3450 = vunpack.c.l.b16 %v3354
      %v3451 = vunpack.c.l.b16 %v3355
      %v3452 = vunpack.c.l.b16 %v3356
      %v3453 = vunpack.c.l.b16 %v3357
      %v3454 = vunpack.c.l.b16 %v3358
      %v3455 = vunpack.c.l.b16 %v3359
      %v3456 = vunpack.c.l.b16 %v3360
      %v3457 = vunpack.c.l.b16 %v3361
      %v3458 = vunpack.c.l.b16 %v3362
      %v3459 = vpack.c.b16 %v3444, %v3443
      %v3460 = vpack.c.b16 %v3446, %v3445
      %v3461 = vpack.c.b16 %v3448, %v3447
      %v3462 = vpack.c.b16 %v3450, %v3449
      %v3463 = vpack.c.b16 %v3452, %v3451
      %v3464 = vpack.c.b16 %v3454, %v3453
      %v3465 = vpack.c.b16 %v3456, %v3455
      %v3466 = vpack.c.b16 %v3458, %v3457
      %3475 = vmatprep.subr.bf16.mxu0 0
      %3476 = vmatpush1.bf16.msra.mxu0 %v3466
      %3477 = vmatprep.subr.bf16.mxu0 0
      %3478 = vmatpush1.bf16.msra.mxu0 %v3465
      %3479 = vmatprep.subr.bf16.mxu0 0
      %3480 = vmatpush1.bf16.msra.mxu0 %v3464
      %3481 = vmatprep.subr.bf16.mxu0 0
      %3482 = vmatpush1.bf16.msra.mxu0 %v3463
      %3483 = vmatprep.subr.bf16.mxu0 0
      %3484 = vmatpush1.bf16.msra.mxu0 %v3462
      %3485 = vmatprep.subr.bf16.mxu0 0
      %3486 = vmatpush1.bf16.msra.mxu0 %v3461
      %3487 = vmatprep.subr.bf16.mxu0 0
      %3488 = vmatpush1.bf16.msra.mxu0 %v3460
      %3489 = vmatprep.subr.bf16.mxu0 0
      %3490 = vmatpush1.bf16.msra.mxu0 %v3459
      %3491 = vmatprep.subr.bf16.mxu0 0
      %3492 = vmatpush2.bf16.msra.mxu0 0
      %3493 = vmatprep.subr.bf16.mxu0 0
      %3494 = vmatpush2.bf16.msra.mxu0 0
      %3495 = vmatprep.subr.bf16.mxu0 0
      %3496 = vmatpush2.bf16.msra.mxu0 0
      %3497 = vmatprep.subr.bf16.mxu0 0
      %3498 = vmatpush2.bf16.msra.mxu0 0
      %3499 = vmatprep.subr.bf16.mxu0 0
      %3500 = vmatpush2.bf16.msra.mxu0 0
      %3501 = vmatprep.subr.bf16.mxu0 0
      %3502 = vmatpush2.bf16.msra.mxu0 0
      %3503 = vmatprep.subr.bf16.mxu0 0
      %3504 = vmatpush2.bf16.msra.mxu0 0
      %3505 = vmatprep.subr.bf16.mxu0 0
      %3506 = vmatpush2.bf16.msra.mxu0 0
      %3507 = vmatprep.mubr.bf16.mxu0 0
      %3508 = vmatmul.mubr.bf16.gmra.mxu0 %v3395
      %v3509 = vpop.f32.mrf.mxu0
      %v3510 = vadd.f32 0.0, %v3509
      %v3511 = vpop.f32.mrf.mxu0
      %v3512 = vpop.f32.mrf.mxu0
      %v3513 = vadd.f32 0.0, %v3512
      %v3514 = vpop.f32.mrf.mxu0
      %3515 = vmatprep.mubr.bf16.mxu0 0
      %3516 = vmatmul.mubr.bf16.gmra.mxu0 %v3396
      %v3517 = vpop.f32.mrf.mxu0
      %v3518 = vadd.f32 0.0, %v3517
      %v3519 = vpop.f32.mrf.mxu0
      %v3520 = vpop.f32.mrf.mxu0
      %v3521 = vadd.f32 0.0, %v3520
      %v3522 = vpop.f32.mrf.mxu0
      %3523 = vmatprep.mubr.bf16.mxu0 0
      %3524 = vmatmul.mubr.bf16.gmra.mxu0 %v3397
      %v3525 = vpop.f32.mrf.mxu0
      %v3526 = vadd.f32 0.0, %v3525
      %v3527 = vpop.f32.mrf.mxu0
      %v3528 = vpop.f32.mrf.mxu0
      %v3529 = vadd.f32 0.0, %v3528
      %v3530 = vpop.f32.mrf.mxu0
      %3531 = vmatprep.mubr.bf16.mxu0 0
      %3532 = vmatmul.mubr.bf16.gmra.mxu0 %v3398
      %v3533 = vpop.f32.mrf.mxu0
      %v3534 = vadd.f32 0.0, %v3533
      %v3535 = vpop.f32.mrf.mxu0
      %v3536 = vpop.f32.mrf.mxu0
      %v3537 = vadd.f32 0.0, %v3536
      %v3538 = vpop.f32.mrf.mxu0
      %3539 = vmatprep.mubr.bf16.mxu0 0
      %3540 = vmatmul.mubr.bf16.gmra.mxu0 %v3399
      %v3541 = vpop.f32.mrf.mxu0
      %v3542 = vadd.f32 0.0, %v3541
      %v3543 = vpop.f32.mrf.mxu0
      %v3544 = vpop.f32.mrf.mxu0
      %v3545 = vadd.f32 0.0, %v3544
      %v3546 = vpop.f32.mrf.mxu0
      %3547 = vmatprep.mubr.bf16.mxu0 0
      %3548 = vmatmul.mubr.bf16.gmra.mxu0 %v3400
      %v3549 = vpop.f32.mrf.mxu0
      %v3550 = vadd.f32 0.0, %v3549
      %v3551 = vpop.f32.mrf.mxu0
      %v3552 = vpop.f32.mrf.mxu0
      %v3553 = vadd.f32 0.0, %v3552
      %v3554 = vpop.f32.mrf.mxu0
      %3555 = vmatprep.mubr.bf16.mxu0 0
      %3556 = vmatmul.mubr.bf16.gmra.mxu0 %v3401
      %v3557 = vpop.f32.mrf.mxu0
      %v3558 = vadd.f32 0.0, %v3557
      %v3559 = vpop.f32.mrf.mxu0
      %v3560 = vpop.f32.mrf.mxu0
      %v3561 = vadd.f32 0.0, %v3560
      %v3562 = vpop.f32.mrf.mxu0
      %3563 = vmatprep.mubr.bf16.mxu0 0
      %3564 = vmatmul.mubr.bf16.gmra.mxu0 %v3402
      %v3565 = vpop.f32.mrf.mxu0
      %v3566 = vadd.f32 0.0, %v3565
      %v3567 = vpop.f32.mrf.mxu0
      %v3568 = vpop.f32.mrf.mxu0
      %v3569 = vadd.f32 0.0, %v3568
      %v3570 = vpop.f32.mrf.mxu0
      %3571 = vmatprep.mubr.bf16.mxu0 0
      %3572 = vmatmul.mubr.bf16.gmra.mxu0 %v3403
      %v3573 = vpop.f32.mrf.mxu0
      %v3574 = vadd.f32 0.0, %v3573
      %v3575 = vpop.f32.mrf.mxu0
      %v3576 = vpop.f32.mrf.mxu0
      %v3577 = vadd.f32 0.0, %v3576
      %v3578 = vpop.f32.mrf.mxu0
      %3579 = vmatprep.mubr.bf16.mxu0 0
      %3580 = vmatmul.mubr.bf16.gmra.mxu0 %v3404
      %v3581 = vpop.f32.mrf.mxu0
      %v3582 = vadd.f32 0.0, %v3581
      %v3583 = vpop.f32.mrf.mxu0
      %v3584 = vpop.f32.mrf.mxu0
      %v3585 = vadd.f32 0.0, %v3584
      %v3586 = vpop.f32.mrf.mxu0
      %3587 = vmatprep.mubr.bf16.mxu0 0
      %3588 = vmatmul.mubr.bf16.gmra.mxu0 %v3405
      %v3589 = vpop.f32.mrf.mxu0
      %v3590 = vadd.f32 0.0, %v3589
      %v3591 = vpop.f32.mrf.mxu0
      %v3592 = vpop.f32.mrf.mxu0
      %v3593 = vadd.f32 0.0, %v3592
      %v3594 = vpop.f32.mrf.mxu0
      %3595 = vmatprep.mubr.bf16.mxu0 0
      %3596 = vmatmul.mubr.bf16.gmra.mxu0 %v3406
      %v3597 = vpop.f32.mrf.mxu0
      %v3598 = vadd.f32 0.0, %v3597
      %v3599 = vpop.f32.mrf.mxu0
      %v3600 = vpop.f32.mrf.mxu0
      %v3601 = vadd.f32 0.0, %v3600
      %v3602 = vpop.f32.mrf.mxu0
      %3603 = vmatprep.mubr.bf16.mxu0 0
      %3604 = vmatmul.mubr.bf16.gmra.mxu0 %v3407
      %v3605 = vpop.f32.mrf.mxu0
      %v3606 = vadd.f32 0.0, %v3605
      %v3607 = vpop.f32.mrf.mxu0
      %v3608 = vpop.f32.mrf.mxu0
      %v3609 = vadd.f32 0.0, %v3608
      %v3610 = vpop.f32.mrf.mxu0
      %3611 = vmatprep.mubr.bf16.mxu0 0
      %3612 = vmatmul.mubr.bf16.gmra.mxu0 %v3408
      %v3613 = vpop.f32.mrf.mxu0
      %v3614 = vadd.f32 0.0, %v3613
      %v3615 = vpop.f32.mrf.mxu0
      %v3616 = vpop.f32.mrf.mxu0
      %v3617 = vadd.f32 0.0, %v3616
      %v3618 = vpop.f32.mrf.mxu0
      %3619 = vmatprep.mubr.bf16.mxu0 0
      %3620 = vmatmul.mubr.bf16.gmra.mxu0 %v3409
      %v3621 = vpop.f32.mrf.mxu0
      %v3622 = vadd.f32 0.0, %v3621
      %v3623 = vpop.f32.mrf.mxu0
      %v3624 = vpop.f32.mrf.mxu0
      %v3625 = vadd.f32 0.0, %v3624
      %v3626 = vpop.f32.mrf.mxu0
      %3627 = vmatprep.mubr.bf16.mxu0 0
      %3628 = vmatmul.mubr.bf16.gmra.mxu0 %v3410
      %v3629 = vpop.f32.mrf.mxu0
      %v3630 = vadd.f32 0.0, %v3629
      %v3631 = vpop.f32.mrf.mxu0
      %v3632 = vpop.f32.mrf.mxu0
      %v3633 = vadd.f32 0.0, %v3632
      %v3634 = vpop.f32.mrf.mxu0
      %3635 = vdwg.mxu0
      %v3636 = vadd.f32 %v2882, %v3510
      %v3637 = vadd.f32 %v2883, %v3513
      %v3638 = vadd.f32 %v2884, %v3518
      %v3639 = vadd.f32 %v2885, %v3521
      %v3640 = vadd.f32 %v2886, %v3526
      %v3641 = vadd.f32 %v2887, %v3529
      %v3642 = vadd.f32 %v2888, %v3534
      %v3643 = vadd.f32 %v2889, %v3537
      %v3644 = vadd.f32 %v2890, %v3542
      %v3645 = vadd.f32 %v2891, %v3545
      %v3646 = vadd.f32 %v2892, %v3550
      %v3647 = vadd.f32 %v2893, %v3553
      %v3648 = vadd.f32 %v2894, %v3558
      %v3649 = vadd.f32 %v2895, %v3561
      %v3650 = vadd.f32 %v2896, %v3566
      %v3651 = vadd.f32 %v2897, %v3569
      %v3652 = vadd.f32 %v2898, %v3574
      %v3653 = vadd.f32 %v2899, %v3577
      %v3654 = vadd.f32 %v2900, %v3582
      %v3655 = vadd.f32 %v2901, %v3585
      %v3656 = vadd.f32 %v2902, %v3590
      %v3657 = vadd.f32 %v2903, %v3593
      %v3658 = vadd.f32 %v2904, %v3598
      %v3659 = vadd.f32 %v2905, %v3601
      %v3660 = vadd.f32 %v2906, %v3606
      %v3661 = vadd.f32 %v2907, %v3609
      %v3662 = vadd.f32 %v2908, %v3614
      %v3663 = vadd.f32 %v2909, %v3617
      %v3664 = vadd.f32 %v2910, %v3622
      %v3665 = vadd.f32 %v2911, %v3625
      %v3666 = vadd.f32 %v2912, %v3630
      %v3667 = vadd.f32 %v2913, %v3633
      %v3668 = vld [vmem:[%s879] sm:$0xe]
      %v3669 = vld [vmem:[%s879 + $0xc] sm:$0xe]
      %v3670 = vld [vmem:[%s879 + $0x18] sm:$0xe]
      %v3671 = vld [vmem:[%s879 + $0x24] sm:$0xe]
      %v3672 = vld [vmem:[%s879 + $0x30] sm:$0xe]
      %v3673 = vld [vmem:[%s879 + $0x3c] sm:$0xe]
      %v3674 = vld [vmem:[%s879 + $0x48] sm:$0xe]
      %v3675 = vld [vmem:[%s879 + $0x54] sm:$0xe]
      %v3676 = vld [vmem:[%s879 + $0x60] sm:$0xe]
      %v3677 = vld [vmem:[%s879 + $0x6c] sm:$0xe]
      %v3678 = vld [vmem:[%s879 + $0x78] sm:$0xe]
      %v3679 = vld [vmem:[%s879 + $0x84] sm:$0xe]
      %v3680 = vld [vmem:[%s879 + $0x90] sm:$0xe]
      %v3681 = vld [vmem:[%s879 + $0x9c] sm:$0xe]
      %v3682 = vld [vmem:[%s879 + $0xa8] sm:$0xe]
      %v3683 = vld [vmem:[%s879 + $0xb4] sm:$0xe]
      %v3732 = vrot.slane %v3668, 5
      %v3733 = vrot.slane %v3732, 4
      %v3734 = vrot.slane %v2915, 5
      %v3735 = vsel %vm2093, %v3733, %v3734
      %v3736 = vrot.slane %v3734, 4
      %v3737 = vrot.slane %v2916, 5
      %v3738 = vsel %vm2093, %v3736, %v3737
      %v3739 = vrot.slane %v3669, 5
      %v3740 = vrot.slane %v3739, 4
      %v3741 = vrot.slane %v2918, 5
      %v3742 = vsel %vm2093, %v3740, %v3741
      %v3743 = vrot.slane %v3741, 4
      %v3744 = vrot.slane %v2919, 5
      %v3745 = vsel %vm2093, %v3743, %v3744
      %v3746 = vrot.slane %v3670, 5
      %v3747 = vrot.slane %v3746, 4
      %v3748 = vrot.slane %v2921, 5
      %v3749 = vsel %vm2093, %v3747, %v3748
      %v3750 = vrot.slane %v3748, 4
      %v3751 = vrot.slane %v2922, 5
      %v3752 = vsel %vm2093, %v3750, %v3751
      %v3753 = vrot.slane %v3671, 5
      %v3754 = vrot.slane %v3753, 4
      %v3755 = vrot.slane %v2924, 5
      %v3756 = vsel %vm2093, %v3754, %v3755
      %v3757 = vrot.slane %v3755, 4
      %v3758 = vrot.slane %v2925, 5
      %v3759 = vsel %vm2093, %v3757, %v3758
      %v3760 = vrot.slane %v3672, 5
      %v3761 = vrot.slane %v3760, 4
      %v3762 = vrot.slane %v2927, 5
      %v3763 = vsel %vm2093, %v3761, %v3762
      %v3764 = vrot.slane %v3762, 4
      %v3765 = vrot.slane %v2928, 5
      %v3766 = vsel %vm2093, %v3764, %v3765
      %v3767 = vrot.slane %v3673, 5
      %v3768 = vrot.slane %v3767, 4
      %v3769 = vrot.slane %v2930, 5
      %v3770 = vsel %vm2093, %v3768, %v3769
      %v3771 = vrot.slane %v3769, 4
      %v3772 = vrot.slane %v2931, 5
      %v3773 = vsel %vm2093, %v3771, %v3772
      %v3774 = vrot.slane %v3674, 5
      %v3775 = vrot.slane %v3774, 4
      %v3776 = vrot.slane %v2933, 5
      %v3777 = vsel %vm2093, %v3775, %v3776
      %v3778 = vrot.slane %v3776, 4
      %v3779 = vrot.slane %v2934, 5
      %v3780 = vsel %vm2093, %v3778, %v3779
      %v3781 = vrot.slane %v3675, 5
      %v3782 = vrot.slane %v3781, 4
      %v3783 = vrot.slane %v2936, 5
      %v3784 = vsel %vm2093, %v3782, %v3783
      %v3785 = vrot.slane %v3783, 4
      %v3786 = vrot.slane %v2937, 5
      %v3787 = vsel %vm2093, %v3785, %v3786
      %v3788 = vrot.slane %v3676, 5
      %v3789 = vrot.slane %v3788, 4
      %v3790 = vrot.slane %v2939, 5
      %v3791 = vsel %vm2093, %v3789, %v3790
      %v3792 = vrot.slane %v3790, 4
      %v3793 = vrot.slane %v2940, 5
      %v3794 = vsel %vm2093, %v3792, %v3793
      %v3795 = vrot.slane %v3677, 5
      %v3796 = vrot.slane %v3795, 4
      %v3797 = vrot.slane %v2942, 5
      %v3798 = vsel %vm2093, %v3796, %v3797
      %v3799 = vrot.slane %v3797, 4
      %v3800 = vrot.slane %v2943, 5
      %v3801 = vsel %vm2093, %v3799, %v3800
      %v3802 = vrot.slane %v3678, 5
      %v3803 = vrot.slane %v3802, 4
      %v3804 = vrot.slane %v2945, 5
      %v3805 = vsel %vm2093, %v3803, %v3804
      %v3806 = vrot.slane %v3804, 4
      %v3807 = vrot.slane %v2946, 5
      %v3808 = vsel %vm2093, %v3806, %v3807
      %v3809 = vrot.slane %v3679, 5
      %v3810 = vrot.slane %v3809, 4
      %v3811 = vrot.slane %v2948, 5
      %v3812 = vsel %vm2093, %v3810, %v3811
      %v3813 = vrot.slane %v3811, 4
      %v3814 = vrot.slane %v2949, 5
      %v3815 = vsel %vm2093, %v3813, %v3814
      %v3816 = vrot.slane %v3680, 5
      %v3817 = vrot.slane %v3816, 4
      %v3818 = vrot.slane %v2951, 5
      %v3819 = vsel %vm2093, %v3817, %v3818
      %v3820 = vrot.slane %v3818, 4
      %v3821 = vrot.slane %v2952, 5
      %v3822 = vsel %vm2093, %v3820, %v3821
      %v3823 = vrot.slane %v3681, 5
      %v3824 = vrot.slane %v3823, 4
      %v3825 = vrot.slane %v2954, 5
      %v3826 = vsel %vm2093, %v3824, %v3825
      %v3827 = vrot.slane %v3825, 4
      %v3828 = vrot.slane %v2955, 5
      %v3829 = vsel %vm2093, %v3827, %v3828
      %v3830 = vrot.slane %v3682, 5
      %v3831 = vrot.slane %v3830, 4
      %v3832 = vrot.slane %v2957, 5
      %v3833 = vsel %vm2093, %v3831, %v3832
      %v3834 = vrot.slane %v3832, 4
      %v3835 = vrot.slane %v2958, 5
      %v3836 = vsel %vm2093, %v3834, %v3835
      %v3837 = vrot.slane %v3683, 5
      %v3838 = vrot.slane %v3837, 4
      %v3839 = vrot.slane %v2960, 5
      %v3840 = vsel %vm2093, %v3838, %v3839
      %v3841 = vrot.slane %v3839, 4
      %v3842 = vrot.slane %v2961, 5
      %v3843 = vsel %vm2093, %v3841, %v3842
      %s3844 = scalar_lea.vmem %s1, 320
      %v3845 = vld [vmem:[%s3844] sm:$0xf]
      %v3846 = vld [vmem:[%s3844 + $0x4] sm:$0xf]
      %v3847 = vld [vmem:[%s3844 + $0x8] sm:$0xf]
      %v3848 = vld [vmem:[%s3844 + $0xc] sm:$0xf]
      %v3849 = vld [vmem:[%s3844 + $0x10] sm:$0xf]
      %v3850 = vld [vmem:[%s3844 + $0x14] sm:$0xf]
      %v3851 = vld [vmem:[%s3844 + $0x18] sm:$0xf]
      %v3852 = vld [vmem:[%s3844 + $0x1c] sm:$0xf]
      %v3853 = vld [vmem:[%s3844 + $0x20] sm:$0xf]
      %v3854 = vld [vmem:[%s3844 + $0x24] sm:$0xf]
      %v3855 = vld [vmem:[%s3844 + $0x28] sm:$0xf]
      %v3856 = vld [vmem:[%s3844 + $0x2c] sm:$0xf]
      %v3857 = vld [vmem:[%s3844 + $0x30] sm:$0xf]
      %v3858 = vld [vmem:[%s3844 + $0x34] sm:$0xf]
      %v3859 = vld [vmem:[%s3844 + $0x38] sm:$0xf]
      %v3860 = vld [vmem:[%s3844 + $0x3c] sm:$0xf]
      %v3861 = vunpack.c.l.b16 %v3735
      %v3862 = vunpack.c.l.b16 %v3738
      %v3863 = vunpack.c.l.b16 %v3742
      %v3864 = vunpack.c.l.b16 %v3745
      %v3865 = vunpack.c.l.b16 %v3749
      %v3866 = vunpack.c.l.b16 %v3752
      %v3867 = vunpack.c.l.b16 %v3756
      %v3868 = vunpack.c.l.b16 %v3759
      %v3869 = vunpack.c.l.b16 %v3763
      %v3870 = vunpack.c.l.b16 %v3766
      %v3871 = vunpack.c.l.b16 %v3770
      %v3872 = vunpack.c.l.b16 %v3773
      %v3873 = vunpack.c.l.b16 %v3777
      %v3874 = vunpack.c.l.b16 %v3780
      %v3875 = vunpack.c.l.b16 %v3784
      %v3876 = vunpack.c.l.b16 %v3787
      %v3877 = vunpack.c.l.b16 %v3791
      %v3878 = vunpack.c.l.b16 %v3794
      %v3879 = vunpack.c.l.b16 %v3798
      %v3880 = vunpack.c.l.b16 %v3801
      %v3881 = vunpack.c.l.b16 %v3805
      %v3882 = vunpack.c.l.b16 %v3808
      %v3883 = vunpack.c.l.b16 %v3812
      %v3884 = vunpack.c.l.b16 %v3815
      %v3885 = vunpack.c.l.b16 %v3819
      %v3886 = vunpack.c.l.b16 %v3822
      %v3887 = vunpack.c.l.b16 %v3826
      %v3888 = vunpack.c.l.b16 %v3829
      %v3889 = vunpack.c.l.b16 %v3833
      %v3890 = vunpack.c.l.b16 %v3836
      %v3891 = vunpack.c.l.b16 %v3840
      %v3892 = vunpack.c.l.b16 %v3843
      %v3893 = vpack.c.b16 %v3862, %v3861
      %v3894 = vpack.c.b16 %v3864, %v3863
      %v3895 = vpack.c.b16 %v3866, %v3865
      %v3896 = vpack.c.b16 %v3868, %v3867
      %v3897 = vpack.c.b16 %v3870, %v3869
      %v3898 = vpack.c.b16 %v3872, %v3871
      %v3899 = vpack.c.b16 %v3874, %v3873
      %v3900 = vpack.c.b16 %v3876, %v3875
      %v3901 = vpack.c.b16 %v3878, %v3877
      %v3902 = vpack.c.b16 %v3880, %v3879
      %v3903 = vpack.c.b16 %v3882, %v3881
      %v3904 = vpack.c.b16 %v3884, %v3883
      %v3905 = vpack.c.b16 %v3886, %v3885
      %v3906 = vpack.c.b16 %v3888, %v3887
      %v3907 = vpack.c.b16 %v3890, %v3889
      %v3908 = vpack.c.b16 %v3892, %v3891
      %v3941 = vunpack.c.l.b16 %v3845
      %v3942 = vunpack.c.l.b16 %v3846
      %v3943 = vunpack.c.l.b16 %v3847
      %v3944 = vunpack.c.l.b16 %v3848
      %v3945 = vunpack.c.l.b16 %v3849
      %v3946 = vunpack.c.l.b16 %v3850
      %v3947 = vunpack.c.l.b16 %v3851
      %v3948 = vunpack.c.l.b16 %v3852
      %v3949 = vunpack.c.l.b16 %v3853
      %v3950 = vunpack.c.l.b16 %v3854
      %v3951 = vunpack.c.l.b16 %v3855
      %v3952 = vunpack.c.l.b16 %v3856
      %v3953 = vunpack.c.l.b16 %v3857
      %v3954 = vunpack.c.l.b16 %v3858
      %v3955 = vunpack.c.l.b16 %v3859
      %v3956 = vunpack.c.l.b16 %v3860
      %v3957 = vpack.c.b16 %v3942, %v3941
      %v3958 = vpack.c.b16 %v3944, %v3943
      %v3959 = vpack.c.b16 %v3946, %v3945
      %v3960 = vpack.c.b16 %v3948, %v3947
      %v3961 = vpack.c.b16 %v3950, %v3949
      %v3962 = vpack.c.b16 %v3952, %v3951
      %v3963 = vpack.c.b16 %v3954, %v3953
      %v3964 = vpack.c.b16 %v3956, %v3955
      %3973 = vmatprep.subr.bf16.mxu0 0
      %3974 = vmatpush1.bf16.msra.mxu0 %v3964
      %3975 = vmatprep.subr.bf16.mxu0 0
      %3976 = vmatpush1.bf16.msra.mxu0 %v3963
      %3977 = vmatprep.subr.bf16.mxu0 0
      %3978 = vmatpush1.bf16.msra.mxu0 %v3962
      %3979 = vmatprep.subr.bf16.mxu0 0
      %3980 = vmatpush1.bf16.msra.mxu0 %v3961
      %3981 = vmatprep.subr.bf16.mxu0 0
      %3982 = vmatpush1.bf16.msra.mxu0 %v3960
      %3983 = vmatprep.subr.bf16.mxu0 0
      %3984 = vmatpush1.bf16.msra.mxu0 %v3959
      %3985 = vmatprep.subr.bf16.mxu0 0
      %3986 = vmatpush1.bf16.msra.mxu0 %v3958
      %3987 = vmatprep.subr.bf16.mxu0 0
      %3988 = vmatpush1.bf16.msra.mxu0 %v3957
      %3989 = vmatprep.subr.bf16.mxu0 0
      %3990 = vmatpush2.bf16.msra.mxu0 0
      %3991 = vmatprep.subr.bf16.mxu0 0
      %3992 = vmatpush2.bf16.msra.mxu0 0
      %3993 = vmatprep.subr.bf16.mxu0 0
      %3994 = vmatpush2.bf16.msra.mxu0 0
      %3995 = vmatprep.subr.bf16.mxu0 0
      %3996 = vmatpush2.bf16.msra.mxu0 0
      %3997 = vmatprep.subr.bf16.mxu0 0
      %3998 = vmatpush2.bf16.msra.mxu0 0
      %3999 = vmatprep.subr.bf16.mxu0 0
      %4000 = vmatpush2.bf16.msra.mxu0 0
      %4001 = vmatprep.subr.bf16.mxu0 0
      %4002 = vmatpush2.bf16.msra.mxu0 0
      %4003 = vmatprep.subr.bf16.mxu0 0
      %4004 = vmatpush2.bf16.msra.mxu0 0
      %4005 = vmatprep.mubr.bf16.mxu0 0
      %4006 = vmatmul.mubr.bf16.gmra.mxu0 %v3893
      %v4007 = vpop.f32.mrf.mxu0
      %v4008 = vadd.f32 0.0, %v4007
      %v4009 = vpop.f32.mrf.mxu0
      %v4010 = vpop.f32.mrf.mxu0
      %v4011 = vadd.f32 0.0, %v4010
      %v4012 = vpop.f32.mrf.mxu0
      %4013 = vmatprep.mubr.bf16.mxu0 0
      %4014 = vmatmul.mubr.bf16.gmra.mxu0 %v3894
      %v4015 = vpop.f32.mrf.mxu0
      %v4016 = vadd.f32 0.0, %v4015
      %v4017 = vpop.f32.mrf.mxu0
      %v4018 = vpop.f32.mrf.mxu0
      %v4019 = vadd.f32 0.0, %v4018
      %v4020 = vpop.f32.mrf.mxu0
      %4021 = vmatprep.mubr.bf16.mxu0 0
      %4022 = vmatmul.mubr.bf16.gmra.mxu0 %v3895
      %v4023 = vpop.f32.mrf.mxu0
      %v4024 = vadd.f32 0.0, %v4023
      %v4025 = vpop.f32.mrf.mxu0
      %v4026 = vpop.f32.mrf.mxu0
      %v4027 = vadd.f32 0.0, %v4026
      %v4028 = vpop.f32.mrf.mxu0
      %4029 = vmatprep.mubr.bf16.mxu0 0
      %4030 = vmatmul.mubr.bf16.gmra.mxu0 %v3896
      %v4031 = vpop.f32.mrf.mxu0
      %v4032 = vadd.f32 0.0, %v4031
      %v4033 = vpop.f32.mrf.mxu0
      %v4034 = vpop.f32.mrf.mxu0
      %v4035 = vadd.f32 0.0, %v4034
      %v4036 = vpop.f32.mrf.mxu0
      %4037 = vmatprep.mubr.bf16.mxu0 0
      %4038 = vmatmul.mubr.bf16.gmra.mxu0 %v3897
      %v4039 = vpop.f32.mrf.mxu0
      %v4040 = vadd.f32 0.0, %v4039
      %v4041 = vpop.f32.mrf.mxu0
      %v4042 = vpop.f32.mrf.mxu0
      %v4043 = vadd.f32 0.0, %v4042
      %v4044 = vpop.f32.mrf.mxu0
      %4045 = vmatprep.mubr.bf16.mxu0 0
      %4046 = vmatmul.mubr.bf16.gmra.mxu0 %v3898
      %v4047 = vpop.f32.mrf.mxu0
      %v4048 = vadd.f32 0.0, %v4047
      %v4049 = vpop.f32.mrf.mxu0
      %v4050 = vpop.f32.mrf.mxu0
      %v4051 = vadd.f32 0.0, %v4050
      %v4052 = vpop.f32.mrf.mxu0
      %4053 = vmatprep.mubr.bf16.mxu0 0
      %4054 = vmatmul.mubr.bf16.gmra.mxu0 %v3899
      %v4055 = vpop.f32.mrf.mxu0
      %v4056 = vadd.f32 0.0, %v4055
      %v4057 = vpop.f32.mrf.mxu0
      %v4058 = vpop.f32.mrf.mxu0
      %v4059 = vadd.f32 0.0, %v4058
      %v4060 = vpop.f32.mrf.mxu0
      %4061 = vmatprep.mubr.bf16.mxu0 0
      %4062 = vmatmul.mubr.bf16.gmra.mxu0 %v3900
      %v4063 = vpop.f32.mrf.mxu0
      %v4064 = vadd.f32 0.0, %v4063
      %v4065 = vpop.f32.mrf.mxu0
      %v4066 = vpop.f32.mrf.mxu0
      %v4067 = vadd.f32 0.0, %v4066
      %v4068 = vpop.f32.mrf.mxu0
      %4069 = vmatprep.mubr.bf16.mxu0 0
      %4070 = vmatmul.mubr.bf16.gmra.mxu0 %v3901
      %v4071 = vpop.f32.mrf.mxu0
      %v4072 = vadd.f32 0.0, %v4071
      %v4073 = vpop.f32.mrf.mxu0
      %v4074 = vpop.f32.mrf.mxu0
      %v4075 = vadd.f32 0.0, %v4074
      %v4076 = vpop.f32.mrf.mxu0
      %4077 = vmatprep.mubr.bf16.mxu0 0
      %4078 = vmatmul.mubr.bf16.gmra.mxu0 %v3902
      %v4079 = vpop.f32.mrf.mxu0
      %v4080 = vadd.f32 0.0, %v4079
      %v4081 = vpop.f32.mrf.mxu0
      %v4082 = vpop.f32.mrf.mxu0
      %v4083 = vadd.f32 0.0, %v4082
      %v4084 = vpop.f32.mrf.mxu0
      %4085 = vmatprep.mubr.bf16.mxu0 0
      %4086 = vmatmul.mubr.bf16.gmra.mxu0 %v3903
      %v4087 = vpop.f32.mrf.mxu0
      %v4088 = vadd.f32 0.0, %v4087
      %v4089 = vpop.f32.mrf.mxu0
      %v4090 = vpop.f32.mrf.mxu0
      %v4091 = vadd.f32 0.0, %v4090
      %v4092 = vpop.f32.mrf.mxu0
      %4093 = vmatprep.mubr.bf16.mxu0 0
      %4094 = vmatmul.mubr.bf16.gmra.mxu0 %v3904
      %v4095 = vpop.f32.mrf.mxu0
      %v4096 = vadd.f32 0.0, %v4095
      %v4097 = vpop.f32.mrf.mxu0
      %v4098 = vpop.f32.mrf.mxu0
      %v4099 = vadd.f32 0.0, %v4098
      %v4100 = vpop.f32.mrf.mxu0
      %4101 = vmatprep.mubr.bf16.mxu0 0
      %4102 = vmatmul.mubr.bf16.gmra.mxu0 %v3905
      %v4103 = vpop.f32.mrf.mxu0
      %v4104 = vadd.f32 0.0, %v4103
      %v4105 = vpop.f32.mrf.mxu0
      %v4106 = vpop.f32.mrf.mxu0
      %v4107 = vadd.f32 0.0, %v4106
      %v4108 = vpop.f32.mrf.mxu0
      %4109 = vmatprep.mubr.bf16.mxu0 0
      %4110 = vmatmul.mubr.bf16.gmra.mxu0 %v3906
      %v4111 = vpop.f32.mrf.mxu0
      %v4112 = vadd.f32 0.0, %v4111
      %v4113 = vpop.f32.mrf.mxu0
      %v4114 = vpop.f32.mrf.mxu0
      %v4115 = vadd.f32 0.0, %v4114
      %v4116 = vpop.f32.mrf.mxu0
      %4117 = vmatprep.mubr.bf16.mxu0 0
      %4118 = vmatmul.mubr.bf16.gmra.mxu0 %v3907
      %v4119 = vpop.f32.mrf.mxu0
      %v4120 = vadd.f32 0.0, %v4119
      %v4121 = vpop.f32.mrf.mxu0
      %v4122 = vpop.f32.mrf.mxu0
      %v4123 = vadd.f32 0.0, %v4122
      %v4124 = vpop.f32.mrf.mxu0
      %4125 = vmatprep.mubr.bf16.mxu0 0
      %4126 = vmatmul.mubr.bf16.gmra.mxu0 %v3908
      %v4127 = vpop.f32.mrf.mxu0
      %v4128 = vadd.f32 0.0, %v4127
      %v4129 = vpop.f32.mrf.mxu0
      %v4130 = vpop.f32.mrf.mxu0
      %v4131 = vadd.f32 0.0, %v4130
      %v4132 = vpop.f32.mrf.mxu0
      %4133 = vdwg.mxu0
      %v4134 = vadd.f32 %v3636, %v4008
      %v4135 = vadd.f32 %v3637, %v4011
      %v4136 = vadd.f32 %v3638, %v4016
      %v4137 = vadd.f32 %v3639, %v4019
      %v4138 = vadd.f32 %v3640, %v4024
      %v4139 = vadd.f32 %v3641, %v4027
      %v4140 = vadd.f32 %v3642, %v4032
      %v4141 = vadd.f32 %v3643, %v4035
      %v4142 = vadd.f32 %v3644, %v4040
      %v4143 = vadd.f32 %v3645, %v4043
      %v4144 = vadd.f32 %v3646, %v4048
      %v4145 = vadd.f32 %v3647, %v4051
      %v4146 = vadd.f32 %v3648, %v4056
      %v4147 = vadd.f32 %v3649, %v4059
      %v4148 = vadd.f32 %v3650, %v4064
      %v4149 = vadd.f32 %v3651, %v4067
      %v4150 = vadd.f32 %v3652, %v4072
      %v4151 = vadd.f32 %v3653, %v4075
      %v4152 = vadd.f32 %v3654, %v4080
      %v4153 = vadd.f32 %v3655, %v4083
      %v4154 = vadd.f32 %v3656, %v4088
      %v4155 = vadd.f32 %v3657, %v4091
      %v4156 = vadd.f32 %v3658, %v4096
      %v4157 = vadd.f32 %v3659, %v4099
      %v4158 = vadd.f32 %v3660, %v4104
      %v4159 = vadd.f32 %v3661, %v4107
      %v4160 = vadd.f32 %v3662, %v4112
      %v4161 = vadd.f32 %v3663, %v4115
      %v4162 = vadd.f32 %v3664, %v4120
      %v4163 = vadd.f32 %v3665, %v4123
      %v4164 = vadd.f32 %v3666, %v4128
      %v4165 = vadd.f32 %v3667, %v4131
      %s4166 = scalar_lea.vmem [#allocation2], 24
      %v4167 = vld [vmem:[%s4166] sm:$0xf]
      %v4168 = vld [vmem:[%s4166 + $0x4] sm:$0xf]
      %v4169 = vld [vmem:[%s4166 + $0xc] sm:$0xf]
      %v4170 = vld [vmem:[%s4166 + $0x10] sm:$0xf]
      %v4171 = vld [vmem:[%s4166 + $0x18] sm:$0xf]
      %v4172 = vld [vmem:[%s4166 + $0x1c] sm:$0xf]
      %v4173 = vld [vmem:[%s4166 + $0x24] sm:$0xf]
      %v4174 = vld [vmem:[%s4166 + $0x28] sm:$0xf]
      %v4175 = vld [vmem:[%s4166 + $0x30] sm:$0xf]
      %v4176 = vld [vmem:[%s4166 + $0x34] sm:$0xf]
      %v4177 = vld [vmem:[%s4166 + $0x3c] sm:$0xf]
      %v4178 = vld [vmem:[%s4166 + $0x40] sm:$0xf]
      %v4179 = vld [vmem:[%s4166 + $0x48] sm:$0xf]
      %v4180 = vld [vmem:[%s4166 + $0x4c] sm:$0xf]
      %v4181 = vld [vmem:[%s4166 + $0x54] sm:$0xf]
      %v4182 = vld [vmem:[%s4166 + $0x58] sm:$0xf]
      %v4183 = vld [vmem:[%s4166 + $0x60] sm:$0xf]
      %v4184 = vld [vmem:[%s4166 + $0x64] sm:$0xf]
      %v4185 = vld [vmem:[%s4166 + $0x6c] sm:$0xf]
      %v4186 = vld [vmem:[%s4166 + $0x70] sm:$0xf]
      %v4187 = vld [vmem:[%s4166 + $0x78] sm:$0xf]
      %v4188 = vld [vmem:[%s4166 + $0x7c] sm:$0xf]
      %v4189 = vld [vmem:[%s4166 + $0x84] sm:$0xf]
      %v4190 = vld [vmem:[%s4166 + $0x88] sm:$0xf]
      %v4191 = vld [vmem:[%s4166 + $0x90] sm:$0xf]
      %v4192 = vld [vmem:[%s4166 + $0x94] sm:$0xf]
      %v4193 = vld [vmem:[%s4166 + $0x9c] sm:$0xf]
      %v4194 = vld [vmem:[%s4166 + $0xa0] sm:$0xf]
      %v4195 = vld [vmem:[%s4166 + $0xa8] sm:$0xf]
      %v4196 = vld [vmem:[%s4166 + $0xac] sm:$0xf]
      %v4197 = vld [vmem:[%s4166 + $0xb4] sm:$0xf]
      %v4198 = vld [vmem:[%s4166 + $0xb8] sm:$0xf]
      %s4199 = scalar_lea.vmem %s1, 384
      %v4200 = vld [vmem:[%s4199] sm:$0xf]
      %v4201 = vld [vmem:[%s4199 + $0x4] sm:$0xf]
      %v4202 = vld [vmem:[%s4199 + $0x8] sm:$0xf]
      %v4203 = vld [vmem:[%s4199 + $0xc] sm:$0xf]
      %v4204 = vld [vmem:[%s4199 + $0x10] sm:$0xf]
      %v4205 = vld [vmem:[%s4199 + $0x14] sm:$0xf]
      %v4206 = vld [vmem:[%s4199 + $0x18] sm:$0xf]
      %v4207 = vld [vmem:[%s4199 + $0x1c] sm:$0xf]
      %v4208 = vld [vmem:[%s4199 + $0x20] sm:$0xf]
      %v4209 = vld [vmem:[%s4199 + $0x24] sm:$0xf]
      %v4210 = vld [vmem:[%s4199 + $0x28] sm:$0xf]
      %v4211 = vld [vmem:[%s4199 + $0x2c] sm:$0xf]
      %v4212 = vld [vmem:[%s4199 + $0x30] sm:$0xf]
      %v4213 = vld [vmem:[%s4199 + $0x34] sm:$0xf]
      %v4214 = vld [vmem:[%s4199 + $0x38] sm:$0xf]
      %v4215 = vld [vmem:[%s4199 + $0x3c] sm:$0xf]
      %v4248 = vunpack.c.l.b16 %v4167
      %v4249 = vunpack.c.l.b16 %v4168
      %v4250 = vunpack.c.l.b16 %v4169
      %v4251 = vunpack.c.l.b16 %v4170
      %v4252 = vunpack.c.l.b16 %v4171
      %v4253 = vunpack.c.l.b16 %v4172
      %v4254 = vunpack.c.l.b16 %v4173
      %v4255 = vunpack.c.l.b16 %v4174
      %v4256 = vunpack.c.l.b16 %v4175
      %v4257 = vunpack.c.l.b16 %v4176
      %v4258 = vunpack.c.l.b16 %v4177
      %v4259 = vunpack.c.l.b16 %v4178
      %v4260 = vunpack.c.l.b16 %v4179
      %v4261 = vunpack.c.l.b16 %v4180
      %v4262 = vunpack.c.l.b16 %v4181
      %v4263 = vunpack.c.l.b16 %v4182
      %v4264 = vunpack.c.l.b16 %v4183
      %v4265 = vunpack.c.l.b16 %v4184
      %v4266 = vunpack.c.l.b16 %v4185
      %v4267 = vunpack.c.l.b16 %v4186
      %v4268 = vunpack.c.l.b16 %v4187
      %v4269 = vunpack.c.l.b16 %v4188
      %v4270 = vunpack.c.l.b16 %v4189
      %v4271 = vunpack.c.l.b16 %v4190
      %v4272 = vunpack.c.l.b16 %v4191
      %v4273 = vunpack.c.l.b16 %v4192
      %v4274 = vunpack.c.l.b16 %v4193
      %v4275 = vunpack.c.l.b16 %v4194
      %v4276 = vunpack.c.l.b16 %v4195
      %v4277 = vunpack.c.l.b16 %v4196
      %v4278 = vunpack.c.l.b16 %v4197
      %v4279 = vunpack.c.l.b16 %v4198
      %v4280 = vpack.c.b16 %v4249, %v4248
      %v4281 = vpack.c.b16 %v4251, %v4250
      %v4282 = vpack.c.b16 %v4253, %v4252
      %v4283 = vpack.c.b16 %v4255, %v4254
      %v4284 = vpack.c.b16 %v4257, %v4256
      %v4285 = vpack.c.b16 %v4259, %v4258
      %v4286 = vpack.c.b16 %v4261, %v4260
      %v4287 = vpack.c.b16 %v4263, %v4262
      %v4288 = vpack.c.b16 %v4265, %v4264
      %v4289 = vpack.c.b16 %v4267, %v4266
      %v4290 = vpack.c.b16 %v4269, %v4268
      %v4291 = vpack.c.b16 %v4271, %v4270
      %v4292 = vpack.c.b16 %v4273, %v4272
      %v4293 = vpack.c.b16 %v4275, %v4274
      %v4294 = vpack.c.b16 %v4277, %v4276
      %v4295 = vpack.c.b16 %v4279, %v4278
      %v4328 = vunpack.c.l.b16 %v4200
      %v4329 = vunpack.c.l.b16 %v4201
      %v4330 = vunpack.c.l.b16 %v4202
      %v4331 = vunpack.c.l.b16 %v4203
      %v4332 = vunpack.c.l.b16 %v4204
      %v4333 = vunpack.c.l.b16 %v4205
      %v4334 = vunpack.c.l.b16 %v4206
      %v4335 = vunpack.c.l.b16 %v4207
      %v4336 = vunpack.c.l.b16 %v4208
      %v4337 = vunpack.c.l.b16 %v4209
      %v4338 = vunpack.c.l.b16 %v4210
      %v4339 = vunpack.c.l.b16 %v4211
      %v4340 = vunpack.c.l.b16 %v4212
      %v4341 = vunpack.c.l.b16 %v4213
      %v4342 = vunpack.c.l.b16 %v4214
      %v4343 = vunpack.c.l.b16 %v4215
      %v4344 = vpack.c.b16 %v4329, %v4328
      %v4345 = vpack.c.b16 %v4331, %v4330
      %v4346 = vpack.c.b16 %v4333, %v4332
      %v4347 = vpack.c.b16 %v4335, %v4334
      %v4348 = vpack.c.b16 %v4337, %v4336
      %v4349 = vpack.c.b16 %v4339, %v4338
      %v4350 = vpack.c.b16 %v4341, %v4340
      %v4351 = vpack.c.b16 %v4343, %v4342
      %4360 = vmatprep.subr.bf16.mxu0 0
      %4361 = vmatpush1.bf16.msra.mxu0 %v4351
      %4362 = vmatprep.subr.bf16.mxu0 0
      %4363 = vmatpush1.bf16.msra.mxu0 %v4350
      %4364 = vmatprep.subr.bf16.mxu0 0
      %4365 = vmatpush1.bf16.msra.mxu0 %v4349
      %4366 = vmatprep.subr.bf16.mxu0 0
      %4367 = vmatpush1.bf16.msra.mxu0 %v4348
      %4368 = vmatprep.subr.bf16.mxu0 0
      %4369 = vmatpush1.bf16.msra.mxu0 %v4347
      %4370 = vmatprep.subr.bf16.mxu0 0
      %4371 = vmatpush1.bf16.msra.mxu0 %v4346
      %4372 = vmatprep.subr.bf16.mxu0 0
      %4373 = vmatpush1.bf16.msra.mxu0 %v4345
      %4374 = vmatprep.subr.bf16.mxu0 0
      %4375 = vmatpush1.bf16.msra.mxu0 %v4344
      %4376 = vmatprep.subr.bf16.mxu0 0
      %4377 = vmatpush2.bf16.msra.mxu0 0
      %4378 = vmatprep.subr.bf16.mxu0 0
      %4379 = vmatpush2.bf16.msra.mxu0 0
      %4380 = vmatprep.subr.bf16.mxu0 0
      %4381 = vmatpush2.bf16.msra.mxu0 0
      %4382 = vmatprep.subr.bf16.mxu0 0
      %4383 = vmatpush2.bf16.msra.mxu0 0
      %4384 = vmatprep.subr.bf16.mxu0 0
      %4385 = vmatpush2.bf16.msra.mxu0 0
      %4386 = vmatprep.subr.bf16.mxu0 0
      %4387 = vmatpush2.bf16.msra.mxu0 0
      %4388 = vmatprep.subr.bf16.mxu0 0
      %4389 = vmatpush2.bf16.msra.mxu0 0
      %4390 = vmatprep.subr.bf16.mxu0 0
      %4391 = vmatpush2.bf16.msra.mxu0 0
      %4392 = vmatprep.mubr.bf16.mxu0 0
      %4393 = vmatmul.mubr.bf16.gmra.mxu0 %v4280
      %v4394 = vpop.f32.mrf.mxu0
      %v4395 = vadd.f32 0.0, %v4394
      %v4396 = vpop.f32.mrf.mxu0
      %v4397 = vpop.f32.mrf.mxu0
      %v4398 = vadd.f32 0.0, %v4397
      %v4399 = vpop.f32.mrf.mxu0
      %4400 = vmatprep.mubr.bf16.mxu0 0
      %4401 = vmatmul.mubr.bf16.gmra.mxu0 %v4281
      %v4402 = vpop.f32.mrf.mxu0
      %v4403 = vadd.f32 0.0, %v4402
      %v4404 = vpop.f32.mrf.mxu0
      %v4405 = vpop.f32.mrf.mxu0
      %v4406 = vadd.f32 0.0, %v4405
      %v4407 = vpop.f32.mrf.mxu0
      %4408 = vmatprep.mubr.bf16.mxu0 0
      %4409 = vmatmul.mubr.bf16.gmra.mxu0 %v4282
      %v4410 = vpop.f32.mrf.mxu0
      %v4411 = vadd.f32 0.0, %v4410
      %v4412 = vpop.f32.mrf.mxu0
      %v4413 = vpop.f32.mrf.mxu0
      %v4414 = vadd.f32 0.0, %v4413
      %v4415 = vpop.f32.mrf.mxu0
      %4416 = vmatprep.mubr.bf16.mxu0 0
      %4417 = vmatmul.mubr.bf16.gmra.mxu0 %v4283
      %v4418 = vpop.f32.mrf.mxu0
      %v4419 = vadd.f32 0.0, %v4418
      %v4420 = vpop.f32.mrf.mxu0
      %v4421 = vpop.f32.mrf.mxu0
      %v4422 = vadd.f32 0.0, %v4421
      %v4423 = vpop.f32.mrf.mxu0
      %4424 = vmatprep.mubr.bf16.mxu0 0
      %4425 = vmatmul.mubr.bf16.gmra.mxu0 %v4284
      %v4426 = vpop.f32.mrf.mxu0
      %v4427 = vadd.f32 0.0, %v4426
      %v4428 = vpop.f32.mrf.mxu0
      %v4429 = vpop.f32.mrf.mxu0
      %v4430 = vadd.f32 0.0, %v4429
      %v4431 = vpop.f32.mrf.mxu0
      %4432 = vmatprep.mubr.bf16.mxu0 0
      %4433 = vmatmul.mubr.bf16.gmra.mxu0 %v4285
      %v4434 = vpop.f32.mrf.mxu0
      %v4435 = vadd.f32 0.0, %v4434
      %v4436 = vpop.f32.mrf.mxu0
      %v4437 = vpop.f32.mrf.mxu0
      %v4438 = vadd.f32 0.0, %v4437
      %v4439 = vpop.f32.mrf.mxu0
      %4440 = vmatprep.mubr.bf16.mxu0 0
      %4441 = vmatmul.mubr.bf16.gmra.mxu0 %v4286
      %v4442 = vpop.f32.mrf.mxu0
      %v4443 = vadd.f32 0.0, %v4442
      %v4444 = vpop.f32.mrf.mxu0
      %v4445 = vpop.f32.mrf.mxu0
      %v4446 = vadd.f32 0.0, %v4445
      %v4447 = vpop.f32.mrf.mxu0
      %4448 = vmatprep.mubr.bf16.mxu0 0
      %4449 = vmatmul.mubr.bf16.gmra.mxu0 %v4287
      %v4450 = vpop.f32.mrf.mxu0
      %v4451 = vadd.f32 0.0, %v4450
      %v4452 = vpop.f32.mrf.mxu0
      %v4453 = vpop.f32.mrf.mxu0
      %v4454 = vadd.f32 0.0, %v4453
      %v4455 = vpop.f32.mrf.mxu0
      %4456 = vmatprep.mubr.bf16.mxu0 0
      %4457 = vmatmul.mubr.bf16.gmra.mxu0 %v4288
      %v4458 = vpop.f32.mrf.mxu0
      %v4459 = vadd.f32 0.0, %v4458
      %v4460 = vpop.f32.mrf.mxu0
      %v4461 = vpop.f32.mrf.mxu0
      %v4462 = vadd.f32 0.0, %v4461
      %v4463 = vpop.f32.mrf.mxu0
      %4464 = vmatprep.mubr.bf16.mxu0 0
      %4465 = vmatmul.mubr.bf16.gmra.mxu0 %v4289
      %v4466 = vpop.f32.mrf.mxu0
      %v4467 = vadd.f32 0.0, %v4466
      %v4468 = vpop.f32.mrf.mxu0
      %v4469 = vpop.f32.mrf.mxu0
      %v4470 = vadd.f32 0.0, %v4469
      %v4471 = vpop.f32.mrf.mxu0
      %4472 = vmatprep.mubr.bf16.mxu0 0
      %4473 = vmatmul.mubr.bf16.gmra.mxu0 %v4290
      %v4474 = vpop.f32.mrf.mxu0
      %v4475 = vadd.f32 0.0, %v4474
      %v4476 = vpop.f32.mrf.mxu0
      %v4477 = vpop.f32.mrf.mxu0
      %v4478 = vadd.f32 0.0, %v4477
      %v4479 = vpop.f32.mrf.mxu0
      %4480 = vmatprep.mubr.bf16.mxu0 0
      %4481 = vmatmul.mubr.bf16.gmra.mxu0 %v4291
      %v4482 = vpop.f32.mrf.mxu0
      %v4483 = vadd.f32 0.0, %v4482
      %v4484 = vpop.f32.mrf.mxu0
      %v4485 = vpop.f32.mrf.mxu0
      %v4486 = vadd.f32 0.0, %v4485
      %v4487 = vpop.f32.mrf.mxu0
      %4488 = vmatprep.mubr.bf16.mxu0 0
      %4489 = vmatmul.mubr.bf16.gmra.mxu0 %v4292
      %v4490 = vpop.f32.mrf.mxu0
      %v4491 = vadd.f32 0.0, %v4490
      %v4492 = vpop.f32.mrf.mxu0
      %v4493 = vpop.f32.mrf.mxu0
      %v4494 = vadd.f32 0.0, %v4493
      %v4495 = vpop.f32.mrf.mxu0
      %4496 = vmatprep.mubr.bf16.mxu0 0
      %4497 = vmatmul.mubr.bf16.gmra.mxu0 %v4293
      %v4498 = vpop.f32.mrf.mxu0
      %v4499 = vadd.f32 0.0, %v4498
      %v4500 = vpop.f32.mrf.mxu0
      %v4501 = vpop.f32.mrf.mxu0
      %v4502 = vadd.f32 0.0, %v4501
      %v4503 = vpop.f32.mrf.mxu0
      %4504 = vmatprep.mubr.bf16.mxu0 0
      %4505 = vmatmul.mubr.bf16.gmra.mxu0 %v4294
      %v4506 = vpop.f32.mrf.mxu0
      %v4507 = vadd.f32 0.0, %v4506
      %v4508 = vpop.f32.mrf.mxu0
      %v4509 = vpop.f32.mrf.mxu0
      %v4510 = vadd.f32 0.0, %v4509
      %v4511 = vpop.f32.mrf.mxu0
      %4512 = vmatprep.mubr.bf16.mxu0 0
      %4513 = vmatmul.mubr.bf16.gmra.mxu0 %v4295
      %v4514 = vpop.f32.mrf.mxu0
      %v4515 = vadd.f32 0.0, %v4514
      %v4516 = vpop.f32.mrf.mxu0
      %v4517 = vpop.f32.mrf.mxu0
      %v4518 = vadd.f32 0.0, %v4517
      %v4519 = vpop.f32.mrf.mxu0
      %4520 = vdwg.mxu0
      %v4521 = vadd.f32 %v4134, %v4395
      %v4522 = vadd.f32 %v4135, %v4398
      %v4523 = vadd.f32 %v4136, %v4403
      %v4524 = vadd.f32 %v4137, %v4406
      %v4525 = vadd.f32 %v4138, %v4411
      %v4526 = vadd.f32 %v4139, %v4414
      %v4527 = vadd.f32 %v4140, %v4419
      %v4528 = vadd.f32 %v4141, %v4422
      %v4529 = vadd.f32 %v4142, %v4427
      %v4530 = vadd.f32 %v4143, %v4430
      %v4531 = vadd.f32 %v4144, %v4435
      %v4532 = vadd.f32 %v4145, %v4438
      %v4533 = vadd.f32 %v4146, %v4443
      %v4534 = vadd.f32 %v4147, %v4446
      %v4535 = vadd.f32 %v4148, %v4451
      %v4536 = vadd.f32 %v4149, %v4454
      %v4537 = vadd.f32 %v4150, %v4459
      %v4538 = vadd.f32 %v4151, %v4462
      %v4539 = vadd.f32 %v4152, %v4467
      %v4540 = vadd.f32 %v4153, %v4470
      %v4541 = vadd.f32 %v4154, %v4475
      %v4542 = vadd.f32 %v4155, %v4478
      %v4543 = vadd.f32 %v4156, %v4483
      %v4544 = vadd.f32 %v4157, %v4486
      %v4545 = vadd.f32 %v4158, %v4491
      %v4546 = vadd.f32 %v4159, %v4494
      %v4547 = vadd.f32 %v4160, %v4499
      %v4548 = vadd.f32 %v4161, %v4502
      %v4549 = vadd.f32 %v4162, %v4507
      %v4550 = vadd.f32 %v4163, %v4510
      %v4551 = vadd.f32 %v4164, %v4515
      %v4552 = vadd.f32 %v4165, %v4518
      %v4553 = vld [vmem:[%s4166] sm:$0xf]
      %v4554 = vld [vmem:[%s4166 + $0x4] sm:$0xf]
      %v4555 = vld [vmem:[%s4166 + $0x8] sm:$0x1]
      %v4556 = vld [vmem:[%s4166 + $0xc] sm:$0xf]
      %v4557 = vld [vmem:[%s4166 + $0x10] sm:$0xf]
      %v4558 = vld [vmem:[%s4166 + $0x14] sm:$0x1]
      %v4559 = vld [vmem:[%s4166 + $0x18] sm:$0xf]
      %v4560 = vld [vmem:[%s4166 + $0x1c] sm:$0xf]
      %v4561 = vld [vmem:[%s4166 + $0x20] sm:$0x1]
      %v4562 = vld [vmem:[%s4166 + $0x24] sm:$0xf]
      %v4563 = vld [vmem:[%s4166 + $0x28] sm:$0xf]
      %v4564 = vld [vmem:[%s4166 + $0x2c] sm:$0x1]
      %v4565 = vld [vmem:[%s4166 + $0x30] sm:$0xf]
      %v4566 = vld [vmem:[%s4166 + $0x34] sm:$0xf]
      %v4567 = vld [vmem:[%s4166 + $0x38] sm:$0x1]
      %v4568 = vld [vmem:[%s4166 + $0x3c] sm:$0xf]
      %v4569 = vld [vmem:[%s4166 + $0x40] sm:$0xf]
      %v4570 = vld [vmem:[%s4166 + $0x44] sm:$0x1]
      %v4571 = vld [vmem:[%s4166 + $0x48] sm:$0xf]
      %v4572 = vld [vmem:[%s4166 + $0x4c] sm:$0xf]
      %v4573 = vld [vmem:[%s4166 + $0x50] sm:$0x1]
      %v4574 = vld [vmem:[%s4166 + $0x54] sm:$0xf]
      %v4575 = vld [vmem:[%s4166 + $0x58] sm:$0xf]
      %v4576 = vld [vmem:[%s4166 + $0x5c] sm:$0x1]
      %v4577 = vld [vmem:[%s4166 + $0x60] sm:$0xf]
      %v4578 = vld [vmem:[%s4166 + $0x64] sm:$0xf]
      %v4579 = vld [vmem:[%s4166 + $0x68] sm:$0x1]
      %v4580 = vld [vmem:[%s4166 + $0x6c] sm:$0xf]
      %v4581 = vld [vmem:[%s4166 + $0x70] sm:$0xf]
      %v4582 = vld [vmem:[%s4166 + $0x74] sm:$0x1]
      %v4583 = vld [vmem:[%s4166 + $0x78] sm:$0xf]
      %v4584 = vld [vmem:[%s4166 + $0x7c] sm:$0xf]
      %v4585 = vld [vmem:[%s4166 + $0x80] sm:$0x1]
      %v4586 = vld [vmem:[%s4166 + $0x84] sm:$0xf]
      %v4587 = vld [vmem:[%s4166 + $0x88] sm:$0xf]
      %v4588 = vld [vmem:[%s4166 + $0x8c] sm:$0x1]
      %v4589 = vld [vmem:[%s4166 + $0x90] sm:$0xf]
      %v4590 = vld [vmem:[%s4166 + $0x94] sm:$0xf]
      %v4591 = vld [vmem:[%s4166 + $0x98] sm:$0x1]
      %v4592 = vld [vmem:[%s4166 + $0x9c] sm:$0xf]
      %v4593 = vld [vmem:[%s4166 + $0xa0] sm:$0xf]
      %v4594 = vld [vmem:[%s4166 + $0xa4] sm:$0x1]
      %v4595 = vld [vmem:[%s4166 + $0xa8] sm:$0xf]
      %v4596 = vld [vmem:[%s4166 + $0xac] sm:$0xf]
      %v4597 = vld [vmem:[%s4166 + $0xb0] sm:$0x1]
      %v4598 = vld [vmem:[%s4166 + $0xb4] sm:$0xf]
      %v4599 = vld [vmem:[%s4166 + $0xb8] sm:$0xf]
      %v4600 = vld [vmem:[%s4166 + $0xbc] sm:$0x1]
      %v4602 = vshrl.u32 %v4553, 16
      %v4604 = vrot.slane %v4602, 4
      %v4605 = vshll.u32 %v4553, 16
      %v4607 = vrot.slane %v4605, 5
      %v4608 = vor.u32 %v4604, %v4607
      %v4609 = vrot.slane %v4608, 4
      %v4611 = vshll.u32 %v4554, 16
      %v4613 = vrot.slane %v4611, 5
      %v4614 = vsel %vm1063, %v4609, %v4613
      %v4615 = vshrl.u32 %v4554, 16
      %v4617 = vrot.slane %v4615, 4
      %v4618 = vor.u32 %v4617, %v4613
      %v4619 = vrot.slane %v4618, 4
      %v4621 = vshll.u32 %v4555, 16
      %v4623 = vrot.slane %v4621, 5
      %v4624 = vsel %vm1063, %v4619, %v4623
      %v4626 = vshrl.u32 %v4556, 16
      %v4628 = vrot.slane %v4626, 4
      %v4629 = vshll.u32 %v4556, 16
      %v4631 = vrot.slane %v4629, 5
      %v4632 = vor.u32 %v4628, %v4631
      %v4633 = vrot.slane %v4632, 4
      %v4635 = vshll.u32 %v4557, 16
      %v4637 = vrot.slane %v4635, 5
      %v4638 = vsel %vm1063, %v4633, %v4637
      %v4639 = vshrl.u32 %v4557, 16
      %v4641 = vrot.slane %v4639, 4
      %v4642 = vor.u32 %v4641, %v4637
      %v4643 = vrot.slane %v4642, 4
      %v4645 = vshll.u32 %v4558, 16
      %v4647 = vrot.slane %v4645, 5
      %v4648 = vsel %vm1063, %v4643, %v4647
      %v4650 = vshrl.u32 %v4559, 16
      %v4652 = vrot.slane %v4650, 4
      %v4653 = vshll.u32 %v4559, 16
      %v4655 = vrot.slane %v4653, 5
      %v4656 = vor.u32 %v4652, %v4655
      %v4657 = vrot.slane %v4656, 4
      %v4659 = vshll.u32 %v4560, 16
      %v4661 = vrot.slane %v4659, 5
      %v4662 = vsel %vm1063, %v4657, %v4661
      %v4663 = vshrl.u32 %v4560, 16
      %v4665 = vrot.slane %v4663, 4
      %v4666 = vor.u32 %v4665, %v4661
      %v4667 = vrot.slane %v4666, 4
      %v4669 = vshll.u32 %v4561, 16
      %v4671 = vrot.slane %v4669, 5
      %v4672 = vsel %vm1063, %v4667, %v4671
      %v4674 = vshrl.u32 %v4562, 16
      %v4676 = vrot.slane %v4674, 4
      %v4677 = vshll.u32 %v4562, 16
      %v4679 = vrot.slane %v4677, 5
      %v4680 = vor.u32 %v4676, %v4679
      %v4681 = vrot.slane %v4680, 4
      %v4683 = vshll.u32 %v4563, 16
      %v4685 = vrot.slane %v4683, 5
      %v4686 = vsel %vm1063, %v4681, %v4685
      %v4687 = vshrl.u32 %v4563, 16
      %v4689 = vrot.slane %v4687, 4
      %v4690 = vor.u32 %v4689, %v4685
      %v4691 = vrot.slane %v4690, 4
      %v4693 = vshll.u32 %v4564, 16
      %v4695 = vrot.slane %v4693, 5
      %v4696 = vsel %vm1063, %v4691, %v4695
      %v4698 = vshrl.u32 %v4565, 16
      %v4700 = vrot.slane %v4698, 4
      %v4701 = vshll.u32 %v4565, 16
      %v4703 = vrot.slane %v4701, 5
      %v4704 = vor.u32 %v4700, %v4703
      %v4705 = vrot.slane %v4704, 4
      %v4707 = vshll.u32 %v4566, 16
      %v4709 = vrot.slane %v4707, 5
      %v4710 = vsel %vm1063, %v4705, %v4709
      %v4711 = vshrl.u32 %v4566, 16
      %v4713 = vrot.slane %v4711, 4
      %v4714 = vor.u32 %v4713, %v4709
      %v4715 = vrot.slane %v4714, 4
      %v4717 = vshll.u32 %v4567, 16
      %v4719 = vrot.slane %v4717, 5
      %v4720 = vsel %vm1063, %v4715, %v4719
      %v4722 = vshrl.u32 %v4568, 16
      %v4724 = vrot.slane %v4722, 4
      %v4725 = vshll.u32 %v4568, 16
      %v4727 = vrot.slane %v4725, 5
      %v4728 = vor.u32 %v4724, %v4727
      %v4729 = vrot.slane %v4728, 4
      %v4731 = vshll.u32 %v4569, 16
      %v4733 = vrot.slane %v4731, 5
      %v4734 = vsel %vm1063, %v4729, %v4733
      %v4735 = vshrl.u32 %v4569, 16
      %v4737 = vrot.slane %v4735, 4
      %v4738 = vor.u32 %v4737, %v4733
      %v4739 = vrot.slane %v4738, 4
      %v4741 = vshll.u32 %v4570, 16
      %v4743 = vrot.slane %v4741, 5
      %v4744 = vsel %vm1063, %v4739, %v4743
      %v4746 = vshrl.u32 %v4571, 16
      %v4748 = vrot.slane %v4746, 4
      %v4749 = vshll.u32 %v4571, 16
      %v4751 = vrot.slane %v4749, 5
      %v4752 = vor.u32 %v4748, %v4751
      %v4753 = vrot.slane %v4752, 4
      %v4755 = vshll.u32 %v4572, 16
      %v4757 = vrot.slane %v4755, 5
      %v4758 = vsel %vm1063, %v4753, %v4757
      %v4759 = vshrl.u32 %v4572, 16
      %v4761 = vrot.slane %v4759, 4
      %v4762 = vor.u32 %v4761, %v4757
      %v4763 = vrot.slane %v4762, 4
      %v4765 = vshll.u32 %v4573, 16
      %v4767 = vrot.slane %v4765, 5
      %v4768 = vsel %vm1063, %v4763, %v4767
      %v4770 = vshrl.u32 %v4574, 16
      %v4772 = vrot.slane %v4770, 4
      %v4773 = vshll.u32 %v4574, 16
      %v4775 = vrot.slane %v4773, 5
      %v4776 = vor.u32 %v4772, %v4775
      %v4777 = vrot.slane %v4776, 4
      %v4779 = vshll.u32 %v4575, 16
      %v4781 = vrot.slane %v4779, 5
      %v4782 = vsel %vm1063, %v4777, %v4781
      %v4783 = vshrl.u32 %v4575, 16
      %v4785 = vrot.slane %v4783, 4
      %v4786 = vor.u32 %v4785, %v4781
      %v4787 = vrot.slane %v4786, 4
      %v4789 = vshll.u32 %v4576, 16
      %v4791 = vrot.slane %v4789, 5
      %v4792 = vsel %vm1063, %v4787, %v4791
      %v4794 = vshrl.u32 %v4577, 16
      %v4796 = vrot.slane %v4794, 4
      %v4797 = vshll.u32 %v4577, 16
      %v4799 = vrot.slane %v4797, 5
      %v4800 = vor.u32 %v4796, %v4799
      %v4801 = vrot.slane %v4800, 4
      %v4803 = vshll.u32 %v4578, 16
      %v4805 = vrot.slane %v4803, 5
      %v4806 = vsel %vm1063, %v4801, %v4805
      %v4807 = vshrl.u32 %v4578, 16
      %v4809 = vrot.slane %v4807, 4
      %v4810 = vor.u32 %v4809, %v4805
      %v4811 = vrot.slane %v4810, 4
      %v4813 = vshll.u32 %v4579, 16
      %v4815 = vrot.slane %v4813, 5
      %v4816 = vsel %vm1063, %v4811, %v4815
      %v4818 = vshrl.u32 %v4580, 16
      %v4820 = vrot.slane %v4818, 4
      %v4821 = vshll.u32 %v4580, 16
      %v4823 = vrot.slane %v4821, 5
      %v4824 = vor.u32 %v4820, %v4823
      %v4825 = vrot.slane %v4824, 4
      %v4827 = vshll.u32 %v4581, 16
      %v4829 = vrot.slane %v4827, 5
      %v4830 = vsel %vm1063, %v4825, %v4829
      %v4831 = vshrl.u32 %v4581, 16
      %v4833 = vrot.slane %v4831, 4
      %v4834 = vor.u32 %v4833, %v4829
      %v4835 = vrot.slane %v4834, 4
      %v4837 = vshll.u32 %v4582, 16
      %v4839 = vrot.slane %v4837, 5
      %v4840 = vsel %vm1063, %v4835, %v4839
      %v4842 = vshrl.u32 %v4583, 16
      %v4844 = vrot.slane %v4842, 4
      %v4845 = vshll.u32 %v4583, 16
      %v4847 = vrot.slane %v4845, 5
      %v4848 = vor.u32 %v4844, %v4847
      %v4849 = vrot.slane %v4848, 4
      %v4851 = vshll.u32 %v4584, 16
      %v4853 = vrot.slane %v4851, 5
      %v4854 = vsel %vm1063, %v4849, %v4853
      %v4855 = vshrl.u32 %v4584, 16
      %v4857 = vrot.slane %v4855, 4
      %v4858 = vor.u32 %v4857, %v4853
      %v4859 = vrot.slane %v4858, 4
      %v4861 = vshll.u32 %v4585, 16
      %v4863 = vrot.slane %v4861, 5
      %v4864 = vsel %vm1063, %v4859, %v4863
      %v4866 = vshrl.u32 %v4586, 16
      %v4868 = vrot.slane %v4866, 4
      %v4869 = vshll.u32 %v4586, 16
      %v4871 = vrot.slane %v4869, 5
      %v4872 = vor.u32 %v4868, %v4871
      %v4873 = vrot.slane %v4872, 4
      %v4875 = vshll.u32 %v4587, 16
      %v4877 = vrot.slane %v4875, 5
      %v4878 = vsel %vm1063, %v4873, %v4877
      %v4879 = vshrl.u32 %v4587, 16
      %v4881 = vrot.slane %v4879, 4
      %v4882 = vor.u32 %v4881, %v4877
      %v4883 = vrot.slane %v4882, 4
      %v4885 = vshll.u32 %v4588, 16
      %v4887 = vrot.slane %v4885, 5
      %v4888 = vsel %vm1063, %v4883, %v4887
      %v4890 = vshrl.u32 %v4589, 16
      %v4892 = vrot.slane %v4890, 4
      %v4893 = vshll.u32 %v4589, 16
      %v4895 = vrot.slane %v4893, 5
      %v4896 = vor.u32 %v4892, %v4895
      %v4897 = vrot.slane %v4896, 4
      %v4899 = vshll.u32 %v4590, 16
      %v4901 = vrot.slane %v4899, 5
      %v4902 = vsel %vm1063, %v4897, %v4901
      %v4903 = vshrl.u32 %v4590, 16
      %v4905 = vrot.slane %v4903, 4
      %v4906 = vor.u32 %v4905, %v4901
      %v4907 = vrot.slane %v4906, 4
      %v4909 = vshll.u32 %v4591, 16
      %v4911 = vrot.slane %v4909, 5
      %v4912 = vsel %vm1063, %v4907, %v4911
      %v4914 = vshrl.u32 %v4592, 16
      %v4916 = vrot.slane %v4914, 4
      %v4917 = vshll.u32 %v4592, 16
      %v4919 = vrot.slane %v4917, 5
      %v4920 = vor.u32 %v4916, %v4919
      %v4921 = vrot.slane %v4920, 4
      %v4923 = vshll.u32 %v4593, 16
      %v4925 = vrot.slane %v4923, 5
      %v4926 = vsel %vm1063, %v4921, %v4925
      %v4927 = vshrl.u32 %v4593, 16
      %v4929 = vrot.slane %v4927, 4
      %v4930 = vor.u32 %v4929, %v4925
      %v4931 = vrot.slane %v4930, 4
      %v4933 = vshll.u32 %v4594, 16
      %v4935 = vrot.slane %v4933, 5
      %v4936 = vsel %vm1063, %v4931, %v4935
      %v4938 = vshrl.u32 %v4595, 16
      %v4940 = vrot.slane %v4938, 4
      %v4941 = vshll.u32 %v4595, 16
      %v4943 = vrot.slane %v4941, 5
      %v4944 = vor.u32 %v4940, %v4943
      %v4945 = vrot.slane %v4944, 4
      %v4947 = vshll.u32 %v4596, 16
      %v4949 = vrot.slane %v4947, 5
      %v4950 = vsel %vm1063, %v4945, %v4949
      %v4951 = vshrl.u32 %v4596, 16
      %v4953 = vrot.slane %v4951, 4
      %v4954 = vor.u32 %v4953, %v4949
      %v4955 = vrot.slane %v4954, 4
      %v4957 = vshll.u32 %v4597, 16
      %v4959 = vrot.slane %v4957, 5
      %v4960 = vsel %vm1063, %v4955, %v4959
      %v4962 = vshrl.u32 %v4598, 16
      %v4964 = vrot.slane %v4962, 4
      %v4965 = vshll.u32 %v4598, 16
      %v4967 = vrot.slane %v4965, 5
      %v4968 = vor.u32 %v4964, %v4967
      %v4969 = vrot.slane %v4968, 4
      %v4971 = vshll.u32 %v4599, 16
      %v4973 = vrot.slane %v4971, 5
      %v4974 = vsel %vm1063, %v4969, %v4973
      %v4975 = vshrl.u32 %v4599, 16
      %v4977 = vrot.slane %v4975, 4
      %v4978 = vor.u32 %v4977, %v4973
      %v4979 = vrot.slane %v4978, 4
      %v4981 = vshll.u32 %v4600, 16
      %v4983 = vrot.slane %v4981, 5
      %v4984 = vsel %vm1063, %v4979, %v4983
      %s4985 = scalar_lea.vmem %s1, 448
      %v4986 = vld [vmem:[%s4985] sm:$0xf]
      %v4987 = vld [vmem:[%s4985 + $0x4] sm:$0xf]
      %v4988 = vld [vmem:[%s4985 + $0x8] sm:$0xf]
      %v4989 = vld [vmem:[%s4985 + $0xc] sm:$0xf]
      %v4990 = vld [vmem:[%s4985 + $0x10] sm:$0xf]
      %v4991 = vld [vmem:[%s4985 + $0x14] sm:$0xf]
      %v4992 = vld [vmem:[%s4985 + $0x18] sm:$0xf]
      %v4993 = vld [vmem:[%s4985 + $0x1c] sm:$0xf]
      %v4994 = vld [vmem:[%s4985 + $0x20] sm:$0xf]
      %v4995 = vld [vmem:[%s4985 + $0x24] sm:$0xf]
      %v4996 = vld [vmem:[%s4985 + $0x28] sm:$0xf]
      %v4997 = vld [vmem:[%s4985 + $0x2c] sm:$0xf]
      %v4998 = vld [vmem:[%s4985 + $0x30] sm:$0xf]
      %v4999 = vld [vmem:[%s4985 + $0x34] sm:$0xf]
      %v5000 = vld [vmem:[%s4985 + $0x38] sm:$0xf]
      %v5001 = vld [vmem:[%s4985 + $0x3c] sm:$0xf]
      %v5002 = vunpack.c.l.b16 %v4614
      %v5003 = vunpack.c.l.b16 %v4624
      %v5004 = vunpack.c.l.b16 %v4638
      %v5005 = vunpack.c.l.b16 %v4648
      %v5006 = vunpack.c.l.b16 %v4662
      %v5007 = vunpack.c.l.b16 %v4672
      %v5008 = vunpack.c.l.b16 %v4686
      %v5009 = vunpack.c.l.b16 %v4696
      %v5010 = vunpack.c.l.b16 %v4710
      %v5011 = vunpack.c.l.b16 %v4720
      %v5012 = vunpack.c.l.b16 %v4734
      %v5013 = vunpack.c.l.b16 %v4744
      %v5014 = vunpack.c.l.b16 %v4758
      %v5015 = vunpack.c.l.b16 %v4768
      %v5016 = vunpack.c.l.b16 %v4782
      %v5017 = vunpack.c.l.b16 %v4792
      %v5018 = vunpack.c.l.b16 %v4806
      %v5019 = vunpack.c.l.b16 %v4816
      %v5020 = vunpack.c.l.b16 %v4830
      %v5021 = vunpack.c.l.b16 %v4840
      %v5022 = vunpack.c.l.b16 %v4854
      %v5023 = vunpack.c.l.b16 %v4864
      %v5024 = vunpack.c.l.b16 %v4878
      %v5025 = vunpack.c.l.b16 %v4888
      %v5026 = vunpack.c.l.b16 %v4902
      %v5027 = vunpack.c.l.b16 %v4912
      %v5028 = vunpack.c.l.b16 %v4926
      %v5029 = vunpack.c.l.b16 %v4936
      %v5030 = vunpack.c.l.b16 %v4950
      %v5031 = vunpack.c.l.b16 %v4960
      %v5032 = vunpack.c.l.b16 %v4974
      %v5033 = vunpack.c.l.b16 %v4984
      %v5034 = vpack.c.b16 %v5003, %v5002
      %v5035 = vpack.c.b16 %v5005, %v5004
      %v5036 = vpack.c.b16 %v5007, %v5006
      %v5037 = vpack.c.b16 %v5009, %v5008
      %v5038 = vpack.c.b16 %v5011, %v5010
      %v5039 = vpack.c.b16 %v5013, %v5012
      %v5040 = vpack.c.b16 %v5015, %v5014
      %v5041 = vpack.c.b16 %v5017, %v5016
      %v5042 = vpack.c.b16 %v5019, %v5018
      %v5043 = vpack.c.b16 %v5021, %v5020
      %v5044 = vpack.c.b16 %v5023, %v5022
      %v5045 = vpack.c.b16 %v5025, %v5024
      %v5046 = vpack.c.b16 %v5027, %v5026
      %v5047 = vpack.c.b16 %v5029, %v5028
      %v5048 = vpack.c.b16 %v5031, %v5030
      %v5049 = vpack.c.b16 %v5033, %v5032
      %v5082 = vunpack.c.l.b16 %v4986
      %v5083 = vunpack.c.l.b16 %v4987
      %v5084 = vunpack.c.l.b16 %v4988
      %v5085 = vunpack.c.l.b16 %v4989
      %v5086 = vunpack.c.l.b16 %v4990
      %v5087 = vunpack.c.l.b16 %v4991
      %v5088 = vunpack.c.l.b16 %v4992
      %v5089 = vunpack.c.l.b16 %v4993
      %v5090 = vunpack.c.l.b16 %v4994
      %v5091 = vunpack.c.l.b16 %v4995
      %v5092 = vunpack.c.l.b16 %v4996
      %v5093 = vunpack.c.l.b16 %v4997
      %v5094 = vunpack.c.l.b16 %v4998
      %v5095 = vunpack.c.l.b16 %v4999
      %v5096 = vunpack.c.l.b16 %v5000
      %v5097 = vunpack.c.l.b16 %v5001
      %v5098 = vpack.c.b16 %v5083, %v5082
      %v5099 = vpack.c.b16 %v5085, %v5084
      %v5100 = vpack.c.b16 %v5087, %v5086
      %v5101 = vpack.c.b16 %v5089, %v5088
      %v5102 = vpack.c.b16 %v5091, %v5090
      %v5103 = vpack.c.b16 %v5093, %v5092
      %v5104 = vpack.c.b16 %v5095, %v5094
      %v5105 = vpack.c.b16 %v5097, %v5096
      %5114 = vmatprep.subr.bf16.mxu0 0
      %5115 = vmatpush1.bf16.msra.mxu0 %v5105
      %5116 = vmatprep.subr.bf16.mxu0 0
      %5117 = vmatpush1.bf16.msra.mxu0 %v5104
      %5118 = vmatprep.subr.bf16.mxu0 0
      %5119 = vmatpush1.bf16.msra.mxu0 %v5103
      %5120 = vmatprep.subr.bf16.mxu0 0
      %5121 = vmatpush1.bf16.msra.mxu0 %v5102
      %5122 = vmatprep.subr.bf16.mxu0 0
      %5123 = vmatpush1.bf16.msra.mxu0 %v5101
      %5124 = vmatprep.subr.bf16.mxu0 0
      %5125 = vmatpush1.bf16.msra.mxu0 %v5100
      %5126 = vmatprep.subr.bf16.mxu0 0
      %5127 = vmatpush1.bf16.msra.mxu0 %v5099
      %5128 = vmatprep.subr.bf16.mxu0 0
      %5129 = vmatpush1.bf16.msra.mxu0 %v5098
      %5130 = vmatprep.subr.bf16.mxu0 0
      %5131 = vmatpush2.bf16.msra.mxu0 0
      %5132 = vmatprep.subr.bf16.mxu0 0
      %5133 = vmatpush2.bf16.msra.mxu0 0
      %5134 = vmatprep.subr.bf16.mxu0 0
      %5135 = vmatpush2.bf16.msra.mxu0 0
      %5136 = vmatprep.subr.bf16.mxu0 0
      %5137 = vmatpush2.bf16.msra.mxu0 0
      %5138 = vmatprep.subr.bf16.mxu0 0
      %5139 = vmatpush2.bf16.msra.mxu0 0
      %5140 = vmatprep.subr.bf16.mxu0 0
      %5141 = vmatpush2.bf16.msra.mxu0 0
      %5142 = vmatprep.subr.bf16.mxu0 0
      %5143 = vmatpush2.bf16.msra.mxu0 0
      %5144 = vmatprep.subr.bf16.mxu0 0
      %5145 = vmatpush2.bf16.msra.mxu0 0
      %5146 = vmatprep.mubr.bf16.mxu0 0
      %5147 = vmatmul.mubr.bf16.gmra.mxu0 %v5034
      %v5148 = vpop.f32.mrf.mxu0
      %v5149 = vadd.f32 0.0, %v5148
      %v5150 = vpop.f32.mrf.mxu0
      %v5151 = vpop.f32.mrf.mxu0
      %v5152 = vadd.f32 0.0, %v5151
      %v5153 = vpop.f32.mrf.mxu0
      %5154 = vmatprep.mubr.bf16.mxu0 0
      %5155 = vmatmul.mubr.bf16.gmra.mxu0 %v5035
      %v5156 = vpop.f32.mrf.mxu0
      %v5157 = vadd.f32 0.0, %v5156
      %v5158 = vpop.f32.mrf.mxu0
      %v5159 = vpop.f32.mrf.mxu0
      %v5160 = vadd.f32 0.0, %v5159
      %v5161 = vpop.f32.mrf.mxu0
      %5162 = vmatprep.mubr.bf16.mxu0 0
      %5163 = vmatmul.mubr.bf16.gmra.mxu0 %v5036
      %v5164 = vpop.f32.mrf.mxu0
      %v5165 = vadd.f32 0.0, %v5164
      %v5166 = vpop.f32.mrf.mxu0
      %v5167 = vpop.f32.mrf.mxu0
      %v5168 = vadd.f32 0.0, %v5167
      %v5169 = vpop.f32.mrf.mxu0
      %5170 = vmatprep.mubr.bf16.mxu0 0
      %5171 = vmatmul.mubr.bf16.gmra.mxu0 %v5037
      %v5172 = vpop.f32.mrf.mxu0
      %v5173 = vadd.f32 0.0, %v5172
      %v5174 = vpop.f32.mrf.mxu0
      %v5175 = vpop.f32.mrf.mxu0
      %v5176 = vadd.f32 0.0, %v5175
      %v5177 = vpop.f32.mrf.mxu0
      %5178 = vmatprep.mubr.bf16.mxu0 0
      %5179 = vmatmul.mubr.bf16.gmra.mxu0 %v5038
      %v5180 = vpop.f32.mrf.mxu0
      %v5181 = vadd.f32 0.0, %v5180
      %v5182 = vpop.f32.mrf.mxu0
      %v5183 = vpop.f32.mrf.mxu0
      %v5184 = vadd.f32 0.0, %v5183
      %v5185 = vpop.f32.mrf.mxu0
      %5186 = vmatprep.mubr.bf16.mxu0 0
      %5187 = vmatmul.mubr.bf16.gmra.mxu0 %v5039
      %v5188 = vpop.f32.mrf.mxu0
      %v5189 = vadd.f32 0.0, %v5188
      %v5190 = vpop.f32.mrf.mxu0
      %v5191 = vpop.f32.mrf.mxu0
      %v5192 = vadd.f32 0.0, %v5191
      %v5193 = vpop.f32.mrf.mxu0
      %5194 = vmatprep.mubr.bf16.mxu0 0
      %5195 = vmatmul.mubr.bf16.gmra.mxu0 %v5040
      %v5196 = vpop.f32.mrf.mxu0
      %v5197 = vadd.f32 0.0, %v5196
      %v5198 = vpop.f32.mrf.mxu0
      %v5199 = vpop.f32.mrf.mxu0
      %v5200 = vadd.f32 0.0, %v5199
      %v5201 = vpop.f32.mrf.mxu0
      %5202 = vmatprep.mubr.bf16.mxu0 0
      %5203 = vmatmul.mubr.bf16.gmra.mxu0 %v5041
      %v5204 = vpop.f32.mrf.mxu0
      %v5205 = vadd.f32 0.0, %v5204
      %v5206 = vpop.f32.mrf.mxu0
      %v5207 = vpop.f32.mrf.mxu0
      %v5208 = vadd.f32 0.0, %v5207
      %v5209 = vpop.f32.mrf.mxu0
      %5210 = vmatprep.mubr.bf16.mxu0 0
      %5211 = vmatmul.mubr.bf16.gmra.mxu0 %v5042
      %v5212 = vpop.f32.mrf.mxu0
      %v5213 = vadd.f32 0.0, %v5212
      %v5214 = vpop.f32.mrf.mxu0
      %v5215 = vpop.f32.mrf.mxu0
      %v5216 = vadd.f32 0.0, %v5215
      %v5217 = vpop.f32.mrf.mxu0
      %5218 = vmatprep.mubr.bf16.mxu0 0
      %5219 = vmatmul.mubr.bf16.gmra.mxu0 %v5043
      %v5220 = vpop.f32.mrf.mxu0
      %v5221 = vadd.f32 0.0, %v5220
      %v5222 = vpop.f32.mrf.mxu0
      %v5223 = vpop.f32.mrf.mxu0
      %v5224 = vadd.f32 0.0, %v5223
      %v5225 = vpop.f32.mrf.mxu0
      %5226 = vmatprep.mubr.bf16.mxu0 0
      %5227 = vmatmul.mubr.bf16.gmra.mxu0 %v5044
      %v5228 = vpop.f32.mrf.mxu0
      %v5229 = vadd.f32 0.0, %v5228
      %v5230 = vpop.f32.mrf.mxu0
      %v5231 = vpop.f32.mrf.mxu0
      %v5232 = vadd.f32 0.0, %v5231
      %v5233 = vpop.f32.mrf.mxu0
      %5234 = vmatprep.mubr.bf16.mxu0 0
      %5235 = vmatmul.mubr.bf16.gmra.mxu0 %v5045
      %v5236 = vpop.f32.mrf.mxu0
      %v5237 = vadd.f32 0.0, %v5236
      %v5238 = vpop.f32.mrf.mxu0
      %v5239 = vpop.f32.mrf.mxu0
      %v5240 = vadd.f32 0.0, %v5239
      %v5241 = vpop.f32.mrf.mxu0
      %5242 = vmatprep.mubr.bf16.mxu0 0
      %5243 = vmatmul.mubr.bf16.gmra.mxu0 %v5046
      %v5244 = vpop.f32.mrf.mxu0
      %v5245 = vadd.f32 0.0, %v5244
      %v5246 = vpop.f32.mrf.mxu0
      %v5247 = vpop.f32.mrf.mxu0
      %v5248 = vadd.f32 0.0, %v5247
      %v5249 = vpop.f32.mrf.mxu0
      %5250 = vmatprep.mubr.bf16.mxu0 0
      %5251 = vmatmul.mubr.bf16.gmra.mxu0 %v5047
      %v5252 = vpop.f32.mrf.mxu0
      %v5253 = vadd.f32 0.0, %v5252
      %v5254 = vpop.f32.mrf.mxu0
      %v5255 = vpop.f32.mrf.mxu0
      %v5256 = vadd.f32 0.0, %v5255
      %v5257 = vpop.f32.mrf.mxu0
      %5258 = vmatprep.mubr.bf16.mxu0 0
      %5259 = vmatmul.mubr.bf16.gmra.mxu0 %v5048
      %v5260 = vpop.f32.mrf.mxu0
      %v5261 = vadd.f32 0.0, %v5260
      %v5262 = vpop.f32.mrf.mxu0
      %v5263 = vpop.f32.mrf.mxu0
      %v5264 = vadd.f32 0.0, %v5263
      %v5265 = vpop.f32.mrf.mxu0
      %5266 = vmatprep.mubr.bf16.mxu0 0
      %5267 = vmatmul.mubr.bf16.gmra.mxu0 %v5049
      %v5268 = vpop.f32.mrf.mxu0
      %v5269 = vadd.f32 0.0, %v5268
      %v5270 = vpop.f32.mrf.mxu0
      %v5271 = vpop.f32.mrf.mxu0
      %v5272 = vadd.f32 0.0, %v5271
      %v5273 = vpop.f32.mrf.mxu0
      %5274 = vdwg.mxu0
      %v5275 = vadd.f32 %v4521, %v5149
      %v5276 = vadd.f32 %v4522, %v5152
      %v5277 = vadd.f32 %v4523, %v5157
      %v5278 = vadd.f32 %v4524, %v5160
      %v5279 = vadd.f32 %v4525, %v5165
      %v5280 = vadd.f32 %v4526, %v5168
      %v5281 = vadd.f32 %v4527, %v5173
      %v5282 = vadd.f32 %v4528, %v5176
      %v5283 = vadd.f32 %v4529, %v5181
      %v5284 = vadd.f32 %v4530, %v5184
      %v5285 = vadd.f32 %v4531, %v5189
      %v5286 = vadd.f32 %v4532, %v5192
      %v5287 = vadd.f32 %v4533, %v5197
      %v5288 = vadd.f32 %v4534, %v5200
      %v5289 = vadd.f32 %v4535, %v5205
      %v5290 = vadd.f32 %v4536, %v5208
      %v5291 = vadd.f32 %v4537, %v5213
      %v5292 = vadd.f32 %v4538, %v5216
      %v5293 = vadd.f32 %v4539, %v5221
      %v5294 = vadd.f32 %v4540, %v5224
      %v5295 = vadd.f32 %v4541, %v5229
      %v5296 = vadd.f32 %v4542, %v5232
      %v5297 = vadd.f32 %v4543, %v5237
      %v5298 = vadd.f32 %v4544, %v5240
      %v5299 = vadd.f32 %v4545, %v5245
      %v5300 = vadd.f32 %v4546, %v5248
      %v5301 = vadd.f32 %v4547, %v5253
      %v5302 = vadd.f32 %v4548, %v5256
      %v5303 = vadd.f32 %v4549, %v5261
      %v5304 = vadd.f32 %v4550, %v5264
      %v5305 = vadd.f32 %v4551, %v5269
      %v5306 = vadd.f32 %v4552, %v5272
      %v5307 = vld [vmem:[%s4166] sm:$0xe]
      %v5308 = vld [vmem:[%s4166 + $0xc] sm:$0xe]
      %v5309 = vld [vmem:[%s4166 + $0x18] sm:$0xe]
      %v5310 = vld [vmem:[%s4166 + $0x24] sm:$0xe]
      %v5311 = vld [vmem:[%s4166 + $0x30] sm:$0xe]
      %v5312 = vld [vmem:[%s4166 + $0x3c] sm:$0xe]
      %v5313 = vld [vmem:[%s4166 + $0x48] sm:$0xe]
      %v5314 = vld [vmem:[%s4166 + $0x54] sm:$0xe]
      %v5315 = vld [vmem:[%s4166 + $0x60] sm:$0xe]
      %v5316 = vld [vmem:[%s4166 + $0x6c] sm:$0xe]
      %v5317 = vld [vmem:[%s4166 + $0x78] sm:$0xe]
      %v5318 = vld [vmem:[%s4166 + $0x84] sm:$0xe]
      %v5319 = vld [vmem:[%s4166 + $0x90] sm:$0xe]
      %v5320 = vld [vmem:[%s4166 + $0x9c] sm:$0xe]
      %v5321 = vld [vmem:[%s4166 + $0xa8] sm:$0xe]
      %v5322 = vld [vmem:[%s4166 + $0xb4] sm:$0xe]
      %v5371 = vrot.slane %v5307, 5
      %v5372 = vrot.slane %v5371, 4
      %v5373 = vrot.slane %v4554, 5
      %v5374 = vsel %vm2093, %v5372, %v5373
      %v5375 = vrot.slane %v5373, 4
      %v5376 = vrot.slane %v4555, 5
      %v5377 = vsel %vm2093, %v5375, %v5376
      %v5378 = vrot.slane %v5308, 5
      %v5379 = vrot.slane %v5378, 4
      %v5380 = vrot.slane %v4557, 5
      %v5381 = vsel %vm2093, %v5379, %v5380
      %v5382 = vrot.slane %v5380, 4
      %v5383 = vrot.slane %v4558, 5
      %v5384 = vsel %vm2093, %v5382, %v5383
      %v5385 = vrot.slane %v5309, 5
      %v5386 = vrot.slane %v5385, 4
      %v5387 = vrot.slane %v4560, 5
      %v5388 = vsel %vm2093, %v5386, %v5387
      %v5389 = vrot.slane %v5387, 4
      %v5390 = vrot.slane %v4561, 5
      %v5391 = vsel %vm2093, %v5389, %v5390
      %v5392 = vrot.slane %v5310, 5
      %v5393 = vrot.slane %v5392, 4
      %v5394 = vrot.slane %v4563, 5
      %v5395 = vsel %vm2093, %v5393, %v5394
      %v5396 = vrot.slane %v5394, 4
      %v5397 = vrot.slane %v4564, 5
      %v5398 = vsel %vm2093, %v5396, %v5397
      %v5399 = vrot.slane %v5311, 5
      %v5400 = vrot.slane %v5399, 4
      %v5401 = vrot.slane %v4566, 5
      %v5402 = vsel %vm2093, %v5400, %v5401
      %v5403 = vrot.slane %v5401, 4
      %v5404 = vrot.slane %v4567, 5
      %v5405 = vsel %vm2093, %v5403, %v5404
      %v5406 = vrot.slane %v5312, 5
      %v5407 = vrot.slane %v5406, 4
      %v5408 = vrot.slane %v4569, 5
      %v5409 = vsel %vm2093, %v5407, %v5408
      %v5410 = vrot.slane %v5408, 4
      %v5411 = vrot.slane %v4570, 5
      %v5412 = vsel %vm2093, %v5410, %v5411
      %v5413 = vrot.slane %v5313, 5
      %v5414 = vrot.slane %v5413, 4
      %v5415 = vrot.slane %v4572, 5
      %v5416 = vsel %vm2093, %v5414, %v5415
      %v5417 = vrot.slane %v5415, 4
      %v5418 = vrot.slane %v4573, 5
      %v5419 = vsel %vm2093, %v5417, %v5418
      %v5420 = vrot.slane %v5314, 5
      %v5421 = vrot.slane %v5420, 4
      %v5422 = vrot.slane %v4575, 5
      %v5423 = vsel %vm2093, %v5421, %v5422
      %v5424 = vrot.slane %v5422, 4
      %v5425 = vrot.slane %v4576, 5
      %v5426 = vsel %vm2093, %v5424, %v5425
      %v5427 = vrot.slane %v5315, 5
      %v5428 = vrot.slane %v5427, 4
      %v5429 = vrot.slane %v4578, 5
      %v5430 = vsel %vm2093, %v5428, %v5429
      %v5431 = vrot.slane %v5429, 4
      %v5432 = vrot.slane %v4579, 5
      %v5433 = vsel %vm2093, %v5431, %v5432
      %v5434 = vrot.slane %v5316, 5
      %v5435 = vrot.slane %v5434, 4
      %v5436 = vrot.slane %v4581, 5
      %v5437 = vsel %vm2093, %v5435, %v5436
      %v5438 = vrot.slane %v5436, 4
      %v5439 = vrot.slane %v4582, 5
      %v5440 = vsel %vm2093, %v5438, %v5439
      %v5441 = vrot.slane %v5317, 5
      %v5442 = vrot.slane %v5441, 4
      %v5443 = vrot.slane %v4584, 5
      %v5444 = vsel %vm2093, %v5442, %v5443
      %v5445 = vrot.slane %v5443, 4
      %v5446 = vrot.slane %v4585, 5
      %v5447 = vsel %vm2093, %v5445, %v5446
      %v5448 = vrot.slane %v5318, 5
      %v5449 = vrot.slane %v5448, 4
      %v5450 = vrot.slane %v4587, 5
      %v5451 = vsel %vm2093, %v5449, %v5450
      %v5452 = vrot.slane %v5450, 4
      %v5453 = vrot.slane %v4588, 5
      %v5454 = vsel %vm2093, %v5452, %v5453
      %v5455 = vrot.slane %v5319, 5
      %v5456 = vrot.slane %v5455, 4
      %v5457 = vrot.slane %v4590, 5
      %v5458 = vsel %vm2093, %v5456, %v5457
      %v5459 = vrot.slane %v5457, 4
      %v5460 = vrot.slane %v4591, 5
      %v5461 = vsel %vm2093, %v5459, %v5460
      %v5462 = vrot.slane %v5320, 5
      %v5463 = vrot.slane %v5462, 4
      %v5464 = vrot.slane %v4593, 5
      %v5465 = vsel %vm2093, %v5463, %v5464
      %v5466 = vrot.slane %v5464, 4
      %v5467 = vrot.slane %v4594, 5
      %v5468 = vsel %vm2093, %v5466, %v5467
      %v5469 = vrot.slane %v5321, 5
      %v5470 = vrot.slane %v5469, 4
      %v5471 = vrot.slane %v4596, 5
      %v5472 = vsel %vm2093, %v5470, %v5471
      %v5473 = vrot.slane %v5471, 4
      %v5474 = vrot.slane %v4597, 5
      %v5475 = vsel %vm2093, %v5473, %v5474
      %v5476 = vrot.slane %v5322, 5
      %v5477 = vrot.slane %v5476, 4
      %v5478 = vrot.slane %v4599, 5
      %v5479 = vsel %vm2093, %v5477, %v5478
      %v5480 = vrot.slane %v5478, 4
      %v5481 = vrot.slane %v4600, 5
      %v5482 = vsel %vm2093, %v5480, %v5481
      %s5483 = scalar_lea.vmem %s1, 512
      %v5484 = vld [vmem:[%s5483] sm:$0xf]
      %v5485 = vld [vmem:[%s5483 + $0x4] sm:$0xf]
      %v5486 = vld [vmem:[%s5483 + $0x8] sm:$0xf]
      %v5487 = vld [vmem:[%s5483 + $0xc] sm:$0xf]
      %v5488 = vld [vmem:[%s5483 + $0x10] sm:$0xf]
      %v5489 = vld [vmem:[%s5483 + $0x14] sm:$0xf]
      %v5490 = vld [vmem:[%s5483 + $0x18] sm:$0xf]
      %v5491 = vld [vmem:[%s5483 + $0x1c] sm:$0xf]
      %v5492 = vld [vmem:[%s5483 + $0x20] sm:$0xf]
      %v5493 = vld [vmem:[%s5483 + $0x24] sm:$0xf]
      %v5494 = vld [vmem:[%s5483 + $0x28] sm:$0xf]
      %v5495 = vld [vmem:[%s5483 + $0x2c] sm:$0xf]
      %v5496 = vld [vmem:[%s5483 + $0x30] sm:$0xf]
      %v5497 = vld [vmem:[%s5483 + $0x34] sm:$0xf]
      %v5498 = vld [vmem:[%s5483 + $0x38] sm:$0xf]
      %v5499 = vld [vmem:[%s5483 + $0x3c] sm:$0xf]
      %v5500 = vunpack.c.l.b16 %v5374
      %v5501 = vunpack.c.l.b16 %v5377
      %v5502 = vunpack.c.l.b16 %v5381
      %v5503 = vunpack.c.l.b16 %v5384
      %v5504 = vunpack.c.l.b16 %v5388
      %v5505 = vunpack.c.l.b16 %v5391
      %v5506 = vunpack.c.l.b16 %v5395
      %v5507 = vunpack.c.l.b16 %v5398
      %v5508 = vunpack.c.l.b16 %v5402
      %v5509 = vunpack.c.l.b16 %v5405
      %v5510 = vunpack.c.l.b16 %v5409
      %v5511 = vunpack.c.l.b16 %v5412
      %v5512 = vunpack.c.l.b16 %v5416
      %v5513 = vunpack.c.l.b16 %v5419
      %v5514 = vunpack.c.l.b16 %v5423
      %v5515 = vunpack.c.l.b16 %v5426
      %v5516 = vunpack.c.l.b16 %v5430
      %v5517 = vunpack.c.l.b16 %v5433
      %v5518 = vunpack.c.l.b16 %v5437
      %v5519 = vunpack.c.l.b16 %v5440
      %v5520 = vunpack.c.l.b16 %v5444
      %v5521 = vunpack.c.l.b16 %v5447
      %v5522 = vunpack.c.l.b16 %v5451
      %v5523 = vunpack.c.l.b16 %v5454
      %v5524 = vunpack.c.l.b16 %v5458
      %v5525 = vunpack.c.l.b16 %v5461
      %v5526 = vunpack.c.l.b16 %v5465
      %v5527 = vunpack.c.l.b16 %v5468
      %v5528 = vunpack.c.l.b16 %v5472
      %v5529 = vunpack.c.l.b16 %v5475
      %v5530 = vunpack.c.l.b16 %v5479
      %v5531 = vunpack.c.l.b16 %v5482
      %v5532 = vpack.c.b16 %v5501, %v5500
      %v5533 = vpack.c.b16 %v5503, %v5502
      %v5534 = vpack.c.b16 %v5505, %v5504
      %v5535 = vpack.c.b16 %v5507, %v5506
      %v5536 = vpack.c.b16 %v5509, %v5508
      %v5537 = vpack.c.b16 %v5511, %v5510
      %v5538 = vpack.c.b16 %v5513, %v5512
      %v5539 = vpack.c.b16 %v5515, %v5514
      %v5540 = vpack.c.b16 %v5517, %v5516
      %v5541 = vpack.c.b16 %v5519, %v5518
      %v5542 = vpack.c.b16 %v5521, %v5520
      %v5543 = vpack.c.b16 %v5523, %v5522
      %v5544 = vpack.c.b16 %v5525, %v5524
      %v5545 = vpack.c.b16 %v5527, %v5526
      %v5546 = vpack.c.b16 %v5529, %v5528
      %v5547 = vpack.c.b16 %v5531, %v5530
      %v5580 = vunpack.c.l.b16 %v5484
      %v5581 = vunpack.c.l.b16 %v5485
      %v5582 = vunpack.c.l.b16 %v5486
      %v5583 = vunpack.c.l.b16 %v5487
      %v5584 = vunpack.c.l.b16 %v5488
      %v5585 = vunpack.c.l.b16 %v5489
      %v5586 = vunpack.c.l.b16 %v5490
      %v5587 = vunpack.c.l.b16 %v5491
      %v5588 = vunpack.c.l.b16 %v5492
      %v5589 = vunpack.c.l.b16 %v5493
      %v5590 = vunpack.c.l.b16 %v5494
      %v5591 = vunpack.c.l.b16 %v5495
      %v5592 = vunpack.c.l.b16 %v5496
      %v5593 = vunpack.c.l.b16 %v5497
      %v5594 = vunpack.c.l.b16 %v5498
      %v5595 = vunpack.c.l.b16 %v5499
      %v5596 = vpack.c.b16 %v5581, %v5580
      %v5597 = vpack.c.b16 %v5583, %v5582
      %v5598 = vpack.c.b16 %v5585, %v5584
      %v5599 = vpack.c.b16 %v5587, %v5586
      %v5600 = vpack.c.b16 %v5589, %v5588
      %v5601 = vpack.c.b16 %v5591, %v5590
      %v5602 = vpack.c.b16 %v5593, %v5592
      %v5603 = vpack.c.b16 %v5595, %v5594
      %5612 = vmatprep.subr.bf16.mxu0 0
      %5613 = vmatpush1.bf16.msra.mxu0 %v5603
      %5614 = vmatprep.subr.bf16.mxu0 0
      %5615 = vmatpush1.bf16.msra.mxu0 %v5602
      %5616 = vmatprep.subr.bf16.mxu0 0
      %5617 = vmatpush1.bf16.msra.mxu0 %v5601
      %5618 = vmatprep.subr.bf16.mxu0 0
      %5619 = vmatpush1.bf16.msra.mxu0 %v5600
      %5620 = vmatprep.subr.bf16.mxu0 0
      %5621 = vmatpush1.bf16.msra.mxu0 %v5599
      %5622 = vmatprep.subr.bf16.mxu0 0
      %5623 = vmatpush1.bf16.msra.mxu0 %v5598
      %5624 = vmatprep.subr.bf16.mxu0 0
      %5625 = vmatpush1.bf16.msra.mxu0 %v5597
      %5626 = vmatprep.subr.bf16.mxu0 0
      %5627 = vmatpush1.bf16.msra.mxu0 %v5596
      %5628 = vmatprep.subr.bf16.mxu0 0
      %5629 = vmatpush2.bf16.msra.mxu0 0
      %5630 = vmatprep.subr.bf16.mxu0 0
      %5631 = vmatpush2.bf16.msra.mxu0 0
      %5632 = vmatprep.subr.bf16.mxu0 0
      %5633 = vmatpush2.bf16.msra.mxu0 0
      %5634 = vmatprep.subr.bf16.mxu0 0
      %5635 = vmatpush2.bf16.msra.mxu0 0
      %5636 = vmatprep.subr.bf16.mxu0 0
      %5637 = vmatpush2.bf16.msra.mxu0 0
      %5638 = vmatprep.subr.bf16.mxu0 0
      %5639 = vmatpush2.bf16.msra.mxu0 0
      %5640 = vmatprep.subr.bf16.mxu0 0
      %5641 = vmatpush2.bf16.msra.mxu0 0
      %5642 = vmatprep.subr.bf16.mxu0 0
      %5643 = vmatpush2.bf16.msra.mxu0 0
      %5644 = vmatprep.mubr.bf16.mxu0 0
      %5645 = vmatmul.mubr.bf16.gmra.mxu0 %v5532
      %v5646 = vpop.f32.mrf.mxu0
      %v5647 = vadd.f32 0.0, %v5646
      %v5648 = vpop.f32.mrf.mxu0
      %v5649 = vpop.f32.mrf.mxu0
      %v5650 = vadd.f32 0.0, %v5649
      %v5651 = vpop.f32.mrf.mxu0
      %5652 = vmatprep.mubr.bf16.mxu0 0
      %5653 = vmatmul.mubr.bf16.gmra.mxu0 %v5533
      %v5654 = vpop.f32.mrf.mxu0
      %v5655 = vadd.f32 0.0, %v5654
      %v5656 = vpop.f32.mrf.mxu0
      %v5657 = vpop.f32.mrf.mxu0
      %v5658 = vadd.f32 0.0, %v5657
      %v5659 = vpop.f32.mrf.mxu0
      %5660 = vmatprep.mubr.bf16.mxu0 0
      %5661 = vmatmul.mubr.bf16.gmra.mxu0 %v5534
      %v5662 = vpop.f32.mrf.mxu0
      %v5663 = vadd.f32 0.0, %v5662
      %v5664 = vpop.f32.mrf.mxu0
      %v5665 = vpop.f32.mrf.mxu0
      %v5666 = vadd.f32 0.0, %v5665
      %v5667 = vpop.f32.mrf.mxu0
      %5668 = vmatprep.mubr.bf16.mxu0 0
      %5669 = vmatmul.mubr.bf16.gmra.mxu0 %v5535
      %v5670 = vpop.f32.mrf.mxu0
      %v5671 = vadd.f32 0.0, %v5670
      %v5672 = vpop.f32.mrf.mxu0
      %v5673 = vpop.f32.mrf.mxu0
      %v5674 = vadd.f32 0.0, %v5673
      %v5675 = vpop.f32.mrf.mxu0
      %5676 = vmatprep.mubr.bf16.mxu0 0
      %5677 = vmatmul.mubr.bf16.gmra.mxu0 %v5536
      %v5678 = vpop.f32.mrf.mxu0
      %v5679 = vadd.f32 0.0, %v5678
      %v5680 = vpop.f32.mrf.mxu0
      %v5681 = vpop.f32.mrf.mxu0
      %v5682 = vadd.f32 0.0, %v5681
      %v5683 = vpop.f32.mrf.mxu0
      %5684 = vmatprep.mubr.bf16.mxu0 0
      %5685 = vmatmul.mubr.bf16.gmra.mxu0 %v5537
      %v5686 = vpop.f32.mrf.mxu0
      %v5687 = vadd.f32 0.0, %v5686
      %v5688 = vpop.f32.mrf.mxu0
      %v5689 = vpop.f32.mrf.mxu0
      %v5690 = vadd.f32 0.0, %v5689
      %v5691 = vpop.f32.mrf.mxu0
      %5692 = vmatprep.mubr.bf16.mxu0 0
      %5693 = vmatmul.mubr.bf16.gmra.mxu0 %v5538
      %v5694 = vpop.f32.mrf.mxu0
      %v5695 = vadd.f32 0.0, %v5694
      %v5696 = vpop.f32.mrf.mxu0
      %v5697 = vpop.f32.mrf.mxu0
      %v5698 = vadd.f32 0.0, %v5697
      %v5699 = vpop.f32.mrf.mxu0
      %5700 = vmatprep.mubr.bf16.mxu0 0
      %5701 = vmatmul.mubr.bf16.gmra.mxu0 %v5539
      %v5702 = vpop.f32.mrf.mxu0
      %v5703 = vadd.f32 0.0, %v5702
      %v5704 = vpop.f32.mrf.mxu0
      %v5705 = vpop.f32.mrf.mxu0
      %v5706 = vadd.f32 0.0, %v5705
      %v5707 = vpop.f32.mrf.mxu0
      %5708 = vmatprep.mubr.bf16.mxu0 0
      %5709 = vmatmul.mubr.bf16.gmra.mxu0 %v5540
      %v5710 = vpop.f32.mrf.mxu0
      %v5711 = vadd.f32 0.0, %v5710
      %v5712 = vpop.f32.mrf.mxu0
      %v5713 = vpop.f32.mrf.mxu0
      %v5714 = vadd.f32 0.0, %v5713
      %v5715 = vpop.f32.mrf.mxu0
      %5716 = vmatprep.mubr.bf16.mxu0 0
      %5717 = vmatmul.mubr.bf16.gmra.mxu0 %v5541
      %v5718 = vpop.f32.mrf.mxu0
      %v5719 = vadd.f32 0.0, %v5718
      %v5720 = vpop.f32.mrf.mxu0
      %v5721 = vpop.f32.mrf.mxu0
      %v5722 = vadd.f32 0.0, %v5721
      %v5723 = vpop.f32.mrf.mxu0
      %5724 = vmatprep.mubr.bf16.mxu0 0
      %5725 = vmatmul.mubr.bf16.gmra.mxu0 %v5542
      %v5726 = vpop.f32.mrf.mxu0
      %v5727 = vadd.f32 0.0, %v5726
      %v5728 = vpop.f32.mrf.mxu0
      %v5729 = vpop.f32.mrf.mxu0
      %v5730 = vadd.f32 0.0, %v5729
      %v5731 = vpop.f32.mrf.mxu0
      %5732 = vmatprep.mubr.bf16.mxu0 0
      %5733 = vmatmul.mubr.bf16.gmra.mxu0 %v5543
      %v5734 = vpop.f32.mrf.mxu0
      %v5735 = vadd.f32 0.0, %v5734
      %v5736 = vpop.f32.mrf.mxu0
      %v5737 = vpop.f32.mrf.mxu0
      %v5738 = vadd.f32 0.0, %v5737
      %v5739 = vpop.f32.mrf.mxu0
      %5740 = vmatprep.mubr.bf16.mxu0 0
      %5741 = vmatmul.mubr.bf16.gmra.mxu0 %v5544
      %v5742 = vpop.f32.mrf.mxu0
      %v5743 = vadd.f32 0.0, %v5742
      %v5744 = vpop.f32.mrf.mxu0
      %v5745 = vpop.f32.mrf.mxu0
      %v5746 = vadd.f32 0.0, %v5745
      %v5747 = vpop.f32.mrf.mxu0
      %5748 = vmatprep.mubr.bf16.mxu0 0
      %5749 = vmatmul.mubr.bf16.gmra.mxu0 %v5545
      %v5750 = vpop.f32.mrf.mxu0
      %v5751 = vadd.f32 0.0, %v5750
      %v5752 = vpop.f32.mrf.mxu0
      %v5753 = vpop.f32.mrf.mxu0
      %v5754 = vadd.f32 0.0, %v5753
      %v5755 = vpop.f32.mrf.mxu0
      %5756 = vmatprep.mubr.bf16.mxu0 0
      %5757 = vmatmul.mubr.bf16.gmra.mxu0 %v5546
      %v5758 = vpop.f32.mrf.mxu0
      %v5759 = vadd.f32 0.0, %v5758
      %v5760 = vpop.f32.mrf.mxu0
      %v5761 = vpop.f32.mrf.mxu0
      %v5762 = vadd.f32 0.0, %v5761
      %v5763 = vpop.f32.mrf.mxu0
      %5764 = vmatprep.mubr.bf16.mxu0 0
      %5765 = vmatmul.mubr.bf16.gmra.mxu0 %v5547
      %v5766 = vpop.f32.mrf.mxu0
      %v5767 = vadd.f32 0.0, %v5766
      %v5768 = vpop.f32.mrf.mxu0
      %v5769 = vpop.f32.mrf.mxu0
      %v5770 = vadd.f32 0.0, %v5769
      %v5771 = vpop.f32.mrf.mxu0
      %5772 = vdwg.mxu0
      %v5773 = vadd.f32 %v5275, %v5647
      %v5774 = vadd.f32 %v5276, %v5650
      %v5775 = vadd.f32 %v5277, %v5655
      %v5776 = vadd.f32 %v5278, %v5658
      %v5777 = vadd.f32 %v5279, %v5663
      %v5778 = vadd.f32 %v5280, %v5666
      %v5779 = vadd.f32 %v5281, %v5671
      %v5780 = vadd.f32 %v5282, %v5674
      %v5781 = vadd.f32 %v5283, %v5679
      %v5782 = vadd.f32 %v5284, %v5682
      %v5783 = vadd.f32 %v5285, %v5687
      %v5784 = vadd.f32 %v5286, %v5690
      %v5785 = vadd.f32 %v5287, %v5695
      %v5786 = vadd.f32 %v5288, %v5698
      %v5787 = vadd.f32 %v5289, %v5703
      %v5788 = vadd.f32 %v5290, %v5706
      %v5789 = vadd.f32 %v5291, %v5711
      %v5790 = vadd.f32 %v5292, %v5714
      %v5791 = vadd.f32 %v5293, %v5719
      %v5792 = vadd.f32 %v5294, %v5722
      %v5793 = vadd.f32 %v5295, %v5727
      %v5794 = vadd.f32 %v5296, %v5730
      %v5795 = vadd.f32 %v5297, %v5735
      %v5796 = vadd.f32 %v5298, %v5738
      %v5797 = vadd.f32 %v5299, %v5743
      %v5798 = vadd.f32 %v5300, %v5746
      %v5799 = vadd.f32 %v5301, %v5751
      %v5800 = vadd.f32 %v5302, %v5754
      %v5801 = vadd.f32 %v5303, %v5759
      %v5802 = vadd.f32 %v5304, %v5762
      %v5803 = vadd.f32 %v5305, %v5767
      %v5804 = vadd.f32 %v5306, %v5770
      %v5805 = vld [vmem:[%s2] sm:$0x1]
      %v5807 = vlaneseq
      %v5808 = vshrl.u32 %v5807, 7
      %v5809 = vsub.s32 0, %v5808
      %v5810 = vrot.slane %v5805, %v5809
      %v5812 = vadd.f32 %v5773, %v5810
      %v5813 = vadd.f32 %v5774, %v5810
      %v5814 = vadd.f32 %v5775, %v5810
      %v5815 = vadd.f32 %v5776, %v5810
      %v5816 = vadd.f32 %v5777, %v5810
      %v5817 = vadd.f32 %v5778, %v5810
      %v5818 = vadd.f32 %v5779, %v5810
      %v5819 = vadd.f32 %v5780, %v5810
      %v5820 = vadd.f32 %v5781, %v5810
      %v5821 = vadd.f32 %v5782, %v5810
      %v5822 = vadd.f32 %v5783, %v5810
      %v5823 = vadd.f32 %v5784, %v5810
      %v5824 = vadd.f32 %v5785, %v5810
      %v5825 = vadd.f32 %v5786, %v5810
      %v5826 = vadd.f32 %v5787, %v5810
      %v5827 = vadd.f32 %v5788, %v5810
      %v5828 = vadd.f32 %v5789, %v5810
      %v5829 = vadd.f32 %v5790, %v5810
      %v5830 = vadd.f32 %v5791, %v5810
      %v5831 = vadd.f32 %v5792, %v5810
      %v5832 = vadd.f32 %v5793, %v5810
      %v5833 = vadd.f32 %v5794, %v5810
      %v5834 = vadd.f32 %v5795, %v5810
      %v5835 = vadd.f32 %v5796, %v5810
      %v5836 = vadd.f32 %v5797, %v5810
      %v5837 = vadd.f32 %v5798, %v5810
      %v5838 = vadd.f32 %v5799, %v5810
      %v5839 = vadd.f32 %v5800, %v5810
      %v5840 = vadd.f32 %v5801, %v5810
      %v5841 = vadd.f32 %v5802, %v5810
      %v5842 = vadd.f32 %v5803, %v5810
      %v5843 = vadd.f32 %v5804, %v5810
      %v5844 = vmax.f32 %v5812, 0.0
      %v5845 = vmax.f32 %v5813, 0.0
      %v5846 = vmax.f32 %v5814, 0.0
      %v5847 = vmax.f32 %v5815, 0.0
      %v5848 = vmax.f32 %v5816, 0.0
      %v5849 = vmax.f32 %v5817, 0.0
      %v5850 = vmax.f32 %v5818, 0.0
      %v5851 = vmax.f32 %v5819, 0.0
      %v5852 = vmax.f32 %v5820, 0.0
      %v5853 = vmax.f32 %v5821, 0.0
      %v5854 = vmax.f32 %v5822, 0.0
      %v5855 = vmax.f32 %v5823, 0.0
      %v5856 = vmax.f32 %v5824, 0.0
      %v5857 = vmax.f32 %v5825, 0.0
      %v5858 = vmax.f32 %v5826, 0.0
      %v5859 = vmax.f32 %v5827, 0.0
      %v5860 = vmax.f32 %v5828, 0.0
      %v5861 = vmax.f32 %v5829, 0.0
      %v5862 = vmax.f32 %v5830, 0.0
      %v5863 = vmax.f32 %v5831, 0.0
      %v5864 = vmax.f32 %v5832, 0.0
      %v5865 = vmax.f32 %v5833, 0.0
      %v5866 = vmax.f32 %v5834, 0.0
      %v5867 = vmax.f32 %v5835, 0.0
      %v5868 = vmax.f32 %v5836, 0.0
      %v5869 = vmax.f32 %v5837, 0.0
      %v5870 = vmax.f32 %v5838, 0.0
      %v5871 = vmax.f32 %v5839, 0.0
      %v5872 = vmax.f32 %v5840, 0.0
      %v5873 = vmax.f32 %v5841, 0.0
      %v5874 = vmax.f32 %v5842, 0.0
      %v5875 = vmax.f32 %v5843, 0.0
      %v5876 = vpack.c.bf16 %v5845, %v5844
      %v5877 = vpack.c.bf16 %v5847, %v5846
      %v5878 = vpack.c.bf16 %v5849, %v5848
      %v5879 = vpack.c.bf16 %v5851, %v5850
      %v5880 = vpack.c.bf16 %v5853, %v5852
      %v5881 = vpack.c.bf16 %v5855, %v5854
      %v5882 = vpack.c.bf16 %v5857, %v5856
      %v5883 = vpack.c.bf16 %v5859, %v5858
      %v5884 = vpack.c.bf16 %v5861, %v5860
      %v5885 = vpack.c.bf16 %v5863, %v5862
      %v5886 = vpack.c.bf16 %v5865, %v5864
      %v5887 = vpack.c.bf16 %v5867, %v5866
      %v5888 = vpack.c.bf16 %v5869, %v5868
      %v5889 = vpack.c.bf16 %v5871, %v5870
      %v5890 = vpack.c.bf16 %v5873, %v5872
      %v5891 = vpack.c.bf16 %v5875, %v5874
      %v5908 = vunpack.c.l.b16 %v5876
      %v5909 = vunpack.c.h.b16 %v5876
      %v5910 = vunpack.c.l.b16 %v5877
      %v5911 = vunpack.c.h.b16 %v5877
      %v5912 = vunpack.c.l.b16 %v5878
      %v5913 = vunpack.c.h.b16 %v5878
      %v5914 = vunpack.c.l.b16 %v5879
      %v5915 = vunpack.c.h.b16 %v5879
      %v5916 = vunpack.c.l.b16 %v5880
      %v5917 = vunpack.c.h.b16 %v5880
      %v5918 = vunpack.c.l.b16 %v5881
      %v5919 = vunpack.c.h.b16 %v5881
      %v5920 = vunpack.c.l.b16 %v5882
      %v5921 = vunpack.c.h.b16 %v5882
      %v5922 = vunpack.c.l.b16 %v5883
      %v5923 = vunpack.c.h.b16 %v5883
      %v5924 = vunpack.c.l.b16 %v5884
      %v5925 = vunpack.c.h.b16 %v5884
      %v5926 = vunpack.c.l.b16 %v5885
      %v5927 = vunpack.c.h.b16 %v5885
      %v5928 = vunpack.c.l.b16 %v5886
      %v5929 = vunpack.c.h.b16 %v5886
      %v5930 = vunpack.c.l.b16 %v5887
      %v5931 = vunpack.c.h.b16 %v5887
      %v5932 = vunpack.c.l.b16 %v5888
      %v5933 = vunpack.c.h.b16 %v5888
      %v5934 = vunpack.c.l.b16 %v5889
      %v5935 = vunpack.c.h.b16 %v5889
      %v5936 = vunpack.c.l.b16 %v5890
      %v5937 = vunpack.c.h.b16 %v5890
      %v5938 = vunpack.c.l.b16 %v5891
      %v5939 = vunpack.c.h.b16 %v5891
      %v5940 = vpack.c.b16 %v5908, %v5908
      %v5941 = vpack.c.b16 %v5909, %v5909
      %v5942 = vpack.c.b16 %v5910, %v5910
      %v5943 = vpack.c.b16 %v5911, %v5911
      %v5944 = vpack.c.b16 %v5912, %v5912
      %v5945 = vpack.c.b16 %v5913, %v5913
      %v5946 = vpack.c.b16 %v5914, %v5914
      %v5947 = vpack.c.b16 %v5915, %v5915
      %v5948 = vpack.c.b16 %v5916, %v5916
      %v5949 = vpack.c.b16 %v5917, %v5917
      %v5950 = vpack.c.b16 %v5918, %v5918
      %v5951 = vpack.c.b16 %v5919, %v5919
      %v5952 = vpack.c.b16 %v5920, %v5920
      %v5953 = vpack.c.b16 %v5921, %v5921
      %v5954 = vpack.c.b16 %v5922, %v5922
      %v5955 = vpack.c.b16 %v5923, %v5923
      %v5956 = vpack.c.b16 %v5924, %v5924
      %v5957 = vpack.c.b16 %v5925, %v5925
      %v5958 = vpack.c.b16 %v5926, %v5926
      %v5959 = vpack.c.b16 %v5927, %v5927
      %v5960 = vpack.c.b16 %v5928, %v5928
      %v5961 = vpack.c.b16 %v5929, %v5929
      %v5962 = vpack.c.b16 %v5930, %v5930
      %v5963 = vpack.c.b16 %v5931, %v5931
      %v5964 = vpack.c.b16 %v5932, %v5932
      %v5965 = vpack.c.b16 %v5933, %v5933
      %v5966 = vpack.c.b16 %v5934, %v5934
      %v5967 = vpack.c.b16 %v5935, %v5935
      %v5968 = vpack.c.b16 %v5936, %v5936
      %v5969 = vpack.c.b16 %v5937, %v5937
      %v5970 = vpack.c.b16 %v5938, %v5938
      %v5971 = vpack.c.b16 %v5939, %v5939
      %6004 = vst [vmem:[%s258] sm:$0xf] %v5940
      %6005 = vst [vmem:[%s258 + $0x4] sm:$0xf] %v5941
      %6006 = vst [vmem:[%s258 + $0x8] sm:$0xf] %v5942
      %6007 = vst [vmem:[%s258 + $0xc] sm:$0xf] %v5943
      %6008 = vst [vmem:[%s258 + $0x10] sm:$0xf] %v5944
      %6009 = vst [vmem:[%s258 + $0x14] sm:$0xf] %v5945
      %6010 = vst [vmem:[%s258 + $0x18] sm:$0xf] %v5946
      %6011 = vst [vmem:[%s258 + $0x1c] sm:$0xf] %v5947
      %6012 = vst [vmem:[%s258 + $0x20] sm:$0xf] %v5948
      %6013 = vst [vmem:[%s258 + $0x24] sm:$0xf] %v5949
      %6014 = vst [vmem:[%s258 + $0x28] sm:$0xf] %v5950
      %6015 = vst [vmem:[%s258 + $0x2c] sm:$0xf] %v5951
      %6016 = vst [vmem:[%s258 + $0x30] sm:$0xf] %v5952
      %6017 = vst [vmem:[%s258 + $0x34] sm:$0xf] %v5953
      %6018 = vst [vmem:[%s258 + $0x38] sm:$0xf] %v5954
      %6019 = vst [vmem:[%s258 + $0x3c] sm:$0xf] %v5955
      %6020 = vst [vmem:[%s258 + $0x40] sm:$0xf] %v5956
      %6021 = vst [vmem:[%s258 + $0x44] sm:$0xf] %v5957
      %6022 = vst [vmem:[%s258 + $0x48] sm:$0xf] %v5958
      %6023 = vst [vmem:[%s258 + $0x4c] sm:$0xf] %v5959
      %6024 = vst [vmem:[%s258 + $0x50] sm:$0xf] %v5960
      %6025 = vst [vmem:[%s258 + $0x54] sm:$0xf] %v5961
      %6026 = vst [vmem:[%s258 + $0x58] sm:$0xf] %v5962
      %6027 = vst [vmem:[%s258 + $0x5c] sm:$0xf] %v5963
      %6028 = vst [vmem:[%s258 + $0x60] sm:$0xf] %v5964
      %6029 = vst [vmem:[%s258 + $0x64] sm:$0xf] %v5965
      %6030 = vst [vmem:[%s258 + $0x68] sm:$0xf] %v5966
      %6031 = vst [vmem:[%s258 + $0x6c] sm:$0xf] %v5967
      %6032 = vst [vmem:[%s258 + $0x70] sm:$0xf] %v5968
      %6033 = vst [vmem:[%s258 + $0x74] sm:$0xf] %v5969
      %6034 = vst [vmem:[%s258 + $0x78] sm:$0xf] %v5970
      %6035 = vst [vmem:[%s258 + $0x7c] sm:$0xf] %v5971
      %v6036 = vadd.f32 %v5844, %v5845
      %v6037 = vadd.f32 %v6036, %v5846
      %v6038 = vadd.f32 %v6037, %v5847
      %v6039 = vadd.f32 %v6038, %v5848
      %v6040 = vadd.f32 %v6039, %v5849
      %v6041 = vadd.f32 %v6040, %v5850
      %v6042 = vadd.f32 %v6041, %v5851
      %v6043 = vadd.f32 %v6042, %v5852
      %v6044 = vadd.f32 %v6043, %v5853
      %v6045 = vadd.f32 %v6044, %v5854
      %v6046 = vadd.f32 %v6045, %v5855
      %v6047 = vadd.f32 %v6046, %v5856
      %v6048 = vadd.f32 %v6047, %v5857
      %v6049 = vadd.f32 %v6048, %v5858
      %v6050 = vadd.f32 %v6049, %v5859
      %v6051 = vadd.f32 %v6050, %v5860
      %v6052 = vadd.f32 %v6051, %v5861
      %v6053 = vadd.f32 %v6052, %v5862
      %v6054 = vadd.f32 %v6053, %v5863
      %v6055 = vadd.f32 %v6054, %v5864
      %v6056 = vadd.f32 %v6055, %v5865
      %v6057 = vadd.f32 %v6056, %v5866
      %v6058 = vadd.f32 %v6057, %v5867
      %v6059 = vadd.f32 %v6058, %v5868
      %v6060 = vadd.f32 %v6059, %v5869
      %v6061 = vadd.f32 %v6060, %v5870
      %v6062 = vadd.f32 %v6061, %v5871
      %v6063 = vadd.f32 %v6062, %v5872
      %v6064 = vadd.f32 %v6063, %v5873
      %v6065 = vadd.f32 %v6064, %v5874
      %v6066 = vadd.f32 %v6065, %v5875
      %v6067 = vrot.slane %v6066, 4
      %v6068 = vadd.f32 %v6066, %v6067
      %v6069 = vrot.slane %v6068, 2
      %v6070 = vadd.f32 %v6068, %v6069
      %v6071 = vrot.slane %v6070, 1
      %v6072 = vadd.f32 %v6070, %v6071
      %6073 = vst [vmem:[%s262] sm:$0x1] %v6072
      %v6074 = vmul.f32 %v5844, %v5844
      %v6075 = vmul.f32 %v5845, %v5845
      %v6076 = vmul.f32 %v5846, %v5846
      %v6077 = vmul.f32 %v5847, %v5847
      %v6078 = vmul.f32 %v5848, %v5848
      %v6079 = vmul.f32 %v5849, %v5849
      %v6080 = vmul.f32 %v5850, %v5850
      %v6081 = vmul.f32 %v5851, %v5851
      %v6082 = vmul.f32 %v5852, %v5852
      %v6083 = vmul.f32 %v5853, %v5853
      %v6084 = vmul.f32 %v5854, %v5854
      %v6085 = vmul.f32 %v5855, %v5855
      %v6086 = vmul.f32 %v5856, %v5856
      %v6087 = vmul.f32 %v5857, %v5857
      %v6088 = vmul.f32 %v5858, %v5858
      %v6089 = vmul.f32 %v5859, %v5859
      %v6090 = vmul.f32 %v5860, %v5860
      %v6091 = vmul.f32 %v5861, %v5861
      %v6092 = vmul.f32 %v5862, %v5862
      %v6093 = vmul.f32 %v5863, %v5863
      %v6094 = vmul.f32 %v5864, %v5864
      %v6095 = vmul.f32 %v5865, %v5865
      %v6096 = vmul.f32 %v5866, %v5866
      %v6097 = vmul.f32 %v5867, %v5867
      %v6098 = vmul.f32 %v5868, %v5868
      %v6099 = vmul.f32 %v5869, %v5869
      %v6100 = vmul.f32 %v5870, %v5870
      %v6101 = vmul.f32 %v5871, %v5871
      %v6102 = vmul.f32 %v5872, %v5872
      %v6103 = vmul.f32 %v5873, %v5873
      %v6104 = vmul.f32 %v5874, %v5874
      %v6105 = vmul.f32 %v5875, %v5875
      %v6106 = vadd.f32 %v6074, %v6075
      %v6107 = vadd.f32 %v6106, %v6076
      %v6108 = vadd.f32 %v6107, %v6077
      %v6109 = vadd.f32 %v6108, %v6078
      %v6110 = vadd.f32 %v6109, %v6079
      %v6111 = vadd.f32 %v6110, %v6080
      %v6112 = vadd.f32 %v6111, %v6081
      %v6113 = vadd.f32 %v6112, %v6082
      %v6114 = vadd.f32 %v6113, %v6083
      %v6115 = vadd.f32 %v6114, %v6084
      %v6116 = vadd.f32 %v6115, %v6085
      %v6117 = vadd.f32 %v6116, %v6086
      %v6118 = vadd.f32 %v6117, %v6087
      %v6119 = vadd.f32 %v6118, %v6088
      %v6120 = vadd.f32 %v6119, %v6089
      %v6121 = vadd.f32 %v6120, %v6090
      %v6122 = vadd.f32 %v6121, %v6091
      %v6123 = vadd.f32 %v6122, %v6092
      %v6124 = vadd.f32 %v6123, %v6093
      %v6125 = vadd.f32 %v6124, %v6094
      %v6126 = vadd.f32 %v6125, %v6095
      %v6127 = vadd.f32 %v6126, %v6096
      %v6128 = vadd.f32 %v6127, %v6097
      %v6129 = vadd.f32 %v6128, %v6098
      %v6130 = vadd.f32 %v6129, %v6099
      %v6131 = vadd.f32 %v6130, %v6100
      %v6132 = vadd.f32 %v6131, %v6101
      %v6133 = vadd.f32 %v6132, %v6102
      %v6134 = vadd.f32 %v6133, %v6103
      %v6135 = vadd.f32 %v6134, %v6104
      %v6136 = vadd.f32 %v6135, %v6105
      %v6137 = vrot.slane %v6136, 4
      %v6138 = vadd.f32 %v6136, %v6137
      %v6139 = vrot.slane %v6138, 2
      %v6140 = vadd.f32 %v6138, %v6139
      %v6141 = vrot.slane %v6140, 1
      %v6142 = vadd.f32 %v6140, %v6141
      %6143 = vst [vmem:[%s262 + $0x1] sm:$0x1] %v6142
      %p6144 = scmp.lt.s32.totalorder %s18, 1
      %s6145 = scalar_select %p6144, %s18, 1
      %s6146 = smul.addr %s6145, 32
      %s6147 = smul.addr %s6146, 4
      %s6148 = scalar_lea.vmem %s5, %s6147
      %p6149 = scmp.lt.s32.totalorder %s18, 1
      %s6150 = scalar_select %p6149, %s18, 1
      %s6151 = smul.addr %s6150, 2
      %s6152 = scalar_lea.vmem %s6, %s6151
      // Predicated region
      $region41: #{conv_res_forward.4} parent=39 // pred_check
        %p6153 = pneg %p146
      $region42: #{conv_res_forward.4} parent=39 // pred_check_branch
        %6155 = sbr.rel (%p6153) target = $region44
      $region43: #{conv_res_forward.4} parent=39 // pred_region
        _
      $region44: #{conv_res_forward.4} parent=39 // pred_fallthru
        _
      // Predicated region
      $region45: #{conv_res_forward.4} parent=39 // pred_check
        %p6156 = pneg %p172
      $region46: #{conv_res_forward.4} parent=39 // pred_check_branch
        %6158 = sbr.rel (%p6156) target = $region48
      $region47: #{conv_res_forward.4} parent=39 // pred_region
        _
      $region48: #{conv_res_forward.4} parent=39 // pred_fallthru
        _
    $region40: #{conv_res_forward.4} parent=5 // pred_fallthru
      _
    %p6159 = scmp.le.s32.totalorder 2, %s13
    // Predicated region
    $region49: #{conv_res_forward.4} parent=5 // pred_check
      %p6160 = pneg %p6159
    $region50: #{conv_res_forward.4} parent=5 // pred_check_branch
      %6162 = sbr.rel (%p6160) target = $region52
    $region51: #{conv_res_forward.4} parent=5 // pred_region
      %s6163 = ssub.s32 %s13, 2
      // Predicated region
      $region53: #{conv_res_forward.4} parent=51 // pred_check
        %p6164 = pneg %p152
      $region54: #{conv_res_forward.4} parent=51 // pred_check_branch
        %6166 = sbr.rel (%p6164) target = $region56
      $region55: #{conv_res_forward.4} parent=51 // pred_region
        %p6167 = scmp.lt.s32.totalorder %s19, 1
        %s6168 = scalar_select %p6167, %s19, 1
        %s6169 = smul.addr %s6168, 32
        %s6170 = smul.addr %s6169, 4
        %s6171 = scalar_lea.vmem %s5, %s6170
      $region56: #{conv_res_forward.4} parent=51 // pred_fallthru
        _
      // Predicated region
      $region57: #{conv_res_forward.4} parent=51 // pred_check
        %p6172 = pneg %p178
      $region58: #{conv_res_forward.4} parent=51 // pred_check_branch
        %6174 = sbr.rel (%p6172) target = $region60
      $region59: #{conv_res_forward.4} parent=51 // pred_region
        %p6175 = scmp.lt.s32.totalorder %s19, 1
        %s6176 = scalar_select %p6175, %s19, 1
        %s6177 = smul.addr %s6176, 2
        %s6178 = scalar_lea.vmem %s6, %s6177
      $region60: #{conv_res_forward.4} parent=51 // pred_fallthru
        _
    $region52: #{conv_res_forward.4} parent=5 // pred_fallthru
      _
  $region6: #{conv_res_forward.4} parent=0 // loop_footer
    %s17 = sadd.s32 1, %s13
  $region7: #{conv_res_forward.4} parent=0 // loop_footer_branch
    %12 = sbr.rel target = $region3
  $region8: #{conv_res_forward.4} parent=0 // loop_exit
    _

</llo_original>
